<compile_context>
chip_gen: v7x
topology: tpu7x:2x2x1
jax: 0.10.0
libtpu: 0.0.40
codegen_flags: <defaults>
</compile_context>

<pallas_src>
import functools

import jax
import jax.numpy as jnp
import numpy as np
from jax.experimental import pallas as pl
from jax.experimental.pallas import tpu as pltpu


# --------------------------------------------------------------------------
# Pallas kernel: one image per grid step.
# --------------------------------------------------------------------------
def _rcab_kernel(alphas_ref,      # SMEM (2,) f32 : PReLU alphas [firstblock, cab]
                 x_ref,           # (HW, C) f32   : flat image (also the residual)
                 mask_ref,        # (M, 1)  f32   : 1.0 on real columns of the width-padded rows
                 w1_ref,          # (9C, C) bf16  : conv1 weights, tap-major rows
                 w2_ref,          # (9C, C) bf16  : conv2 weights
                 caw1_ref,        # (Cr, C) f32   : 1x1 squeeze weight
                 cab1_ref,        # (Cr, 1) f32
                 caw2_ref,        # (Cr, C) f32   : 1x1 excite weight (transposed)
                 cab2_ref,        # (1, C)  f32
                 out_ref,         # (HW, C) f32
                 xpad_ref,        # VMEM scratch (PR, C) bf16 : flat zero-padded input
                 y1pad_ref,       # VMEM scratch (PR, C) bf16 : flat zero-padded conv1 output
                 patches_ref,     # VMEM scratch (M, 9C) bf16 : im2col buffer (shared)
                 *, H, W, C, Wp, M, SHIM, OFF, PR):
    a1 = alphas_ref[0]
    a2 = alphas_ref[1]
    mask = mask_ref[...]                                        # (M, 1)

    # ---- build the zero-padded bf16 image in VMEM (no padded HBM copy) ------
    # Re-zeroed every step: with a "parallel" grid each core owns its scratch
    # and may start at program_id > 0, so no pid==0 gating.
    xpad_ref[...] = jnp.zeros_like(xpad_ref)
    for i in range(H):                                          # even, pair-aligned stores
        xpad_ref[pl.ds(OFF + i * Wp, W), :] = (
            x_ref[pl.ds(i * W, W), :].astype(jnp.bfloat16))

    # ---- conv3x3 #1: 9 contiguous tap slices -> ONE (M,9C)x(9C,C) MXU dot ---
    for t in range(9):
        ky, kx = t // 3, t % 3
        patches_ref[:, pl.ds(t * C, C)] = xpad_ref[pl.ds(SHIM + ky * Wp + kx, M), :]
    acc1 = jnp.dot(patches_ref[...], w1_ref[...],
                   preferred_element_type=jnp.float32)          # (M, C) f32
    y1 = jnp.where(acc1 > 0, acc1, a1 * acc1)                   # PReLU
    y1 = y1 * mask                                              # zero the wrap columns

    # ---- stash y1 into the padded conv-2 buffer ------------------------------
    # The masked wrap columns land exactly on the per-row border positions, so
    # only the head/tail slabs need explicit zeroing; the interior is one
    # contiguous, pair-aligned bf16 store.
    zeros_head = jnp.zeros((OFF, C), jnp.bfloat16)
    y1pad_ref[pl.ds(0, OFF), :] = zeros_head
    y1pad_ref[pl.ds(OFF + M, PR - OFF - M), :] = jnp.zeros((PR - OFF - M, C),
                                                           jnp.bfloat16)
    y1pad_ref[pl.ds(OFF, M), :] = y1.astype(jnp.bfloat16)

    # ---- conv3x3 #2 -----------------------------------------------------------
    for t in range(9):
        ky, kx = t // 3, t % 3
        patches_ref[:, pl.ds(t * C, C)] = y1pad_ref[pl.ds(SHIM + ky * Wp + kx, M), :]
    acc2 = jnp.dot(patches_ref[...], w2_ref[...],
                   preferred_element_type=jnp.float32)          # (M, C) f32
    acc2 = acc2 * mask                                          # zero wrap columns (for GAP)

    # ---- channel attention: GAP -> 1x1 -> PReLU -> 1x1 -> sigmoid ------------
    # Cr = C//16 is tiny, so keep it off the MXU (VPU broadcasts + XLU sums).
    pooled = jnp.sum(acc2, axis=0, keepdims=True) * (1.0 / (H * W))           # (1, C)
    z = jnp.sum(pooled * caw1_ref[...], axis=1, keepdims=True) + cab1_ref[...]  # (Cr, 1)
    z = jnp.where(z > 0, z, a2 * z)                                            # PReLU
    e = jnp.sum(z * caw2_ref[...], axis=0, keepdims=True) + cab2_ref[...]      # (1, C)
    att = jax.nn.sigmoid(e)                                                    # (1, C)

    scaled = acc2 * att                                                        # (M, C)

    # ---- drop wrap columns, add residual, store -------------------------------
    # Output-side stores are sublane-aligned (i*W multiple of 8); the only
    # remaining misalignment is the small value-slice at stride Wp.
    for i in range(H):
        row = scaled[i * Wp:i * Wp + W, :] + x_ref[pl.ds(i * W, W), :]
        out_ref[pl.ds(i * W, W), :] = row.astype(out_ref.dtype)


# --------------------------------------------------------------------------
# Wrapper
# --------------------------------------------------------------------------
def rcab_pallas(x, params):
    """RCAB forward.  x: (N, H, W, C) float32 (NHWC layout of the NCHW module)."""
    N, H, W, C = x.shape
    Cr = params["caw1"].shape[0]
    HW = H * W
    Wp = W + 2
    M = H * Wp                                   # conv rows incl. 2 wrap cols / image row
    SHIM = (Wp + 1) % 2                          # keeps interior bf16 stores pair-aligned
    OFF = Wp + 1 + SHIM                          # flat row of pixel (0,0) in the padded buffer
    PR = -(-(SHIM + (H + 2) * Wp + 2) // 8) * 8  # padded rows (+2 overread guard, 8-rounded)
    K9 = 9 * C

    x_flat = x.reshape(N, HW, C)                 # free HBM-side metadata reshape
    # validity mask of the width-padded row layout: row m is real iff m % Wp < W
    mask = ((jnp.arange(M) % Wp) < W).astype(jnp.float32).reshape(M, 1)

    kernel = functools.partial(_rcab_kernel, H=H, W=W, C=C, Wp=Wp, M=M,
                               SHIM=SHIM, OFF=OFF, PR=PR)

    # crude lane-padded VMEM budget, only used to raise the scoped limit
    def lanes(c):
        return -(-c // 128) * 128
    est = (2 * HW * lanes(C) * 4 * 2             # x in + out, double buffered
           + 2 * M * lanes(1) * 4                # mask
           + 2 * 2 * K9 * lanes(C) * 2           # w1, w2
           + 2 * PR * lanes(C) * 2               # xpad + y1pad scratch (bf16)
           + M * lanes(K9) * 2                   # im2col patches (bf16)
           + 8 * M * lanes(C) * 4)               # f32 intermediates headroom
    vmem_limit = int(min(max(2 * est, 32 << 20), 64 << 20))

    out_flat = pl.pallas_call(
        kernel,
        out_shape=jax.ShapeDtypeStruct((N, HW, C), x.dtype),
        grid_spec=pltpu.PrefetchScalarGridSpec(
            num_scalar_prefetch=0,
            grid=(N,),
            in_specs=[
                pl.BlockSpec(memory_space=pltpu.MemorySpace.SMEM),      # alphas
                pl.BlockSpec((None, HW, C), lambda n: (n, 0, 0)),       # x (flat, f32)
                pl.BlockSpec((M, 1), lambda n: (0, 0)),                 # row mask
                pl.BlockSpec((K9, C), lambda n: (0, 0)),                # w1 (bf16)
                pl.BlockSpec((K9, C), lambda n: (0, 0)),                # w2 (bf16)
                pl.BlockSpec((Cr, C), lambda n: (0, 0)),                # caw1
                pl.BlockSpec((Cr, 1), lambda n: (0, 0)),                # cab1
                pl.BlockSpec((Cr, C), lambda n: (0, 0)),                # caw2
                pl.BlockSpec((1, C), lambda n: (0, 0)),                 # cab2
            ],
            out_specs=pl.BlockSpec((None, HW, C), lambda n: (n, 0, 0)),
            scratch_shapes=[
                pltpu.VMEM((PR, C), jnp.bfloat16),   # flat padded input
                pltpu.VMEM((PR, C), jnp.bfloat16),   # flat padded conv1 output
                pltpu.VMEM((M, K9), jnp.bfloat16),   # im2col patches (shared by both convs)
            ],
        ),
        compiler_params=pltpu.CompilerParams(
            dimension_semantics=("parallel",),
            vmem_limit_bytes=vmem_limit),
    )(params["alphas"], x_flat, mask, params["w1"], params["w2"],
      params["caw1"], params["cab1"], params["caw2"], params["cab2"])

    return out_flat.reshape(N, H, W, C)


# --------------------------------------------------------------------------
# Pure-JAX reference (NHWC, f32) for validation
# --------------------------------------------------------------------------
def _conv3x3_ref(x, w_oihw):
    w_hwio = jnp.transpose(w_oihw, (2, 3, 1, 0))
    return jax.lax.conv_general_dilated(
        x, w_hwio, window_strides=(1, 1), padding="SAME",
        dimension_numbers=("NHWC", "HWIO", "NHWC"))


def _prelu(t, a):
    return jnp.where(t > 0, t, a * t)


def rcab_ref(x, raw):
    d = _conv3x3_ref(x, raw["w1_oihw"])
    d = _prelu(d, raw["a1"])
    d = _conv3x3_ref(d, raw["w2_oihw"])
    pooled = jnp.mean(d, axis=(1, 2), keepdims=True)                  # (N,1,1,C)
    z = jnp.einsum("nhwc,cr->nhwr", pooled, raw["caw1"]) + raw["cab1"]
    z = _prelu(z, raw["a2"])
    z = jnp.einsum("nhwr,rc->nhwc", z, raw["caw2"]) + raw["cab2"]
    att = jax.nn.sigmoid(z)
    return att * d + x


# --------------------------------------------------------------------------
# Parameter construction (deterministic, matches RCA_Block(features=C) shapes)
# --------------------------------------------------------------------------
def make_params(key, C):
    Cr = C // 16
    assert Cr >= 1, "features must be >= 16 for the squeeze conv"
    k1, k2, k3, k4, k5, k6 = jax.random.split(key, 6)

    w1_oihw = 0.1 * jax.random.normal(k1, (C, C, 3, 3), jnp.float32)     # conv3x3, bias=False
    w2_oihw = 0.1 * jax.random.normal(k2, (C, C, 3, 3), jnp.float32)     # conv3x3, bias=False
    caw1_oihw = 0.1 * jax.random.normal(k3, (Cr, C, 1, 1), jnp.float32)  # 1x1, bias=True
    cab1 = 0.1 * jax.random.normal(k4, (Cr,), jnp.float32)
    caw2_oihw = 0.1 * jax.random.normal(k5, (C, Cr, 1, 1), jnp.float32)  # 1x1, bias=True
    cab2 = 0.1 * jax.random.normal(k6, (C,), jnp.float32)
    a1 = jnp.float32(0.25)   # nn.PReLU() default init
    a2 = jnp.float32(0.25)

    # Kernel-friendly layouts: 3x3 weights flattened to (9*C_in, C_out) bf16,
    # tap-major rows (matching the im2col column order); the 1x1 squeeze /
    # excite weights are laid out (Cr, C) for the VPU formulation.
    def flat_taps(w_oihw):  # (O,I,3,3) -> (9*I, O)
        return (jnp.transpose(w_oihw, (2, 3, 1, 0))
                .reshape(9 * C, C).astype(jnp.bfloat16))

    params = {
        "alphas": jnp.stack([a1, a2]),
        "w1": flat_taps(w1_oihw),
        "w2": flat_taps(w2_oihw),
        "caw1": caw1_oihw[:, :, 0, 0],            # (Cr, C): [r, c] = W1x1[r, c]
        "cab1": cab1.reshape(Cr, 1),
        "caw2": caw2_oihw[:, :, 0, 0].T,          # (Cr, C): [r, c] = W1x1[c, r]
        "cab2": cab2.reshape(1, C),
    }
    raw = {
        "w1_oihw": w1_oihw, "w2_oihw": w2_oihw,
        "caw1": caw1_oihw[:, :, 0, 0].T, "cab1": cab1,
        "caw2": caw2_oihw[:, :, 0, 0].T, "cab2": cab2,
        "a1": a1, "a2": a2,
    }
    return params, raw


if __name__ == "__main__":
    N, C, H, W = 2, 32, 16, 16          # NCHW-equivalent (2, 32, 16, 16)
    key = jax.random.PRNGKey(0)
    kx, kp = jax.random.split(key)
    x = jax.random.normal(kx, (N, H, W, C), jnp.float32)   # NHWC
    params, raw = make_params(kp, C)

    out = jax.block_until_ready(rcab_pallas(x, params))
    ref = jax.block_until_ready(rcab_ref(x, raw))

    assert out.shape == (N, H, W, C)
    # Conv matmuls use bf16 operands with f32 accumulation on the MXU.
    np.testing.assert_allclose(np.asarray(out), np.asarray(ref), rtol=2e-2, atol=2e-2)
    print("KERNEL_OK")
</pallas_src>

<mosaic_0001>
module attributes {stable_mosaic.version = 11 : i64} {
  func.func @_rcab_kernel(%arg0: i32, %arg1: memref<2xf32, #tpu.memory_space<smem>>, %arg2: memref<1x256x32xf32, #tpu.memory_space<vmem>>, %arg3: memref<288x1xf32, #tpu.memory_space<vmem>>, %arg4: memref<288x32xbf16, #tpu.memory_space<vmem>>, %arg5: memref<288x32xbf16, #tpu.memory_space<vmem>>, %arg6: memref<2x32xf32, #tpu.memory_space<vmem>>, %arg7: memref<2x1xf32, #tpu.memory_space<vmem>>, %arg8: memref<2x32xf32, #tpu.memory_space<vmem>>, %arg9: memref<1x32xf32, #tpu.memory_space<vmem>>, %arg10: memref<1x256x32xf32, #tpu.memory_space<vmem>>, %arg11: memref<328x32xbf16, #tpu.memory_space<vmem>>, %arg12: memref<328x32xbf16, #tpu.memory_space<vmem>>, %arg13: memref<288x288xbf16, #tpu.memory_space<vmem>>) attributes {dimension_semantics = [#tpu.dimension_semantics<parallel>], iteration_bounds = array<i64: 2>, scalar_prefetch = 0 : i64, scratch_operands = 3 : i64, tpu.core_type = #tpu.core_type<tc>, window_params = [{transform_indices = @transform_0, window_bounds = array<i64: 2>}, {transform_indices = @transform_1, window_bounds = array<i64: 1, 256, 32>}, {pipeline_mode = #tpu.pipeline_mode<synchronous>, transform_indices = @transform_2, window_bounds = array<i64: 288, 1>}, {pipeline_mode = #tpu.pipeline_mode<synchronous>, transform_indices = @transform_3, window_bounds = array<i64: 288, 32>}, {pipeline_mode = #tpu.pipeline_mode<synchronous>, transform_indices = @transform_4, window_bounds = array<i64: 288, 32>}, {pipeline_mode = #tpu.pipeline_mode<synchronous>, transform_indices = @transform_5, window_bounds = array<i64: 2, 32>}, {pipeline_mode = #tpu.pipeline_mode<synchronous>, transform_indices = @transform_6, window_bounds = array<i64: 2, 1>}, {pipeline_mode = #tpu.pipeline_mode<synchronous>, transform_indices = @transform_7, window_bounds = array<i64: 2, 32>}, {pipeline_mode = #tpu.pipeline_mode<synchronous>, transform_indices = @transform_8, window_bounds = array<i64: 1, 32>}, {transform_indices = @transform_9, window_bounds = array<i64: 1, 256, 32>}]} {
    %c0 = arith.constant 0 : index
    %0 = memref.load %arg1[%c0] : memref<2xf32, #tpu.memory_space<smem>>
    %c1 = arith.constant 1 : index
    %1 = memref.load %arg1[%c1] : memref<2xf32, #tpu.memory_space<smem>>
    %c0_0 = arith.constant 0 : index
    %c0_1 = arith.constant 0 : index
    %2 = vector.load %arg3[%c0_0, %c0_1] : memref<288x1xf32, #tpu.memory_space<vmem>>, vector<288x1xf32>
    %cst = arith.constant 0.000000e+00 : bf16
    %3 = vector.broadcast %cst : bf16 to vector<328x32xbf16>
    %c0_2 = arith.constant 0 : index
    %c0_3 = arith.constant 0 : index
    %4 = vector.load %arg11[%c0_2, %c0_3] : memref<328x32xbf16, #tpu.memory_space<vmem>>, vector<328x32xbf16>
    tpu.vector_store %arg11[%c0_2, %c0_3], %3 {strides = array<i32>} : memref<328x32xbf16, #tpu.memory_space<vmem>>, vector<328x32xbf16>,
    %c0_4 = arith.constant 0 : index
    %c0_5 = arith.constant 0 : index
    %c0_6 = arith.constant 0 : index
    %5 = vector.load %arg2[%c0_4, %c0_5, %c0_6] : memref<1x256x32xf32, #tpu.memory_space<vmem>>, vector<1x16x32xf32>
    %6 = vector.shape_cast %5 : vector<1x16x32xf32> to vector<16x32xf32>
    %7 = arith.truncf %6 : vector<16x32xf32> to vector<16x32xbf16>
    %c20 = arith.constant 20 : index
    %c0_7 = arith.constant 0 : index
    %8 = vector.load %arg11[%c20, %c0_7] : memref<328x32xbf16, #tpu.memory_space<vmem>>, vector<16x32xbf16>
    tpu.vector_store %arg11[%c20, %c0_7], %7 {strides = array<i32>} : memref<328x32xbf16, #tpu.memory_space<vmem>>, vector<16x32xbf16>,
    %c0_8 = arith.constant 0 : index
    %c16 = arith.constant 16 : index
    %c0_9 = arith.constant 0 : index
    %9 = vector.load %arg2[%c0_8, %c16, %c0_9] : memref<1x256x32xf32, #tpu.memory_space<vmem>>, vector<1x16x32xf32>
    %10 = vector.shape_cast %9 : vector<1x16x32xf32> to vector<16x32xf32>
    %11 = arith.truncf %10 : vector<16x32xf32> to vector<16x32xbf16>
    %c38 = arith.constant 38 : index
    %c0_10 = arith.constant 0 : index
    %12 = vector.load %arg11[%c38, %c0_10] : memref<328x32xbf16, #tpu.memory_space<vmem>>, vector<16x32xbf16>
    tpu.vector_store %arg11[%c38, %c0_10], %11 {strides = array<i32>} : memref<328x32xbf16, #tpu.memory_space<vmem>>, vector<16x32xbf16>,
    %c0_11 = arith.constant 0 : index
    %c32 = arith.constant 32 : index
    %c0_12 = arith.constant 0 : index
    %13 = vector.load %arg2[%c0_11, %c32, %c0_12] : memref<1x256x32xf32, #tpu.memory_space<vmem>>, vector<1x16x32xf32>
    %14 = vector.shape_cast %13 : vector<1x16x32xf32> to vector<16x32xf32>
    %15 = arith.truncf %14 : vector<16x32xf32> to vector<16x32xbf16>
    %c56 = arith.constant 56 : index
    %c0_13 = arith.constant 0 : index
    %16 = vector.load %arg11[%c56, %c0_13] : memref<328x32xbf16, #tpu.memory_space<vmem>>, vector<16x32xbf16>
    tpu.vector_store %arg11[%c56, %c0_13], %15 {strides = array<i32>} : memref<328x32xbf16, #tpu.memory_space<vmem>>, vector<16x32xbf16>,
    %c0_14 = arith.constant 0 : index
    %c48 = arith.constant 48 : index
    %c0_15 = arith.constant 0 : index
    %17 = vector.load %arg2[%c0_14, %c48, %c0_15] : memref<1x256x32xf32, #tpu.memory_space<vmem>>, vector<1x16x32xf32>
    %18 = vector.shape_cast %17 : vector<1x16x32xf32> to vector<16x32xf32>
    %19 = arith.truncf %18 : vector<16x32xf32> to vector<16x32xbf16>
    %c74 = arith.constant 74 : index
    %c0_16 = arith.constant 0 : index
    %20 = vector.load %arg11[%c74, %c0_16] : memref<328x32xbf16, #tpu.memory_space<vmem>>, vector<16x32xbf16>
    tpu.vector_store %arg11[%c74, %c0_16], %19 {strides = array<i32>} : memref<328x32xbf16, #tpu.memory_space<vmem>>, vector<16x32xbf16>,
    %c0_17 = arith.constant 0 : index
    %c64 = arith.constant 64 : index
    %c0_18 = arith.constant 0 : index
    %21 = vector.load %arg2[%c0_17, %c64, %c0_18] : memref<1x256x32xf32, #tpu.memory_space<vmem>>, vector<1x16x32xf32>
    %22 = vector.shape_cast %21 : vector<1x16x32xf32> to vector<16x32xf32>
    %23 = arith.truncf %22 : vector<16x32xf32> to vector<16x32xbf16>
    %c92 = arith.constant 92 : index
    %c0_19 = arith.constant 0 : index
    %24 = vector.load %arg11[%c92, %c0_19] : memref<328x32xbf16, #tpu.memory_space<vmem>>, vector<16x32xbf16>
    tpu.vector_store %arg11[%c92, %c0_19], %23 {strides = array<i32>} : memref<328x32xbf16, #tpu.memory_space<vmem>>, vector<16x32xbf16>,
    %c0_20 = arith.constant 0 : index
    %c80 = arith.constant 80 : index
    %c0_21 = arith.constant 0 : index
    %25 = vector.load %arg2[%c0_20, %c80, %c0_21] : memref<1x256x32xf32, #tpu.memory_space<vmem>>, vector<1x16x32xf32>
    %26 = vector.shape_cast %25 : vector<1x16x32xf32> to vector<16x32xf32>
    %27 = arith.truncf %26 : vector<16x32xf32> to vector<16x32xbf16>
    %c110 = arith.constant 110 : index
    %c0_22 = arith.constant 0 : index
    %28 = vector.load %arg11[%c110, %c0_22] : memref<328x32xbf16, #tpu.memory_space<vmem>>, vector<16x32xbf16>
    tpu.vector_store %arg11[%c110, %c0_22], %27 {strides = array<i32>} : memref<328x32xbf16, #tpu.memory_space<vmem>>, vector<16x32xbf16>,
    %c0_23 = arith.constant 0 : index
    %c96 = arith.constant 96 : index
    %c0_24 = arith.constant 0 : index
    %29 = vector.load %arg2[%c0_23, %c96, %c0_24] : memref<1x256x32xf32, #tpu.memory_space<vmem>>, vector<1x16x32xf32>
    %30 = vector.shape_cast %29 : vector<1x16x32xf32> to vector<16x32xf32>
    %31 = arith.truncf %30 : vector<16x32xf32> to vector<16x32xbf16>
    %c128 = arith.constant 128 : index
    %c0_25 = arith.constant 0 : index
    %32 = vector.load %arg11[%c128, %c0_25] : memref<328x32xbf16, #tpu.memory_space<vmem>>, vector<16x32xbf16>
    tpu.vector_store %arg11[%c128, %c0_25], %31 {strides = array<i32>} : memref<328x32xbf16, #tpu.memory_space<vmem>>, vector<16x32xbf16>,
    %c0_26 = arith.constant 0 : index
    %c112 = arith.constant 112 : index
    %c0_27 = arith.constant 0 : index
    %33 = vector.load %arg2[%c0_26, %c112, %c0_27] : memref<1x256x32xf32, #tpu.memory_space<vmem>>, vector<1x16x32xf32>
    %34 = vector.shape_cast %33 : vector<1x16x32xf32> to vector<16x32xf32>
    %35 = arith.truncf %34 : vector<16x32xf32> to vector<16x32xbf16>
    %c146 = arith.constant 146 : index
    %c0_28 = arith.constant 0 : index
    %36 = vector.load %arg11[%c146, %c0_28] : memref<328x32xbf16, #tpu.memory_space<vmem>>, vector<16x32xbf16>
    tpu.vector_store %arg11[%c146, %c0_28], %35 {strides = array<i32>} : memref<328x32xbf16, #tpu.memory_space<vmem>>, vector<16x32xbf16>,
    %c0_29 = arith.constant 0 : index
    %c128_30 = arith.constant 128 : index
    %c0_31 = arith.constant 0 : index
    %37 = vector.load %arg2[%c0_29, %c128_30, %c0_31] : memref<1x256x32xf32, #tpu.memory_space<vmem>>, vector<1x16x32xf32>
    %38 = vector.shape_cast %37 : vector<1x16x32xf32> to vector<16x32xf32>
    %39 = arith.truncf %38 : vector<16x32xf32> to vector<16x32xbf16>
    %c164 = arith.constant 164 : index
    %c0_32 = arith.constant 0 : index
    %40 = vector.load %arg11[%c164, %c0_32] : memref<328x32xbf16, #tpu.memory_space<vmem>>, vector<16x32xbf16>
    tpu.vector_store %arg11[%c164, %c0_32], %39 {strides = array<i32>} : memref<328x32xbf16, #tpu.memory_space<vmem>>, vector<16x32xbf16>,
    %c0_33 = arith.constant 0 : index
    %c144 = arith.constant 144 : index
    %c0_34 = arith.constant 0 : index
    %41 = vector.load %arg2[%c0_33, %c144, %c0_34] : memref<1x256x32xf32, #tpu.memory_space<vmem>>, vector<1x16x32xf32>
    %42 = vector.shape_cast %41 : vector<1x16x32xf32> to vector<16x32xf32>
    %43 = arith.truncf %42 : vector<16x32xf32> to vector<16x32xbf16>
    %c182 = arith.constant 182 : index
    %c0_35 = arith.constant 0 : index
    %44 = vector.load %arg11[%c182, %c0_35] : memref<328x32xbf16, #tpu.memory_space<vmem>>, vector<16x32xbf16>
    tpu.vector_store %arg11[%c182, %c0_35], %43 {strides = array<i32>} : memref<328x32xbf16, #tpu.memory_space<vmem>>, vector<16x32xbf16>,
    %c0_36 = arith.constant 0 : index
    %c160 = arith.constant 160 : index
    %c0_37 = arith.constant 0 : index
    %45 = vector.load %arg2[%c0_36, %c160, %c0_37] : memref<1x256x32xf32, #tpu.memory_space<vmem>>, vector<1x16x32xf32>
    %46 = vector.shape_cast %45 : vector<1x16x32xf32> to vector<16x32xf32>
    %47 = arith.truncf %46 : vector<16x32xf32> to vector<16x32xbf16>
    %c200 = arith.constant 200 : index
    %c0_38 = arith.constant 0 : index
    %48 = vector.load %arg11[%c200, %c0_38] : memref<328x32xbf16, #tpu.memory_space<vmem>>, vector<16x32xbf16>
    tpu.vector_store %arg11[%c200, %c0_38], %47 {strides = array<i32>} : memref<328x32xbf16, #tpu.memory_space<vmem>>, vector<16x32xbf16>,
    %c0_39 = arith.constant 0 : index
    %c176 = arith.constant 176 : index
    %c0_40 = arith.constant 0 : index
    %49 = vector.load %arg2[%c0_39, %c176, %c0_40] : memref<1x256x32xf32, #tpu.memory_space<vmem>>, vector<1x16x32xf32>
    %50 = vector.shape_cast %49 : vector<1x16x32xf32> to vector<16x32xf32>
    %51 = arith.truncf %50 : vector<16x32xf32> to vector<16x32xbf16>
    %c218 = arith.constant 218 : index
    %c0_41 = arith.constant 0 : index
    %52 = vector.load %arg11[%c218, %c0_41] : memref<328x32xbf16, #tpu.memory_space<vmem>>, vector<16x32xbf16>
    tpu.vector_store %arg11[%c218, %c0_41], %51 {strides = array<i32>} : memref<328x32xbf16, #tpu.memory_space<vmem>>, vector<16x32xbf16>,
    %c0_42 = arith.constant 0 : index
    %c192 = arith.constant 192 : index
    %c0_43 = arith.constant 0 : index
    %53 = vector.load %arg2[%c0_42, %c192, %c0_43] : memref<1x256x32xf32, #tpu.memory_space<vmem>>, vector<1x16x32xf32>
    %54 = vector.shape_cast %53 : vector<1x16x32xf32> to vector<16x32xf32>
    %55 = arith.truncf %54 : vector<16x32xf32> to vector<16x32xbf16>
    %c236 = arith.constant 236 : index
    %c0_44 = arith.constant 0 : index
    %56 = vector.load %arg11[%c236, %c0_44] : memref<328x32xbf16, #tpu.memory_space<vmem>>, vector<16x32xbf16>
    tpu.vector_store %arg11[%c236, %c0_44], %55 {strides = array<i32>} : memref<328x32xbf16, #tpu.memory_space<vmem>>, vector<16x32xbf16>,
    %c0_45 = arith.constant 0 : index
    %c208 = arith.constant 208 : index
    %c0_46 = arith.constant 0 : index
    %57 = vector.load %arg2[%c0_45, %c208, %c0_46] : memref<1x256x32xf32, #tpu.memory_space<vmem>>, vector<1x16x32xf32>
    %58 = vector.shape_cast %57 : vector<1x16x32xf32> to vector<16x32xf32>
    %59 = arith.truncf %58 : vector<16x32xf32> to vector<16x32xbf16>
    %c254 = arith.constant 254 : index
    %c0_47 = arith.constant 0 : index
    %60 = vector.load %arg11[%c254, %c0_47] : memref<328x32xbf16, #tpu.memory_space<vmem>>, vector<16x32xbf16>
    tpu.vector_store %arg11[%c254, %c0_47], %59 {strides = array<i32>} : memref<328x32xbf16, #tpu.memory_space<vmem>>, vector<16x32xbf16>,
    %c0_48 = arith.constant 0 : index
    %c224 = arith.constant 224 : index
    %c0_49 = arith.constant 0 : index
    %61 = vector.load %arg2[%c0_48, %c224, %c0_49] : memref<1x256x32xf32, #tpu.memory_space<vmem>>, vector<1x16x32xf32>
    %62 = vector.shape_cast %61 : vector<1x16x32xf32> to vector<16x32xf32>
    %63 = arith.truncf %62 : vector<16x32xf32> to vector<16x32xbf16>
    %c272 = arith.constant 272 : index
    %c0_50 = arith.constant 0 : index
    %64 = vector.load %arg11[%c272, %c0_50] : memref<328x32xbf16, #tpu.memory_space<vmem>>, vector<16x32xbf16>
    tpu.vector_store %arg11[%c272, %c0_50], %63 {strides = array<i32>} : memref<328x32xbf16, #tpu.memory_space<vmem>>, vector<16x32xbf16>,
    %c0_51 = arith.constant 0 : index
    %c240 = arith.constant 240 : index
    %c0_52 = arith.constant 0 : index
    %65 = vector.load %arg2[%c0_51, %c240, %c0_52] : memref<1x256x32xf32, #tpu.memory_space<vmem>>, vector<1x16x32xf32>
    %66 = vector.shape_cast %65 : vector<1x16x32xf32> to vector<16x32xf32>
    %67 = arith.truncf %66 : vector<16x32xf32> to vector<16x32xbf16>
    %c290 = arith.constant 290 : index
    %c0_53 = arith.constant 0 : index
    %68 = vector.load %arg11[%c290, %c0_53] : memref<328x32xbf16, #tpu.memory_space<vmem>>, vector<16x32xbf16>
    tpu.vector_store %arg11[%c290, %c0_53], %67 {strides = array<i32>} : memref<328x32xbf16, #tpu.memory_space<vmem>>, vector<16x32xbf16>,
    %c1_54 = arith.constant 1 : index
    %c0_55 = arith.constant 0 : index
    %69 = vector.load %arg11[%c1_54, %c0_55] : memref<328x32xbf16, #tpu.memory_space<vmem>>, vector<288x32xbf16>
    %c0_56 = arith.constant 0 : index
    %c0_57 = arith.constant 0 : index
    %70 = vector.load %arg13[%c0_56, %c0_57] : memref<288x288xbf16, #tpu.memory_space<vmem>>, vector<288x32xbf16>
    tpu.vector_store %arg13[%c0_56, %c0_57], %69 {strides = array<i32>} : memref<288x288xbf16, #tpu.memory_space<vmem>>, vector<288x32xbf16>,
    %c2 = arith.constant 2 : index
    %c0_58 = arith.constant 0 : index
    %71 = vector.load %arg11[%c2, %c0_58] : memref<328x32xbf16, #tpu.memory_space<vmem>>, vector<288x32xbf16>
    %c0_59 = arith.constant 0 : index
    %c32_60 = arith.constant 32 : index
    %72 = vector.load %arg13[%c0_59, %c32_60] : memref<288x288xbf16, #tpu.memory_space<vmem>>, vector<288x32xbf16>
    tpu.vector_store %arg13[%c0_59, %c32_60], %71 {strides = array<i32>} : memref<288x288xbf16, #tpu.memory_space<vmem>>, vector<288x32xbf16>,
    %c3 = arith.constant 3 : index
    %c0_61 = arith.constant 0 : index
    %73 = vector.load %arg11[%c3, %c0_61] : memref<328x32xbf16, #tpu.memory_space<vmem>>, vector<288x32xbf16>
    %c0_62 = arith.constant 0 : index
    %c64_63 = arith.constant 64 : index
    %74 = vector.load %arg13[%c0_62, %c64_63] : memref<288x288xbf16, #tpu.memory_space<vmem>>, vector<288x32xbf16>
    tpu.vector_store %arg13[%c0_62, %c64_63], %73 {strides = array<i32>} : memref<288x288xbf16, #tpu.memory_space<vmem>>, vector<288x32xbf16>,
    %c19 = arith.constant 19 : index
    %c0_64 = arith.constant 0 : index
    %75 = vector.load %arg11[%c19, %c0_64] : memref<328x32xbf16, #tpu.memory_space<vmem>>, vector<288x32xbf16>
    %c0_65 = arith.constant 0 : index
    %c96_66 = arith.constant 96 : index
    %76 = vector.load %arg13[%c0_65, %c96_66] : memref<288x288xbf16, #tpu.memory_space<vmem>>, vector<288x32xbf16>
    tpu.vector_store %arg13[%c0_65, %c96_66], %75 {strides = array<i32>} : memref<288x288xbf16, #tpu.memory_space<vmem>>, vector<288x32xbf16>,
    %c20_67 = arith.constant 20 : index
    %c0_68 = arith.constant 0 : index
    %77 = vector.load %arg11[%c20_67, %c0_68] : memref<328x32xbf16, #tpu.memory_space<vmem>>, vector<288x32xbf16>
    %c0_69 = arith.constant 0 : index
    %c128_70 = arith.constant 128 : index
    %78 = vector.load %arg13[%c0_69, %c128_70] : memref<288x288xbf16, #tpu.memory_space<vmem>>, vector<288x32xbf16>
    tpu.vector_store %arg13[%c0_69, %c128_70], %77 {strides = array<i32>} : memref<288x288xbf16, #tpu.memory_space<vmem>>, vector<288x32xbf16>,
    %c21 = arith.constant 21 : index
    %c0_71 = arith.constant 0 : index
    %79 = vector.load %arg11[%c21, %c0_71] : memref<328x32xbf16, #tpu.memory_space<vmem>>, vector<288x32xbf16>
    %c0_72 = arith.constant 0 : index
    %c160_73 = arith.constant 160 : index
    %80 = vector.load %arg13[%c0_72, %c160_73] : memref<288x288xbf16, #tpu.memory_space<vmem>>, vector<288x32xbf16>
    tpu.vector_store %arg13[%c0_72, %c160_73], %79 {strides = array<i32>} : memref<288x288xbf16, #tpu.memory_space<vmem>>, vector<288x32xbf16>,
    %c37 = arith.constant 37 : index
    %c0_74 = arith.constant 0 : index
    %81 = vector.load %arg11[%c37, %c0_74] : memref<328x32xbf16, #tpu.memory_space<vmem>>, vector<288x32xbf16>
    %c0_75 = arith.constant 0 : index
    %c192_76 = arith.constant 192 : index
    %82 = vector.load %arg13[%c0_75, %c192_76] : memref<288x288xbf16, #tpu.memory_space<vmem>>, vector<288x32xbf16>
    tpu.vector_store %arg13[%c0_75, %c192_76], %81 {strides = array<i32>} : memref<288x288xbf16, #tpu.memory_space<vmem>>, vector<288x32xbf16>,
    %c38_77 = arith.constant 38 : index
    %c0_78 = arith.constant 0 : index
    %83 = vector.load %arg11[%c38_77, %c0_78] : memref<328x32xbf16, #tpu.memory_space<vmem>>, vector<288x32xbf16>
    %c0_79 = arith.constant 0 : index
    %c224_80 = arith.constant 224 : index
    %84 = vector.load %arg13[%c0_79, %c224_80] : memref<288x288xbf16, #tpu.memory_space<vmem>>, vector<288x32xbf16>
    tpu.vector_store %arg13[%c0_79, %c224_80], %83 {strides = array<i32>} : memref<288x288xbf16, #tpu.memory_space<vmem>>, vector<288x32xbf16>,
    %c39 = arith.constant 39 : index
    %c0_81 = arith.constant 0 : index
    %85 = vector.load %arg11[%c39, %c0_81] : memref<328x32xbf16, #tpu.memory_space<vmem>>, vector<288x32xbf16>
    %c0_82 = arith.constant 0 : index
    %c256 = arith.constant 256 : index
    %86 = vector.load %arg13[%c0_82, %c256] : memref<288x288xbf16, #tpu.memory_space<vmem>>, vector<288x32xbf16>
    tpu.vector_store %arg13[%c0_82, %c256], %85 {strides = array<i32>} : memref<288x288xbf16, #tpu.memory_space<vmem>>, vector<288x32xbf16>,
    %c0_83 = arith.constant 0 : index
    %c0_84 = arith.constant 0 : index
    %87 = vector.load %arg13[%c0_83, %c0_84] : memref<288x288xbf16, #tpu.memory_space<vmem>>, vector<288x288xbf16>
    %c0_85 = arith.constant 0 : index
    %c0_86 = arith.constant 0 : index
    %88 = vector.load %arg4[%c0_85, %c0_86] : memref<288x32xbf16, #tpu.memory_space<vmem>>, vector<288x32xbf16>
    %cst_87 = arith.constant dense<0.000000e+00> : vector<288x32xf32>
    %89 = tpu.matmul %87, %88, %cst_87 {dimension_numbers = #tpu.dot_dimension_numbers<[1], [0], [0], [1], [0, 0, 1, 1], [], []>} : vector<288x288xbf16>, vector<288x32xbf16>, vector<288x32xf32> -> vector<288x32xf32>
    %cst_88 = arith.constant 0.000000e+00 : f32
    %90 = vector.broadcast %cst_88 : f32 to vector<288x32xf32>
    %91 = arith.cmpf ogt, %89, %90 : vector<288x32xf32>
    %92 = vector.broadcast %0 : f32 to vector<288x32xf32>
    %93 = arith.mulf %92, %89 : vector<288x32xf32>
    %94 = arith.select %91, %89, %93 : vector<288x32xi1>, vector<288x32xf32>
    %95 = vector.broadcast %2 : vector<288x1xf32> to vector<288x32xf32>
    %96 = arith.mulf %94, %95 : vector<288x32xf32>
    %cst_89 = arith.constant 0.000000e+00 : bf16
    %97 = vector.broadcast %cst_89 : bf16 to vector<20x32xbf16>
    %c0_90 = arith.constant 0 : index
    %c0_91 = arith.constant 0 : index
    %98 = vector.load %arg12[%c0_90, %c0_91] : memref<328x32xbf16, #tpu.memory_space<vmem>>, vector<20x32xbf16>
    tpu.vector_store %arg12[%c0_90, %c0_91], %97 {strides = array<i32>} : memref<328x32xbf16, #tpu.memory_space<vmem>>, vector<20x32xbf16>,
    %cst_92 = arith.constant 0.000000e+00 : bf16
    %99 = vector.broadcast %cst_92 : bf16 to vector<20x32xbf16>
    %c308 = arith.constant 308 : index
    %c0_93 = arith.constant 0 : index
    %100 = vector.load %arg12[%c308, %c0_93] : memref<328x32xbf16, #tpu.memory_space<vmem>>, vector<20x32xbf16>
    tpu.vector_store %arg12[%c308, %c0_93], %99 {strides = array<i32>} : memref<328x32xbf16, #tpu.memory_space<vmem>>, vector<20x32xbf16>,
    %101 = arith.truncf %96 : vector<288x32xf32> to vector<288x32xbf16>
    %c20_94 = arith.constant 20 : index
    %c0_95 = arith.constant 0 : index
    %102 = vector.load %arg12[%c20_94, %c0_95] : memref<328x32xbf16, #tpu.memory_space<vmem>>, vector<288x32xbf16>
    tpu.vector_store %arg12[%c20_94, %c0_95], %101 {strides = array<i32>} : memref<328x32xbf16, #tpu.memory_space<vmem>>, vector<288x32xbf16>,
    %c1_96 = arith.constant 1 : index
    %c0_97 = arith.constant 0 : index
    %103 = vector.load %arg12[%c1_96, %c0_97] : memref<328x32xbf16, #tpu.memory_space<vmem>>, vector<288x32xbf16>
    %c0_98 = arith.constant 0 : index
    %c0_99 = arith.constant 0 : index
    %104 = vector.load %arg13[%c0_98, %c0_99] : memref<288x288xbf16, #tpu.memory_space<vmem>>, vector<288x32xbf16>
    tpu.vector_store %arg13[%c0_98, %c0_99], %103 {strides = array<i32>} : memref<288x288xbf16, #tpu.memory_space<vmem>>, vector<288x32xbf16>,
    %c2_100 = arith.constant 2 : index
    %c0_101 = arith.constant 0 : index
    %105 = vector.load %arg12[%c2_100, %c0_101] : memref<328x32xbf16, #tpu.memory_space<vmem>>, vector<288x32xbf16>
    %c0_102 = arith.constant 0 : index
    %c32_103 = arith.constant 32 : index
    %106 = vector.load %arg13[%c0_102, %c32_103] : memref<288x288xbf16, #tpu.memory_space<vmem>>, vector<288x32xbf16>
    tpu.vector_store %arg13[%c0_102, %c32_103], %105 {strides = array<i32>} : memref<288x288xbf16, #tpu.memory_space<vmem>>, vector<288x32xbf16>,
    %c3_104 = arith.constant 3 : index
    %c0_105 = arith.constant 0 : index
    %107 = vector.load %arg12[%c3_104, %c0_105] : memref<328x32xbf16, #tpu.memory_space<vmem>>, vector<288x32xbf16>
    %c0_106 = arith.constant 0 : index
    %c64_107 = arith.constant 64 : index
    %108 = vector.load %arg13[%c0_106, %c64_107] : memref<288x288xbf16, #tpu.memory_space<vmem>>, vector<288x32xbf16>
    tpu.vector_store %arg13[%c0_106, %c64_107], %107 {strides = array<i32>} : memref<288x288xbf16, #tpu.memory_space<vmem>>, vector<288x32xbf16>,
    %c19_108 = arith.constant 19 : index
    %c0_109 = arith.constant 0 : index
    %109 = vector.load %arg12[%c19_108, %c0_109] : memref<328x32xbf16, #tpu.memory_space<vmem>>, vector<288x32xbf16>
    %c0_110 = arith.constant 0 : index
    %c96_111 = arith.constant 96 : index
    %110 = vector.load %arg13[%c0_110, %c96_111] : memref<288x288xbf16, #tpu.memory_space<vmem>>, vector<288x32xbf16>
    tpu.vector_store %arg13[%c0_110, %c96_111], %109 {strides = array<i32>} : memref<288x288xbf16, #tpu.memory_space<vmem>>, vector<288x32xbf16>,
    %c20_112 = arith.constant 20 : index
    %c0_113 = arith.constant 0 : index
    %111 = vector.load %arg12[%c20_112, %c0_113] : memref<328x32xbf16, #tpu.memory_space<vmem>>, vector<288x32xbf16>
    %c0_114 = arith.constant 0 : index
    %c128_115 = arith.constant 128 : index
    %112 = vector.load %arg13[%c0_114, %c128_115] : memref<288x288xbf16, #tpu.memory_space<vmem>>, vector<288x32xbf16>
    tpu.vector_store %arg13[%c0_114, %c128_115], %111 {strides = array<i32>} : memref<288x288xbf16, #tpu.memory_space<vmem>>, vector<288x32xbf16>,
    %c21_116 = arith.constant 21 : index
    %c0_117 = arith.constant 0 : index
    %113 = vector.load %arg12[%c21_116, %c0_117] : memref<328x32xbf16, #tpu.memory_space<vmem>>, vector<288x32xbf16>
    %c0_118 = arith.constant 0 : index
    %c160_119 = arith.constant 160 : index
    %114 = vector.load %arg13[%c0_118, %c160_119] : memref<288x288xbf16, #tpu.memory_space<vmem>>, vector<288x32xbf16>
    tpu.vector_store %arg13[%c0_118, %c160_119], %113 {strides = array<i32>} : memref<288x288xbf16, #tpu.memory_space<vmem>>, vector<288x32xbf16>,
    %c37_120 = arith.constant 37 : index
    %c0_121 = arith.constant 0 : index
    %115 = vector.load %arg12[%c37_120, %c0_121] : memref<328x32xbf16, #tpu.memory_space<vmem>>, vector<288x32xbf16>
    %c0_122 = arith.constant 0 : index
    %c192_123 = arith.constant 192 : index
    %116 = vector.load %arg13[%c0_122, %c192_123] : memref<288x288xbf16, #tpu.memory_space<vmem>>, vector<288x32xbf16>
    tpu.vector_store %arg13[%c0_122, %c192_123], %115 {strides = array<i32>} : memref<288x288xbf16, #tpu.memory_space<vmem>>, vector<288x32xbf16>,
    %c38_124 = arith.constant 38 : index
    %c0_125 = arith.constant 0 : index
    %117 = vector.load %arg12[%c38_124, %c0_125] : memref<328x32xbf16, #tpu.memory_space<vmem>>, vector<288x32xbf16>
    %c0_126 = arith.constant 0 : index
    %c224_127 = arith.constant 224 : index
    %118 = vector.load %arg13[%c0_126, %c224_127] : memref<288x288xbf16, #tpu.memory_space<vmem>>, vector<288x32xbf16>
    tpu.vector_store %arg13[%c0_126, %c224_127], %117 {strides = array<i32>} : memref<288x288xbf16, #tpu.memory_space<vmem>>, vector<288x32xbf16>,
    %c39_128 = arith.constant 39 : index
    %c0_129 = arith.constant 0 : index
    %119 = vector.load %arg12[%c39_128, %c0_129] : memref<328x32xbf16, #tpu.memory_space<vmem>>, vector<288x32xbf16>
    %c0_130 = arith.constant 0 : index
    %c256_131 = arith.constant 256 : index
    %120 = vector.load %arg13[%c0_130, %c256_131] : memref<288x288xbf16, #tpu.memory_space<vmem>>, vector<288x32xbf16>
    tpu.vector_store %arg13[%c0_130, %c256_131], %119 {strides = array<i32>} : memref<288x288xbf16, #tpu.memory_space<vmem>>, vector<288x32xbf16>,
    %c0_132 = arith.constant 0 : index
    %c0_133 = arith.constant 0 : index
    %121 = vector.load %arg13[%c0_132, %c0_133] : memref<288x288xbf16, #tpu.memory_space<vmem>>, vector<288x288xbf16>
    %c0_134 = arith.constant 0 : index
    %c0_135 = arith.constant 0 : index
    %122 = vector.load %arg5[%c0_134, %c0_135] : memref<288x32xbf16, #tpu.memory_space<vmem>>, vector<288x32xbf16>
    %cst_136 = arith.constant dense<0.000000e+00> : vector<288x32xf32>
    %123 = tpu.matmul %121, %122, %cst_136 {dimension_numbers = #tpu.dot_dimension_numbers<[1], [0], [0], [1], [0, 0, 1, 1], [], []>} : vector<288x288xbf16>, vector<288x32xbf16>, vector<288x32xf32> -> vector<288x32xf32>
    %124 = vector.broadcast %2 : vector<288x1xf32> to vector<288x32xf32>
    %125 = arith.mulf %123, %124 : vector<288x32xf32>
    %cst_137 = arith.constant dense<0.000000e+00> : vector<32xf32>
    %126 = vector.multi_reduction <add>, %125, %cst_137 [0] : vector<288x32xf32> to vector<32xf32>
    %127 = vector.shape_cast %126 : vector<32xf32> to vector<1x32xf32>
    %cst_138 = arith.constant 3.906250e-03 : f32
    %128 = vector.broadcast %cst_138 : f32 to vector<1x32xf32>
    %129 = arith.mulf %127, %128 : vector<1x32xf32>
    %c0_139 = arith.constant 0 : index
    %c0_140 = arith.constant 0 : index
    %130 = vector.load %arg6[%c0_139, %c0_140] : memref<2x32xf32, #tpu.memory_space<vmem>>, vector<2x32xf32>
    %131 = vector.broadcast %129 : vector<1x32xf32> to vector<2x32xf32>
    %132 = arith.mulf %131, %130 : vector<2x32xf32>
    %cst_141 = arith.constant dense<0.000000e+00> : vector<2xf32>
    %133 = vector.multi_reduction <add>, %132, %cst_141 [1] : vector<2x32xf32> to vector<2xf32>
    %134 = vector.shape_cast %133 : vector<2xf32> to vector<2x1xf32>
    %c0_142 = arith.constant 0 : index
    %c0_143 = arith.constant 0 : index
    %135 = vector.load %arg7[%c0_142, %c0_143] : memref<2x1xf32, #tpu.memory_space<vmem>>, vector<2x1xf32>
    %136 = arith.addf %134, %135 : vector<2x1xf32>
    %cst_144 = arith.constant 0.000000e+00 : f32
    %137 = vector.broadcast %cst_144 : f32 to vector<2x1xf32>
    %138 = arith.cmpf ogt, %136, %137 : vector<2x1xf32>
    %139 = vector.broadcast %1 : f32 to vector<2x1xf32>
    %140 = arith.mulf %139, %136 : vector<2x1xf32>
    %141 = arith.select %138, %136, %140 : vector<2x1xi1>, vector<2x1xf32>
    %c0_145 = arith.constant 0 : index
    %c0_146 = arith.constant 0 : index
    %142 = vector.load %arg8[%c0_145, %c0_146] : memref<2x32xf32, #tpu.memory_space<vmem>>, vector<2x32xf32>
    %143 = vector.broadcast %141 : vector<2x1xf32> to vector<2x32xf32>
    %144 = arith.mulf %143, %142 : vector<2x32xf32>
    %cst_147 = arith.constant dense<0.000000e+00> : vector<32xf32>
    %145 = vector.multi_reduction <add>, %144, %cst_147 [0] : vector<2x32xf32> to vector<32xf32>
    %146 = vector.shape_cast %145 : vector<32xf32> to vector<1x32xf32>
    %c0_148 = arith.constant 0 : index
    %c0_149 = arith.constant 0 : index
    %147 = vector.load %arg9[%c0_148, %c0_149] : memref<1x32xf32, #tpu.memory_space<vmem>>, vector<1x32xf32>
    %148 = arith.addf %146, %147 : vector<1x32xf32>
    %149 = arith.negf %148 : vector<1x32xf32>
    %150 = math.exp %149 : vector<1x32xf32>
    %cst_150 = arith.constant 1.000000e+00 : f32
    %151 = vector.broadcast %cst_150 : f32 to vector<1x32xf32>
    %152 = arith.addf %151, %150 : vector<1x32xf32>
    %153 = arith.divf %151, %152 : vector<1x32xf32>
    %154 = vector.broadcast %153 : vector<1x32xf32> to vector<288x32xf32>
    %155 = arith.mulf %125, %154 : vector<288x32xf32>
    %156 = vector.extract_strided_slice %155 {offsets = [0, 0], sizes = [16, 32], strides = [1, 1]} : vector<288x32xf32> to vector<16x32xf32>
    %c0_151 = arith.constant 0 : index
    %c0_152 = arith.constant 0 : index
    %c0_153 = arith.constant 0 : index
    %157 = vector.load %arg2[%c0_151, %c0_152, %c0_153] : memref<1x256x32xf32, #tpu.memory_space<vmem>>, vector<1x16x32xf32>
    %158 = vector.shape_cast %157 : vector<1x16x32xf32> to vector<16x32xf32>
    %159 = arith.addf %156, %158 : vector<16x32xf32>
    %c0_154 = arith.constant 0 : index
    %c0_155 = arith.constant 0 : index
    %c0_156 = arith.constant 0 : index
    %160 = vector.load %arg10[%c0_154, %c0_155, %c0_156] : memref<1x256x32xf32, #tpu.memory_space<vmem>>, vector<1x16x32xf32>
    %161 = vector.shape_cast %160 : vector<1x16x32xf32> to vector<16x32xf32>
    %162 = vector.shape_cast %159 : vector<16x32xf32> to vector<1x16x32xf32>
    tpu.vector_store %arg10[%c0_154, %c0_155, %c0_156], %162 {strides = array<i32>} : memref<1x256x32xf32, #tpu.memory_space<vmem>>, vector<1x16x32xf32>,
    %163 = vector.extract_strided_slice %155 {offsets = [18, 0], sizes = [16, 32], strides = [1, 1]} : vector<288x32xf32> to vector<16x32xf32>
    %c0_157 = arith.constant 0 : index
    %c16_158 = arith.constant 16 : index
    %c0_159 = arith.constant 0 : index
    %164 = vector.load %arg2[%c0_157, %c16_158, %c0_159] : memref<1x256x32xf32, #tpu.memory_space<vmem>>, vector<1x16x32xf32>
    %165 = vector.shape_cast %164 : vector<1x16x32xf32> to vector<16x32xf32>
    %166 = arith.addf %163, %165 : vector<16x32xf32>
    %c0_160 = arith.constant 0 : index
    %c16_161 = arith.constant 16 : index
    %c0_162 = arith.constant 0 : index
    %167 = vector.load %arg10[%c0_160, %c16_161, %c0_162] : memref<1x256x32xf32, #tpu.memory_space<vmem>>, vector<1x16x32xf32>
    %168 = vector.shape_cast %167 : vector<1x16x32xf32> to vector<16x32xf32>
    %169 = vector.shape_cast %166 : vector<16x32xf32> to vector<1x16x32xf32>
    tpu.vector_store %arg10[%c0_160, %c16_161, %c0_162], %169 {strides = array<i32>} : memref<1x256x32xf32, #tpu.memory_space<vmem>>, vector<1x16x32xf32>,
    %170 = vector.extract_strided_slice %155 {offsets = [36, 0], sizes = [16, 32], strides = [1, 1]} : vector<288x32xf32> to vector<16x32xf32>
    %c0_163 = arith.constant 0 : index
    %c32_164 = arith.constant 32 : index
    %c0_165 = arith.constant 0 : index
    %171 = vector.load %arg2[%c0_163, %c32_164, %c0_165] : memref<1x256x32xf32, #tpu.memory_space<vmem>>, vector<1x16x32xf32>
    %172 = vector.shape_cast %171 : vector<1x16x32xf32> to vector<16x32xf32>
    %173 = arith.addf %170, %172 : vector<16x32xf32>
    %c0_166 = arith.constant 0 : index
    %c32_167 = arith.constant 32 : index
    %c0_168 = arith.constant 0 : index
    %174 = vector.load %arg10[%c0_166, %c32_167, %c0_168] : memref<1x256x32xf32, #tpu.memory_space<vmem>>, vector<1x16x32xf32>
    %175 = vector.shape_cast %174 : vector<1x16x32xf32> to vector<16x32xf32>
    %176 = vector.shape_cast %173 : vector<16x32xf32> to vector<1x16x32xf32>
    tpu.vector_store %arg10[%c0_166, %c32_167, %c0_168], %176 {strides = array<i32>} : memref<1x256x32xf32, #tpu.memory_space<vmem>>, vector<1x16x32xf32>,
    %177 = vector.extract_strided_slice %155 {offsets = [54, 0], sizes = [16, 32], strides = [1, 1]} : vector<288x32xf32> to vector<16x32xf32>
    %c0_169 = arith.constant 0 : index
    %c48_170 = arith.constant 48 : index
    %c0_171 = arith.constant 0 : index
    %178 = vector.load %arg2[%c0_169, %c48_170, %c0_171] : memref<1x256x32xf32, #tpu.memory_space<vmem>>, vector<1x16x32xf32>
    %179 = vector.shape_cast %178 : vector<1x16x32xf32> to vector<16x32xf32>
    %180 = arith.addf %177, %179 : vector<16x32xf32>
    %c0_172 = arith.constant 0 : index
    %c48_173 = arith.constant 48 : index
    %c0_174 = arith.constant 0 : index
    %181 = vector.load %arg10[%c0_172, %c48_173, %c0_174] : memref<1x256x32xf32, #tpu.memory_space<vmem>>, vector<1x16x32xf32>
    %182 = vector.shape_cast %181 : vector<1x16x32xf32> to vector<16x32xf32>
    %183 = vector.shape_cast %180 : vector<16x32xf32> to vector<1x16x32xf32>
    tpu.vector_store %arg10[%c0_172, %c48_173, %c0_174], %183 {strides = array<i32>} : memref<1x256x32xf32, #tpu.memory_space<vmem>>, vector<1x16x32xf32>,
    %184 = vector.extract_strided_slice %155 {offsets = [72, 0], sizes = [16, 32], strides = [1, 1]} : vector<288x32xf32> to vector<16x32xf32>
    %c0_175 = arith.constant 0 : index
    %c64_176 = arith.constant 64 : index
    %c0_177 = arith.constant 0 : index
    %185 = vector.load %arg2[%c0_175, %c64_176, %c0_177] : memref<1x256x32xf32, #tpu.memory_space<vmem>>, vector<1x16x32xf32>
    %186 = vector.shape_cast %185 : vector<1x16x32xf32> to vector<16x32xf32>
    %187 = arith.addf %184, %186 : vector<16x32xf32>
    %c0_178 = arith.constant 0 : index
    %c64_179 = arith.constant 64 : index
    %c0_180 = arith.constant 0 : index
    %188 = vector.load %arg10[%c0_178, %c64_179, %c0_180] : memref<1x256x32xf32, #tpu.memory_space<vmem>>, vector<1x16x32xf32>
    %189 = vector.shape_cast %188 : vector<1x16x32xf32> to vector<16x32xf32>
    %190 = vector.shape_cast %187 : vector<16x32xf32> to vector<1x16x32xf32>
    tpu.vector_store %arg10[%c0_178, %c64_179, %c0_180], %190 {strides = array<i32>} : memref<1x256x32xf32, #tpu.memory_space<vmem>>, vector<1x16x32xf32>,
    %191 = vector.extract_strided_slice %155 {offsets = [90, 0], sizes = [16, 32], strides = [1, 1]} : vector<288x32xf32> to vector<16x32xf32>
    %c0_181 = arith.constant 0 : index
    %c80_182 = arith.constant 80 : index
    %c0_183 = arith.constant 0 : index
    %192 = vector.load %arg2[%c0_181, %c80_182, %c0_183] : memref<1x256x32xf32, #tpu.memory_space<vmem>>, vector<1x16x32xf32>
    %193 = vector.shape_cast %192 : vector<1x16x32xf32> to vector<16x32xf32>
    %194 = arith.addf %191, %193 : vector<16x32xf32>
    %c0_184 = arith.constant 0 : index
    %c80_185 = arith.constant 80 : index
    %c0_186 = arith.constant 0 : index
    %195 = vector.load %arg10[%c0_184, %c80_185, %c0_186] : memref<1x256x32xf32, #tpu.memory_space<vmem>>, vector<1x16x32xf32>
    %196 = vector.shape_cast %195 : vector<1x16x32xf32> to vector<16x32xf32>
    %197 = vector.shape_cast %194 : vector<16x32xf32> to vector<1x16x32xf32>
    tpu.vector_store %arg10[%c0_184, %c80_185, %c0_186], %197 {strides = array<i32>} : memref<1x256x32xf32, #tpu.memory_space<vmem>>, vector<1x16x32xf32>,
    %198 = vector.extract_strided_slice %155 {offsets = [108, 0], sizes = [16, 32], strides = [1, 1]} : vector<288x32xf32> to vector<16x32xf32>
    %c0_187 = arith.constant 0 : index
    %c96_188 = arith.constant 96 : index
    %c0_189 = arith.constant 0 : index
    %199 = vector.load %arg2[%c0_187, %c96_188, %c0_189] : memref<1x256x32xf32, #tpu.memory_space<vmem>>, vector<1x16x32xf32>
    %200 = vector.shape_cast %199 : vector<1x16x32xf32> to vector<16x32xf32>
    %201 = arith.addf %198, %200 : vector<16x32xf32>
    %c0_190 = arith.constant 0 : index
    %c96_191 = arith.constant 96 : index
    %c0_192 = arith.constant 0 : index
    %202 = vector.load %arg10[%c0_190, %c96_191, %c0_192] : memref<1x256x32xf32, #tpu.memory_space<vmem>>, vector<1x16x32xf32>
    %203 = vector.shape_cast %202 : vector<1x16x32xf32> to vector<16x32xf32>
    %204 = vector.shape_cast %201 : vector<16x32xf32> to vector<1x16x32xf32>
    tpu.vector_store %arg10[%c0_190, %c96_191, %c0_192], %204 {strides = array<i32>} : memref<1x256x32xf32, #tpu.memory_space<vmem>>, vector<1x16x32xf32>,
    %205 = vector.extract_strided_slice %155 {offsets = [126, 0], sizes = [16, 32], strides = [1, 1]} : vector<288x32xf32> to vector<16x32xf32>
    %c0_193 = arith.constant 0 : index
    %c112_194 = arith.constant 112 : index
    %c0_195 = arith.constant 0 : index
    %206 = vector.load %arg2[%c0_193, %c112_194, %c0_195] : memref<1x256x32xf32, #tpu.memory_space<vmem>>, vector<1x16x32xf32>
    %207 = vector.shape_cast %206 : vector<1x16x32xf32> to vector<16x32xf32>
    %208 = arith.addf %205, %207 : vector<16x32xf32>
    %c0_196 = arith.constant 0 : index
    %c112_197 = arith.constant 112 : index
    %c0_198 = arith.constant 0 : index
    %209 = vector.load %arg10[%c0_196, %c112_197, %c0_198] : memref<1x256x32xf32, #tpu.memory_space<vmem>>, vector<1x16x32xf32>
    %210 = vector.shape_cast %209 : vector<1x16x32xf32> to vector<16x32xf32>
    %211 = vector.shape_cast %208 : vector<16x32xf32> to vector<1x16x32xf32>
    tpu.vector_store %arg10[%c0_196, %c112_197, %c0_198], %211 {strides = array<i32>} : memref<1x256x32xf32, #tpu.memory_space<vmem>>, vector<1x16x32xf32>,
    %212 = vector.extract_strided_slice %155 {offsets = [144, 0], sizes = [16, 32], strides = [1, 1]} : vector<288x32xf32> to vector<16x32xf32>
    %c0_199 = arith.constant 0 : index
    %c128_200 = arith.constant 128 : index
    %c0_201 = arith.constant 0 : index
    %213 = vector.load %arg2[%c0_199, %c128_200, %c0_201] : memref<1x256x32xf32, #tpu.memory_space<vmem>>, vector<1x16x32xf32>
    %214 = vector.shape_cast %213 : vector<1x16x32xf32> to vector<16x32xf32>
    %215 = arith.addf %212, %214 : vector<16x32xf32>
    %c0_202 = arith.constant 0 : index
    %c128_203 = arith.constant 128 : index
    %c0_204 = arith.constant 0 : index
    %216 = vector.load %arg10[%c0_202, %c128_203, %c0_204] : memref<1x256x32xf32, #tpu.memory_space<vmem>>, vector<1x16x32xf32>
    %217 = vector.shape_cast %216 : vector<1x16x32xf32> to vector<16x32xf32>
    %218 = vector.shape_cast %215 : vector<16x32xf32> to vector<1x16x32xf32>
    tpu.vector_store %arg10[%c0_202, %c128_203, %c0_204], %218 {strides = array<i32>} : memref<1x256x32xf32, #tpu.memory_space<vmem>>, vector<1x16x32xf32>,
    %219 = vector.extract_strided_slice %155 {offsets = [162, 0], sizes = [16, 32], strides = [1, 1]} : vector<288x32xf32> to vector<16x32xf32>
    %c0_205 = arith.constant 0 : index
    %c144_206 = arith.constant 144 : index
    %c0_207 = arith.constant 0 : index
    %220 = vector.load %arg2[%c0_205, %c144_206, %c0_207] : memref<1x256x32xf32, #tpu.memory_space<vmem>>, vector<1x16x32xf32>
    %221 = vector.shape_cast %220 : vector<1x16x32xf32> to vector<16x32xf32>
    %222 = arith.addf %219, %221 : vector<16x32xf32>
    %c0_208 = arith.constant 0 : index
    %c144_209 = arith.constant 144 : index
    %c0_210 = arith.constant 0 : index
    %223 = vector.load %arg10[%c0_208, %c144_209, %c0_210] : memref<1x256x32xf32, #tpu.memory_space<vmem>>, vector<1x16x32xf32>
    %224 = vector.shape_cast %223 : vector<1x16x32xf32> to vector<16x32xf32>
    %225 = vector.shape_cast %222 : vector<16x32xf32> to vector<1x16x32xf32>
    tpu.vector_store %arg10[%c0_208, %c144_209, %c0_210], %225 {strides = array<i32>} : memref<1x256x32xf32, #tpu.memory_space<vmem>>, vector<1x16x32xf32>,
    %226 = vector.extract_strided_slice %155 {offsets = [180, 0], sizes = [16, 32], strides = [1, 1]} : vector<288x32xf32> to vector<16x32xf32>
    %c0_211 = arith.constant 0 : index
    %c160_212 = arith.constant 160 : index
    %c0_213 = arith.constant 0 : index
    %227 = vector.load %arg2[%c0_211, %c160_212, %c0_213] : memref<1x256x32xf32, #tpu.memory_space<vmem>>, vector<1x16x32xf32>
    %228 = vector.shape_cast %227 : vector<1x16x32xf32> to vector<16x32xf32>
    %229 = arith.addf %226, %228 : vector<16x32xf32>
    %c0_214 = arith.constant 0 : index
    %c160_215 = arith.constant 160 : index
    %c0_216 = arith.constant 0 : index
    %230 = vector.load %arg10[%c0_214, %c160_215, %c0_216] : memref<1x256x32xf32, #tpu.memory_space<vmem>>, vector<1x16x32xf32>
    %231 = vector.shape_cast %230 : vector<1x16x32xf32> to vector<16x32xf32>
    %232 = vector.shape_cast %229 : vector<16x32xf32> to vector<1x16x32xf32>
    tpu.vector_store %arg10[%c0_214, %c160_215, %c0_216], %232 {strides = array<i32>} : memref<1x256x32xf32, #tpu.memory_space<vmem>>, vector<1x16x32xf32>,
    %233 = vector.extract_strided_slice %155 {offsets = [198, 0], sizes = [16, 32], strides = [1, 1]} : vector<288x32xf32> to vector<16x32xf32>
    %c0_217 = arith.constant 0 : index
    %c176_218 = arith.constant 176 : index
    %c0_219 = arith.constant 0 : index
    %234 = vector.load %arg2[%c0_217, %c176_218, %c0_219] : memref<1x256x32xf32, #tpu.memory_space<vmem>>, vector<1x16x32xf32>
    %235 = vector.shape_cast %234 : vector<1x16x32xf32> to vector<16x32xf32>
    %236 = arith.addf %233, %235 : vector<16x32xf32>
    %c0_220 = arith.constant 0 : index
    %c176_221 = arith.constant 176 : index
    %c0_222 = arith.constant 0 : index
    %237 = vector.load %arg10[%c0_220, %c176_221, %c0_222] : memref<1x256x32xf32, #tpu.memory_space<vmem>>, vector<1x16x32xf32>
    %238 = vector.shape_cast %237 : vector<1x16x32xf32> to vector<16x32xf32>
    %239 = vector.shape_cast %236 : vector<16x32xf32> to vector<1x16x32xf32>
    tpu.vector_store %arg10[%c0_220, %c176_221, %c0_222], %239 {strides = array<i32>} : memref<1x256x32xf32, #tpu.memory_space<vmem>>, vector<1x16x32xf32>,
    %240 = vector.extract_strided_slice %155 {offsets = [216, 0], sizes = [16, 32], strides = [1, 1]} : vector<288x32xf32> to vector<16x32xf32>
    %c0_223 = arith.constant 0 : index
    %c192_224 = arith.constant 192 : index
    %c0_225 = arith.constant 0 : index
    %241 = vector.load %arg2[%c0_223, %c192_224, %c0_225] : memref<1x256x32xf32, #tpu.memory_space<vmem>>, vector<1x16x32xf32>
    %242 = vector.shape_cast %241 : vector<1x16x32xf32> to vector<16x32xf32>
    %243 = arith.addf %240, %242 : vector<16x32xf32>
    %c0_226 = arith.constant 0 : index
    %c192_227 = arith.constant 192 : index
    %c0_228 = arith.constant 0 : index
    %244 = vector.load %arg10[%c0_226, %c192_227, %c0_228] : memref<1x256x32xf32, #tpu.memory_space<vmem>>, vector<1x16x32xf32>
    %245 = vector.shape_cast %244 : vector<1x16x32xf32> to vector<16x32xf32>
    %246 = vector.shape_cast %243 : vector<16x32xf32> to vector<1x16x32xf32>
    tpu.vector_store %arg10[%c0_226, %c192_227, %c0_228], %246 {strides = array<i32>} : memref<1x256x32xf32, #tpu.memory_space<vmem>>, vector<1x16x32xf32>,
    %247 = vector.extract_strided_slice %155 {offsets = [234, 0], sizes = [16, 32], strides = [1, 1]} : vector<288x32xf32> to vector<16x32xf32>
    %c0_229 = arith.constant 0 : index
    %c208_230 = arith.constant 208 : index
    %c0_231 = arith.constant 0 : index
    %248 = vector.load %arg2[%c0_229, %c208_230, %c0_231] : memref<1x256x32xf32, #tpu.memory_space<vmem>>, vector<1x16x32xf32>
    %249 = vector.shape_cast %248 : vector<1x16x32xf32> to vector<16x32xf32>
    %250 = arith.addf %247, %249 : vector<16x32xf32>
    %c0_232 = arith.constant 0 : index
    %c208_233 = arith.constant 208 : index
    %c0_234 = arith.constant 0 : index
    %251 = vector.load %arg10[%c0_232, %c208_233, %c0_234] : memref<1x256x32xf32, #tpu.memory_space<vmem>>, vector<1x16x32xf32>
    %252 = vector.shape_cast %251 : vector<1x16x32xf32> to vector<16x32xf32>
    %253 = vector.shape_cast %250 : vector<16x32xf32> to vector<1x16x32xf32>
    tpu.vector_store %arg10[%c0_232, %c208_233, %c0_234], %253 {strides = array<i32>} : memref<1x256x32xf32, #tpu.memory_space<vmem>>, vector<1x16x32xf32>,
    %254 = vector.extract_strided_slice %155 {offsets = [252, 0], sizes = [16, 32], strides = [1, 1]} : vector<288x32xf32> to vector<16x32xf32>
    %c0_235 = arith.constant 0 : index
    %c224_236 = arith.constant 224 : index
    %c0_237 = arith.constant 0 : index
    %255 = vector.load %arg2[%c0_235, %c224_236, %c0_237] : memref<1x256x32xf32, #tpu.memory_space<vmem>>, vector<1x16x32xf32>
    %256 = vector.shape_cast %255 : vector<1x16x32xf32> to vector<16x32xf32>
    %257 = arith.addf %254, %256 : vector<16x32xf32>
    %c0_238 = arith.constant 0 : index
    %c224_239 = arith.constant 224 : index
    %c0_240 = arith.constant 0 : index
    %258 = vector.load %arg10[%c0_238, %c224_239, %c0_240] : memref<1x256x32xf32, #tpu.memory_space<vmem>>, vector<1x16x32xf32>
    %259 = vector.shape_cast %258 : vector<1x16x32xf32> to vector<16x32xf32>
    %260 = vector.shape_cast %257 : vector<16x32xf32> to vector<1x16x32xf32>
    tpu.vector_store %arg10[%c0_238, %c224_239, %c0_240], %260 {strides = array<i32>} : memref<1x256x32xf32, #tpu.memory_space<vmem>>, vector<1x16x32xf32>,
    %261 = vector.extract_strided_slice %155 {offsets = [270, 0], sizes = [16, 32], strides = [1, 1]} : vector<288x32xf32> to vector<16x32xf32>
    %c0_241 = arith.constant 0 : index
    %c240_242 = arith.constant 240 : index
    %c0_243 = arith.constant 0 : index
    %262 = vector.load %arg2[%c0_241, %c240_242, %c0_243] : memref<1x256x32xf32, #tpu.memory_space<vmem>>, vector<1x16x32xf32>
    %263 = vector.shape_cast %262 : vector<1x16x32xf32> to vector<16x32xf32>
    %264 = arith.addf %261, %263 : vector<16x32xf32>
    %c0_244 = arith.constant 0 : index
    %c240_245 = arith.constant 240 : index
    %c0_246 = arith.constant 0 : index
    %265 = vector.load %arg10[%c0_244, %c240_245, %c0_246] : memref<1x256x32xf32, #tpu.memory_space<vmem>>, vector<1x16x32xf32>
    %266 = vector.shape_cast %265 : vector<1x16x32xf32> to vector<16x32xf32>
    %267 = vector.shape_cast %264 : vector<16x32xf32> to vector<1x16x32xf32>
    tpu.vector_store %arg10[%c0_244, %c240_245, %c0_246], %267 {strides = array<i32>} : memref<1x256x32xf32, #tpu.memory_space<vmem>>, vector<1x16x32xf32>,
    return
  }
  func.func @transform_0(%arg0: i32) -> i32 {
    %c0_i32 = arith.constant 0 : i32
    %c0_i32_0 = arith.constant 0 : i32
    return %c0_i32 : i32
  }
  func.func @transform_1(%arg0: i32) -> (i32, i32, i32) {
    %c0_i32 = arith.constant 0 : i32
    %c0_i32_0 = arith.constant 0 : i32
    %c0_i32_1 = arith.constant 0 : i32
    return %arg0, %c0_i32, %c0_i32_0 : i32, i32, i32
  }
  func.func @transform_2(%arg0: i32) -> (i32, i32) {
    %c0_i32 = arith.constant 0 : i32
    %c0_i32_0 = arith.constant 0 : i32
    %c0_i32_1 = arith.constant 0 : i32
    return %c0_i32, %c0_i32_0 : i32, i32
  }
  func.func @transform_3(%arg0: i32) -> (i32, i32) {
    %c0_i32 = arith.constant 0 : i32
    %c0_i32_0 = arith.constant 0 : i32
    %c0_i32_1 = arith.constant 0 : i32
    return %c0_i32, %c0_i32_0 : i32, i32
  }
  func.func @transform_4(%arg0: i32) -> (i32, i32) {
    %c0_i32 = arith.constant 0 : i32
    %c0_i32_0 = arith.constant 0 : i32
    %c0_i32_1 = arith.constant 0 : i32
    return %c0_i32, %c0_i32_0 : i32, i32
  }
  func.func @transform_5(%arg0: i32) -> (i32, i32) {
    %c0_i32 = arith.constant 0 : i32
    %c0_i32_0 = arith.constant 0 : i32
    %c0_i32_1 = arith.constant 0 : i32
    return %c0_i32, %c0_i32_0 : i32, i32
  }
  func.func @transform_6(%arg0: i32) -> (i32, i32) {
    %c0_i32 = arith.constant 0 : i32
    %c0_i32_0 = arith.constant 0 : i32
    %c0_i32_1 = arith.constant 0 : i32
    return %c0_i32, %c0_i32_0 : i32, i32
  }
  func.func @transform_7(%arg0: i32) -> (i32, i32) {
    %c0_i32 = arith.constant 0 : i32
    %c0_i32_0 = arith.constant 0 : i32
    %c0_i32_1 = arith.constant 0 : i32
    return %c0_i32, %c0_i32_0 : i32, i32
  }
  func.func @transform_8(%arg0: i32) -> (i32, i32) {
    %c0_i32 = arith.constant 0 : i32
    %c0_i32_0 = arith.constant 0 : i32
    %c0_i32_1 = arith.constant 0 : i32
    return %c0_i32, %c0_i32_0 : i32, i32
  }
  func.func @transform_9(%arg0: i32) -> (i32, i32, i32) {
    %c0_i32 = arith.constant 0 : i32
    %c0_i32_0 = arith.constant 0 : i32
    %c0_i32_1 = arith.constant 0 : i32
    return %arg0, %c0_i32, %c0_i32_0 : i32, i32, i32
  }
}

</mosaic_0001>

<llo_original>
// kernel: tpu_custom_call.1
$region0: #{tpu_custom_call.1}
  #allocation0 [shape = 'u32[]', space=smem, size = 0x4, offset = 0x4, fixed_abs, tag = 'smem constant byte address 0x4 - core index']
  #allocation1 [shape = 'u32[144,128]{1,0:T(1,128)}', space=vmem, size = 0x12000, scoped, tag = 'internal scratch']
  #allocation2 [shape = 'bf16[328,32]{1,0:T(8,128)(2,1)}', space=vmem, size = 0x14800, scoped, tag = 'scratch operand']
  #allocation3 [shape = 'bf16[328,32]{1,0:T(8,128)(2,1)}', space=vmem, size = 0x14800, scoped, tag = 'scratch operand']
  #allocation4 [shape = 'bf16[288,288]{1,0:T(16,128)(2,1)}', space=vmem, size = 0x36000, scoped, tag = 'scratch operand']
  %s0 = inlined_call_operand.vmem [shape: f32[2], index: 0, kind: input, shape index: {}]
  %s1 = inlined_call_operand.vmem [shape: f32[2,256,32], index: 1, kind: input, shape index: {}]
  %s2 = inlined_call_operand.vmem [shape: f32[288,1], index: 2, kind: input, shape index: {}]
  %s3 = inlined_call_operand.vmem [shape: bf16[288,32], index: 3, kind: input, shape index: {}]
  %s4 = inlined_call_operand.vmem [shape: bf16[288,32], index: 4, kind: input, shape index: {}]
  %s5 = inlined_call_operand.vmem [shape: f32[2,32], index: 5, kind: input, shape index: {}]
  %s6 = inlined_call_operand.vmem [shape: f32[2,1], index: 6, kind: input, shape index: {}]
  %s7 = inlined_call_operand.vmem [shape: f32[2,32], index: 7, kind: input, shape index: {}]
  %s8 = inlined_call_operand.vmem [shape: f32[1,32], index: 8, kind: input, shape index: {}]
  %s9 = inlined_call_operand.vmem [shape: f32[2,256,32], index: 9, kind: output, shape index: {}]
  %s10 = sld [smem:[#allocation0]]
  $region73: #{tpu_custom_call.1} parent=0
    _
  %s12 = ssub.s32 1, %s10
  %s13 = scalar_select 0, %s12, %s10
  $region1: #{tpu_custom_call.1} parent=0
    #allocation5 [shape = 'u8[512]{0}', space=smem, size = 0x200, scoped, tag = 'input window, operand 0, single buffered']
    #allocation6 [shape = 's32[2]{0}', space=sflag, size = 0x8, scoped, tag = 'scoped memory for tpu_custom_call.1']
    %14 = vsyncpa [#allocation6], 0
    loop: start=0, step=1, limit=4
    $region2: #{tpu_custom_call.1} parent=1 // loop_pre_header
      _
    $region3: #{tpu_custom_call.1} parent=1 // loop_header
      %s16 = sphi 0, %s20
      %p17 = scmp.ge.s32.totalorder %s16, 4
      %s24 = sphi 0, %s24
      %s26 = sphi 0, %s24
      %s27 = sphi 0, %s26
      %s41 = sphi 0, %s27
      %s47 = sphi 0, %s49
      %s50 = sphi 0, %s47
      %s51 = sphi 0, %s50
      %s67 = sphi 0, %s51
      %s71 = sphi 0, %s71
      %s73 = sphi 0, %s71
      %s74 = sphi 0, %s73
      %s88 = sphi 0, %s74
      %s92 = sphi 0, %s92
      %s94 = sphi 0, %s92
      %s95 = sphi 0, %s94
      %s109 = sphi 0, %s95
      %s113 = sphi 0, %s113
      %s115 = sphi 0, %s113
      %s116 = sphi 0, %s115
      %s130 = sphi 0, %s116
      %s134 = sphi 0, %s134
      %s136 = sphi 0, %s134
      %s137 = sphi 0, %s136
      %s151 = sphi 0, %s137
      %s155 = sphi 0, %s155
      %s157 = sphi 0, %s155
      %s158 = sphi 0, %s157
      %s172 = sphi 0, %s158
      %s176 = sphi 0, %s176
      %s178 = sphi 0, %s176
      %s179 = sphi 0, %s178
      %s193 = sphi 0, %s179
      %s197 = sphi 0, %s197
      %s199 = sphi 0, %s197
      %s200 = sphi 0, %s199
      %s214 = sphi 0, %s200
      %s220 = sphi 0, %s222
      %s223 = sphi 0, %s220
      %s224 = sphi 0, %s223
      %s240 = sphi 0, %s224
    $region4: #{tpu_custom_call.1} parent=1 // loop_header_branch
      %19 = sbr.rel (%p17) target = $region8
    $region5: #{tpu_custom_call.1} parent=1 // loop_body
      %s21 = ssub.s32 %s16, 1
      %s22 = ssub.s32 %s16, 2
      %s23 = sadd.s32 %s16, 1
      %s25 = sadd.s32 %s24, 1
      %p28 = scmp.eq.s32.totalorder %s16, 1
      %p29 = scmp.ne.s32.totalorder %s24, %s26
      %p30 = scmp.eq.s32.totalorder %s16, 0
      %p31 = por %p29, %p30
      %p32 = scmp.ne.s32.totalorder %s24, %s26
      %p33 = scmp.eq.s32.totalorder %s21, 1
      %p34 = por %p32, %p33
      %p35 = scmp.ne.s32.totalorder %s26, %s27
      %p36 = scmp.eq.s32.totalorder %s21, 0
      %p37 = por %p35, %p36
      %p38 = scmp.ne.s32.totalorder %s26, %s27
      %p39 = scmp.eq.s32.totalorder %s22, 1
      %p40 = por %p38, %p39
      %p42 = scmp.ne.s32.totalorder %s27, %s41
      %p43 = scmp.eq.s32.totalorder %s22, 0
      %p44 = por %p42, %p43
      %s45 = ssub.s32 %s16, %s23
      %p46 = scmp.eq.s32.totalorder %s45, 0
      %s48 = sadd.s32 %s47, 1
      %s49 = scalar_select %p46, %s47, %s48
      %p52 = pneg %p46
      %p53 = scmp.eq.s32.totalorder %s16, 1
      %p54 = por %p52, %p53
      %p55 = scmp.ne.s32.totalorder %s47, %s50
      %p56 = scmp.eq.s32.totalorder %s16, 0
      %p57 = por %p55, %p56
      %p58 = scmp.ne.s32.totalorder %s47, %s50
      %p59 = scmp.eq.s32.totalorder %s21, 1
      %p60 = por %p58, %p59
      %p61 = scmp.ne.s32.totalorder %s50, %s51
      %p62 = scmp.eq.s32.totalorder %s21, 0
      %p63 = por %p61, %p62
      %p64 = scmp.ne.s32.totalorder %s50, %s51
      %p65 = scmp.eq.s32.totalorder %s22, 1
      %p66 = por %p64, %p65
      %p68 = scmp.ne.s32.totalorder %s51, %s67
      %p69 = scmp.eq.s32.totalorder %s22, 0
      %p70 = por %p68, %p69
      %s72 = sadd.s32 %s71, 1
      %p75 = scmp.eq.s32.totalorder %s16, 1
      %p76 = scmp.ne.s32.totalorder %s71, %s73
      %p77 = scmp.eq.s32.totalorder %s16, 0
      %p78 = por %p76, %p77
      %p79 = scmp.ne.s32.totalorder %s71, %s73
      %p80 = scmp.eq.s32.totalorder %s21, 1
      %p81 = por %p79, %p80
      %p82 = scmp.ne.s32.totalorder %s73, %s74
      %p83 = scmp.eq.s32.totalorder %s21, 0
      %p84 = por %p82, %p83
      %p85 = scmp.ne.s32.totalorder %s73, %s74
      %p86 = scmp.eq.s32.totalorder %s22, 1
      %p87 = por %p85, %p86
      %p89 = scmp.ne.s32.totalorder %s74, %s88
      %p90 = scmp.eq.s32.totalorder %s22, 0
      %p91 = por %p89, %p90
      %s93 = sadd.s32 %s92, 1
      %p96 = scmp.eq.s32.totalorder %s16, 1
      %p97 = scmp.ne.s32.totalorder %s92, %s94
      %p98 = scmp.eq.s32.totalorder %s16, 0
      %p99 = por %p97, %p98
      %p100 = scmp.ne.s32.totalorder %s92, %s94
      %p101 = scmp.eq.s32.totalorder %s21, 1
      %p102 = por %p100, %p101
      %p103 = scmp.ne.s32.totalorder %s94, %s95
      %p104 = scmp.eq.s32.totalorder %s21, 0
      %p105 = por %p103, %p104
      %p106 = scmp.ne.s32.totalorder %s94, %s95
      %p107 = scmp.eq.s32.totalorder %s22, 1
      %p108 = por %p106, %p107
      %p110 = scmp.ne.s32.totalorder %s95, %s109
      %p111 = scmp.eq.s32.totalorder %s22, 0
      %p112 = por %p110, %p111
      %s114 = sadd.s32 %s113, 1
      %p117 = scmp.eq.s32.totalorder %s16, 1
      %p118 = scmp.ne.s32.totalorder %s113, %s115
      %p119 = scmp.eq.s32.totalorder %s16, 0
      %p120 = por %p118, %p119
      %p121 = scmp.ne.s32.totalorder %s113, %s115
      %p122 = scmp.eq.s32.totalorder %s21, 1
      %p123 = por %p121, %p122
      %p124 = scmp.ne.s32.totalorder %s115, %s116
      %p125 = scmp.eq.s32.totalorder %s21, 0
      %p126 = por %p124, %p125
      %p127 = scmp.ne.s32.totalorder %s115, %s116
      %p128 = scmp.eq.s32.totalorder %s22, 1
      %p129 = por %p127, %p128
      %p131 = scmp.ne.s32.totalorder %s116, %s130
      %p132 = scmp.eq.s32.totalorder %s22, 0
      %p133 = por %p131, %p132
      %s135 = sadd.s32 %s134, 1
      %p138 = scmp.eq.s32.totalorder %s16, 1
      %p139 = scmp.ne.s32.totalorder %s134, %s136
      %p140 = scmp.eq.s32.totalorder %s16, 0
      %p141 = por %p139, %p140
      %p142 = scmp.ne.s32.totalorder %s134, %s136
      %p143 = scmp.eq.s32.totalorder %s21, 1
      %p144 = por %p142, %p143
      %p145 = scmp.ne.s32.totalorder %s136, %s137
      %p146 = scmp.eq.s32.totalorder %s21, 0
      %p147 = por %p145, %p146
      %p148 = scmp.ne.s32.totalorder %s136, %s137
      %p149 = scmp.eq.s32.totalorder %s22, 1
      %p150 = por %p148, %p149
      %p152 = scmp.ne.s32.totalorder %s137, %s151
      %p153 = scmp.eq.s32.totalorder %s22, 0
      %p154 = por %p152, %p153
      %s156 = sadd.s32 %s155, 1
      %p159 = scmp.eq.s32.totalorder %s16, 1
      %p160 = scmp.ne.s32.totalorder %s155, %s157
      %p161 = scmp.eq.s32.totalorder %s16, 0
      %p162 = por %p160, %p161
      %p163 = scmp.ne.s32.totalorder %s155, %s157
      %p164 = scmp.eq.s32.totalorder %s21, 1
      %p165 = por %p163, %p164
      %p166 = scmp.ne.s32.totalorder %s157, %s158
      %p167 = scmp.eq.s32.totalorder %s21, 0
      %p168 = por %p166, %p167
      %p169 = scmp.ne.s32.totalorder %s157, %s158
      %p170 = scmp.eq.s32.totalorder %s22, 1
      %p171 = por %p169, %p170
      %p173 = scmp.ne.s32.totalorder %s158, %s172
      %p174 = scmp.eq.s32.totalorder %s22, 0
      %p175 = por %p173, %p174
      %s177 = sadd.s32 %s176, 1
      %p180 = scmp.eq.s32.totalorder %s16, 1
      %p181 = scmp.ne.s32.totalorder %s176, %s178
      %p182 = scmp.eq.s32.totalorder %s16, 0
      %p183 = por %p181, %p182
      %p184 = scmp.ne.s32.totalorder %s176, %s178
      %p185 = scmp.eq.s32.totalorder %s21, 1
      %p186 = por %p184, %p185
      %p187 = scmp.ne.s32.totalorder %s178, %s179
      %p188 = scmp.eq.s32.totalorder %s21, 0
      %p189 = por %p187, %p188
      %p190 = scmp.ne.s32.totalorder %s178, %s179
      %p191 = scmp.eq.s32.totalorder %s22, 1
      %p192 = por %p190, %p191
      %p194 = scmp.ne.s32.totalorder %s179, %s193
      %p195 = scmp.eq.s32.totalorder %s22, 0
      %p196 = por %p194, %p195
      %s198 = sadd.s32 %s197, 1
      %p201 = scmp.eq.s32.totalorder %s16, 1
      %p202 = scmp.ne.s32.totalorder %s197, %s199
      %p203 = scmp.eq.s32.totalorder %s16, 0
      %p204 = por %p202, %p203
      %p205 = scmp.ne.s32.totalorder %s197, %s199
      %p206 = scmp.eq.s32.totalorder %s21, 1
      %p207 = por %p205, %p206
      %p208 = scmp.ne.s32.totalorder %s199, %s200
      %p209 = scmp.eq.s32.totalorder %s21, 0
      %p210 = por %p208, %p209
      %p211 = scmp.ne.s32.totalorder %s199, %s200
      %p212 = scmp.eq.s32.totalorder %s22, 1
      %p213 = por %p211, %p212
      %p215 = scmp.ne.s32.totalorder %s200, %s214
      %p216 = scmp.eq.s32.totalorder %s22, 0
      %p217 = por %p215, %p216
      %s218 = ssub.s32 %s16, %s23
      %p219 = scmp.eq.s32.totalorder %s218, 0
      %s221 = sadd.s32 %s220, 1
      %s222 = scalar_select %p219, %s220, %s221
      %p225 = pneg %p219
      %p226 = scmp.eq.s32.totalorder %s16, 1
      %p227 = por %p225, %p226
      %p228 = scmp.ne.s32.totalorder %s220, %s223
      %p229 = scmp.eq.s32.totalorder %s16, 0
      %p230 = por %p228, %p229
      %p231 = scmp.ne.s32.totalorder %s220, %s223
      %p232 = scmp.eq.s32.totalorder %s21, 1
      %p233 = por %p231, %p232
      %p234 = scmp.ne.s32.totalorder %s223, %s224
      %p235 = scmp.eq.s32.totalorder %s21, 0
      %p236 = por %p234, %p235
      %p237 = scmp.ne.s32.totalorder %s223, %s224
      %p238 = scmp.eq.s32.totalorder %s22, 1
      %p239 = por %p237, %p238
      %p241 = scmp.ne.s32.totalorder %s224, %s240
      %p242 = scmp.eq.s32.totalorder %s22, 0
      %p243 = por %p241, %p242
      %p244 = scmp.le.s32.totalorder 1, %s16
      %p245 = scmp.lt.s32.totalorder %s16, 3
      %p246 = pnand %p244, %p245
      %p247 = pneg %p246
      // Predicated region
      $region9: #{tpu_custom_call.1} parent=5 // pred_check
        _
      $region10: #{tpu_custom_call.1} parent=5 // pred_check_branch
        %249 = sbr.rel (%p246) target = $region12
      $region11: #{tpu_custom_call.1} parent=5 // pred_region
        %s250 = ssub.s32 %s16, 1
        // Predicated region
        $region13: #{tpu_custom_call.1} parent=11 // pred_check
          %p251 = pneg %p37
        $region14: #{tpu_custom_call.1} parent=11 // pred_check_branch
          %253 = sbr.rel (%p251) target = $region16
        $region15: #{tpu_custom_call.1} parent=11 // pred_region
          %s255 = ssub.s32 16, 16
          %256 = vsyncadd [#allocation6], %s255
          %s258 = sshll.u32 %s0, 4
          %s259 = int_to_ptr.vmem [resolvable:$true] %s258
          %261 = dma.vmem_to_smem %s259, 16, [#allocation5], [#allocation6]
        $region16: #{tpu_custom_call.1} parent=11 // pred_fallthru
          _
        // Predicated region
        $region17: #{tpu_custom_call.1} parent=11 // pred_check
          %p262 = pneg %p84
        $region18: #{tpu_custom_call.1} parent=11 // pred_check_branch
          %264 = sbr.rel (%p262) target = $region20
        $region19: #{tpu_custom_call.1} parent=11 // pred_region
          _
        $region20: #{tpu_custom_call.1} parent=11 // pred_fallthru
          _
        // Predicated region
        $region21: #{tpu_custom_call.1} parent=11 // pred_check
          %p265 = pneg %p105
        $region22: #{tpu_custom_call.1} parent=11 // pred_check_branch
          %267 = sbr.rel (%p265) target = $region24
        $region23: #{tpu_custom_call.1} parent=11 // pred_region
          _
        $region24: #{tpu_custom_call.1} parent=11 // pred_fallthru
          _
        // Predicated region
        $region25: #{tpu_custom_call.1} parent=11 // pred_check
          %p268 = pneg %p126
        $region26: #{tpu_custom_call.1} parent=11 // pred_check_branch
          %270 = sbr.rel (%p268) target = $region28
        $region27: #{tpu_custom_call.1} parent=11 // pred_region
          _
        $region28: #{tpu_custom_call.1} parent=11 // pred_fallthru
          _
        // Predicated region
        $region29: #{tpu_custom_call.1} parent=11 // pred_check
          %p271 = pneg %p147
        $region30: #{tpu_custom_call.1} parent=11 // pred_check_branch
          %273 = sbr.rel (%p271) target = $region32
        $region31: #{tpu_custom_call.1} parent=11 // pred_region
          _
        $region32: #{tpu_custom_call.1} parent=11 // pred_fallthru
          _
        // Predicated region
        $region33: #{tpu_custom_call.1} parent=11 // pred_check
          %p274 = pneg %p168
        $region34: #{tpu_custom_call.1} parent=11 // pred_check_branch
          %276 = sbr.rel (%p274) target = $region36
        $region35: #{tpu_custom_call.1} parent=11 // pred_region
          _
        $region36: #{tpu_custom_call.1} parent=11 // pred_fallthru
          _
        // Predicated region
        $region37: #{tpu_custom_call.1} parent=11 // pred_check
          %p277 = pneg %p189
        $region38: #{tpu_custom_call.1} parent=11 // pred_check_branch
          %279 = sbr.rel (%p277) target = $region40
        $region39: #{tpu_custom_call.1} parent=11 // pred_region
          _
        $region40: #{tpu_custom_call.1} parent=11 // pred_fallthru
          _
        // Predicated region
        $region41: #{tpu_custom_call.1} parent=11 // pred_check
          %p280 = pneg %p210
        $region42: #{tpu_custom_call.1} parent=11 // pred_check_branch
          %282 = sbr.rel (%p280) target = $region44
        $region43: #{tpu_custom_call.1} parent=11 // pred_region
          _
        $region44: #{tpu_custom_call.1} parent=11 // pred_fallthru
          _
      $region12: #{tpu_custom_call.1} parent=5 // pred_fallthru
        _
      %p283 = scmp.lt.s32.totalorder %s16, 2
      // Predicated region
      $region45: #{tpu_custom_call.1} parent=5 // pred_check
        %p284 = pneg %p283
      $region46: #{tpu_custom_call.1} parent=5 // pred_check_branch
        %286 = sbr.rel (%p284) target = $region48
      $region47: #{tpu_custom_call.1} parent=5 // pred_region
        // Predicated region
        $region49: #{tpu_custom_call.1} parent=47 // pred_check
          %p287 = pneg %p57
        $region50: #{tpu_custom_call.1} parent=47 // pred_check_branch
          %289 = sbr.rel (%p287) target = $region52
        $region51: #{tpu_custom_call.1} parent=47 // pred_region
          %p290 = scmp.lt.s32.totalorder %s16, 1
          %s291 = scalar_select %p290, %s16, 1
          %s292 = smul.addr %s291, 32
          %s293 = smul.addr %s292, 8
          %s294 = scalar_lea.vmem %s1, %s293
        $region52: #{tpu_custom_call.1} parent=47 // pred_fallthru
          _
      $region48: #{tpu_custom_call.1} parent=5 // pred_fallthru
        _
      %p295 = scmp.le.s32.totalorder 1, %s16
      %p296 = scmp.lt.s32.totalorder %s16, 3
      %p297 = pnand %p295, %p296
      %p298 = pneg %p297
      // Predicated region
      $region53: #{tpu_custom_call.1} parent=5 // pred_check
        _
      $region54: #{tpu_custom_call.1} parent=5 // pred_check_branch
        %300 = sbr.rel (%p297) target = $region56
      $region55: #{tpu_custom_call.1} parent=5 // pred_region
        %s301 = ssub.s32 %s16, 1
        // Predicated region
        $region57: #{tpu_custom_call.1} parent=55 // pred_check
          %p302 = pneg %p37
        $region58: #{tpu_custom_call.1} parent=55 // pred_check_branch
          %304 = sbr.rel (%p302) target = $region60
        $region59: #{tpu_custom_call.1} parent=55 // pred_region
          %305 = dma.done [#allocation6], 16
        $region60: #{tpu_custom_call.1} parent=55 // pred_fallthru
          _
        %306 = sfence
        %p307 = pneg %p37
        %p308 = pneg %p34
        %p309 = scmp.lt.s32.totalorder %s21, 1
        %s310 = scalar_select %p309, %s21, 1
        %s311 = smul.addr %s310, 32
        %s312 = smul.addr %s311, 8
        %s313 = scalar_lea.vmem %s1, %s312
        %p314 = pneg %p63
        %p315 = pneg %p60
        %p316 = pneg %p84
        %p317 = pneg %p81
        %p318 = pneg %p105
        %p319 = pneg %p102
        %p320 = pneg %p126
        %p321 = pneg %p123
        %p322 = pneg %p147
        %p323 = pneg %p144
        %p324 = pneg %p168
        %p325 = pneg %p165
        %p326 = pneg %p189
        %p327 = pneg %p186
        %p328 = pneg %p210
        %p329 = pneg %p207
        %p330 = pneg %p236
        %p331 = pneg %p233
        %p332 = scmp.lt.s32.totalorder %s21, 1
        %s333 = scalar_select %p332, %s21, 1
        %s334 = smul.addr %s333, 32
        %s335 = smul.addr %s334, 8
        %s336 = scalar_lea.vmem %s9, %s335
        %p337 = scmp.lt.s32.totalorder %s21, 1
        %s338 = scalar_select %p337, %s21, 1
        %s339 = smul.addr %s338, 32
        %s340 = smul.addr %s339, 8
        %s341 = scalar_lea.vmem %s1, %s340
        %p342 = scmp.lt.s32.totalorder %s21, 1
        %s343 = scalar_select %p342, %s21, 1
        %s344 = smul.addr %s343, 32
        %s345 = smul.addr %s344, 8
        %s346 = scalar_lea.vmem %s9, %s345
        %s348 = sld [smem:[#allocation5]]
        %s349 = sld [smem:[#allocation5 + $0x1]]
        %v350 = vld [vmem:[%s2] sm:$0xff]
        %v351 = vld [vmem:[%s2 + $0x8] sm:$0xff]
        %v352 = vld [vmem:[%s2 + $0x10] sm:$0xff]
        %v353 = vld [vmem:[%s2 + $0x18] sm:$0xff]
        %v354 = vld [vmem:[%s2 + $0x20] sm:$0xff]
        %v355 = vld [vmem:[%s2 + $0x28] sm:$0xff]
        %v356 = vld [vmem:[%s2 + $0x30] sm:$0xff]
        %v357 = vld [vmem:[%s2 + $0x38] sm:$0xff]
        %v358 = vld [vmem:[%s2 + $0x40] sm:$0xff]
        %v359 = vld [vmem:[%s2 + $0x48] sm:$0xff]
        %v360 = vld [vmem:[%s2 + $0x50] sm:$0xff]
        %v361 = vld [vmem:[%s2 + $0x58] sm:$0xff]
        %v362 = vld [vmem:[%s2 + $0x60] sm:$0xff]
        %v363 = vld [vmem:[%s2 + $0x68] sm:$0xff]
        %v364 = vld [vmem:[%s2 + $0x70] sm:$0xff]
        %v365 = vld [vmem:[%s2 + $0x78] sm:$0xff]
        %v366 = vld [vmem:[%s2 + $0x80] sm:$0xff]
        %v367 = vld [vmem:[%s2 + $0x88] sm:$0xff]
        %v368 = vld [vmem:[%s2 + $0x90] sm:$0xff]
        %v369 = vld [vmem:[%s2 + $0x98] sm:$0xff]
        %v370 = vld [vmem:[%s2 + $0xa0] sm:$0xff]
        %v371 = vld [vmem:[%s2 + $0xa8] sm:$0xff]
        %v372 = vld [vmem:[%s2 + $0xb0] sm:$0xff]
        %v373 = vld [vmem:[%s2 + $0xb8] sm:$0xff]
        %v374 = vld [vmem:[%s2 + $0xc0] sm:$0xff]
        %v375 = vld [vmem:[%s2 + $0xc8] sm:$0xff]
        %v376 = vld [vmem:[%s2 + $0xd0] sm:$0xff]
        %v377 = vld [vmem:[%s2 + $0xd8] sm:$0xff]
        %v378 = vld [vmem:[%s2 + $0xe0] sm:$0xff]
        %v379 = vld [vmem:[%s2 + $0xe8] sm:$0xff]
        %v380 = vld [vmem:[%s2 + $0xf0] sm:$0xff]
        %v381 = vld [vmem:[%s2 + $0xf8] sm:$0xff]
        %v382 = vld [vmem:[%s2 + $0x100] sm:$0xff]
        %v383 = vld [vmem:[%s2 + $0x108] sm:$0xff]
        %v384 = vld [vmem:[%s2 + $0x110] sm:$0xff]
        %v385 = vld [vmem:[%s2 + $0x118] sm:$0xff]
        %vm386 = vcmask 257024
        %387 = vst.msk [vmem:[#allocation2] sm:$0xf] %vm386, 0
        %388 = vst.msk [vmem:[#allocation2 + $0x4] sm:$0xf] %vm386, 0
        %389 = vst.msk [vmem:[#allocation2 + $0x8] sm:$0xf] %vm386, 0
        %390 = vst.msk [vmem:[#allocation2 + $0xc] sm:$0xf] %vm386, 0
        %391 = vst.msk [vmem:[#allocation2 + $0x10] sm:$0xf] %vm386, 0
        %392 = vst.msk [vmem:[#allocation2 + $0x14] sm:$0xf] %vm386, 0
        %393 = vst.msk [vmem:[#allocation2 + $0x18] sm:$0xf] %vm386, 0
        %394 = vst.msk [vmem:[#allocation2 + $0x1c] sm:$0xf] %vm386, 0
        %395 = vst.msk [vmem:[#allocation2 + $0x20] sm:$0xf] %vm386, 0
        %396 = vst.msk [vmem:[#allocation2 + $0x24] sm:$0xf] %vm386, 0
        %397 = vst.msk [vmem:[#allocation2 + $0x28] sm:$0xf] %vm386, 0
        %398 = vst.msk [vmem:[#allocation2 + $0x2c] sm:$0xf] %vm386, 0
        %399 = vst.msk [vmem:[#allocation2 + $0x30] sm:$0xf] %vm386, 0
        %400 = vst.msk [vmem:[#allocation2 + $0x34] sm:$0xf] %vm386, 0
        %401 = vst.msk [vmem:[#allocation2 + $0x38] sm:$0xf] %vm386, 0
        %402 = vst.msk [vmem:[#allocation2 + $0x3c] sm:$0xf] %vm386, 0
        %403 = vst.msk [vmem:[#allocation2 + $0x40] sm:$0xf] %vm386, 0
        %404 = vst.msk [vmem:[#allocation2 + $0x44] sm:$0xf] %vm386, 0
        %405 = vst.msk [vmem:[#allocation2 + $0x48] sm:$0xf] %vm386, 0
        %406 = vst.msk [vmem:[#allocation2 + $0x4c] sm:$0xf] %vm386, 0
        %407 = vst.msk [vmem:[#allocation2 + $0x50] sm:$0xf] %vm386, 0
        %408 = vst.msk [vmem:[#allocation2 + $0x54] sm:$0xf] %vm386, 0
        %409 = vst.msk [vmem:[#allocation2 + $0x58] sm:$0xf] %vm386, 0
        %410 = vst.msk [vmem:[#allocation2 + $0x5c] sm:$0xf] %vm386, 0
        %411 = vst.msk [vmem:[#allocation2 + $0x60] sm:$0xf] %vm386, 0
        %412 = vst.msk [vmem:[#allocation2 + $0x64] sm:$0xf] %vm386, 0
        %413 = vst.msk [vmem:[#allocation2 + $0x68] sm:$0xf] %vm386, 0
        %414 = vst.msk [vmem:[#allocation2 + $0x6c] sm:$0xf] %vm386, 0
        %415 = vst.msk [vmem:[#allocation2 + $0x70] sm:$0xf] %vm386, 0
        %416 = vst.msk [vmem:[#allocation2 + $0x74] sm:$0xf] %vm386, 0
        %417 = vst.msk [vmem:[#allocation2 + $0x78] sm:$0xf] %vm386, 0
        %418 = vst.msk [vmem:[#allocation2 + $0x7c] sm:$0xf] %vm386, 0
        %419 = vst.msk [vmem:[#allocation2 + $0x80] sm:$0xf] %vm386, 0
        %420 = vst.msk [vmem:[#allocation2 + $0x84] sm:$0xf] %vm386, 0
        %421 = vst.msk [vmem:[#allocation2 + $0x88] sm:$0xf] %vm386, 0
        %422 = vst.msk [vmem:[#allocation2 + $0x8c] sm:$0xf] %vm386, 0
        %423 = vst.msk [vmem:[#allocation2 + $0x90] sm:$0xf] %vm386, 0
        %424 = vst.msk [vmem:[#allocation2 + $0x94] sm:$0xf] %vm386, 0
        %425 = vst.msk [vmem:[#allocation2 + $0x98] sm:$0xf] %vm386, 0
        %426 = vst.msk [vmem:[#allocation2 + $0x9c] sm:$0xf] %vm386, 0
        %427 = vst.msk [vmem:[#allocation2 + $0xa0] sm:$0xf] %vm386, 0
        %v428 = vld [vmem:[%s341] sm:$0xff]
        %v429 = vld [vmem:[%s341 + $0x8] sm:$0xff]
        %v430 = vpack.c.bf16 %v429, %v428
        %v432 = vunpack.c.l.b16 %v430
        %v433 = vunpack.c.h.b16 %v430
        %v434 = vpack.c.b16 %v432, %v432
        %v435 = vpack.c.b16 %v433, %v433
        %vm436 = vcmask 1041408
        %vm437 = vcmask 1045508
        %vm438 = vmor %vm436, %vm437
        %v439 = vrot.slane %v434, 6
        %v440 = vrot.slane %v439, 4
        %v441 = vrot.slane %v435, 6
        %v442 = vsel %vm438, %v440, %v441
        %v443 = vrot.slane %v441, 4
        %vm447 = vcmask 257026
        %448 = vst.msk [vmem:[#allocation2 + $0x8] sm:$0xc] %vm447, %v439
        %449 = vst.msk [vmem:[#allocation2 + $0xc] sm:$0xf] %vm386, %v442
        %vm450 = vcmask 254976
        %451 = vst.msk [vmem:[#allocation2 + $0x10] sm:$0x3] %vm450, %v443
        %v452 = vld [vmem:[%s341 + $0x10] sm:$0xff]
        %v453 = vld [vmem:[%s341 + $0x18] sm:$0xff]
        %v454 = vpack.c.bf16 %v453, %v452
        %v456 = vunpack.c.l.b16 %v454
        %v457 = vunpack.c.h.b16 %v454
        %v458 = vpack.c.b16 %v456, %v456
        %v459 = vpack.c.b16 %v457, %v457
        %vm460 = vcmask 1042432
        %vm461 = vcmask 1046532
        %vm462 = vmor %vm460, %vm461
        %v463 = vrot.slane %v458, 5
        %v464 = vrot.slane %v463, 4
        %v465 = vrot.slane %v459, 5
        %v466 = vsel %vm462, %v464, %v465
        %v467 = vrot.slane %v465, 4
        %vm471 = vcmask 257027
        %472 = vst.msk [vmem:[#allocation2 + $0x10] sm:$0x8] %vm471, %v463
        %473 = vst.msk [vmem:[#allocation2 + $0x14] sm:$0xf] %vm386, %v466
        %vm474 = vcmask 256000
        %475 = vst.msk [vmem:[#allocation2 + $0x18] sm:$0x7] %vm474, %v467
        %v476 = vld [vmem:[%s341 + $0x20] sm:$0xff]
        %v477 = vld [vmem:[%s341 + $0x28] sm:$0xff]
        %v478 = vpack.c.bf16 %v477, %v476
        %v480 = vunpack.c.l.b16 %v478
        %v481 = vunpack.c.h.b16 %v478
        %v482 = vpack.c.b16 %v480, %v480
        %v483 = vpack.c.b16 %v481, %v481
        %486 = vst.msk [vmem:[#allocation2 + $0x1c] sm:$0xf] %vm386, %v482
        %487 = vst.msk [vmem:[#allocation2 + $0x20] sm:$0xf] %vm386, %v483
        %v488 = vld [vmem:[%s341 + $0x30] sm:$0xff]
        %v489 = vld [vmem:[%s341 + $0x38] sm:$0xff]
        %v490 = vpack.c.bf16 %v489, %v488
        %v492 = vunpack.c.l.b16 %v490
        %v493 = vunpack.c.h.b16 %v490
        %v494 = vpack.c.b16 %v492, %v492
        %v495 = vpack.c.b16 %v493, %v493
        %vm496 = vcmask 1040384
        %vm497 = vcmask 1044484
        %vm498 = vmor %vm496, %vm497
        %v499 = vrot.slane %v494, 7
        %v500 = vrot.slane %v499, 4
        %v501 = vrot.slane %v495, 7
        %v502 = vsel %vm498, %v500, %v501
        %v503 = vrot.slane %v501, 4
        %vm507 = vcmask 257025
        %508 = vst.msk [vmem:[#allocation2 + $0x24] sm:$0xe] %vm507, %v499
        %509 = vst.msk [vmem:[#allocation2 + $0x28] sm:$0xf] %vm386, %v502
        %vm510 = vcmask 253952
        %511 = vst.msk [vmem:[#allocation2 + $0x2c] sm:$0x1] %vm510, %v503
        %v512 = vld [vmem:[%s341 + $0x40] sm:$0xff]
        %v513 = vld [vmem:[%s341 + $0x48] sm:$0xff]
        %v514 = vpack.c.bf16 %v513, %v512
        %v516 = vunpack.c.l.b16 %v514
        %v517 = vunpack.c.h.b16 %v514
        %v518 = vpack.c.b16 %v516, %v516
        %v519 = vpack.c.b16 %v517, %v517
        %v520 = vrot.slane %v518, 6
        %v521 = vrot.slane %v520, 4
        %v522 = vrot.slane %v519, 6
        %v523 = vsel %vm438, %v521, %v522
        %v524 = vrot.slane %v522, 4
        %528 = vst.msk [vmem:[#allocation2 + $0x2c] sm:$0xc] %vm447, %v520
        %529 = vst.msk [vmem:[#allocation2 + $0x30] sm:$0xf] %vm386, %v523
        %530 = vst.msk [vmem:[#allocation2 + $0x34] sm:$0x3] %vm450, %v524
        %v531 = vld [vmem:[%s341 + $0x50] sm:$0xff]
        %v532 = vld [vmem:[%s341 + $0x58] sm:$0xff]
        %v533 = vpack.c.bf16 %v532, %v531
        %v535 = vunpack.c.l.b16 %v533
        %v536 = vunpack.c.h.b16 %v533
        %v537 = vpack.c.b16 %v535, %v535
        %v538 = vpack.c.b16 %v536, %v536
        %v539 = vrot.slane %v537, 5
        %v540 = vrot.slane %v539, 4
        %v541 = vrot.slane %v538, 5
        %v542 = vsel %vm462, %v540, %v541
        %v543 = vrot.slane %v541, 4
        %547 = vst.msk [vmem:[#allocation2 + $0x34] sm:$0x8] %vm471, %v539
        %548 = vst.msk [vmem:[#allocation2 + $0x38] sm:$0xf] %vm386, %v542
        %549 = vst.msk [vmem:[#allocation2 + $0x3c] sm:$0x7] %vm474, %v543
        %v550 = vld [vmem:[%s341 + $0x60] sm:$0xff]
        %v551 = vld [vmem:[%s341 + $0x68] sm:$0xff]
        %v552 = vpack.c.bf16 %v551, %v550
        %v554 = vunpack.c.l.b16 %v552
        %v555 = vunpack.c.h.b16 %v552
        %v556 = vpack.c.b16 %v554, %v554
        %v557 = vpack.c.b16 %v555, %v555
        %560 = vst.msk [vmem:[#allocation2 + $0x40] sm:$0xf] %vm386, %v556
        %561 = vst.msk [vmem:[#allocation2 + $0x44] sm:$0xf] %vm386, %v557
        %v562 = vld [vmem:[%s341 + $0x70] sm:$0xff]
        %v563 = vld [vmem:[%s341 + $0x78] sm:$0xff]
        %v564 = vpack.c.bf16 %v563, %v562
        %v566 = vunpack.c.l.b16 %v564
        %v567 = vunpack.c.h.b16 %v564
        %v568 = vpack.c.b16 %v566, %v566
        %v569 = vpack.c.b16 %v567, %v567
        %v570 = vrot.slane %v568, 7
        %v571 = vrot.slane %v570, 4
        %v572 = vrot.slane %v569, 7
        %v573 = vsel %vm498, %v571, %v572
        %v574 = vrot.slane %v572, 4
        %578 = vst.msk [vmem:[#allocation2 + $0x48] sm:$0xe] %vm507, %v570
        %579 = vst.msk [vmem:[#allocation2 + $0x4c] sm:$0xf] %vm386, %v573
        %580 = vst.msk [vmem:[#allocation2 + $0x50] sm:$0x1] %vm510, %v574
        %v581 = vld [vmem:[%s341 + $0x80] sm:$0xff]
        %v582 = vld [vmem:[%s341 + $0x88] sm:$0xff]
        %v583 = vpack.c.bf16 %v582, %v581
        %v585 = vunpack.c.l.b16 %v583
        %v586 = vunpack.c.h.b16 %v583
        %v587 = vpack.c.b16 %v585, %v585
        %v588 = vpack.c.b16 %v586, %v586
        %v589 = vrot.slane %v587, 6
        %v590 = vrot.slane %v589, 4
        %v591 = vrot.slane %v588, 6
        %v592 = vsel %vm438, %v590, %v591
        %v593 = vrot.slane %v591, 4
        %597 = vst.msk [vmem:[#allocation2 + $0x50] sm:$0xc] %vm447, %v589
        %598 = vst.msk [vmem:[#allocation2 + $0x54] sm:$0xf] %vm386, %v592
        %599 = vst.msk [vmem:[#allocation2 + $0x58] sm:$0x3] %vm450, %v593
        %v600 = vld [vmem:[%s341 + $0x90] sm:$0xff]
        %v601 = vld [vmem:[%s341 + $0x98] sm:$0xff]
        %v602 = vpack.c.bf16 %v601, %v600
        %v604 = vunpack.c.l.b16 %v602
        %v605 = vunpack.c.h.b16 %v602
        %v606 = vpack.c.b16 %v604, %v604
        %v607 = vpack.c.b16 %v605, %v605
        %v608 = vrot.slane %v606, 5
        %v609 = vrot.slane %v608, 4
        %v610 = vrot.slane %v607, 5
        %v611 = vsel %vm462, %v609, %v610
        %v612 = vrot.slane %v610, 4
        %616 = vst.msk [vmem:[#allocation2 + $0x58] sm:$0x8] %vm471, %v608
        %617 = vst.msk [vmem:[#allocation2 + $0x5c] sm:$0xf] %vm386, %v611
        %618 = vst.msk [vmem:[#allocation2 + $0x60] sm:$0x7] %vm474, %v612
        %v619 = vld [vmem:[%s341 + $0xa0] sm:$0xff]
        %v620 = vld [vmem:[%s341 + $0xa8] sm:$0xff]
        %v621 = vpack.c.bf16 %v620, %v619
        %v623 = vunpack.c.l.b16 %v621
        %v624 = vunpack.c.h.b16 %v621
        %v625 = vpack.c.b16 %v623, %v623
        %v626 = vpack.c.b16 %v624, %v624
        %629 = vst.msk [vmem:[#allocation2 + $0x64] sm:$0xf] %vm386, %v625
        %630 = vst.msk [vmem:[#allocation2 + $0x68] sm:$0xf] %vm386, %v626
        %v631 = vld [vmem:[%s341 + $0xb0] sm:$0xff]
        %v632 = vld [vmem:[%s341 + $0xb8] sm:$0xff]
        %v633 = vpack.c.bf16 %v632, %v631
        %v635 = vunpack.c.l.b16 %v633
        %v636 = vunpack.c.h.b16 %v633
        %v637 = vpack.c.b16 %v635, %v635
        %v638 = vpack.c.b16 %v636, %v636
        %v639 = vrot.slane %v637, 7
        %v640 = vrot.slane %v639, 4
        %v641 = vrot.slane %v638, 7
        %v642 = vsel %vm498, %v640, %v641
        %v643 = vrot.slane %v641, 4
        %647 = vst.msk [vmem:[#allocation2 + $0x6c] sm:$0xe] %vm507, %v639
        %648 = vst.msk [vmem:[#allocation2 + $0x70] sm:$0xf] %vm386, %v642
        %649 = vst.msk [vmem:[#allocation2 + $0x74] sm:$0x1] %vm510, %v643
        %v650 = vld [vmem:[%s341 + $0xc0] sm:$0xff]
        %v651 = vld [vmem:[%s341 + $0xc8] sm:$0xff]
        %v652 = vpack.c.bf16 %v651, %v650
        %v654 = vunpack.c.l.b16 %v652
        %v655 = vunpack.c.h.b16 %v652
        %v656 = vpack.c.b16 %v654, %v654
        %v657 = vpack.c.b16 %v655, %v655
        %v658 = vrot.slane %v656, 6
        %v659 = vrot.slane %v658, 4
        %v660 = vrot.slane %v657, 6
        %v661 = vsel %vm438, %v659, %v660
        %v662 = vrot.slane %v660, 4
        %666 = vst.msk [vmem:[#allocation2 + $0x74] sm:$0xc] %vm447, %v658
        %667 = vst.msk [vmem:[#allocation2 + $0x78] sm:$0xf] %vm386, %v661
        %668 = vst.msk [vmem:[#allocation2 + $0x7c] sm:$0x3] %vm450, %v662
        %v669 = vld [vmem:[%s341 + $0xd0] sm:$0xff]
        %v670 = vld [vmem:[%s341 + $0xd8] sm:$0xff]
        %v671 = vpack.c.bf16 %v670, %v669
        %v673 = vunpack.c.l.b16 %v671
        %v674 = vunpack.c.h.b16 %v671
        %v675 = vpack.c.b16 %v673, %v673
        %v676 = vpack.c.b16 %v674, %v674
        %v677 = vrot.slane %v675, 5
        %v678 = vrot.slane %v677, 4
        %v679 = vrot.slane %v676, 5
        %v680 = vsel %vm462, %v678, %v679
        %v681 = vrot.slane %v679, 4
        %685 = vst.msk [vmem:[#allocation2 + $0x7c] sm:$0x8] %vm471, %v677
        %686 = vst.msk [vmem:[#allocation2 + $0x80] sm:$0xf] %vm386, %v680
        %687 = vst.msk [vmem:[#allocation2 + $0x84] sm:$0x7] %vm474, %v681
        %v688 = vld [vmem:[%s341 + $0xe0] sm:$0xff]
        %v689 = vld [vmem:[%s341 + $0xe8] sm:$0xff]
        %v690 = vpack.c.bf16 %v689, %v688
        %v692 = vunpack.c.l.b16 %v690
        %v693 = vunpack.c.h.b16 %v690
        %v694 = vpack.c.b16 %v692, %v692
        %v695 = vpack.c.b16 %v693, %v693
        %698 = vst.msk [vmem:[#allocation2 + $0x88] sm:$0xf] %vm386, %v694
        %699 = vst.msk [vmem:[#allocation2 + $0x8c] sm:$0xf] %vm386, %v695
        %v700 = vld [vmem:[%s341 + $0xf0] sm:$0xff]
        %v701 = vld [vmem:[%s341 + $0xf8] sm:$0xff]
        %v702 = vpack.c.bf16 %v701, %v700
        %v704 = vunpack.c.l.b16 %v702
        %v705 = vunpack.c.h.b16 %v702
        %v706 = vpack.c.b16 %v704, %v704
        %v707 = vpack.c.b16 %v705, %v705
        %v708 = vrot.slane %v706, 7
        %v709 = vrot.slane %v708, 4
        %v710 = vrot.slane %v707, 7
        %v711 = vsel %vm498, %v709, %v710
        %v712 = vrot.slane %v710, 4
        %716 = vst.msk [vmem:[#allocation2 + $0x90] sm:$0xe] %vm507, %v708
        %717 = vst.msk [vmem:[#allocation2 + $0x94] sm:$0xf] %vm386, %v711
        %718 = vst.msk [vmem:[#allocation2 + $0x98] sm:$0x1] %vm510, %v712
        %v719 = vld [vmem:[#allocation2] sm:$0xf]
        %v720 = vld [vmem:[#allocation2 + $0x4] sm:$0xf]
        %v721 = vld [vmem:[#allocation2 + $0x8] sm:$0xf]
        %v722 = vld [vmem:[#allocation2 + $0xc] sm:$0xf]
        %v723 = vld [vmem:[#allocation2 + $0x10] sm:$0xf]
        %v724 = vld [vmem:[#allocation2 + $0x14] sm:$0xf]
        %v725 = vld [vmem:[#allocation2 + $0x18] sm:$0xf]
        %v726 = vld [vmem:[#allocation2 + $0x1c] sm:$0xf]
        %v727 = vld [vmem:[#allocation2 + $0x20] sm:$0xf]
        %v728 = vld [vmem:[#allocation2 + $0x24] sm:$0xf]
        %v729 = vld [vmem:[#allocation2 + $0x28] sm:$0xf]
        %v730 = vld [vmem:[#allocation2 + $0x2c] sm:$0xf]
        %v731 = vld [vmem:[#allocation2 + $0x30] sm:$0xf]
        %v732 = vld [vmem:[#allocation2 + $0x34] sm:$0xf]
        %v733 = vld [vmem:[#allocation2 + $0x38] sm:$0xf]
        %v734 = vld [vmem:[#allocation2 + $0x3c] sm:$0xf]
        %v735 = vld [vmem:[#allocation2 + $0x40] sm:$0xf]
        %v736 = vld [vmem:[#allocation2 + $0x44] sm:$0xf]
        %v737 = vld [vmem:[#allocation2 + $0x48] sm:$0xf]
        %v738 = vld [vmem:[#allocation2 + $0x4c] sm:$0xf]
        %v739 = vld [vmem:[#allocation2 + $0x50] sm:$0xf]
        %v740 = vld [vmem:[#allocation2 + $0x54] sm:$0xf]
        %v741 = vld [vmem:[#allocation2 + $0x58] sm:$0xf]
        %v742 = vld [vmem:[#allocation2 + $0x5c] sm:$0xf]
        %v743 = vld [vmem:[#allocation2 + $0x60] sm:$0xf]
        %v744 = vld [vmem:[#allocation2 + $0x64] sm:$0xf]
        %v745 = vld [vmem:[#allocation2 + $0x68] sm:$0xf]
        %v746 = vld [vmem:[#allocation2 + $0x6c] sm:$0xf]
        %v747 = vld [vmem:[#allocation2 + $0x70] sm:$0xf]
        %v748 = vld [vmem:[#allocation2 + $0x74] sm:$0xf]
        %v749 = vld [vmem:[#allocation2 + $0x78] sm:$0xf]
        %v750 = vld [vmem:[#allocation2 + $0x7c] sm:$0xf]
        %v751 = vld [vmem:[#allocation2 + $0x80] sm:$0xf]
        %v752 = vld [vmem:[#allocation2 + $0x84] sm:$0xf]
        %v753 = vld [vmem:[#allocation2 + $0x88] sm:$0xf]
        %v754 = vld [vmem:[#allocation2 + $0x8c] sm:$0xf]
        %v755 = vld [vmem:[#allocation2 + $0x90] sm:$0x1]
        %v793 = vunpack.c.l.b16 %v719
        %v794 = vunpack.c.l.b16 %v720
        %v795 = vunpack.c.l.b16 %v721
        %v796 = vunpack.c.l.b16 %v722
        %v797 = vunpack.c.l.b16 %v723
        %v798 = vunpack.c.l.b16 %v724
        %v799 = vunpack.c.l.b16 %v725
        %v800 = vunpack.c.l.b16 %v726
        %v801 = vunpack.c.l.b16 %v727
        %v802 = vunpack.c.l.b16 %v728
        %v803 = vunpack.c.l.b16 %v729
        %v804 = vunpack.c.l.b16 %v730
        %v805 = vunpack.c.l.b16 %v731
        %v806 = vunpack.c.l.b16 %v732
        %v807 = vunpack.c.l.b16 %v733
        %v808 = vunpack.c.l.b16 %v734
        %v809 = vunpack.c.l.b16 %v735
        %v810 = vunpack.c.l.b16 %v736
        %v811 = vunpack.c.l.b16 %v737
        %v812 = vunpack.c.l.b16 %v738
        %v813 = vunpack.c.l.b16 %v739
        %v814 = vunpack.c.l.b16 %v740
        %v815 = vunpack.c.l.b16 %v741
        %v816 = vunpack.c.l.b16 %v742
        %v817 = vunpack.c.l.b16 %v743
        %v818 = vunpack.c.l.b16 %v744
        %v819 = vunpack.c.l.b16 %v745
        %v820 = vunpack.c.l.b16 %v746
        %v821 = vunpack.c.l.b16 %v747
        %v822 = vunpack.c.l.b16 %v748
        %v823 = vunpack.c.l.b16 %v749
        %v824 = vunpack.c.l.b16 %v750
        %v825 = vunpack.c.l.b16 %v751
        %v826 = vunpack.c.l.b16 %v752
        %v827 = vunpack.c.l.b16 %v753
        %v828 = vunpack.c.l.b16 %v754
        %v829 = vunpack.c.l.b16 %v755
        %v830 = vpack.c.b16 %v794, %v793
        %v831 = vpack.c.b16 %v796, %v795
        %v832 = vpack.c.b16 %v798, %v797
        %v833 = vpack.c.b16 %v800, %v799
        %v834 = vpack.c.b16 %v802, %v801
        %v835 = vpack.c.b16 %v804, %v803
        %v836 = vpack.c.b16 %v806, %v805
        %v837 = vpack.c.b16 %v808, %v807
        %v838 = vpack.c.b16 %v810, %v809
        %v839 = vpack.c.b16 %v812, %v811
        %v840 = vpack.c.b16 %v814, %v813
        %v841 = vpack.c.b16 %v816, %v815
        %v842 = vpack.c.b16 %v818, %v817
        %v843 = vpack.c.b16 %v820, %v819
        %v844 = vpack.c.b16 %v822, %v821
        %v845 = vpack.c.b16 %v824, %v823
        %v846 = vpack.c.b16 %v826, %v825
        %v847 = vpack.c.b16 %v828, %v827
        %v848 = vpack.c.b16 %v829, %v829
        %vm849 = vsmask.f32 7424
        %v851 = vshrl.u32 %v830, 16
        %v853 = vshll.u32 %v830, 16
        %v855 = vrot.slane %v853, 1
        %v856 = vor.u32 %v851, %v855
        %v858 = vshll.u32 %v831, 16
        %v860 = vrot.slane %v858, 1
        %v861 = vsel %vm849, %v856, %v860
        %v862 = vshrl.u32 %v831, 16
        %v864 = vor.u32 %v862, %v860
        %v866 = vshll.u32 %v832, 16
        %v868 = vrot.slane %v866, 1
        %v869 = vsel %vm849, %v864, %v868
        %v870 = vshrl.u32 %v832, 16
        %v872 = vor.u32 %v870, %v868
        %v874 = vshll.u32 %v833, 16
        %v876 = vrot.slane %v874, 1
        %v877 = vsel %vm849, %v872, %v876
        %v878 = vshrl.u32 %v833, 16
        %v880 = vor.u32 %v878, %v876
        %v882 = vshll.u32 %v834, 16
        %v884 = vrot.slane %v882, 1
        %v885 = vsel %vm849, %v880, %v884
        %v886 = vshrl.u32 %v834, 16
        %v888 = vor.u32 %v886, %v884
        %v890 = vshll.u32 %v835, 16
        %v892 = vrot.slane %v890, 1
        %v893 = vsel %vm849, %v888, %v892
        %v894 = vshrl.u32 %v835, 16
        %v896 = vor.u32 %v894, %v892
        %v898 = vshll.u32 %v836, 16
        %v900 = vrot.slane %v898, 1
        %v901 = vsel %vm849, %v896, %v900
        %v902 = vshrl.u32 %v836, 16
        %v904 = vor.u32 %v902, %v900
        %v906 = vshll.u32 %v837, 16
        %v908 = vrot.slane %v906, 1
        %v909 = vsel %vm849, %v904, %v908
        %v910 = vshrl.u32 %v837, 16
        %v912 = vor.u32 %v910, %v908
        %v914 = vshll.u32 %v838, 16
        %v916 = vrot.slane %v914, 1
        %v917 = vsel %vm849, %v912, %v916
        %v918 = vshrl.u32 %v838, 16
        %v920 = vor.u32 %v918, %v916
        %v922 = vshll.u32 %v839, 16
        %v924 = vrot.slane %v922, 1
        %v925 = vsel %vm849, %v920, %v924
        %v926 = vshrl.u32 %v839, 16
        %v928 = vor.u32 %v926, %v924
        %v930 = vshll.u32 %v840, 16
        %v932 = vrot.slane %v930, 1
        %v933 = vsel %vm849, %v928, %v932
        %v934 = vshrl.u32 %v840, 16
        %v936 = vor.u32 %v934, %v932
        %v938 = vshll.u32 %v841, 16
        %v940 = vrot.slane %v938, 1
        %v941 = vsel %vm849, %v936, %v940
        %v942 = vshrl.u32 %v841, 16
        %v944 = vor.u32 %v942, %v940
        %v946 = vshll.u32 %v842, 16
        %v948 = vrot.slane %v946, 1
        %v949 = vsel %vm849, %v944, %v948
        %v950 = vshrl.u32 %v842, 16
        %v952 = vor.u32 %v950, %v948
        %v954 = vshll.u32 %v843, 16
        %v956 = vrot.slane %v954, 1
        %v957 = vsel %vm849, %v952, %v956
        %v958 = vshrl.u32 %v843, 16
        %v960 = vor.u32 %v958, %v956
        %v962 = vshll.u32 %v844, 16
        %v964 = vrot.slane %v962, 1
        %v965 = vsel %vm849, %v960, %v964
        %v966 = vshrl.u32 %v844, 16
        %v968 = vor.u32 %v966, %v964
        %v970 = vshll.u32 %v845, 16
        %v972 = vrot.slane %v970, 1
        %v973 = vsel %vm849, %v968, %v972
        %v974 = vshrl.u32 %v845, 16
        %v976 = vor.u32 %v974, %v972
        %v978 = vshll.u32 %v846, 16
        %v980 = vrot.slane %v978, 1
        %v981 = vsel %vm849, %v976, %v980
        %v982 = vshrl.u32 %v846, 16
        %v984 = vor.u32 %v982, %v980
        %v986 = vshll.u32 %v847, 16
        %v988 = vrot.slane %v986, 1
        %v989 = vsel %vm849, %v984, %v988
        %v990 = vshrl.u32 %v847, 16
        %v992 = vor.u32 %v990, %v988
        %v994 = vshll.u32 %v848, 16
        %v996 = vrot.slane %v994, 1
        %v997 = vsel %vm849, %v992, %v996
        %vm1016 = vcmask 261120
        %1017 = vst.msk [vmem:[#allocation4] sm:$0xff] %vm1016, %v861
        %1018 = vst.msk [vmem:[#allocation4 + $0x18] sm:$0xff] %vm1016, %v869
        %1019 = vst.msk [vmem:[#allocation4 + $0x30] sm:$0xff] %vm1016, %v877
        %1020 = vst.msk [vmem:[#allocation4 + $0x48] sm:$0xff] %vm1016, %v885
        %1021 = vst.msk [vmem:[#allocation4 + $0x60] sm:$0xff] %vm1016, %v893
        %1022 = vst.msk [vmem:[#allocation4 + $0x78] sm:$0xff] %vm1016, %v901
        %1023 = vst.msk [vmem:[#allocation4 + $0x90] sm:$0xff] %vm1016, %v909
        %1024 = vst.msk [vmem:[#allocation4 + $0xa8] sm:$0xff] %vm1016, %v917
        %1025 = vst.msk [vmem:[#allocation4 + $0xc0] sm:$0xff] %vm1016, %v925
        %1026 = vst.msk [vmem:[#allocation4 + $0xd8] sm:$0xff] %vm1016, %v933
        %1027 = vst.msk [vmem:[#allocation4 + $0xf0] sm:$0xff] %vm1016, %v941
        %1028 = vst.msk [vmem:[#allocation4 + $0x108] sm:$0xff] %vm1016, %v949
        %1029 = vst.msk [vmem:[#allocation4 + $0x120] sm:$0xff] %vm1016, %v957
        %1030 = vst.msk [vmem:[#allocation4 + $0x138] sm:$0xff] %vm1016, %v965
        %1031 = vst.msk [vmem:[#allocation4 + $0x150] sm:$0xff] %vm1016, %v973
        %1032 = vst.msk [vmem:[#allocation4 + $0x168] sm:$0xff] %vm1016, %v981
        %1033 = vst.msk [vmem:[#allocation4 + $0x180] sm:$0xff] %vm1016, %v989
        %1034 = vst.msk [vmem:[#allocation4 + $0x198] sm:$0xff] %vm1016, %v997
        %v1035 = vld [vmem:[#allocation2] sm:$0xe]
        %v1036 = vld [vmem:[#allocation2 + $0x4] sm:$0xf]
        %v1037 = vld [vmem:[#allocation2 + $0x8] sm:$0xf]
        %v1038 = vld [vmem:[#allocation2 + $0xc] sm:$0xf]
        %v1039 = vld [vmem:[#allocation2 + $0x10] sm:$0xf]
        %v1040 = vld [vmem:[#allocation2 + $0x14] sm:$0xf]
        %v1041 = vld [vmem:[#allocation2 + $0x18] sm:$0xf]
        %v1042 = vld [vmem:[#allocation2 + $0x1c] sm:$0xf]
        %v1043 = vld [vmem:[#allocation2 + $0x20] sm:$0xf]
        %v1044 = vld [vmem:[#allocation2 + $0x24] sm:$0xf]
        %v1045 = vld [vmem:[#allocation2 + $0x28] sm:$0xf]
        %v1046 = vld [vmem:[#allocation2 + $0x2c] sm:$0xf]
        %v1047 = vld [vmem:[#allocation2 + $0x30] sm:$0xf]
        %v1048 = vld [vmem:[#allocation2 + $0x34] sm:$0xf]
        %v1049 = vld [vmem:[#allocation2 + $0x38] sm:$0xf]
        %v1050 = vld [vmem:[#allocation2 + $0x3c] sm:$0xf]
        %v1051 = vld [vmem:[#allocation2 + $0x40] sm:$0xf]
        %v1052 = vld [vmem:[#allocation2 + $0x44] sm:$0xf]
        %v1053 = vld [vmem:[#allocation2 + $0x48] sm:$0xf]
        %v1054 = vld [vmem:[#allocation2 + $0x4c] sm:$0xf]
        %v1055 = vld [vmem:[#allocation2 + $0x50] sm:$0xf]
        %v1056 = vld [vmem:[#allocation2 + $0x54] sm:$0xf]
        %v1057 = vld [vmem:[#allocation2 + $0x58] sm:$0xf]
        %v1058 = vld [vmem:[#allocation2 + $0x5c] sm:$0xf]
        %v1059 = vld [vmem:[#allocation2 + $0x60] sm:$0xf]
        %v1060 = vld [vmem:[#allocation2 + $0x64] sm:$0xf]
        %v1061 = vld [vmem:[#allocation2 + $0x68] sm:$0xf]
        %v1062 = vld [vmem:[#allocation2 + $0x6c] sm:$0xf]
        %v1063 = vld [vmem:[#allocation2 + $0x70] sm:$0xf]
        %v1064 = vld [vmem:[#allocation2 + $0x74] sm:$0xf]
        %v1065 = vld [vmem:[#allocation2 + $0x78] sm:$0xf]
        %v1066 = vld [vmem:[#allocation2 + $0x7c] sm:$0xf]
        %v1067 = vld [vmem:[#allocation2 + $0x80] sm:$0xf]
        %v1068 = vld [vmem:[#allocation2 + $0x84] sm:$0xf]
        %v1069 = vld [vmem:[#allocation2 + $0x88] sm:$0xf]
        %v1070 = vld [vmem:[#allocation2 + $0x8c] sm:$0xf]
        %v1071 = vld [vmem:[#allocation2 + $0x90] sm:$0x1]
        %v1109 = vunpack.c.l.b16 %v1035
        %v1110 = vunpack.c.l.b16 %v1036
        %v1111 = vunpack.c.l.b16 %v1037
        %v1112 = vunpack.c.l.b16 %v1038
        %v1113 = vunpack.c.l.b16 %v1039
        %v1114 = vunpack.c.l.b16 %v1040
        %v1115 = vunpack.c.l.b16 %v1041
        %v1116 = vunpack.c.l.b16 %v1042
        %v1117 = vunpack.c.l.b16 %v1043
        %v1118 = vunpack.c.l.b16 %v1044
        %v1119 = vunpack.c.l.b16 %v1045
        %v1120 = vunpack.c.l.b16 %v1046
        %v1121 = vunpack.c.l.b16 %v1047
        %v1122 = vunpack.c.l.b16 %v1048
        %v1123 = vunpack.c.l.b16 %v1049
        %v1124 = vunpack.c.l.b16 %v1050
        %v1125 = vunpack.c.l.b16 %v1051
        %v1126 = vunpack.c.l.b16 %v1052
        %v1127 = vunpack.c.l.b16 %v1053
        %v1128 = vunpack.c.l.b16 %v1054
        %v1129 = vunpack.c.l.b16 %v1055
        %v1130 = vunpack.c.l.b16 %v1056
        %v1131 = vunpack.c.l.b16 %v1057
        %v1132 = vunpack.c.l.b16 %v1058
        %v1133 = vunpack.c.l.b16 %v1059
        %v1134 = vunpack.c.l.b16 %v1060
        %v1135 = vunpack.c.l.b16 %v1061
        %v1136 = vunpack.c.l.b16 %v1062
        %v1137 = vunpack.c.l.b16 %v1063
        %v1138 = vunpack.c.l.b16 %v1064
        %v1139 = vunpack.c.l.b16 %v1065
        %v1140 = vunpack.c.l.b16 %v1066
        %v1141 = vunpack.c.l.b16 %v1067
        %v1142 = vunpack.c.l.b16 %v1068
        %v1143 = vunpack.c.l.b16 %v1069
        %v1144 = vunpack.c.l.b16 %v1070
        %v1145 = vunpack.c.l.b16 %v1071
        %v1146 = vpack.c.b16 %v1110, %v1109
        %v1147 = vpack.c.b16 %v1112, %v1111
        %v1148 = vpack.c.b16 %v1114, %v1113
        %v1149 = vpack.c.b16 %v1116, %v1115
        %v1150 = vpack.c.b16 %v1118, %v1117
        %v1151 = vpack.c.b16 %v1120, %v1119
        %v1152 = vpack.c.b16 %v1122, %v1121
        %v1153 = vpack.c.b16 %v1124, %v1123
        %v1154 = vpack.c.b16 %v1126, %v1125
        %v1155 = vpack.c.b16 %v1128, %v1127
        %v1156 = vpack.c.b16 %v1130, %v1129
        %v1157 = vpack.c.b16 %v1132, %v1131
        %v1158 = vpack.c.b16 %v1134, %v1133
        %v1159 = vpack.c.b16 %v1136, %v1135
        %v1160 = vpack.c.b16 %v1138, %v1137
        %v1161 = vpack.c.b16 %v1140, %v1139
        %v1162 = vpack.c.b16 %v1142, %v1141
        %v1163 = vpack.c.b16 %v1144, %v1143
        %v1164 = vpack.c.b16 %v1145, %v1145
        %vm1165 = vcmask 1046528
        %v1166 = vrot.slane %v1146, 1
        %v1167 = vrot.slane %v1147, 1
        %v1168 = vsel %vm1165, %v1166, %v1167
        %v1169 = vrot.slane %v1148, 1
        %v1170 = vsel %vm1165, %v1167, %v1169
        %v1171 = vrot.slane %v1149, 1
        %v1172 = vsel %vm1165, %v1169, %v1171
        %v1173 = vrot.slane %v1150, 1
        %v1174 = vsel %vm1165, %v1171, %v1173
        %v1175 = vrot.slane %v1151, 1
        %v1176 = vsel %vm1165, %v1173, %v1175
        %v1177 = vrot.slane %v1152, 1
        %v1178 = vsel %vm1165, %v1175, %v1177
        %v1179 = vrot.slane %v1153, 1
        %v1180 = vsel %vm1165, %v1177, %v1179
        %v1181 = vrot.slane %v1154, 1
        %v1182 = vsel %vm1165, %v1179, %v1181
        %v1183 = vrot.slane %v1155, 1
        %v1184 = vsel %vm1165, %v1181, %v1183
        %v1185 = vrot.slane %v1156, 1
        %v1186 = vsel %vm1165, %v1183, %v1185
        %v1187 = vrot.slane %v1157, 1
        %v1188 = vsel %vm1165, %v1185, %v1187
        %v1189 = vrot.slane %v1158, 1
        %v1190 = vsel %vm1165, %v1187, %v1189
        %v1191 = vrot.slane %v1159, 1
        %v1192 = vsel %vm1165, %v1189, %v1191
        %v1193 = vrot.slane %v1160, 1
        %v1194 = vsel %vm1165, %v1191, %v1193
        %v1195 = vrot.slane %v1161, 1
        %v1196 = vsel %vm1165, %v1193, %v1195
        %v1197 = vrot.slane %v1162, 1
        %v1198 = vsel %vm1165, %v1195, %v1197
        %v1199 = vrot.slane %v1163, 1
        %v1200 = vsel %vm1165, %v1197, %v1199
        %v1201 = vrot.slane %v1164, 1
        %v1202 = vsel %vm1165, %v1199, %v1201
        %1203 = vrot.lane.b32.xlu0 %v1168, 32
        %v1204 = vpop.permute.xlu0 %1203
        %1205 = vrot.lane.b32.xlu0 %v1170, 32
        %v1206 = vpop.permute.xlu0 %1205
        %1207 = vrot.lane.b32.xlu0 %v1172, 32
        %v1208 = vpop.permute.xlu0 %1207
        %1209 = vrot.lane.b32.xlu0 %v1174, 32
        %v1210 = vpop.permute.xlu0 %1209
        %1211 = vrot.lane.b32.xlu0 %v1176, 32
        %v1212 = vpop.permute.xlu0 %1211
        %1213 = vrot.lane.b32.xlu0 %v1178, 32
        %v1214 = vpop.permute.xlu0 %1213
        %1215 = vrot.lane.b32.xlu0 %v1180, 32
        %v1216 = vpop.permute.xlu0 %1215
        %1217 = vrot.lane.b32.xlu0 %v1182, 32
        %v1218 = vpop.permute.xlu0 %1217
        %1219 = vrot.lane.b32.xlu0 %v1184, 32
        %v1220 = vpop.permute.xlu0 %1219
        %1221 = vrot.lane.b32.xlu0 %v1186, 32
        %v1222 = vpop.permute.xlu0 %1221
        %1223 = vrot.lane.b32.xlu0 %v1188, 32
        %v1224 = vpop.permute.xlu0 %1223
        %1225 = vrot.lane.b32.xlu0 %v1190, 32
        %v1226 = vpop.permute.xlu0 %1225
        %1227 = vrot.lane.b32.xlu0 %v1192, 32
        %v1228 = vpop.permute.xlu0 %1227
        %1229 = vrot.lane.b32.xlu0 %v1194, 32
        %v1230 = vpop.permute.xlu0 %1229
        %1231 = vrot.lane.b32.xlu0 %v1196, 32
        %v1232 = vpop.permute.xlu0 %1231
        %1233 = vrot.lane.b32.xlu0 %v1198, 32
        %v1234 = vpop.permute.xlu0 %1233
        %1235 = vrot.lane.b32.xlu0 %v1200, 32
        %v1236 = vpop.permute.xlu0 %1235
        %1237 = vrot.lane.b32.xlu0 %v1202, 32
        %v1238 = vpop.permute.xlu0 %1237
        %vm1257 = vcmask 523520
        %1258 = vst.msk [vmem:[#allocation4] sm:$0xff] %vm1257, %v1204
        %1259 = vst.msk [vmem:[#allocation4 + $0x18] sm:$0xff] %vm1257, %v1206
        %1260 = vst.msk [vmem:[#allocation4 + $0x30] sm:$0xff] %vm1257, %v1208
        %1261 = vst.msk [vmem:[#allocation4 + $0x48] sm:$0xff] %vm1257, %v1210
        %1262 = vst.msk [vmem:[#allocation4 + $0x60] sm:$0xff] %vm1257, %v1212
        %1263 = vst.msk [vmem:[#allocation4 + $0x78] sm:$0xff] %vm1257, %v1214
        %1264 = vst.msk [vmem:[#allocation4 + $0x90] sm:$0xff] %vm1257, %v1216
        %1265 = vst.msk [vmem:[#allocation4 + $0xa8] sm:$0xff] %vm1257, %v1218
        %1266 = vst.msk [vmem:[#allocation4 + $0xc0] sm:$0xff] %vm1257, %v1220
        %1267 = vst.msk [vmem:[#allocation4 + $0xd8] sm:$0xff] %vm1257, %v1222
        %1268 = vst.msk [vmem:[#allocation4 + $0xf0] sm:$0xff] %vm1257, %v1224
        %1269 = vst.msk [vmem:[#allocation4 + $0x108] sm:$0xff] %vm1257, %v1226
        %1270 = vst.msk [vmem:[#allocation4 + $0x120] sm:$0xff] %vm1257, %v1228
        %1271 = vst.msk [vmem:[#allocation4 + $0x138] sm:$0xff] %vm1257, %v1230
        %1272 = vst.msk [vmem:[#allocation4 + $0x150] sm:$0xff] %vm1257, %v1232
        %1273 = vst.msk [vmem:[#allocation4 + $0x168] sm:$0xff] %vm1257, %v1234
        %1274 = vst.msk [vmem:[#allocation4 + $0x180] sm:$0xff] %vm1257, %v1236
        %1275 = vst.msk [vmem:[#allocation4 + $0x198] sm:$0xff] %vm1257, %v1238
        %v1276 = vld [vmem:[#allocation2] sm:$0xe]
        %v1277 = vld [vmem:[#allocation2 + $0x4] sm:$0xf]
        %v1278 = vld [vmem:[#allocation2 + $0x8] sm:$0xf]
        %v1279 = vld [vmem:[#allocation2 + $0xc] sm:$0xf]
        %v1280 = vld [vmem:[#allocation2 + $0x10] sm:$0xf]
        %v1281 = vld [vmem:[#allocation2 + $0x14] sm:$0xf]
        %v1282 = vld [vmem:[#allocation2 + $0x18] sm:$0xf]
        %v1283 = vld [vmem:[#allocation2 + $0x1c] sm:$0xf]
        %v1284 = vld [vmem:[#allocation2 + $0x20] sm:$0xf]
        %v1285 = vld [vmem:[#allocation2 + $0x24] sm:$0xf]
        %v1286 = vld [vmem:[#allocation2 + $0x28] sm:$0xf]
        %v1287 = vld [vmem:[#allocation2 + $0x2c] sm:$0xf]
        %v1288 = vld [vmem:[#allocation2 + $0x30] sm:$0xf]
        %v1289 = vld [vmem:[#allocation2 + $0x34] sm:$0xf]
        %v1290 = vld [vmem:[#allocation2 + $0x38] sm:$0xf]
        %v1291 = vld [vmem:[#allocation2 + $0x3c] sm:$0xf]
        %v1292 = vld [vmem:[#allocation2 + $0x40] sm:$0xf]
        %v1293 = vld [vmem:[#allocation2 + $0x44] sm:$0xf]
        %v1294 = vld [vmem:[#allocation2 + $0x48] sm:$0xf]
        %v1295 = vld [vmem:[#allocation2 + $0x4c] sm:$0xf]
        %v1296 = vld [vmem:[#allocation2 + $0x50] sm:$0xf]
        %v1297 = vld [vmem:[#allocation2 + $0x54] sm:$0xf]
        %v1298 = vld [vmem:[#allocation2 + $0x58] sm:$0xf]
        %v1299 = vld [vmem:[#allocation2 + $0x5c] sm:$0xf]
        %v1300 = vld [vmem:[#allocation2 + $0x60] sm:$0xf]
        %v1301 = vld [vmem:[#allocation2 + $0x64] sm:$0xf]
        %v1302 = vld [vmem:[#allocation2 + $0x68] sm:$0xf]
        %v1303 = vld [vmem:[#allocation2 + $0x6c] sm:$0xf]
        %v1304 = vld [vmem:[#allocation2 + $0x70] sm:$0xf]
        %v1305 = vld [vmem:[#allocation2 + $0x74] sm:$0xf]
        %v1306 = vld [vmem:[#allocation2 + $0x78] sm:$0xf]
        %v1307 = vld [vmem:[#allocation2 + $0x7c] sm:$0xf]
        %v1308 = vld [vmem:[#allocation2 + $0x80] sm:$0xf]
        %v1309 = vld [vmem:[#allocation2 + $0x84] sm:$0xf]
        %v1310 = vld [vmem:[#allocation2 + $0x88] sm:$0xf]
        %v1311 = vld [vmem:[#allocation2 + $0x8c] sm:$0xf]
        %v1312 = vld [vmem:[#allocation2 + $0x90] sm:$0x3]
        %v1350 = vunpack.c.l.b16 %v1276
        %v1351 = vunpack.c.l.b16 %v1277
        %v1352 = vunpack.c.l.b16 %v1278
        %v1353 = vunpack.c.l.b16 %v1279
        %v1354 = vunpack.c.l.b16 %v1280
        %v1355 = vunpack.c.l.b16 %v1281
        %v1356 = vunpack.c.l.b16 %v1282
        %v1357 = vunpack.c.l.b16 %v1283
        %v1358 = vunpack.c.l.b16 %v1284
        %v1359 = vunpack.c.l.b16 %v1285
        %v1360 = vunpack.c.l.b16 %v1286
        %v1361 = vunpack.c.l.b16 %v1287
        %v1362 = vunpack.c.l.b16 %v1288
        %v1363 = vunpack.c.l.b16 %v1289
        %v1364 = vunpack.c.l.b16 %v1290
        %v1365 = vunpack.c.l.b16 %v1291
        %v1366 = vunpack.c.l.b16 %v1292
        %v1367 = vunpack.c.l.b16 %v1293
        %v1368 = vunpack.c.l.b16 %v1294
        %v1369 = vunpack.c.l.b16 %v1295
        %v1370 = vunpack.c.l.b16 %v1296
        %v1371 = vunpack.c.l.b16 %v1297
        %v1372 = vunpack.c.l.b16 %v1298
        %v1373 = vunpack.c.l.b16 %v1299
        %v1374 = vunpack.c.l.b16 %v1300
        %v1375 = vunpack.c.l.b16 %v1301
        %v1376 = vunpack.c.l.b16 %v1302
        %v1377 = vunpack.c.l.b16 %v1303
        %v1378 = vunpack.c.l.b16 %v1304
        %v1379 = vunpack.c.l.b16 %v1305
        %v1380 = vunpack.c.l.b16 %v1306
        %v1381 = vunpack.c.l.b16 %v1307
        %v1382 = vunpack.c.l.b16 %v1308
        %v1383 = vunpack.c.l.b16 %v1309
        %v1384 = vunpack.c.l.b16 %v1310
        %v1385 = vunpack.c.l.b16 %v1311
        %v1386 = vunpack.c.l.b16 %v1312
        %v1387 = vpack.c.b16 %v1351, %v1350
        %v1388 = vpack.c.b16 %v1353, %v1352
        %v1389 = vpack.c.b16 %v1355, %v1354
        %v1390 = vpack.c.b16 %v1357, %v1356
        %v1391 = vpack.c.b16 %v1359, %v1358
        %v1392 = vpack.c.b16 %v1361, %v1360
        %v1393 = vpack.c.b16 %v1363, %v1362
        %v1394 = vpack.c.b16 %v1365, %v1364
        %v1395 = vpack.c.b16 %v1367, %v1366
        %v1396 = vpack.c.b16 %v1369, %v1368
        %v1397 = vpack.c.b16 %v1371, %v1370
        %v1398 = vpack.c.b16 %v1373, %v1372
        %v1399 = vpack.c.b16 %v1375, %v1374
        %v1400 = vpack.c.b16 %v1377, %v1376
        %v1401 = vpack.c.b16 %v1379, %v1378
        %v1402 = vpack.c.b16 %v1381, %v1380
        %v1403 = vpack.c.b16 %v1383, %v1382
        %v1404 = vpack.c.b16 %v1385, %v1384
        %v1405 = vpack.c.b16 %v1386, %v1386
        %vm1406 = vsmask.f32 6400
        %v1408 = vshrl.u32 %v1387, 16
        %v1410 = vrot.slane %v1408, 1
        %v1411 = vshll.u32 %v1387, 16
        %v1413 = vrot.slane %v1411, 2
        %v1414 = vor.u32 %v1410, %v1413
        %v1416 = vshrl.u32 %v1388, 16
        %v1418 = vrot.slane %v1416, 1
        %v1419 = vshll.u32 %v1388, 16
        %v1421 = vrot.slane %v1419, 2
        %v1422 = vor.u32 %v1418, %v1421
        %v1423 = vsel %vm1406, %v1414, %v1422
        %v1425 = vshrl.u32 %v1389, 16
        %v1427 = vrot.slane %v1425, 1
        %v1428 = vshll.u32 %v1389, 16
        %v1430 = vrot.slane %v1428, 2
        %v1431 = vor.u32 %v1427, %v1430
        %v1432 = vsel %vm1406, %v1422, %v1431
        %v1434 = vshrl.u32 %v1390, 16
        %v1436 = vrot.slane %v1434, 1
        %v1437 = vshll.u32 %v1390, 16
        %v1439 = vrot.slane %v1437, 2
        %v1440 = vor.u32 %v1436, %v1439
        %v1441 = vsel %vm1406, %v1431, %v1440
        %v1443 = vshrl.u32 %v1391, 16
        %v1445 = vrot.slane %v1443, 1
        %v1446 = vshll.u32 %v1391, 16
        %v1448 = vrot.slane %v1446, 2
        %v1449 = vor.u32 %v1445, %v1448
        %v1450 = vsel %vm1406, %v1440, %v1449
        %v1452 = vshrl.u32 %v1392, 16
        %v1454 = vrot.slane %v1452, 1
        %v1455 = vshll.u32 %v1392, 16
        %v1457 = vrot.slane %v1455, 2
        %v1458 = vor.u32 %v1454, %v1457
        %v1459 = vsel %vm1406, %v1449, %v1458
        %v1461 = vshrl.u32 %v1393, 16
        %v1463 = vrot.slane %v1461, 1
        %v1464 = vshll.u32 %v1393, 16
        %v1466 = vrot.slane %v1464, 2
        %v1467 = vor.u32 %v1463, %v1466
        %v1468 = vsel %vm1406, %v1458, %v1467
        %v1470 = vshrl.u32 %v1394, 16
        %v1472 = vrot.slane %v1470, 1
        %v1473 = vshll.u32 %v1394, 16
        %v1475 = vrot.slane %v1473, 2
        %v1476 = vor.u32 %v1472, %v1475
        %v1477 = vsel %vm1406, %v1467, %v1476
        %v1479 = vshrl.u32 %v1395, 16
        %v1481 = vrot.slane %v1479, 1
        %v1482 = vshll.u32 %v1395, 16
        %v1484 = vrot.slane %v1482, 2
        %v1485 = vor.u32 %v1481, %v1484
        %v1486 = vsel %vm1406, %v1476, %v1485
        %v1488 = vshrl.u32 %v1396, 16
        %v1490 = vrot.slane %v1488, 1
        %v1491 = vshll.u32 %v1396, 16
        %v1493 = vrot.slane %v1491, 2
        %v1494 = vor.u32 %v1490, %v1493
        %v1495 = vsel %vm1406, %v1485, %v1494
        %v1497 = vshrl.u32 %v1397, 16
        %v1499 = vrot.slane %v1497, 1
        %v1500 = vshll.u32 %v1397, 16
        %v1502 = vrot.slane %v1500, 2
        %v1503 = vor.u32 %v1499, %v1502
        %v1504 = vsel %vm1406, %v1494, %v1503
        %v1506 = vshrl.u32 %v1398, 16
        %v1508 = vrot.slane %v1506, 1
        %v1509 = vshll.u32 %v1398, 16
        %v1511 = vrot.slane %v1509, 2
        %v1512 = vor.u32 %v1508, %v1511
        %v1513 = vsel %vm1406, %v1503, %v1512
        %v1515 = vshrl.u32 %v1399, 16
        %v1517 = vrot.slane %v1515, 1
        %v1518 = vshll.u32 %v1399, 16
        %v1520 = vrot.slane %v1518, 2
        %v1521 = vor.u32 %v1517, %v1520
        %v1522 = vsel %vm1406, %v1512, %v1521
        %v1524 = vshrl.u32 %v1400, 16
        %v1526 = vrot.slane %v1524, 1
        %v1527 = vshll.u32 %v1400, 16
        %v1529 = vrot.slane %v1527, 2
        %v1530 = vor.u32 %v1526, %v1529
        %v1531 = vsel %vm1406, %v1521, %v1530
        %v1533 = vshrl.u32 %v1401, 16
        %v1535 = vrot.slane %v1533, 1
        %v1536 = vshll.u32 %v1401, 16
        %v1538 = vrot.slane %v1536, 2
        %v1539 = vor.u32 %v1535, %v1538
        %v1540 = vsel %vm1406, %v1530, %v1539
        %v1542 = vshrl.u32 %v1402, 16
        %v1544 = vrot.slane %v1542, 1
        %v1545 = vshll.u32 %v1402, 16
        %v1547 = vrot.slane %v1545, 2
        %v1548 = vor.u32 %v1544, %v1547
        %v1549 = vsel %vm1406, %v1539, %v1548
        %v1551 = vshrl.u32 %v1403, 16
        %v1553 = vrot.slane %v1551, 1
        %v1554 = vshll.u32 %v1403, 16
        %v1556 = vrot.slane %v1554, 2
        %v1557 = vor.u32 %v1553, %v1556
        %v1558 = vsel %vm1406, %v1548, %v1557
        %v1560 = vshrl.u32 %v1404, 16
        %v1562 = vrot.slane %v1560, 1
        %v1563 = vshll.u32 %v1404, 16
        %v1565 = vrot.slane %v1563, 2
        %v1566 = vor.u32 %v1562, %v1565
        %v1567 = vsel %vm1406, %v1557, %v1566
        %v1569 = vshrl.u32 %v1405, 16
        %v1571 = vrot.slane %v1569, 1
        %v1572 = vshll.u32 %v1405, 16
        %v1574 = vrot.slane %v1572, 2
        %v1575 = vor.u32 %v1571, %v1574
        %v1576 = vsel %vm1406, %v1566, %v1575
        %1577 = vrot.lane.b32.xlu0 %v1423, 64
        %v1578 = vpop.permute.xlu0 %1577
        %1579 = vrot.lane.b32.xlu0 %v1432, 64
        %v1580 = vpop.permute.xlu0 %1579
        %1581 = vrot.lane.b32.xlu0 %v1441, 64
        %v1582 = vpop.permute.xlu0 %1581
        %1583 = vrot.lane.b32.xlu0 %v1450, 64
        %v1584 = vpop.permute.xlu0 %1583
        %1585 = vrot.lane.b32.xlu0 %v1459, 64
        %v1586 = vpop.permute.xlu0 %1585
        %1587 = vrot.lane.b32.xlu0 %v1468, 64
        %v1588 = vpop.permute.xlu0 %1587
        %1589 = vrot.lane.b32.xlu0 %v1477, 64
        %v1590 = vpop.permute.xlu0 %1589
        %1591 = vrot.lane.b32.xlu0 %v1486, 64
        %v1592 = vpop.permute.xlu0 %1591
        %1593 = vrot.lane.b32.xlu0 %v1495, 64
        %v1594 = vpop.permute.xlu0 %1593
        %1595 = vrot.lane.b32.xlu0 %v1504, 64
        %v1596 = vpop.permute.xlu0 %1595
        %1597 = vrot.lane.b32.xlu0 %v1513, 64
        %v1598 = vpop.permute.xlu0 %1597
        %1599 = vrot.lane.b32.xlu0 %v1522, 64
        %v1600 = vpop.permute.xlu0 %1599
        %1601 = vrot.lane.b32.xlu0 %v1531, 64
        %v1602 = vpop.permute.xlu0 %1601
        %1603 = vrot.lane.b32.xlu0 %v1540, 64
        %v1604 = vpop.permute.xlu0 %1603
        %1605 = vrot.lane.b32.xlu0 %v1549, 64
        %v1606 = vpop.permute.xlu0 %1605
        %1607 = vrot.lane.b32.xlu0 %v1558, 64
        %v1608 = vpop.permute.xlu0 %1607
        %1609 = vrot.lane.b32.xlu0 %v1567, 64
        %v1610 = vpop.permute.xlu0 %1609
        %1611 = vrot.lane.b32.xlu0 %v1576, 64
        %v1612 = vpop.permute.xlu0 %1611
        %vm1631 = vcmask 785920
        %1632 = vst.msk [vmem:[#allocation4] sm:$0xff] %vm1631, %v1578
        %1633 = vst.msk [vmem:[#allocation4 + $0x18] sm:$0xff] %vm1631, %v1580
        %1634 = vst.msk [vmem:[#allocation4 + $0x30] sm:$0xff] %vm1631, %v1582
        %1635 = vst.msk [vmem:[#allocation4 + $0x48] sm:$0xff] %vm1631, %v1584
        %1636 = vst.msk [vmem:[#allocation4 + $0x60] sm:$0xff] %vm1631, %v1586
        %1637 = vst.msk [vmem:[#allocation4 + $0x78] sm:$0xff] %vm1631, %v1588
        %1638 = vst.msk [vmem:[#allocation4 + $0x90] sm:$0xff] %vm1631, %v1590
        %1639 = vst.msk [vmem:[#allocation4 + $0xa8] sm:$0xff] %vm1631, %v1592
        %1640 = vst.msk [vmem:[#allocation4 + $0xc0] sm:$0xff] %vm1631, %v1594
        %1641 = vst.msk [vmem:[#allocation4 + $0xd8] sm:$0xff] %vm1631, %v1596
        %1642 = vst.msk [vmem:[#allocation4 + $0xf0] sm:$0xff] %vm1631, %v1598
        %1643 = vst.msk [vmem:[#allocation4 + $0x108] sm:$0xff] %vm1631, %v1600
        %1644 = vst.msk [vmem:[#allocation4 + $0x120] sm:$0xff] %vm1631, %v1602
        %1645 = vst.msk [vmem:[#allocation4 + $0x138] sm:$0xff] %vm1631, %v1604
        %1646 = vst.msk [vmem:[#allocation4 + $0x150] sm:$0xff] %vm1631, %v1606
        %1647 = vst.msk [vmem:[#allocation4 + $0x168] sm:$0xff] %vm1631, %v1608
        %1648 = vst.msk [vmem:[#allocation4 + $0x180] sm:$0xff] %vm1631, %v1610
        %1649 = vst.msk [vmem:[#allocation4 + $0x198] sm:$0xff] %vm1631, %v1612
        %v1650 = vld [vmem:[#allocation2 + $0x8] sm:$0xe]
        %v1651 = vld [vmem:[#allocation2 + $0xc] sm:$0xf]
        %v1652 = vld [vmem:[#allocation2 + $0x10] sm:$0xf]
        %v1653 = vld [vmem:[#allocation2 + $0x14] sm:$0xf]
        %v1654 = vld [vmem:[#allocation2 + $0x18] sm:$0xf]
        %v1655 = vld [vmem:[#allocation2 + $0x1c] sm:$0xf]
        %v1656 = vld [vmem:[#allocation2 + $0x20] sm:$0xf]
        %v1657 = vld [vmem:[#allocation2 + $0x24] sm:$0xf]
        %v1658 = vld [vmem:[#allocation2 + $0x28] sm:$0xf]
        %v1659 = vld [vmem:[#allocation2 + $0x2c] sm:$0xf]
        %v1660 = vld [vmem:[#allocation2 + $0x30] sm:$0xf]
        %v1661 = vld [vmem:[#allocation2 + $0x34] sm:$0xf]
        %v1662 = vld [vmem:[#allocation2 + $0x38] sm:$0xf]
        %v1663 = vld [vmem:[#allocation2 + $0x3c] sm:$0xf]
        %v1664 = vld [vmem:[#allocation2 + $0x40] sm:$0xf]
        %v1665 = vld [vmem:[#allocation2 + $0x44] sm:$0xf]
        %v1666 = vld [vmem:[#allocation2 + $0x48] sm:$0xf]
        %v1667 = vld [vmem:[#allocation2 + $0x4c] sm:$0xf]
        %v1668 = vld [vmem:[#allocation2 + $0x50] sm:$0xf]
        %v1669 = vld [vmem:[#allocation2 + $0x54] sm:$0xf]
        %v1670 = vld [vmem:[#allocation2 + $0x58] sm:$0xf]
        %v1671 = vld [vmem:[#allocation2 + $0x5c] sm:$0xf]
        %v1672 = vld [vmem:[#allocation2 + $0x60] sm:$0xf]
        %v1673 = vld [vmem:[#allocation2 + $0x64] sm:$0xf]
        %v1674 = vld [vmem:[#allocation2 + $0x68] sm:$0xf]
        %v1675 = vld [vmem:[#allocation2 + $0x6c] sm:$0xf]
        %v1676 = vld [vmem:[#allocation2 + $0x70] sm:$0xf]
        %v1677 = vld [vmem:[#allocation2 + $0x74] sm:$0xf]
        %v1678 = vld [vmem:[#allocation2 + $0x78] sm:$0xf]
        %v1679 = vld [vmem:[#allocation2 + $0x7c] sm:$0xf]
        %v1680 = vld [vmem:[#allocation2 + $0x80] sm:$0xf]
        %v1681 = vld [vmem:[#allocation2 + $0x84] sm:$0xf]
        %v1682 = vld [vmem:[#allocation2 + $0x88] sm:$0xf]
        %v1683 = vld [vmem:[#allocation2 + $0x8c] sm:$0xf]
        %v1684 = vld [vmem:[#allocation2 + $0x90] sm:$0xf]
        %v1685 = vld [vmem:[#allocation2 + $0x94] sm:$0xf]
        %v1686 = vld [vmem:[#allocation2 + $0x98] sm:$0x3]
        %v1724 = vunpack.c.l.b16 %v1650
        %v1725 = vunpack.c.l.b16 %v1651
        %v1726 = vunpack.c.l.b16 %v1652
        %v1727 = vunpack.c.l.b16 %v1653
        %v1728 = vunpack.c.l.b16 %v1654
        %v1729 = vunpack.c.l.b16 %v1655
        %v1730 = vunpack.c.l.b16 %v1656
        %v1731 = vunpack.c.l.b16 %v1657
        %v1732 = vunpack.c.l.b16 %v1658
        %v1733 = vunpack.c.l.b16 %v1659
        %v1734 = vunpack.c.l.b16 %v1660
        %v1735 = vunpack.c.l.b16 %v1661
        %v1736 = vunpack.c.l.b16 %v1662
        %v1737 = vunpack.c.l.b16 %v1663
        %v1738 = vunpack.c.l.b16 %v1664
        %v1739 = vunpack.c.l.b16 %v1665
        %v1740 = vunpack.c.l.b16 %v1666
        %v1741 = vunpack.c.l.b16 %v1667
        %v1742 = vunpack.c.l.b16 %v1668
        %v1743 = vunpack.c.l.b16 %v1669
        %v1744 = vunpack.c.l.b16 %v1670
        %v1745 = vunpack.c.l.b16 %v1671
        %v1746 = vunpack.c.l.b16 %v1672
        %v1747 = vunpack.c.l.b16 %v1673
        %v1748 = vunpack.c.l.b16 %v1674
        %v1749 = vunpack.c.l.b16 %v1675
        %v1750 = vunpack.c.l.b16 %v1676
        %v1751 = vunpack.c.l.b16 %v1677
        %v1752 = vunpack.c.l.b16 %v1678
        %v1753 = vunpack.c.l.b16 %v1679
        %v1754 = vunpack.c.l.b16 %v1680
        %v1755 = vunpack.c.l.b16 %v1681
        %v1756 = vunpack.c.l.b16 %v1682
        %v1757 = vunpack.c.l.b16 %v1683
        %v1758 = vunpack.c.l.b16 %v1684
        %v1759 = vunpack.c.l.b16 %v1685
        %v1760 = vunpack.c.l.b16 %v1686
        %v1761 = vpack.c.b16 %v1725, %v1724
        %v1762 = vpack.c.b16 %v1727, %v1726
        %v1763 = vpack.c.b16 %v1729, %v1728
        %v1764 = vpack.c.b16 %v1731, %v1730
        %v1765 = vpack.c.b16 %v1733, %v1732
        %v1766 = vpack.c.b16 %v1735, %v1734
        %v1767 = vpack.c.b16 %v1737, %v1736
        %v1768 = vpack.c.b16 %v1739, %v1738
        %v1769 = vpack.c.b16 %v1741, %v1740
        %v1770 = vpack.c.b16 %v1743, %v1742
        %v1771 = vpack.c.b16 %v1745, %v1744
        %v1772 = vpack.c.b16 %v1747, %v1746
        %v1773 = vpack.c.b16 %v1749, %v1748
        %v1774 = vpack.c.b16 %v1751, %v1750
        %v1775 = vpack.c.b16 %v1753, %v1752
        %v1776 = vpack.c.b16 %v1755, %v1754
        %v1777 = vpack.c.b16 %v1757, %v1756
        %v1778 = vpack.c.b16 %v1759, %v1758
        %v1779 = vpack.c.b16 %v1760, %v1760
        %v1781 = vshrl.u32 %v1761, 16
        %v1783 = vrot.slane %v1781, 1
        %v1784 = vshll.u32 %v1761, 16
        %v1786 = vrot.slane %v1784, 2
        %v1787 = vor.u32 %v1783, %v1786
        %v1789 = vshrl.u32 %v1762, 16
        %v1791 = vrot.slane %v1789, 1
        %v1792 = vshll.u32 %v1762, 16
        %v1794 = vrot.slane %v1792, 2
        %v1795 = vor.u32 %v1791, %v1794
        %v1796 = vsel %vm1406, %v1787, %v1795
        %v1798 = vshrl.u32 %v1763, 16
        %v1800 = vrot.slane %v1798, 1
        %v1801 = vshll.u32 %v1763, 16
        %v1803 = vrot.slane %v1801, 2
        %v1804 = vor.u32 %v1800, %v1803
        %v1805 = vsel %vm1406, %v1795, %v1804
        %v1807 = vshrl.u32 %v1764, 16
        %v1809 = vrot.slane %v1807, 1
        %v1810 = vshll.u32 %v1764, 16
        %v1812 = vrot.slane %v1810, 2
        %v1813 = vor.u32 %v1809, %v1812
        %v1814 = vsel %vm1406, %v1804, %v1813
        %v1816 = vshrl.u32 %v1765, 16
        %v1818 = vrot.slane %v1816, 1
        %v1819 = vshll.u32 %v1765, 16
        %v1821 = vrot.slane %v1819, 2
        %v1822 = vor.u32 %v1818, %v1821
        %v1823 = vsel %vm1406, %v1813, %v1822
        %v1825 = vshrl.u32 %v1766, 16
        %v1827 = vrot.slane %v1825, 1
        %v1828 = vshll.u32 %v1766, 16
        %v1830 = vrot.slane %v1828, 2
        %v1831 = vor.u32 %v1827, %v1830
        %v1832 = vsel %vm1406, %v1822, %v1831
        %v1834 = vshrl.u32 %v1767, 16
        %v1836 = vrot.slane %v1834, 1
        %v1837 = vshll.u32 %v1767, 16
        %v1839 = vrot.slane %v1837, 2
        %v1840 = vor.u32 %v1836, %v1839
        %v1841 = vsel %vm1406, %v1831, %v1840
        %v1843 = vshrl.u32 %v1768, 16
        %v1845 = vrot.slane %v1843, 1
        %v1846 = vshll.u32 %v1768, 16
        %v1848 = vrot.slane %v1846, 2
        %v1849 = vor.u32 %v1845, %v1848
        %v1850 = vsel %vm1406, %v1840, %v1849
        %v1852 = vshrl.u32 %v1769, 16
        %v1854 = vrot.slane %v1852, 1
        %v1855 = vshll.u32 %v1769, 16
        %v1857 = vrot.slane %v1855, 2
        %v1858 = vor.u32 %v1854, %v1857
        %v1859 = vsel %vm1406, %v1849, %v1858
        %v1861 = vshrl.u32 %v1770, 16
        %v1863 = vrot.slane %v1861, 1
        %v1864 = vshll.u32 %v1770, 16
        %v1866 = vrot.slane %v1864, 2
        %v1867 = vor.u32 %v1863, %v1866
        %v1868 = vsel %vm1406, %v1858, %v1867
        %v1870 = vshrl.u32 %v1771, 16
        %v1872 = vrot.slane %v1870, 1
        %v1873 = vshll.u32 %v1771, 16
        %v1875 = vrot.slane %v1873, 2
        %v1876 = vor.u32 %v1872, %v1875
        %v1877 = vsel %vm1406, %v1867, %v1876
        %v1879 = vshrl.u32 %v1772, 16
        %v1881 = vrot.slane %v1879, 1
        %v1882 = vshll.u32 %v1772, 16
        %v1884 = vrot.slane %v1882, 2
        %v1885 = vor.u32 %v1881, %v1884
        %v1886 = vsel %vm1406, %v1876, %v1885
        %v1888 = vshrl.u32 %v1773, 16
        %v1890 = vrot.slane %v1888, 1
        %v1891 = vshll.u32 %v1773, 16
        %v1893 = vrot.slane %v1891, 2
        %v1894 = vor.u32 %v1890, %v1893
        %v1895 = vsel %vm1406, %v1885, %v1894
        %v1897 = vshrl.u32 %v1774, 16
        %v1899 = vrot.slane %v1897, 1
        %v1900 = vshll.u32 %v1774, 16
        %v1902 = vrot.slane %v1900, 2
        %v1903 = vor.u32 %v1899, %v1902
        %v1904 = vsel %vm1406, %v1894, %v1903
        %v1906 = vshrl.u32 %v1775, 16
        %v1908 = vrot.slane %v1906, 1
        %v1909 = vshll.u32 %v1775, 16
        %v1911 = vrot.slane %v1909, 2
        %v1912 = vor.u32 %v1908, %v1911
        %v1913 = vsel %vm1406, %v1903, %v1912
        %v1915 = vshrl.u32 %v1776, 16
        %v1917 = vrot.slane %v1915, 1
        %v1918 = vshll.u32 %v1776, 16
        %v1920 = vrot.slane %v1918, 2
        %v1921 = vor.u32 %v1917, %v1920
        %v1922 = vsel %vm1406, %v1912, %v1921
        %v1924 = vshrl.u32 %v1777, 16
        %v1926 = vrot.slane %v1924, 1
        %v1927 = vshll.u32 %v1777, 16
        %v1929 = vrot.slane %v1927, 2
        %v1930 = vor.u32 %v1926, %v1929
        %v1931 = vsel %vm1406, %v1921, %v1930
        %v1933 = vshrl.u32 %v1778, 16
        %v1935 = vrot.slane %v1933, 1
        %v1936 = vshll.u32 %v1778, 16
        %v1938 = vrot.slane %v1936, 2
        %v1939 = vor.u32 %v1935, %v1938
        %v1940 = vsel %vm1406, %v1930, %v1939
        %v1942 = vshrl.u32 %v1779, 16
        %v1944 = vrot.slane %v1942, 1
        %v1945 = vshll.u32 %v1779, 16
        %v1947 = vrot.slane %v1945, 2
        %v1948 = vor.u32 %v1944, %v1947
        %v1949 = vsel %vm1406, %v1939, %v1948
        %1950 = vrot.lane.b32.xlu0 %v1796, 96
        %v1951 = vpop.permute.xlu0 %1950
        %1952 = vrot.lane.b32.xlu0 %v1805, 96
        %v1953 = vpop.permute.xlu0 %1952
        %1954 = vrot.lane.b32.xlu0 %v1814, 96
        %v1955 = vpop.permute.xlu0 %1954
        %1956 = vrot.lane.b32.xlu0 %v1823, 96
        %v1957 = vpop.permute.xlu0 %1956
        %1958 = vrot.lane.b32.xlu0 %v1832, 96
        %v1959 = vpop.permute.xlu0 %1958
        %1960 = vrot.lane.b32.xlu0 %v1841, 96
        %v1961 = vpop.permute.xlu0 %1960
        %1962 = vrot.lane.b32.xlu0 %v1850, 96
        %v1963 = vpop.permute.xlu0 %1962
        %1964 = vrot.lane.b32.xlu0 %v1859, 96
        %v1965 = vpop.permute.xlu0 %1964
        %1966 = vrot.lane.b32.xlu0 %v1868, 96
        %v1967 = vpop.permute.xlu0 %1966
        %1968 = vrot.lane.b32.xlu0 %v1877, 96
        %v1969 = vpop.permute.xlu0 %1968
        %1970 = vrot.lane.b32.xlu0 %v1886, 96
        %v1971 = vpop.permute.xlu0 %1970
        %1972 = vrot.lane.b32.xlu0 %v1895, 96
        %v1973 = vpop.permute.xlu0 %1972
        %1974 = vrot.lane.b32.xlu0 %v1904, 96
        %v1975 = vpop.permute.xlu0 %1974
        %1976 = vrot.lane.b32.xlu0 %v1913, 96
        %v1977 = vpop.permute.xlu0 %1976
        %1978 = vrot.lane.b32.xlu0 %v1922, 96
        %v1979 = vpop.permute.xlu0 %1978
        %1980 = vrot.lane.b32.xlu0 %v1931, 96
        %v1981 = vpop.permute.xlu0 %1980
        %1982 = vrot.lane.b32.xlu0 %v1940, 96
        %v1983 = vpop.permute.xlu0 %1982
        %1984 = vrot.lane.b32.xlu0 %v1949, 96
        %v1985 = vpop.permute.xlu0 %1984
        %vm2004 = vcmask 1048320
        %2005 = vst.msk [vmem:[#allocation4] sm:$0xff] %vm2004, %v1951
        %2006 = vst.msk [vmem:[#allocation4 + $0x18] sm:$0xff] %vm2004, %v1953
        %2007 = vst.msk [vmem:[#allocation4 + $0x30] sm:$0xff] %vm2004, %v1955
        %2008 = vst.msk [vmem:[#allocation4 + $0x48] sm:$0xff] %vm2004, %v1957
        %2009 = vst.msk [vmem:[#allocation4 + $0x60] sm:$0xff] %vm2004, %v1959
        %2010 = vst.msk [vmem:[#allocation4 + $0x78] sm:$0xff] %vm2004, %v1961
        %2011 = vst.msk [vmem:[#allocation4 + $0x90] sm:$0xff] %vm2004, %v1963
        %2012 = vst.msk [vmem:[#allocation4 + $0xa8] sm:$0xff] %vm2004, %v1965
        %2013 = vst.msk [vmem:[#allocation4 + $0xc0] sm:$0xff] %vm2004, %v1967
        %2014 = vst.msk [vmem:[#allocation4 + $0xd8] sm:$0xff] %vm2004, %v1969
        %2015 = vst.msk [vmem:[#allocation4 + $0xf0] sm:$0xff] %vm2004, %v1971
        %2016 = vst.msk [vmem:[#allocation4 + $0x108] sm:$0xff] %vm2004, %v1973
        %2017 = vst.msk [vmem:[#allocation4 + $0x120] sm:$0xff] %vm2004, %v1975
        %2018 = vst.msk [vmem:[#allocation4 + $0x138] sm:$0xff] %vm2004, %v1977
        %2019 = vst.msk [vmem:[#allocation4 + $0x150] sm:$0xff] %vm2004, %v1979
        %2020 = vst.msk [vmem:[#allocation4 + $0x168] sm:$0xff] %vm2004, %v1981
        %2021 = vst.msk [vmem:[#allocation4 + $0x180] sm:$0xff] %vm2004, %v1983
        %2022 = vst.msk [vmem:[#allocation4 + $0x198] sm:$0xff] %vm2004, %v1985
        %v2023 = vld [vmem:[#allocation2 + $0x8] sm:$0xc]
        %v2024 = vld [vmem:[#allocation2 + $0xc] sm:$0xf]
        %v2025 = vld [vmem:[#allocation2 + $0x10] sm:$0xf]
        %v2026 = vld [vmem:[#allocation2 + $0x14] sm:$0xf]
        %v2027 = vld [vmem:[#allocation2 + $0x18] sm:$0xf]
        %v2028 = vld [vmem:[#allocation2 + $0x1c] sm:$0xf]
        %v2029 = vld [vmem:[#allocation2 + $0x20] sm:$0xf]
        %v2030 = vld [vmem:[#allocation2 + $0x24] sm:$0xf]
        %v2031 = vld [vmem:[#allocation2 + $0x28] sm:$0xf]
        %v2032 = vld [vmem:[#allocation2 + $0x2c] sm:$0xf]
        %v2033 = vld [vmem:[#allocation2 + $0x30] sm:$0xf]
        %v2034 = vld [vmem:[#allocation2 + $0x34] sm:$0xf]
        %v2035 = vld [vmem:[#allocation2 + $0x38] sm:$0xf]
        %v2036 = vld [vmem:[#allocation2 + $0x3c] sm:$0xf]
        %v2037 = vld [vmem:[#allocation2 + $0x40] sm:$0xf]
        %v2038 = vld [vmem:[#allocation2 + $0x44] sm:$0xf]
        %v2039 = vld [vmem:[#allocation2 + $0x48] sm:$0xf]
        %v2040 = vld [vmem:[#allocation2 + $0x4c] sm:$0xf]
        %v2041 = vld [vmem:[#allocation2 + $0x50] sm:$0xf]
        %v2042 = vld [vmem:[#allocation2 + $0x54] sm:$0xf]
        %v2043 = vld [vmem:[#allocation2 + $0x58] sm:$0xf]
        %v2044 = vld [vmem:[#allocation2 + $0x5c] sm:$0xf]
        %v2045 = vld [vmem:[#allocation2 + $0x60] sm:$0xf]
        %v2046 = vld [vmem:[#allocation2 + $0x64] sm:$0xf]
        %v2047 = vld [vmem:[#allocation2 + $0x68] sm:$0xf]
        %v2048 = vld [vmem:[#allocation2 + $0x6c] sm:$0xf]
        %v2049 = vld [vmem:[#allocation2 + $0x70] sm:$0xf]
        %v2050 = vld [vmem:[#allocation2 + $0x74] sm:$0xf]
        %v2051 = vld [vmem:[#allocation2 + $0x78] sm:$0xf]
        %v2052 = vld [vmem:[#allocation2 + $0x7c] sm:$0xf]
        %v2053 = vld [vmem:[#allocation2 + $0x80] sm:$0xf]
        %v2054 = vld [vmem:[#allocation2 + $0x84] sm:$0xf]
        %v2055 = vld [vmem:[#allocation2 + $0x88] sm:$0xf]
        %v2056 = vld [vmem:[#allocation2 + $0x8c] sm:$0xf]
        %v2057 = vld [vmem:[#allocation2 + $0x90] sm:$0xf]
        %v2058 = vld [vmem:[#allocation2 + $0x94] sm:$0xf]
        %v2059 = vld [vmem:[#allocation2 + $0x98] sm:$0x3]
        %v2097 = vunpack.c.l.b16 %v2023
        %v2098 = vunpack.c.l.b16 %v2024
        %v2099 = vunpack.c.l.b16 %v2025
        %v2100 = vunpack.c.l.b16 %v2026
        %v2101 = vunpack.c.l.b16 %v2027
        %v2102 = vunpack.c.l.b16 %v2028
        %v2103 = vunpack.c.l.b16 %v2029
        %v2104 = vunpack.c.l.b16 %v2030
        %v2105 = vunpack.c.l.b16 %v2031
        %v2106 = vunpack.c.l.b16 %v2032
        %v2107 = vunpack.c.l.b16 %v2033
        %v2108 = vunpack.c.l.b16 %v2034
        %v2109 = vunpack.c.l.b16 %v2035
        %v2110 = vunpack.c.l.b16 %v2036
        %v2111 = vunpack.c.l.b16 %v2037
        %v2112 = vunpack.c.l.b16 %v2038
        %v2113 = vunpack.c.l.b16 %v2039
        %v2114 = vunpack.c.l.b16 %v2040
        %v2115 = vunpack.c.l.b16 %v2041
        %v2116 = vunpack.c.l.b16 %v2042
        %v2117 = vunpack.c.l.b16 %v2043
        %v2118 = vunpack.c.l.b16 %v2044
        %v2119 = vunpack.c.l.b16 %v2045
        %v2120 = vunpack.c.l.b16 %v2046
        %v2121 = vunpack.c.l.b16 %v2047
        %v2122 = vunpack.c.l.b16 %v2048
        %v2123 = vunpack.c.l.b16 %v2049
        %v2124 = vunpack.c.l.b16 %v2050
        %v2125 = vunpack.c.l.b16 %v2051
        %v2126 = vunpack.c.l.b16 %v2052
        %v2127 = vunpack.c.l.b16 %v2053
        %v2128 = vunpack.c.l.b16 %v2054
        %v2129 = vunpack.c.l.b16 %v2055
        %v2130 = vunpack.c.l.b16 %v2056
        %v2131 = vunpack.c.l.b16 %v2057
        %v2132 = vunpack.c.l.b16 %v2058
        %v2133 = vunpack.c.l.b16 %v2059
        %v2134 = vpack.c.b16 %v2098, %v2097
        %v2135 = vpack.c.b16 %v2100, %v2099
        %v2136 = vpack.c.b16 %v2102, %v2101
        %v2137 = vpack.c.b16 %v2104, %v2103
        %v2138 = vpack.c.b16 %v2106, %v2105
        %v2139 = vpack.c.b16 %v2108, %v2107
        %v2140 = vpack.c.b16 %v2110, %v2109
        %v2141 = vpack.c.b16 %v2112, %v2111
        %v2142 = vpack.c.b16 %v2114, %v2113
        %v2143 = vpack.c.b16 %v2116, %v2115
        %v2144 = vpack.c.b16 %v2118, %v2117
        %v2145 = vpack.c.b16 %v2120, %v2119
        %v2146 = vpack.c.b16 %v2122, %v2121
        %v2147 = vpack.c.b16 %v2124, %v2123
        %v2148 = vpack.c.b16 %v2126, %v2125
        %v2149 = vpack.c.b16 %v2128, %v2127
        %v2150 = vpack.c.b16 %v2130, %v2129
        %v2151 = vpack.c.b16 %v2132, %v2131
        %v2152 = vpack.c.b16 %v2133, %v2133
        %vm2153 = vcmask 1045504
        %v2154 = vrot.slane %v2134, 2
        %v2155 = vrot.slane %v2135, 2
        %v2156 = vsel %vm2153, %v2154, %v2155
        %v2157 = vrot.slane %v2136, 2
        %v2158 = vsel %vm2153, %v2155, %v2157
        %v2159 = vrot.slane %v2137, 2
        %v2160 = vsel %vm2153, %v2157, %v2159
        %v2161 = vrot.slane %v2138, 2
        %v2162 = vsel %vm2153, %v2159, %v2161
        %v2163 = vrot.slane %v2139, 2
        %v2164 = vsel %vm2153, %v2161, %v2163
        %v2165 = vrot.slane %v2140, 2
        %v2166 = vsel %vm2153, %v2163, %v2165
        %v2167 = vrot.slane %v2141, 2
        %v2168 = vsel %vm2153, %v2165, %v2167
        %v2169 = vrot.slane %v2142, 2
        %v2170 = vsel %vm2153, %v2167, %v2169
        %v2171 = vrot.slane %v2143, 2
        %v2172 = vsel %vm2153, %v2169, %v2171
        %v2173 = vrot.slane %v2144, 2
        %v2174 = vsel %vm2153, %v2171, %v2173
        %v2175 = vrot.slane %v2145, 2
        %v2176 = vsel %vm2153, %v2173, %v2175
        %v2177 = vrot.slane %v2146, 2
        %v2178 = vsel %vm2153, %v2175, %v2177
        %v2179 = vrot.slane %v2147, 2
        %v2180 = vsel %vm2153, %v2177, %v2179
        %v2181 = vrot.slane %v2148, 2
        %v2182 = vsel %vm2153, %v2179, %v2181
        %v2183 = vrot.slane %v2149, 2
        %v2184 = vsel %vm2153, %v2181, %v2183
        %v2185 = vrot.slane %v2150, 2
        %v2186 = vsel %vm2153, %v2183, %v2185
        %v2187 = vrot.slane %v2151, 2
        %v2188 = vsel %vm2153, %v2185, %v2187
        %v2189 = vrot.slane %v2152, 2
        %v2190 = vsel %vm2153, %v2187, %v2189
        %2209 = vst.msk [vmem:[#allocation4 + $0x8] sm:$0xff] %vm1016, %v2156
        %2210 = vst.msk [vmem:[#allocation4 + $0x20] sm:$0xff] %vm1016, %v2158
        %2211 = vst.msk [vmem:[#allocation4 + $0x38] sm:$0xff] %vm1016, %v2160
        %2212 = vst.msk [vmem:[#allocation4 + $0x50] sm:$0xff] %vm1016, %v2162
        %2213 = vst.msk [vmem:[#allocation4 + $0x68] sm:$0xff] %vm1016, %v2164
        %2214 = vst.msk [vmem:[#allocation4 + $0x80] sm:$0xff] %vm1016, %v2166
        %2215 = vst.msk [vmem:[#allocation4 + $0x98] sm:$0xff] %vm1016, %v2168
        %2216 = vst.msk [vmem:[#allocation4 + $0xb0] sm:$0xff] %vm1016, %v2170
        %2217 = vst.msk [vmem:[#allocation4 + $0xc8] sm:$0xff] %vm1016, %v2172
        %2218 = vst.msk [vmem:[#allocation4 + $0xe0] sm:$0xff] %vm1016, %v2174
        %2219 = vst.msk [vmem:[#allocation4 + $0xf8] sm:$0xff] %vm1016, %v2176
        %2220 = vst.msk [vmem:[#allocation4 + $0x110] sm:$0xff] %vm1016, %v2178
        %2221 = vst.msk [vmem:[#allocation4 + $0x128] sm:$0xff] %vm1016, %v2180
        %2222 = vst.msk [vmem:[#allocation4 + $0x140] sm:$0xff] %vm1016, %v2182
        %2223 = vst.msk [vmem:[#allocation4 + $0x158] sm:$0xff] %vm1016, %v2184
        %2224 = vst.msk [vmem:[#allocation4 + $0x170] sm:$0xff] %vm1016, %v2186
        %2225 = vst.msk [vmem:[#allocation4 + $0x188] sm:$0xff] %vm1016, %v2188
        %2226 = vst.msk [vmem:[#allocation4 + $0x1a0] sm:$0xff] %vm1016, %v2190
        %v2227 = vld [vmem:[#allocation2 + $0x8] sm:$0xc]
        %v2228 = vld [vmem:[#allocation2 + $0xc] sm:$0xf]
        %v2229 = vld [vmem:[#allocation2 + $0x10] sm:$0xf]
        %v2230 = vld [vmem:[#allocation2 + $0x14] sm:$0xf]
        %v2231 = vld [vmem:[#allocation2 + $0x18] sm:$0xf]
        %v2232 = vld [vmem:[#allocation2 + $0x1c] sm:$0xf]
        %v2233 = vld [vmem:[#allocation2 + $0x20] sm:$0xf]
        %v2234 = vld [vmem:[#allocation2 + $0x24] sm:$0xf]
        %v2235 = vld [vmem:[#allocation2 + $0x28] sm:$0xf]
        %v2236 = vld [vmem:[#allocation2 + $0x2c] sm:$0xf]
        %v2237 = vld [vmem:[#allocation2 + $0x30] sm:$0xf]
        %v2238 = vld [vmem:[#allocation2 + $0x34] sm:$0xf]
        %v2239 = vld [vmem:[#allocation2 + $0x38] sm:$0xf]
        %v2240 = vld [vmem:[#allocation2 + $0x3c] sm:$0xf]
        %v2241 = vld [vmem:[#allocation2 + $0x40] sm:$0xf]
        %v2242 = vld [vmem:[#allocation2 + $0x44] sm:$0xf]
        %v2243 = vld [vmem:[#allocation2 + $0x48] sm:$0xf]
        %v2244 = vld [vmem:[#allocation2 + $0x4c] sm:$0xf]
        %v2245 = vld [vmem:[#allocation2 + $0x50] sm:$0xf]
        %v2246 = vld [vmem:[#allocation2 + $0x54] sm:$0xf]
        %v2247 = vld [vmem:[#allocation2 + $0x58] sm:$0xf]
        %v2248 = vld [vmem:[#allocation2 + $0x5c] sm:$0xf]
        %v2249 = vld [vmem:[#allocation2 + $0x60] sm:$0xf]
        %v2250 = vld [vmem:[#allocation2 + $0x64] sm:$0xf]
        %v2251 = vld [vmem:[#allocation2 + $0x68] sm:$0xf]
        %v2252 = vld [vmem:[#allocation2 + $0x6c] sm:$0xf]
        %v2253 = vld [vmem:[#allocation2 + $0x70] sm:$0xf]
        %v2254 = vld [vmem:[#allocation2 + $0x74] sm:$0xf]
        %v2255 = vld [vmem:[#allocation2 + $0x78] sm:$0xf]
        %v2256 = vld [vmem:[#allocation2 + $0x7c] sm:$0xf]
        %v2257 = vld [vmem:[#allocation2 + $0x80] sm:$0xf]
        %v2258 = vld [vmem:[#allocation2 + $0x84] sm:$0xf]
        %v2259 = vld [vmem:[#allocation2 + $0x88] sm:$0xf]
        %v2260 = vld [vmem:[#allocation2 + $0x8c] sm:$0xf]
        %v2261 = vld [vmem:[#allocation2 + $0x90] sm:$0xf]
        %v2262 = vld [vmem:[#allocation2 + $0x94] sm:$0xf]
        %v2263 = vld [vmem:[#allocation2 + $0x98] sm:$0x7]
        %v2301 = vunpack.c.l.b16 %v2227
        %v2302 = vunpack.c.l.b16 %v2228
        %v2303 = vunpack.c.l.b16 %v2229
        %v2304 = vunpack.c.l.b16 %v2230
        %v2305 = vunpack.c.l.b16 %v2231
        %v2306 = vunpack.c.l.b16 %v2232
        %v2307 = vunpack.c.l.b16 %v2233
        %v2308 = vunpack.c.l.b16 %v2234
        %v2309 = vunpack.c.l.b16 %v2235
        %v2310 = vunpack.c.l.b16 %v2236
        %v2311 = vunpack.c.l.b16 %v2237
        %v2312 = vunpack.c.l.b16 %v2238
        %v2313 = vunpack.c.l.b16 %v2239
        %v2314 = vunpack.c.l.b16 %v2240
        %v2315 = vunpack.c.l.b16 %v2241
        %v2316 = vunpack.c.l.b16 %v2242
        %v2317 = vunpack.c.l.b16 %v2243
        %v2318 = vunpack.c.l.b16 %v2244
        %v2319 = vunpack.c.l.b16 %v2245
        %v2320 = vunpack.c.l.b16 %v2246
        %v2321 = vunpack.c.l.b16 %v2247
        %v2322 = vunpack.c.l.b16 %v2248
        %v2323 = vunpack.c.l.b16 %v2249
        %v2324 = vunpack.c.l.b16 %v2250
        %v2325 = vunpack.c.l.b16 %v2251
        %v2326 = vunpack.c.l.b16 %v2252
        %v2327 = vunpack.c.l.b16 %v2253
        %v2328 = vunpack.c.l.b16 %v2254
        %v2329 = vunpack.c.l.b16 %v2255
        %v2330 = vunpack.c.l.b16 %v2256
        %v2331 = vunpack.c.l.b16 %v2257
        %v2332 = vunpack.c.l.b16 %v2258
        %v2333 = vunpack.c.l.b16 %v2259
        %v2334 = vunpack.c.l.b16 %v2260
        %v2335 = vunpack.c.l.b16 %v2261
        %v2336 = vunpack.c.l.b16 %v2262
        %v2337 = vunpack.c.l.b16 %v2263
        %v2338 = vpack.c.b16 %v2302, %v2301
        %v2339 = vpack.c.b16 %v2304, %v2303
        %v2340 = vpack.c.b16 %v2306, %v2305
        %v2341 = vpack.c.b16 %v2308, %v2307
        %v2342 = vpack.c.b16 %v2310, %v2309
        %v2343 = vpack.c.b16 %v2312, %v2311
        %v2344 = vpack.c.b16 %v2314, %v2313
        %v2345 = vpack.c.b16 %v2316, %v2315
        %v2346 = vpack.c.b16 %v2318, %v2317
        %v2347 = vpack.c.b16 %v2320, %v2319
        %v2348 = vpack.c.b16 %v2322, %v2321
        %v2349 = vpack.c.b16 %v2324, %v2323
        %v2350 = vpack.c.b16 %v2326, %v2325
        %v2351 = vpack.c.b16 %v2328, %v2327
        %v2352 = vpack.c.b16 %v2330, %v2329
        %v2353 = vpack.c.b16 %v2332, %v2331
        %v2354 = vpack.c.b16 %v2334, %v2333
        %v2355 = vpack.c.b16 %v2336, %v2335
        %v2356 = vpack.c.b16 %v2337, %v2337
        %vm2357 = vsmask.f32 5376
        %v2359 = vshrl.u32 %v2338, 16
        %v2361 = vrot.slane %v2359, 2
        %v2362 = vshll.u32 %v2338, 16
        %v2364 = vrot.slane %v2362, 3
        %v2365 = vor.u32 %v2361, %v2364
        %v2367 = vshrl.u32 %v2339, 16
        %v2369 = vrot.slane %v2367, 2
        %v2370 = vshll.u32 %v2339, 16
        %v2372 = vrot.slane %v2370, 3
        %v2373 = vor.u32 %v2369, %v2372
        %v2374 = vsel %vm2357, %v2365, %v2373
        %v2376 = vshrl.u32 %v2340, 16
        %v2378 = vrot.slane %v2376, 2
        %v2379 = vshll.u32 %v2340, 16
        %v2381 = vrot.slane %v2379, 3
        %v2382 = vor.u32 %v2378, %v2381
        %v2383 = vsel %vm2357, %v2373, %v2382
        %v2385 = vshrl.u32 %v2341, 16
        %v2387 = vrot.slane %v2385, 2
        %v2388 = vshll.u32 %v2341, 16
        %v2390 = vrot.slane %v2388, 3
        %v2391 = vor.u32 %v2387, %v2390
        %v2392 = vsel %vm2357, %v2382, %v2391
        %v2394 = vshrl.u32 %v2342, 16
        %v2396 = vrot.slane %v2394, 2
        %v2397 = vshll.u32 %v2342, 16
        %v2399 = vrot.slane %v2397, 3
        %v2400 = vor.u32 %v2396, %v2399
        %v2401 = vsel %vm2357, %v2391, %v2400
        %v2403 = vshrl.u32 %v2343, 16
        %v2405 = vrot.slane %v2403, 2
        %v2406 = vshll.u32 %v2343, 16
        %v2408 = vrot.slane %v2406, 3
        %v2409 = vor.u32 %v2405, %v2408
        %v2410 = vsel %vm2357, %v2400, %v2409
        %v2412 = vshrl.u32 %v2344, 16
        %v2414 = vrot.slane %v2412, 2
        %v2415 = vshll.u32 %v2344, 16
        %v2417 = vrot.slane %v2415, 3
        %v2418 = vor.u32 %v2414, %v2417
        %v2419 = vsel %vm2357, %v2409, %v2418
        %v2421 = vshrl.u32 %v2345, 16
        %v2423 = vrot.slane %v2421, 2
        %v2424 = vshll.u32 %v2345, 16
        %v2426 = vrot.slane %v2424, 3
        %v2427 = vor.u32 %v2423, %v2426
        %v2428 = vsel %vm2357, %v2418, %v2427
        %v2430 = vshrl.u32 %v2346, 16
        %v2432 = vrot.slane %v2430, 2
        %v2433 = vshll.u32 %v2346, 16
        %v2435 = vrot.slane %v2433, 3
        %v2436 = vor.u32 %v2432, %v2435
        %v2437 = vsel %vm2357, %v2427, %v2436
        %v2439 = vshrl.u32 %v2347, 16
        %v2441 = vrot.slane %v2439, 2
        %v2442 = vshll.u32 %v2347, 16
        %v2444 = vrot.slane %v2442, 3
        %v2445 = vor.u32 %v2441, %v2444
        %v2446 = vsel %vm2357, %v2436, %v2445
        %v2448 = vshrl.u32 %v2348, 16
        %v2450 = vrot.slane %v2448, 2
        %v2451 = vshll.u32 %v2348, 16
        %v2453 = vrot.slane %v2451, 3
        %v2454 = vor.u32 %v2450, %v2453
        %v2455 = vsel %vm2357, %v2445, %v2454
        %v2457 = vshrl.u32 %v2349, 16
        %v2459 = vrot.slane %v2457, 2
        %v2460 = vshll.u32 %v2349, 16
        %v2462 = vrot.slane %v2460, 3
        %v2463 = vor.u32 %v2459, %v2462
        %v2464 = vsel %vm2357, %v2454, %v2463
        %v2466 = vshrl.u32 %v2350, 16
        %v2468 = vrot.slane %v2466, 2
        %v2469 = vshll.u32 %v2350, 16
        %v2471 = vrot.slane %v2469, 3
        %v2472 = vor.u32 %v2468, %v2471
        %v2473 = vsel %vm2357, %v2463, %v2472
        %v2475 = vshrl.u32 %v2351, 16
        %v2477 = vrot.slane %v2475, 2
        %v2478 = vshll.u32 %v2351, 16
        %v2480 = vrot.slane %v2478, 3
        %v2481 = vor.u32 %v2477, %v2480
        %v2482 = vsel %vm2357, %v2472, %v2481
        %v2484 = vshrl.u32 %v2352, 16
        %v2486 = vrot.slane %v2484, 2
        %v2487 = vshll.u32 %v2352, 16
        %v2489 = vrot.slane %v2487, 3
        %v2490 = vor.u32 %v2486, %v2489
        %v2491 = vsel %vm2357, %v2481, %v2490
        %v2493 = vshrl.u32 %v2353, 16
        %v2495 = vrot.slane %v2493, 2
        %v2496 = vshll.u32 %v2353, 16
        %v2498 = vrot.slane %v2496, 3
        %v2499 = vor.u32 %v2495, %v2498
        %v2500 = vsel %vm2357, %v2490, %v2499
        %v2502 = vshrl.u32 %v2354, 16
        %v2504 = vrot.slane %v2502, 2
        %v2505 = vshll.u32 %v2354, 16
        %v2507 = vrot.slane %v2505, 3
        %v2508 = vor.u32 %v2504, %v2507
        %v2509 = vsel %vm2357, %v2499, %v2508
        %v2511 = vshrl.u32 %v2355, 16
        %v2513 = vrot.slane %v2511, 2
        %v2514 = vshll.u32 %v2355, 16
        %v2516 = vrot.slane %v2514, 3
        %v2517 = vor.u32 %v2513, %v2516
        %v2518 = vsel %vm2357, %v2508, %v2517
        %v2520 = vshrl.u32 %v2356, 16
        %v2522 = vrot.slane %v2520, 2
        %v2523 = vshll.u32 %v2356, 16
        %v2525 = vrot.slane %v2523, 3
        %v2526 = vor.u32 %v2522, %v2525
        %v2527 = vsel %vm2357, %v2517, %v2526
        %2528 = vrot.lane.b32.xlu0 %v2374, 32
        %v2529 = vpop.permute.xlu0 %2528
        %2530 = vrot.lane.b32.xlu0 %v2383, 32
        %v2531 = vpop.permute.xlu0 %2530
        %2532 = vrot.lane.b32.xlu0 %v2392, 32
        %v2533 = vpop.permute.xlu0 %2532
        %2534 = vrot.lane.b32.xlu0 %v2401, 32
        %v2535 = vpop.permute.xlu0 %2534
        %2536 = vrot.lane.b32.xlu0 %v2410, 32
        %v2537 = vpop.permute.xlu0 %2536
        %2538 = vrot.lane.b32.xlu0 %v2419, 32
        %v2539 = vpop.permute.xlu0 %2538
        %2540 = vrot.lane.b32.xlu0 %v2428, 32
        %v2541 = vpop.permute.xlu0 %2540
        %2542 = vrot.lane.b32.xlu0 %v2437, 32
        %v2543 = vpop.permute.xlu0 %2542
        %2544 = vrot.lane.b32.xlu0 %v2446, 32
        %v2545 = vpop.permute.xlu0 %2544
        %2546 = vrot.lane.b32.xlu0 %v2455, 32
        %v2547 = vpop.permute.xlu0 %2546
        %2548 = vrot.lane.b32.xlu0 %v2464, 32
        %v2549 = vpop.permute.xlu0 %2548
        %2550 = vrot.lane.b32.xlu0 %v2473, 32
        %v2551 = vpop.permute.xlu0 %2550
        %2552 = vrot.lane.b32.xlu0 %v2482, 32
        %v2553 = vpop.permute.xlu0 %2552
        %2554 = vrot.lane.b32.xlu0 %v2491, 32
        %v2555 = vpop.permute.xlu0 %2554
        %2556 = vrot.lane.b32.xlu0 %v2500, 32
        %v2557 = vpop.permute.xlu0 %2556
        %2558 = vrot.lane.b32.xlu0 %v2509, 32
        %v2559 = vpop.permute.xlu0 %2558
        %2560 = vrot.lane.b32.xlu0 %v2518, 32
        %v2561 = vpop.permute.xlu0 %2560
        %2562 = vrot.lane.b32.xlu0 %v2527, 32
        %v2563 = vpop.permute.xlu0 %2562
        %2582 = vst.msk [vmem:[#allocation4 + $0x8] sm:$0xff] %vm1257, %v2529
        %2583 = vst.msk [vmem:[#allocation4 + $0x20] sm:$0xff] %vm1257, %v2531
        %2584 = vst.msk [vmem:[#allocation4 + $0x38] sm:$0xff] %vm1257, %v2533
        %2585 = vst.msk [vmem:[#allocation4 + $0x50] sm:$0xff] %vm1257, %v2535
        %2586 = vst.msk [vmem:[#allocation4 + $0x68] sm:$0xff] %vm1257, %v2537
        %2587 = vst.msk [vmem:[#allocation4 + $0x80] sm:$0xff] %vm1257, %v2539
        %2588 = vst.msk [vmem:[#allocation4 + $0x98] sm:$0xff] %vm1257, %v2541
        %2589 = vst.msk [vmem:[#allocation4 + $0xb0] sm:$0xff] %vm1257, %v2543
        %2590 = vst.msk [vmem:[#allocation4 + $0xc8] sm:$0xff] %vm1257, %v2545
        %2591 = vst.msk [vmem:[#allocation4 + $0xe0] sm:$0xff] %vm1257, %v2547
        %2592 = vst.msk [vmem:[#allocation4 + $0xf8] sm:$0xff] %vm1257, %v2549
        %2593 = vst.msk [vmem:[#allocation4 + $0x110] sm:$0xff] %vm1257, %v2551
        %2594 = vst.msk [vmem:[#allocation4 + $0x128] sm:$0xff] %vm1257, %v2553
        %2595 = vst.msk [vmem:[#allocation4 + $0x140] sm:$0xff] %vm1257, %v2555
        %2596 = vst.msk [vmem:[#allocation4 + $0x158] sm:$0xff] %vm1257, %v2557
        %2597 = vst.msk [vmem:[#allocation4 + $0x170] sm:$0xff] %vm1257, %v2559
        %2598 = vst.msk [vmem:[#allocation4 + $0x188] sm:$0xff] %vm1257, %v2561
        %2599 = vst.msk [vmem:[#allocation4 + $0x1a0] sm:$0xff] %vm1257, %v2563
        %v2600 = vld [vmem:[#allocation2 + $0x10] sm:$0xc]
        %v2601 = vld [vmem:[#allocation2 + $0x14] sm:$0xf]
        %v2602 = vld [vmem:[#allocation2 + $0x18] sm:$0xf]
        %v2603 = vld [vmem:[#allocation2 + $0x1c] sm:$0xf]
        %v2604 = vld [vmem:[#allocation2 + $0x20] sm:$0xf]
        %v2605 = vld [vmem:[#allocation2 + $0x24] sm:$0xf]
        %v2606 = vld [vmem:[#allocation2 + $0x28] sm:$0xf]
        %v2607 = vld [vmem:[#allocation2 + $0x2c] sm:$0xf]
        %v2608 = vld [vmem:[#allocation2 + $0x30] sm:$0xf]
        %v2609 = vld [vmem:[#allocation2 + $0x34] sm:$0xf]
        %v2610 = vld [vmem:[#allocation2 + $0x38] sm:$0xf]
        %v2611 = vld [vmem:[#allocation2 + $0x3c] sm:$0xf]
        %v2612 = vld [vmem:[#allocation2 + $0x40] sm:$0xf]
        %v2613 = vld [vmem:[#allocation2 + $0x44] sm:$0xf]
        %v2614 = vld [vmem:[#allocation2 + $0x48] sm:$0xf]
        %v2615 = vld [vmem:[#allocation2 + $0x4c] sm:$0xf]
        %v2616 = vld [vmem:[#allocation2 + $0x50] sm:$0xf]
        %v2617 = vld [vmem:[#allocation2 + $0x54] sm:$0xf]
        %v2618 = vld [vmem:[#allocation2 + $0x58] sm:$0xf]
        %v2619 = vld [vmem:[#allocation2 + $0x5c] sm:$0xf]
        %v2620 = vld [vmem:[#allocation2 + $0x60] sm:$0xf]
        %v2621 = vld [vmem:[#allocation2 + $0x64] sm:$0xf]
        %v2622 = vld [vmem:[#allocation2 + $0x68] sm:$0xf]
        %v2623 = vld [vmem:[#allocation2 + $0x6c] sm:$0xf]
        %v2624 = vld [vmem:[#allocation2 + $0x70] sm:$0xf]
        %v2625 = vld [vmem:[#allocation2 + $0x74] sm:$0xf]
        %v2626 = vld [vmem:[#allocation2 + $0x78] sm:$0xf]
        %v2627 = vld [vmem:[#allocation2 + $0x7c] sm:$0xf]
        %v2628 = vld [vmem:[#allocation2 + $0x80] sm:$0xf]
        %v2629 = vld [vmem:[#allocation2 + $0x84] sm:$0xf]
        %v2630 = vld [vmem:[#allocation2 + $0x88] sm:$0xf]
        %v2631 = vld [vmem:[#allocation2 + $0x8c] sm:$0xf]
        %v2632 = vld [vmem:[#allocation2 + $0x90] sm:$0xf]
        %v2633 = vld [vmem:[#allocation2 + $0x94] sm:$0xf]
        %v2634 = vld [vmem:[#allocation2 + $0x98] sm:$0xf]
        %v2635 = vld [vmem:[#allocation2 + $0x9c] sm:$0xf]
        %v2636 = vld [vmem:[#allocation2 + $0xa0] sm:$0x7]
        %v2674 = vunpack.c.l.b16 %v2600
        %v2675 = vunpack.c.l.b16 %v2601
        %v2676 = vunpack.c.l.b16 %v2602
        %v2677 = vunpack.c.l.b16 %v2603
        %v2678 = vunpack.c.l.b16 %v2604
        %v2679 = vunpack.c.l.b16 %v2605
        %v2680 = vunpack.c.l.b16 %v2606
        %v2681 = vunpack.c.l.b16 %v2607
        %v2682 = vunpack.c.l.b16 %v2608
        %v2683 = vunpack.c.l.b16 %v2609
        %v2684 = vunpack.c.l.b16 %v2610
        %v2685 = vunpack.c.l.b16 %v2611
        %v2686 = vunpack.c.l.b16 %v2612
        %v2687 = vunpack.c.l.b16 %v2613
        %v2688 = vunpack.c.l.b16 %v2614
        %v2689 = vunpack.c.l.b16 %v2615
        %v2690 = vunpack.c.l.b16 %v2616
        %v2691 = vunpack.c.l.b16 %v2617
        %v2692 = vunpack.c.l.b16 %v2618
        %v2693 = vunpack.c.l.b16 %v2619
        %v2694 = vunpack.c.l.b16 %v2620
        %v2695 = vunpack.c.l.b16 %v2621
        %v2696 = vunpack.c.l.b16 %v2622
        %v2697 = vunpack.c.l.b16 %v2623
        %v2698 = vunpack.c.l.b16 %v2624
        %v2699 = vunpack.c.l.b16 %v2625
        %v2700 = vunpack.c.l.b16 %v2626
        %v2701 = vunpack.c.l.b16 %v2627
        %v2702 = vunpack.c.l.b16 %v2628
        %v2703 = vunpack.c.l.b16 %v2629
        %v2704 = vunpack.c.l.b16 %v2630
        %v2705 = vunpack.c.l.b16 %v2631
        %v2706 = vunpack.c.l.b16 %v2632
        %v2707 = vunpack.c.l.b16 %v2633
        %v2708 = vunpack.c.l.b16 %v2634
        %v2709 = vunpack.c.l.b16 %v2635
        %v2710 = vunpack.c.l.b16 %v2636
        %v2711 = vpack.c.b16 %v2675, %v2674
        %v2712 = vpack.c.b16 %v2677, %v2676
        %v2713 = vpack.c.b16 %v2679, %v2678
        %v2714 = vpack.c.b16 %v2681, %v2680
        %v2715 = vpack.c.b16 %v2683, %v2682
        %v2716 = vpack.c.b16 %v2685, %v2684
        %v2717 = vpack.c.b16 %v2687, %v2686
        %v2718 = vpack.c.b16 %v2689, %v2688
        %v2719 = vpack.c.b16 %v2691, %v2690
        %v2720 = vpack.c.b16 %v2693, %v2692
        %v2721 = vpack.c.b16 %v2695, %v2694
        %v2722 = vpack.c.b16 %v2697, %v2696
        %v2723 = vpack.c.b16 %v2699, %v2698
        %v2724 = vpack.c.b16 %v2701, %v2700
        %v2725 = vpack.c.b16 %v2703, %v2702
        %v2726 = vpack.c.b16 %v2705, %v2704
        %v2727 = vpack.c.b16 %v2707, %v2706
        %v2728 = vpack.c.b16 %v2709, %v2708
        %v2729 = vpack.c.b16 %v2710, %v2710
        %v2731 = vshrl.u32 %v2711, 16
        %v2733 = vrot.slane %v2731, 2
        %v2734 = vshll.u32 %v2711, 16
        %v2736 = vrot.slane %v2734, 3
        %v2737 = vor.u32 %v2733, %v2736
        %v2739 = vshrl.u32 %v2712, 16
        %v2741 = vrot.slane %v2739, 2
        %v2742 = vshll.u32 %v2712, 16
        %v2744 = vrot.slane %v2742, 3
        %v2745 = vor.u32 %v2741, %v2744
        %v2746 = vsel %vm2357, %v2737, %v2745
        %v2748 = vshrl.u32 %v2713, 16
        %v2750 = vrot.slane %v2748, 2
        %v2751 = vshll.u32 %v2713, 16
        %v2753 = vrot.slane %v2751, 3
        %v2754 = vor.u32 %v2750, %v2753
        %v2755 = vsel %vm2357, %v2745, %v2754
        %v2757 = vshrl.u32 %v2714, 16
        %v2759 = vrot.slane %v2757, 2
        %v2760 = vshll.u32 %v2714, 16
        %v2762 = vrot.slane %v2760, 3
        %v2763 = vor.u32 %v2759, %v2762
        %v2764 = vsel %vm2357, %v2754, %v2763
        %v2766 = vshrl.u32 %v2715, 16
        %v2768 = vrot.slane %v2766, 2
        %v2769 = vshll.u32 %v2715, 16
        %v2771 = vrot.slane %v2769, 3
        %v2772 = vor.u32 %v2768, %v2771
        %v2773 = vsel %vm2357, %v2763, %v2772
        %v2775 = vshrl.u32 %v2716, 16
        %v2777 = vrot.slane %v2775, 2
        %v2778 = vshll.u32 %v2716, 16
        %v2780 = vrot.slane %v2778, 3
        %v2781 = vor.u32 %v2777, %v2780
        %v2782 = vsel %vm2357, %v2772, %v2781
        %v2784 = vshrl.u32 %v2717, 16
        %v2786 = vrot.slane %v2784, 2
        %v2787 = vshll.u32 %v2717, 16
        %v2789 = vrot.slane %v2787, 3
        %v2790 = vor.u32 %v2786, %v2789
        %v2791 = vsel %vm2357, %v2781, %v2790
        %v2793 = vshrl.u32 %v2718, 16
        %v2795 = vrot.slane %v2793, 2
        %v2796 = vshll.u32 %v2718, 16
        %v2798 = vrot.slane %v2796, 3
        %v2799 = vor.u32 %v2795, %v2798
        %v2800 = vsel %vm2357, %v2790, %v2799
        %v2802 = vshrl.u32 %v2719, 16
        %v2804 = vrot.slane %v2802, 2
        %v2805 = vshll.u32 %v2719, 16
        %v2807 = vrot.slane %v2805, 3
        %v2808 = vor.u32 %v2804, %v2807
        %v2809 = vsel %vm2357, %v2799, %v2808
        %v2811 = vshrl.u32 %v2720, 16
        %v2813 = vrot.slane %v2811, 2
        %v2814 = vshll.u32 %v2720, 16
        %v2816 = vrot.slane %v2814, 3
        %v2817 = vor.u32 %v2813, %v2816
        %v2818 = vsel %vm2357, %v2808, %v2817
        %v2820 = vshrl.u32 %v2721, 16
        %v2822 = vrot.slane %v2820, 2
        %v2823 = vshll.u32 %v2721, 16
        %v2825 = vrot.slane %v2823, 3
        %v2826 = vor.u32 %v2822, %v2825
        %v2827 = vsel %vm2357, %v2817, %v2826
        %v2829 = vshrl.u32 %v2722, 16
        %v2831 = vrot.slane %v2829, 2
        %v2832 = vshll.u32 %v2722, 16
        %v2834 = vrot.slane %v2832, 3
        %v2835 = vor.u32 %v2831, %v2834
        %v2836 = vsel %vm2357, %v2826, %v2835
        %v2838 = vshrl.u32 %v2723, 16
        %v2840 = vrot.slane %v2838, 2
        %v2841 = vshll.u32 %v2723, 16
        %v2843 = vrot.slane %v2841, 3
        %v2844 = vor.u32 %v2840, %v2843
        %v2845 = vsel %vm2357, %v2835, %v2844
        %v2847 = vshrl.u32 %v2724, 16
        %v2849 = vrot.slane %v2847, 2
        %v2850 = vshll.u32 %v2724, 16
        %v2852 = vrot.slane %v2850, 3
        %v2853 = vor.u32 %v2849, %v2852
        %v2854 = vsel %vm2357, %v2844, %v2853
        %v2856 = vshrl.u32 %v2725, 16
        %v2858 = vrot.slane %v2856, 2
        %v2859 = vshll.u32 %v2725, 16
        %v2861 = vrot.slane %v2859, 3
        %v2862 = vor.u32 %v2858, %v2861
        %v2863 = vsel %vm2357, %v2853, %v2862
        %v2865 = vshrl.u32 %v2726, 16
        %v2867 = vrot.slane %v2865, 2
        %v2868 = vshll.u32 %v2726, 16
        %v2870 = vrot.slane %v2868, 3
        %v2871 = vor.u32 %v2867, %v2870
        %v2872 = vsel %vm2357, %v2862, %v2871
        %v2874 = vshrl.u32 %v2727, 16
        %v2876 = vrot.slane %v2874, 2
        %v2877 = vshll.u32 %v2727, 16
        %v2879 = vrot.slane %v2877, 3
        %v2880 = vor.u32 %v2876, %v2879
        %v2881 = vsel %vm2357, %v2871, %v2880
        %v2883 = vshrl.u32 %v2728, 16
        %v2885 = vrot.slane %v2883, 2
        %v2886 = vshll.u32 %v2728, 16
        %v2888 = vrot.slane %v2886, 3
        %v2889 = vor.u32 %v2885, %v2888
        %v2890 = vsel %vm2357, %v2880, %v2889
        %v2892 = vshrl.u32 %v2729, 16
        %v2894 = vrot.slane %v2892, 2
        %v2895 = vshll.u32 %v2729, 16
        %v2897 = vrot.slane %v2895, 3
        %v2898 = vor.u32 %v2894, %v2897
        %v2899 = vsel %vm2357, %v2889, %v2898
        %2900 = vrot.lane.b32.xlu0 %v2746, 64
        %v2901 = vpop.permute.xlu0 %2900
        %2902 = vrot.lane.b32.xlu0 %v2755, 64
        %v2903 = vpop.permute.xlu0 %2902
        %2904 = vrot.lane.b32.xlu0 %v2764, 64
        %v2905 = vpop.permute.xlu0 %2904
        %2906 = vrot.lane.b32.xlu0 %v2773, 64
        %v2907 = vpop.permute.xlu0 %2906
        %2908 = vrot.lane.b32.xlu0 %v2782, 64
        %v2909 = vpop.permute.xlu0 %2908
        %2910 = vrot.lane.b32.xlu0 %v2791, 64
        %v2911 = vpop.permute.xlu0 %2910
        %2912 = vrot.lane.b32.xlu0 %v2800, 64
        %v2913 = vpop.permute.xlu0 %2912
        %2914 = vrot.lane.b32.xlu0 %v2809, 64
        %v2915 = vpop.permute.xlu0 %2914
        %2916 = vrot.lane.b32.xlu0 %v2818, 64
        %v2917 = vpop.permute.xlu0 %2916
        %2918 = vrot.lane.b32.xlu0 %v2827, 64
        %v2919 = vpop.permute.xlu0 %2918
        %2920 = vrot.lane.b32.xlu0 %v2836, 64
        %v2921 = vpop.permute.xlu0 %2920
        %2922 = vrot.lane.b32.xlu0 %v2845, 64
        %v2923 = vpop.permute.xlu0 %2922
        %2924 = vrot.lane.b32.xlu0 %v2854, 64
        %v2925 = vpop.permute.xlu0 %2924
        %2926 = vrot.lane.b32.xlu0 %v2863, 64
        %v2927 = vpop.permute.xlu0 %2926
        %2928 = vrot.lane.b32.xlu0 %v2872, 64
        %v2929 = vpop.permute.xlu0 %2928
        %2930 = vrot.lane.b32.xlu0 %v2881, 64
        %v2931 = vpop.permute.xlu0 %2930
        %2932 = vrot.lane.b32.xlu0 %v2890, 64
        %v2933 = vpop.permute.xlu0 %2932
        %2934 = vrot.lane.b32.xlu0 %v2899, 64
        %v2935 = vpop.permute.xlu0 %2934
        %2954 = vst.msk [vmem:[#allocation4 + $0x8] sm:$0xff] %vm1631, %v2901
        %2955 = vst.msk [vmem:[#allocation4 + $0x20] sm:$0xff] %vm1631, %v2903
        %2956 = vst.msk [vmem:[#allocation4 + $0x38] sm:$0xff] %vm1631, %v2905
        %2957 = vst.msk [vmem:[#allocation4 + $0x50] sm:$0xff] %vm1631, %v2907
        %2958 = vst.msk [vmem:[#allocation4 + $0x68] sm:$0xff] %vm1631, %v2909
        %2959 = vst.msk [vmem:[#allocation4 + $0x80] sm:$0xff] %vm1631, %v2911
        %2960 = vst.msk [vmem:[#allocation4 + $0x98] sm:$0xff] %vm1631, %v2913
        %2961 = vst.msk [vmem:[#allocation4 + $0xb0] sm:$0xff] %vm1631, %v2915
        %2962 = vst.msk [vmem:[#allocation4 + $0xc8] sm:$0xff] %vm1631, %v2917
        %2963 = vst.msk [vmem:[#allocation4 + $0xe0] sm:$0xff] %vm1631, %v2919
        %2964 = vst.msk [vmem:[#allocation4 + $0xf8] sm:$0xff] %vm1631, %v2921
        %2965 = vst.msk [vmem:[#allocation4 + $0x110] sm:$0xff] %vm1631, %v2923
        %2966 = vst.msk [vmem:[#allocation4 + $0x128] sm:$0xff] %vm1631, %v2925
        %2967 = vst.msk [vmem:[#allocation4 + $0x140] sm:$0xff] %vm1631, %v2927
        %2968 = vst.msk [vmem:[#allocation4 + $0x158] sm:$0xff] %vm1631, %v2929
        %2969 = vst.msk [vmem:[#allocation4 + $0x170] sm:$0xff] %vm1631, %v2931
        %2970 = vst.msk [vmem:[#allocation4 + $0x188] sm:$0xff] %vm1631, %v2933
        %2971 = vst.msk [vmem:[#allocation4 + $0x1a0] sm:$0xff] %vm1631, %v2935
        %v2972 = vld [vmem:[#allocation2 + $0x10] sm:$0x8]
        %v2973 = vld [vmem:[#allocation2 + $0x14] sm:$0xf]
        %v2974 = vld [vmem:[#allocation2 + $0x18] sm:$0xf]
        %v2975 = vld [vmem:[#allocation2 + $0x1c] sm:$0xf]
        %v2976 = vld [vmem:[#allocation2 + $0x20] sm:$0xf]
        %v2977 = vld [vmem:[#allocation2 + $0x24] sm:$0xf]
        %v2978 = vld [vmem:[#allocation2 + $0x28] sm:$0xf]
        %v2979 = vld [vmem:[#allocation2 + $0x2c] sm:$0xf]
        %v2980 = vld [vmem:[#allocation2 + $0x30] sm:$0xf]
        %v2981 = vld [vmem:[#allocation2 + $0x34] sm:$0xf]
        %v2982 = vld [vmem:[#allocation2 + $0x38] sm:$0xf]
        %v2983 = vld [vmem:[#allocation2 + $0x3c] sm:$0xf]
        %v2984 = vld [vmem:[#allocation2 + $0x40] sm:$0xf]
        %v2985 = vld [vmem:[#allocation2 + $0x44] sm:$0xf]
        %v2986 = vld [vmem:[#allocation2 + $0x48] sm:$0xf]
        %v2987 = vld [vmem:[#allocation2 + $0x4c] sm:$0xf]
        %v2988 = vld [vmem:[#allocation2 + $0x50] sm:$0xf]
        %v2989 = vld [vmem:[#allocation2 + $0x54] sm:$0xf]
        %v2990 = vld [vmem:[#allocation2 + $0x58] sm:$0xf]
        %v2991 = vld [vmem:[#allocation2 + $0x5c] sm:$0xf]
        %v2992 = vld [vmem:[#allocation2 + $0x60] sm:$0xf]
        %v2993 = vld [vmem:[#allocation2 + $0x64] sm:$0xf]
        %v2994 = vld [vmem:[#allocation2 + $0x68] sm:$0xf]
        %v2995 = vld [vmem:[#allocation2 + $0x6c] sm:$0xf]
        %v2996 = vld [vmem:[#allocation2 + $0x70] sm:$0xf]
        %v2997 = vld [vmem:[#allocation2 + $0x74] sm:$0xf]
        %v2998 = vld [vmem:[#allocation2 + $0x78] sm:$0xf]
        %v2999 = vld [vmem:[#allocation2 + $0x7c] sm:$0xf]
        %v3000 = vld [vmem:[#allocation2 + $0x80] sm:$0xf]
        %v3001 = vld [vmem:[#allocation2 + $0x84] sm:$0xf]
        %v3002 = vld [vmem:[#allocation2 + $0x88] sm:$0xf]
        %v3003 = vld [vmem:[#allocation2 + $0x8c] sm:$0xf]
        %v3004 = vld [vmem:[#allocation2 + $0x90] sm:$0xf]
        %v3005 = vld [vmem:[#allocation2 + $0x94] sm:$0xf]
        %v3006 = vld [vmem:[#allocation2 + $0x98] sm:$0xf]
        %v3007 = vld [vmem:[#allocation2 + $0x9c] sm:$0xf]
        %v3008 = vld [vmem:[#allocation2 + $0xa0] sm:$0x7]
        %v3046 = vunpack.c.l.b16 %v2972
        %v3047 = vunpack.c.l.b16 %v2973
        %v3048 = vunpack.c.l.b16 %v2974
        %v3049 = vunpack.c.l.b16 %v2975
        %v3050 = vunpack.c.l.b16 %v2976
        %v3051 = vunpack.c.l.b16 %v2977
        %v3052 = vunpack.c.l.b16 %v2978
        %v3053 = vunpack.c.l.b16 %v2979
        %v3054 = vunpack.c.l.b16 %v2980
        %v3055 = vunpack.c.l.b16 %v2981
        %v3056 = vunpack.c.l.b16 %v2982
        %v3057 = vunpack.c.l.b16 %v2983
        %v3058 = vunpack.c.l.b16 %v2984
        %v3059 = vunpack.c.l.b16 %v2985
        %v3060 = vunpack.c.l.b16 %v2986
        %v3061 = vunpack.c.l.b16 %v2987
        %v3062 = vunpack.c.l.b16 %v2988
        %v3063 = vunpack.c.l.b16 %v2989
        %v3064 = vunpack.c.l.b16 %v2990
        %v3065 = vunpack.c.l.b16 %v2991
        %v3066 = vunpack.c.l.b16 %v2992
        %v3067 = vunpack.c.l.b16 %v2993
        %v3068 = vunpack.c.l.b16 %v2994
        %v3069 = vunpack.c.l.b16 %v2995
        %v3070 = vunpack.c.l.b16 %v2996
        %v3071 = vunpack.c.l.b16 %v2997
        %v3072 = vunpack.c.l.b16 %v2998
        %v3073 = vunpack.c.l.b16 %v2999
        %v3074 = vunpack.c.l.b16 %v3000
        %v3075 = vunpack.c.l.b16 %v3001
        %v3076 = vunpack.c.l.b16 %v3002
        %v3077 = vunpack.c.l.b16 %v3003
        %v3078 = vunpack.c.l.b16 %v3004
        %v3079 = vunpack.c.l.b16 %v3005
        %v3080 = vunpack.c.l.b16 %v3006
        %v3081 = vunpack.c.l.b16 %v3007
        %v3082 = vunpack.c.l.b16 %v3008
        %v3083 = vpack.c.b16 %v3047, %v3046
        %v3084 = vpack.c.b16 %v3049, %v3048
        %v3085 = vpack.c.b16 %v3051, %v3050
        %v3086 = vpack.c.b16 %v3053, %v3052
        %v3087 = vpack.c.b16 %v3055, %v3054
        %v3088 = vpack.c.b16 %v3057, %v3056
        %v3089 = vpack.c.b16 %v3059, %v3058
        %v3090 = vpack.c.b16 %v3061, %v3060
        %v3091 = vpack.c.b16 %v3063, %v3062
        %v3092 = vpack.c.b16 %v3065, %v3064
        %v3093 = vpack.c.b16 %v3067, %v3066
        %v3094 = vpack.c.b16 %v3069, %v3068
        %v3095 = vpack.c.b16 %v3071, %v3070
        %v3096 = vpack.c.b16 %v3073, %v3072
        %v3097 = vpack.c.b16 %v3075, %v3074
        %v3098 = vpack.c.b16 %v3077, %v3076
        %v3099 = vpack.c.b16 %v3079, %v3078
        %v3100 = vpack.c.b16 %v3081, %v3080
        %v3101 = vpack.c.b16 %v3082, %v3082
        %vm3102 = vcmask 1044480
        %v3103 = vrot.slane %v3083, 3
        %v3104 = vrot.slane %v3084, 3
        %v3105 = vsel %vm3102, %v3103, %v3104
        %v3106 = vrot.slane %v3085, 3
        %v3107 = vsel %vm3102, %v3104, %v3106
        %v3108 = vrot.slane %v3086, 3
        %v3109 = vsel %vm3102, %v3106, %v3108
        %v3110 = vrot.slane %v3087, 3
        %v3111 = vsel %vm3102, %v3108, %v3110
        %v3112 = vrot.slane %v3088, 3
        %v3113 = vsel %vm3102, %v3110, %v3112
        %v3114 = vrot.slane %v3089, 3
        %v3115 = vsel %vm3102, %v3112, %v3114
        %v3116 = vrot.slane %v3090, 3
        %v3117 = vsel %vm3102, %v3114, %v3116
        %v3118 = vrot.slane %v3091, 3
        %v3119 = vsel %vm3102, %v3116, %v3118
        %v3120 = vrot.slane %v3092, 3
        %v3121 = vsel %vm3102, %v3118, %v3120
        %v3122 = vrot.slane %v3093, 3
        %v3123 = vsel %vm3102, %v3120, %v3122
        %v3124 = vrot.slane %v3094, 3
        %v3125 = vsel %vm3102, %v3122, %v3124
        %v3126 = vrot.slane %v3095, 3
        %v3127 = vsel %vm3102, %v3124, %v3126
        %v3128 = vrot.slane %v3096, 3
        %v3129 = vsel %vm3102, %v3126, %v3128
        %v3130 = vrot.slane %v3097, 3
        %v3131 = vsel %vm3102, %v3128, %v3130
        %v3132 = vrot.slane %v3098, 3
        %v3133 = vsel %vm3102, %v3130, %v3132
        %v3134 = vrot.slane %v3099, 3
        %v3135 = vsel %vm3102, %v3132, %v3134
        %v3136 = vrot.slane %v3100, 3
        %v3137 = vsel %vm3102, %v3134, %v3136
        %v3138 = vrot.slane %v3101, 3
        %v3139 = vsel %vm3102, %v3136, %v3138
        %3140 = vrot.lane.b32.xlu0 %v3105, 96
        %v3141 = vpop.permute.xlu0 %3140
        %3142 = vrot.lane.b32.xlu0 %v3107, 96
        %v3143 = vpop.permute.xlu0 %3142
        %3144 = vrot.lane.b32.xlu0 %v3109, 96
        %v3145 = vpop.permute.xlu0 %3144
        %3146 = vrot.lane.b32.xlu0 %v3111, 96
        %v3147 = vpop.permute.xlu0 %3146
        %3148 = vrot.lane.b32.xlu0 %v3113, 96
        %v3149 = vpop.permute.xlu0 %3148
        %3150 = vrot.lane.b32.xlu0 %v3115, 96
        %v3151 = vpop.permute.xlu0 %3150
        %3152 = vrot.lane.b32.xlu0 %v3117, 96
        %v3153 = vpop.permute.xlu0 %3152
        %3154 = vrot.lane.b32.xlu0 %v3119, 96
        %v3155 = vpop.permute.xlu0 %3154
        %3156 = vrot.lane.b32.xlu0 %v3121, 96
        %v3157 = vpop.permute.xlu0 %3156
        %3158 = vrot.lane.b32.xlu0 %v3123, 96
        %v3159 = vpop.permute.xlu0 %3158
        %3160 = vrot.lane.b32.xlu0 %v3125, 96
        %v3161 = vpop.permute.xlu0 %3160
        %3162 = vrot.lane.b32.xlu0 %v3127, 96
        %v3163 = vpop.permute.xlu0 %3162
        %3164 = vrot.lane.b32.xlu0 %v3129, 96
        %v3165 = vpop.permute.xlu0 %3164
        %3166 = vrot.lane.b32.xlu0 %v3131, 96
        %v3167 = vpop.permute.xlu0 %3166
        %3168 = vrot.lane.b32.xlu0 %v3133, 96
        %v3169 = vpop.permute.xlu0 %3168
        %3170 = vrot.lane.b32.xlu0 %v3135, 96
        %v3171 = vpop.permute.xlu0 %3170
        %3172 = vrot.lane.b32.xlu0 %v3137, 96
        %v3173 = vpop.permute.xlu0 %3172
        %3174 = vrot.lane.b32.xlu0 %v3139, 96
        %v3175 = vpop.permute.xlu0 %3174
        %3194 = vst.msk [vmem:[#allocation4 + $0x8] sm:$0xff] %vm2004, %v3141
        %3195 = vst.msk [vmem:[#allocation4 + $0x20] sm:$0xff] %vm2004, %v3143
        %3196 = vst.msk [vmem:[#allocation4 + $0x38] sm:$0xff] %vm2004, %v3145
        %3197 = vst.msk [vmem:[#allocation4 + $0x50] sm:$0xff] %vm2004, %v3147
        %3198 = vst.msk [vmem:[#allocation4 + $0x68] sm:$0xff] %vm2004, %v3149
        %3199 = vst.msk [vmem:[#allocation4 + $0x80] sm:$0xff] %vm2004, %v3151
        %3200 = vst.msk [vmem:[#allocation4 + $0x98] sm:$0xff] %vm2004, %v3153
        %3201 = vst.msk [vmem:[#allocation4 + $0xb0] sm:$0xff] %vm2004, %v3155
        %3202 = vst.msk [vmem:[#allocation4 + $0xc8] sm:$0xff] %vm2004, %v3157
        %3203 = vst.msk [vmem:[#allocation4 + $0xe0] sm:$0xff] %vm2004, %v3159
        %3204 = vst.msk [vmem:[#allocation4 + $0xf8] sm:$0xff] %vm2004, %v3161
        %3205 = vst.msk [vmem:[#allocation4 + $0x110] sm:$0xff] %vm2004, %v3163
        %3206 = vst.msk [vmem:[#allocation4 + $0x128] sm:$0xff] %vm2004, %v3165
        %3207 = vst.msk [vmem:[#allocation4 + $0x140] sm:$0xff] %vm2004, %v3167
        %3208 = vst.msk [vmem:[#allocation4 + $0x158] sm:$0xff] %vm2004, %v3169
        %3209 = vst.msk [vmem:[#allocation4 + $0x170] sm:$0xff] %vm2004, %v3171
        %3210 = vst.msk [vmem:[#allocation4 + $0x188] sm:$0xff] %vm2004, %v3173
        %3211 = vst.msk [vmem:[#allocation4 + $0x1a0] sm:$0xff] %vm2004, %v3175
        %v3212 = vld [vmem:[#allocation2 + $0x10] sm:$0x8]
        %v3213 = vld [vmem:[#allocation2 + $0x14] sm:$0xf]
        %v3214 = vld [vmem:[#allocation2 + $0x18] sm:$0xf]
        %v3215 = vld [vmem:[#allocation2 + $0x1c] sm:$0xf]
        %v3216 = vld [vmem:[#allocation2 + $0x20] sm:$0xf]
        %v3217 = vld [vmem:[#allocation2 + $0x24] sm:$0xf]
        %v3218 = vld [vmem:[#allocation2 + $0x28] sm:$0xf]
        %v3219 = vld [vmem:[#allocation2 + $0x2c] sm:$0xf]
        %v3220 = vld [vmem:[#allocation2 + $0x30] sm:$0xf]
        %v3221 = vld [vmem:[#allocation2 + $0x34] sm:$0xf]
        %v3222 = vld [vmem:[#allocation2 + $0x38] sm:$0xf]
        %v3223 = vld [vmem:[#allocation2 + $0x3c] sm:$0xf]
        %v3224 = vld [vmem:[#allocation2 + $0x40] sm:$0xf]
        %v3225 = vld [vmem:[#allocation2 + $0x44] sm:$0xf]
        %v3226 = vld [vmem:[#allocation2 + $0x48] sm:$0xf]
        %v3227 = vld [vmem:[#allocation2 + $0x4c] sm:$0xf]
        %v3228 = vld [vmem:[#allocation2 + $0x50] sm:$0xf]
        %v3229 = vld [vmem:[#allocation2 + $0x54] sm:$0xf]
        %v3230 = vld [vmem:[#allocation2 + $0x58] sm:$0xf]
        %v3231 = vld [vmem:[#allocation2 + $0x5c] sm:$0xf]
        %v3232 = vld [vmem:[#allocation2 + $0x60] sm:$0xf]
        %v3233 = vld [vmem:[#allocation2 + $0x64] sm:$0xf]
        %v3234 = vld [vmem:[#allocation2 + $0x68] sm:$0xf]
        %v3235 = vld [vmem:[#allocation2 + $0x6c] sm:$0xf]
        %v3236 = vld [vmem:[#allocation2 + $0x70] sm:$0xf]
        %v3237 = vld [vmem:[#allocation2 + $0x74] sm:$0xf]
        %v3238 = vld [vmem:[#allocation2 + $0x78] sm:$0xf]
        %v3239 = vld [vmem:[#allocation2 + $0x7c] sm:$0xf]
        %v3240 = vld [vmem:[#allocation2 + $0x80] sm:$0xf]
        %v3241 = vld [vmem:[#allocation2 + $0x84] sm:$0xf]
        %v3242 = vld [vmem:[#allocation2 + $0x88] sm:$0xf]
        %v3243 = vld [vmem:[#allocation2 + $0x8c] sm:$0xf]
        %v3244 = vld [vmem:[#allocation2 + $0x90] sm:$0xf]
        %v3245 = vld [vmem:[#allocation2 + $0x94] sm:$0xf]
        %v3246 = vld [vmem:[#allocation2 + $0x98] sm:$0xf]
        %v3247 = vld [vmem:[#allocation2 + $0x9c] sm:$0xf]
        %v3248 = vld [vmem:[#allocation2 + $0xa0] sm:$0xf]
        %v3286 = vunpack.c.l.b16 %v3212
        %v3287 = vunpack.c.l.b16 %v3213
        %v3288 = vunpack.c.l.b16 %v3214
        %v3289 = vunpack.c.l.b16 %v3215
        %v3290 = vunpack.c.l.b16 %v3216
        %v3291 = vunpack.c.l.b16 %v3217
        %v3292 = vunpack.c.l.b16 %v3218
        %v3293 = vunpack.c.l.b16 %v3219
        %v3294 = vunpack.c.l.b16 %v3220
        %v3295 = vunpack.c.l.b16 %v3221
        %v3296 = vunpack.c.l.b16 %v3222
        %v3297 = vunpack.c.l.b16 %v3223
        %v3298 = vunpack.c.l.b16 %v3224
        %v3299 = vunpack.c.l.b16 %v3225
        %v3300 = vunpack.c.l.b16 %v3226
        %v3301 = vunpack.c.l.b16 %v3227
        %v3302 = vunpack.c.l.b16 %v3228
        %v3303 = vunpack.c.l.b16 %v3229
        %v3304 = vunpack.c.l.b16 %v3230
        %v3305 = vunpack.c.l.b16 %v3231
        %v3306 = vunpack.c.l.b16 %v3232
        %v3307 = vunpack.c.l.b16 %v3233
        %v3308 = vunpack.c.l.b16 %v3234
        %v3309 = vunpack.c.l.b16 %v3235
        %v3310 = vunpack.c.l.b16 %v3236
        %v3311 = vunpack.c.l.b16 %v3237
        %v3312 = vunpack.c.l.b16 %v3238
        %v3313 = vunpack.c.l.b16 %v3239
        %v3314 = vunpack.c.l.b16 %v3240
        %v3315 = vunpack.c.l.b16 %v3241
        %v3316 = vunpack.c.l.b16 %v3242
        %v3317 = vunpack.c.l.b16 %v3243
        %v3318 = vunpack.c.l.b16 %v3244
        %v3319 = vunpack.c.l.b16 %v3245
        %v3320 = vunpack.c.l.b16 %v3246
        %v3321 = vunpack.c.l.b16 %v3247
        %v3322 = vunpack.c.l.b16 %v3248
        %v3323 = vpack.c.b16 %v3287, %v3286
        %v3324 = vpack.c.b16 %v3289, %v3288
        %v3325 = vpack.c.b16 %v3291, %v3290
        %v3326 = vpack.c.b16 %v3293, %v3292
        %v3327 = vpack.c.b16 %v3295, %v3294
        %v3328 = vpack.c.b16 %v3297, %v3296
        %v3329 = vpack.c.b16 %v3299, %v3298
        %v3330 = vpack.c.b16 %v3301, %v3300
        %v3331 = vpack.c.b16 %v3303, %v3302
        %v3332 = vpack.c.b16 %v3305, %v3304
        %v3333 = vpack.c.b16 %v3307, %v3306
        %v3334 = vpack.c.b16 %v3309, %v3308
        %v3335 = vpack.c.b16 %v3311, %v3310
        %v3336 = vpack.c.b16 %v3313, %v3312
        %v3337 = vpack.c.b16 %v3315, %v3314
        %v3338 = vpack.c.b16 %v3317, %v3316
        %v3339 = vpack.c.b16 %v3319, %v3318
        %v3340 = vpack.c.b16 %v3321, %v3320
        %v3341 = vpack.c.b16 %v3322, %v3322
        %vm3342 = vsmask.f32 4352
        %v3344 = vshrl.u32 %v3323, 16
        %v3346 = vrot.slane %v3344, 3
        %v3347 = vshll.u32 %v3323, 16
        %v3349 = vrot.slane %v3347, 4
        %v3350 = vor.u32 %v3346, %v3349
        %v3352 = vshrl.u32 %v3324, 16
        %v3354 = vrot.slane %v3352, 3
        %v3355 = vshll.u32 %v3324, 16
        %v3357 = vrot.slane %v3355, 4
        %v3358 = vor.u32 %v3354, %v3357
        %v3359 = vsel %vm3342, %v3350, %v3358
        %v3361 = vshrl.u32 %v3325, 16
        %v3363 = vrot.slane %v3361, 3
        %v3364 = vshll.u32 %v3325, 16
        %v3366 = vrot.slane %v3364, 4
        %v3367 = vor.u32 %v3363, %v3366
        %v3368 = vsel %vm3342, %v3358, %v3367
        %v3370 = vshrl.u32 %v3326, 16
        %v3372 = vrot.slane %v3370, 3
        %v3373 = vshll.u32 %v3326, 16
        %v3375 = vrot.slane %v3373, 4
        %v3376 = vor.u32 %v3372, %v3375
        %v3377 = vsel %vm3342, %v3367, %v3376
        %v3379 = vshrl.u32 %v3327, 16
        %v3381 = vrot.slane %v3379, 3
        %v3382 = vshll.u32 %v3327, 16
        %v3384 = vrot.slane %v3382, 4
        %v3385 = vor.u32 %v3381, %v3384
        %v3386 = vsel %vm3342, %v3376, %v3385
        %v3388 = vshrl.u32 %v3328, 16
        %v3390 = vrot.slane %v3388, 3
        %v3391 = vshll.u32 %v3328, 16
        %v3393 = vrot.slane %v3391, 4
        %v3394 = vor.u32 %v3390, %v3393
        %v3395 = vsel %vm3342, %v3385, %v3394
        %v3397 = vshrl.u32 %v3329, 16
        %v3399 = vrot.slane %v3397, 3
        %v3400 = vshll.u32 %v3329, 16
        %v3402 = vrot.slane %v3400, 4
        %v3403 = vor.u32 %v3399, %v3402
        %v3404 = vsel %vm3342, %v3394, %v3403
        %v3406 = vshrl.u32 %v3330, 16
        %v3408 = vrot.slane %v3406, 3
        %v3409 = vshll.u32 %v3330, 16
        %v3411 = vrot.slane %v3409, 4
        %v3412 = vor.u32 %v3408, %v3411
        %v3413 = vsel %vm3342, %v3403, %v3412
        %v3415 = vshrl.u32 %v3331, 16
        %v3417 = vrot.slane %v3415, 3
        %v3418 = vshll.u32 %v3331, 16
        %v3420 = vrot.slane %v3418, 4
        %v3421 = vor.u32 %v3417, %v3420
        %v3422 = vsel %vm3342, %v3412, %v3421
        %v3424 = vshrl.u32 %v3332, 16
        %v3426 = vrot.slane %v3424, 3
        %v3427 = vshll.u32 %v3332, 16
        %v3429 = vrot.slane %v3427, 4
        %v3430 = vor.u32 %v3426, %v3429
        %v3431 = vsel %vm3342, %v3421, %v3430
        %v3433 = vshrl.u32 %v3333, 16
        %v3435 = vrot.slane %v3433, 3
        %v3436 = vshll.u32 %v3333, 16
        %v3438 = vrot.slane %v3436, 4
        %v3439 = vor.u32 %v3435, %v3438
        %v3440 = vsel %vm3342, %v3430, %v3439
        %v3442 = vshrl.u32 %v3334, 16
        %v3444 = vrot.slane %v3442, 3
        %v3445 = vshll.u32 %v3334, 16
        %v3447 = vrot.slane %v3445, 4
        %v3448 = vor.u32 %v3444, %v3447
        %v3449 = vsel %vm3342, %v3439, %v3448
        %v3451 = vshrl.u32 %v3335, 16
        %v3453 = vrot.slane %v3451, 3
        %v3454 = vshll.u32 %v3335, 16
        %v3456 = vrot.slane %v3454, 4
        %v3457 = vor.u32 %v3453, %v3456
        %v3458 = vsel %vm3342, %v3448, %v3457
        %v3460 = vshrl.u32 %v3336, 16
        %v3462 = vrot.slane %v3460, 3
        %v3463 = vshll.u32 %v3336, 16
        %v3465 = vrot.slane %v3463, 4
        %v3466 = vor.u32 %v3462, %v3465
        %v3467 = vsel %vm3342, %v3457, %v3466
        %v3469 = vshrl.u32 %v3337, 16
        %v3471 = vrot.slane %v3469, 3
        %v3472 = vshll.u32 %v3337, 16
        %v3474 = vrot.slane %v3472, 4
        %v3475 = vor.u32 %v3471, %v3474
        %v3476 = vsel %vm3342, %v3466, %v3475
        %v3478 = vshrl.u32 %v3338, 16
        %v3480 = vrot.slane %v3478, 3
        %v3481 = vshll.u32 %v3338, 16
        %v3483 = vrot.slane %v3481, 4
        %v3484 = vor.u32 %v3480, %v3483
        %v3485 = vsel %vm3342, %v3475, %v3484
        %v3487 = vshrl.u32 %v3339, 16
        %v3489 = vrot.slane %v3487, 3
        %v3490 = vshll.u32 %v3339, 16
        %v3492 = vrot.slane %v3490, 4
        %v3493 = vor.u32 %v3489, %v3492
        %v3494 = vsel %vm3342, %v3484, %v3493
        %v3496 = vshrl.u32 %v3340, 16
        %v3498 = vrot.slane %v3496, 3
        %v3499 = vshll.u32 %v3340, 16
        %v3501 = vrot.slane %v3499, 4
        %v3502 = vor.u32 %v3498, %v3501
        %v3503 = vsel %vm3342, %v3493, %v3502
        %v3505 = vshrl.u32 %v3341, 16
        %v3507 = vrot.slane %v3505, 3
        %v3508 = vshll.u32 %v3341, 16
        %v3510 = vrot.slane %v3508, 4
        %v3511 = vor.u32 %v3507, %v3510
        %v3512 = vsel %vm3342, %v3502, %v3511
        %3531 = vst.msk [vmem:[#allocation4 + $0x10] sm:$0xff] %vm1016, %v3359
        %3532 = vst.msk [vmem:[#allocation4 + $0x28] sm:$0xff] %vm1016, %v3368
        %3533 = vst.msk [vmem:[#allocation4 + $0x40] sm:$0xff] %vm1016, %v3377
        %3534 = vst.msk [vmem:[#allocation4 + $0x58] sm:$0xff] %vm1016, %v3386
        %3535 = vst.msk [vmem:[#allocation4 + $0x70] sm:$0xff] %vm1016, %v3395
        %3536 = vst.msk [vmem:[#allocation4 + $0x88] sm:$0xff] %vm1016, %v3404
        %3537 = vst.msk [vmem:[#allocation4 + $0xa0] sm:$0xff] %vm1016, %v3413
        %3538 = vst.msk [vmem:[#allocation4 + $0xb8] sm:$0xff] %vm1016, %v3422
        %3539 = vst.msk [vmem:[#allocation4 + $0xd0] sm:$0xff] %vm1016, %v3431
        %3540 = vst.msk [vmem:[#allocation4 + $0xe8] sm:$0xff] %vm1016, %v3440
        %3541 = vst.msk [vmem:[#allocation4 + $0x100] sm:$0xff] %vm1016, %v3449
        %3542 = vst.msk [vmem:[#allocation4 + $0x118] sm:$0xff] %vm1016, %v3458
        %3543 = vst.msk [vmem:[#allocation4 + $0x130] sm:$0xff] %vm1016, %v3467
        %3544 = vst.msk [vmem:[#allocation4 + $0x148] sm:$0xff] %vm1016, %v3476
        %3545 = vst.msk [vmem:[#allocation4 + $0x160] sm:$0xff] %vm1016, %v3485
        %3546 = vst.msk [vmem:[#allocation4 + $0x178] sm:$0xff] %vm1016, %v3494
        %3547 = vst.msk [vmem:[#allocation4 + $0x190] sm:$0xff] %vm1016, %v3503
        %3548 = vst.msk [vmem:[#allocation4 + $0x1a8] sm:$0xff] %vm1016, %v3512
        %v3549 = vld [vmem:[#allocation4] sm:$0xff]
        %v3550 = vld [vmem:[#allocation4 + $0x8] sm:$0xff]
        %v3551 = vld [vmem:[#allocation4 + $0x10] sm:$0xff]
        %v3552 = vld [vmem:[#allocation4 + $0x18] sm:$0xff]
        %v3553 = vld [vmem:[#allocation4 + $0x20] sm:$0xff]
        %v3554 = vld [vmem:[#allocation4 + $0x28] sm:$0xff]
        %v3555 = vld [vmem:[#allocation4 + $0x30] sm:$0xff]
        %v3556 = vld [vmem:[#allocation4 + $0x38] sm:$0xff]
        %v3557 = vld [vmem:[#allocation4 + $0x40] sm:$0xff]
        %v3558 = vld [vmem:[#allocation4 + $0x48] sm:$0xff]
        %v3559 = vld [vmem:[#allocation4 + $0x50] sm:$0xff]
        %v3560 = vld [vmem:[#allocation4 + $0x58] sm:$0xff]
        %v3561 = vld [vmem:[#allocation4 + $0x60] sm:$0xff]
        %v3562 = vld [vmem:[#allocation4 + $0x68] sm:$0xff]
        %v3563 = vld [vmem:[#allocation4 + $0x70] sm:$0xff]
        %v3564 = vld [vmem:[#allocation4 + $0x78] sm:$0xff]
        %v3565 = vld [vmem:[#allocation4 + $0x80] sm:$0xff]
        %v3566 = vld [vmem:[#allocation4 + $0x88] sm:$0xff]
        %v3567 = vld [vmem:[#allocation4 + $0x90] sm:$0xff]
        %v3568 = vld [vmem:[#allocation4 + $0x98] sm:$0xff]
        %v3569 = vld [vmem:[#allocation4 + $0xa0] sm:$0xff]
        %v3570 = vld [vmem:[#allocation4 + $0xa8] sm:$0xff]
        %v3571 = vld [vmem:[#allocation4 + $0xb0] sm:$0xff]
        %v3572 = vld [vmem:[#allocation4 + $0xb8] sm:$0xff]
        %v3573 = vld [vmem:[#allocation4 + $0xc0] sm:$0xff]
        %v3574 = vld [vmem:[#allocation4 + $0xc8] sm:$0xff]
        %v3575 = vld [vmem:[#allocation4 + $0xd0] sm:$0xff]
        %v3576 = vld [vmem:[#allocation4 + $0xd8] sm:$0xff]
        %v3577 = vld [vmem:[#allocation4 + $0xe0] sm:$0xff]
        %v3578 = vld [vmem:[#allocation4 + $0xe8] sm:$0xff]
        %v3579 = vld [vmem:[#allocation4 + $0xf0] sm:$0xff]
        %v3580 = vld [vmem:[#allocation4 + $0xf8] sm:$0xff]
        %v3581 = vld [vmem:[#allocation4 + $0x100] sm:$0xff]
        %v3582 = vld [vmem:[#allocation4 + $0x108] sm:$0xff]
        %v3583 = vld [vmem:[#allocation4 + $0x110] sm:$0xff]
        %v3584 = vld [vmem:[#allocation4 + $0x118] sm:$0xff]
        %v3585 = vld [vmem:[#allocation4 + $0x120] sm:$0xff]
        %v3586 = vld [vmem:[#allocation4 + $0x128] sm:$0xff]
        %v3587 = vld [vmem:[#allocation4 + $0x130] sm:$0xff]
        %v3588 = vld [vmem:[#allocation4 + $0x138] sm:$0xff]
        %v3589 = vld [vmem:[#allocation4 + $0x140] sm:$0xff]
        %v3590 = vld [vmem:[#allocation4 + $0x148] sm:$0xff]
        %v3591 = vld [vmem:[#allocation4 + $0x150] sm:$0xff]
        %v3592 = vld [vmem:[#allocation4 + $0x158] sm:$0xff]
        %v3593 = vld [vmem:[#allocation4 + $0x160] sm:$0xff]
        %v3594 = vld [vmem:[#allocation4 + $0x168] sm:$0xff]
        %v3595 = vld [vmem:[#allocation4 + $0x170] sm:$0xff]
        %v3596 = vld [vmem:[#allocation4 + $0x178] sm:$0xff]
        %v3597 = vld [vmem:[#allocation4 + $0x180] sm:$0xff]
        %v3598 = vld [vmem:[#allocation4 + $0x188] sm:$0xff]
        %v3599 = vld [vmem:[#allocation4 + $0x190] sm:$0xff]
        %v3600 = vld [vmem:[#allocation4 + $0x198] sm:$0xff]
        %v3601 = vld [vmem:[#allocation4 + $0x1a0] sm:$0xff]
        %v3602 = vld [vmem:[#allocation4 + $0x1a8] sm:$0xff]
        %v3603 = vld [vmem:[%s3] sm:$0xf]
        %v3604 = vld [vmem:[%s3 + $0x4] sm:$0xf]
        %v3605 = vld [vmem:[%s3 + $0x8] sm:$0xf]
        %v3606 = vld [vmem:[%s3 + $0xc] sm:$0xf]
        %v3607 = vld [vmem:[%s3 + $0x10] sm:$0xf]
        %v3608 = vld [vmem:[%s3 + $0x14] sm:$0xf]
        %v3609 = vld [vmem:[%s3 + $0x18] sm:$0xf]
        %v3610 = vld [vmem:[%s3 + $0x1c] sm:$0xf]
        %v3611 = vld [vmem:[%s3 + $0x20] sm:$0xf]
        %v3612 = vld [vmem:[%s3 + $0x24] sm:$0xf]
        %v3613 = vld [vmem:[%s3 + $0x28] sm:$0xf]
        %v3614 = vld [vmem:[%s3 + $0x2c] sm:$0xf]
        %v3615 = vld [vmem:[%s3 + $0x30] sm:$0xf]
        %v3616 = vld [vmem:[%s3 + $0x34] sm:$0xf]
        %v3617 = vld [vmem:[%s3 + $0x38] sm:$0xf]
        %v3618 = vld [vmem:[%s3 + $0x3c] sm:$0xf]
        %v3619 = vld [vmem:[%s3 + $0x40] sm:$0xf]
        %v3620 = vld [vmem:[%s3 + $0x44] sm:$0xf]
        %v3621 = vld [vmem:[%s3 + $0x48] sm:$0xf]
        %v3622 = vld [vmem:[%s3 + $0x4c] sm:$0xf]
        %v3623 = vld [vmem:[%s3 + $0x50] sm:$0xf]
        %v3624 = vld [vmem:[%s3 + $0x54] sm:$0xf]
        %v3625 = vld [vmem:[%s3 + $0x58] sm:$0xf]
        %v3626 = vld [vmem:[%s3 + $0x5c] sm:$0xf]
        %v3627 = vld [vmem:[%s3 + $0x60] sm:$0xf]
        %v3628 = vld [vmem:[%s3 + $0x64] sm:$0xf]
        %v3629 = vld [vmem:[%s3 + $0x68] sm:$0xf]
        %v3630 = vld [vmem:[%s3 + $0x6c] sm:$0xf]
        %v3631 = vld [vmem:[%s3 + $0x70] sm:$0xf]
        %v3632 = vld [vmem:[%s3 + $0x74] sm:$0xf]
        %v3633 = vld [vmem:[%s3 + $0x78] sm:$0xf]
        %v3634 = vld [vmem:[%s3 + $0x7c] sm:$0xf]
        %v3635 = vld [vmem:[%s3 + $0x80] sm:$0xf]
        %v3636 = vld [vmem:[%s3 + $0x84] sm:$0xf]
        %v3637 = vld [vmem:[%s3 + $0x88] sm:$0xf]
        %v3638 = vld [vmem:[%s3 + $0x8c] sm:$0xf]
        %v3675 = vunpack.c.l.b16 %v3603
        %v3676 = vunpack.c.l.b16 %v3604
        %v3677 = vunpack.c.l.b16 %v3605
        %v3678 = vunpack.c.l.b16 %v3606
        %v3679 = vunpack.c.l.b16 %v3607
        %v3680 = vunpack.c.l.b16 %v3608
        %v3681 = vunpack.c.l.b16 %v3609
        %v3682 = vunpack.c.l.b16 %v3610
        %v3683 = vunpack.c.l.b16 %v3611
        %v3684 = vunpack.c.l.b16 %v3612
        %v3685 = vunpack.c.l.b16 %v3613
        %v3686 = vunpack.c.l.b16 %v3614
        %v3687 = vunpack.c.l.b16 %v3615
        %v3688 = vunpack.c.l.b16 %v3616
        %v3689 = vunpack.c.l.b16 %v3617
        %v3690 = vunpack.c.l.b16 %v3618
        %v3691 = vunpack.c.l.b16 %v3619
        %v3692 = vunpack.c.l.b16 %v3620
        %v3693 = vunpack.c.l.b16 %v3621
        %v3694 = vunpack.c.l.b16 %v3622
        %v3695 = vunpack.c.l.b16 %v3623
        %v3696 = vunpack.c.l.b16 %v3624
        %v3697 = vunpack.c.l.b16 %v3625
        %v3698 = vunpack.c.l.b16 %v3626
        %v3699 = vunpack.c.l.b16 %v3627
        %v3700 = vunpack.c.l.b16 %v3628
        %v3701 = vunpack.c.l.b16 %v3629
        %v3702 = vunpack.c.l.b16 %v3630
        %v3703 = vunpack.c.l.b16 %v3631
        %v3704 = vunpack.c.l.b16 %v3632
        %v3705 = vunpack.c.l.b16 %v3633
        %v3706 = vunpack.c.l.b16 %v3634
        %v3707 = vunpack.c.l.b16 %v3635
        %v3708 = vunpack.c.l.b16 %v3636
        %v3709 = vunpack.c.l.b16 %v3637
        %v3710 = vunpack.c.l.b16 %v3638
        %v3711 = vpack.c.b16 %v3676, %v3675
        %v3712 = vpack.c.b16 %v3678, %v3677
        %v3713 = vpack.c.b16 %v3680, %v3679
        %v3714 = vpack.c.b16 %v3682, %v3681
        %v3715 = vpack.c.b16 %v3684, %v3683
        %v3716 = vpack.c.b16 %v3686, %v3685
        %v3717 = vpack.c.b16 %v3688, %v3687
        %v3718 = vpack.c.b16 %v3690, %v3689
        %v3719 = vpack.c.b16 %v3692, %v3691
        %v3720 = vpack.c.b16 %v3694, %v3693
        %v3721 = vpack.c.b16 %v3696, %v3695
        %v3722 = vpack.c.b16 %v3698, %v3697
        %v3723 = vpack.c.b16 %v3700, %v3699
        %v3724 = vpack.c.b16 %v3702, %v3701
        %v3725 = vpack.c.b16 %v3704, %v3703
        %v3726 = vpack.c.b16 %v3706, %v3705
        %v3727 = vpack.c.b16 %v3708, %v3707
        %v3728 = vpack.c.b16 %v3710, %v3709
        %v3748 = vsel %vm1016, %v3551, 0
        %v3751 = vsel %vm1016, %v3554, 0
        %v3754 = vsel %vm1016, %v3557, 0
        %v3757 = vsel %vm1016, %v3560, 0
        %v3760 = vsel %vm1016, %v3563, 0
        %v3763 = vsel %vm1016, %v3566, 0
        %v3766 = vsel %vm1016, %v3569, 0
        %v3769 = vsel %vm1016, %v3572, 0
        %v3772 = vsel %vm1016, %v3575, 0
        %v3775 = vsel %vm1016, %v3578, 0
        %v3778 = vsel %vm1016, %v3581, 0
        %v3781 = vsel %vm1016, %v3584, 0
        %v3784 = vsel %vm1016, %v3587, 0
        %v3787 = vsel %vm1016, %v3590, 0
        %v3790 = vsel %vm1016, %v3593, 0
        %v3793 = vsel %vm1016, %v3596, 0
        %v3796 = vsel %vm1016, %v3599, 0
        %v3799 = vsel %vm1016, %v3602, 0
        %3801 = vmatprep.subr.bf16.mxu0 0
        %3802 = vmatpush1.bf16.msra.mxu0 %v3711
        %3803 = vmatprep.subr.bf16.mxu0 0
        %3804 = vmatpush1.bf16.msra.mxu0 %v3712
        %3805 = vmatprep.subr.bf16.mxu0 0
        %3806 = vmatpush1.bf16.msra.mxu0 %v3713
        %3807 = vmatprep.subr.bf16.mxu0 0
        %3808 = vmatpush1.bf16.msra.mxu0 %v3714
        %3809 = vmatprep.subr.bf16.mxu0 0
        %3810 = vmatpush1.bf16.msra.mxu0 %v3715
        %3811 = vmatprep.subr.bf16.mxu0 0
        %3812 = vmatpush1.bf16.msra.mxu0 %v3716
        %3813 = vmatprep.subr.bf16.mxu0 0
        %3814 = vmatpush1.bf16.msra.mxu0 %v3717
        %3815 = vmatprep.subr.bf16.mxu0 0
        %3816 = vmatpush1.bf16.msra.mxu0 %v3718
        %3817 = vmatprep.subr.bf16.mxu0 0
        %3818 = vmatpush1.bf16.msra.mxu0 %v3719
        %3819 = vmatprep.subr.bf16.mxu0 0
        %3820 = vmatpush1.bf16.msra.mxu0 %v3720
        %3821 = vmatprep.subr.bf16.mxu0 0
        %3822 = vmatpush1.bf16.msra.mxu0 %v3721
        %3823 = vmatprep.subr.bf16.mxu0 0
        %3824 = vmatpush1.bf16.msra.mxu0 %v3722
        %3825 = vmatprep.subr.bf16.mxu0 0
        %3826 = vmatpush1.bf16.msra.mxu0 %v3723
        %3827 = vmatprep.subr.bf16.mxu0 0
        %3828 = vmatpush1.bf16.msra.mxu0 %v3724
        %3829 = vmatprep.subr.bf16.mxu0 0
        %3830 = vmatpush1.bf16.msra.mxu0 %v3725
        %3831 = vmatprep.subr.bf16.mxu0 0
        %3832 = vmatpush1.bf16.msra.mxu0 %v3726
        %3833 = vmatprep.mubr.bf16.mxu0 %v3550
        %3834 = vmatmul.mubr.bf16.gmra.mrb[0].mxu0 %v3549
        %v3835 = vpop.f32.mrb[0].mxu0
        %v3836 = vadd.f32 0.0, %v3835
        %v3837 = vpop.f32.mrb[0].mxu0
        %v3838 = vpop.f32.mrb[0].mxu0
        %v3839 = vadd.f32 0.0, %v3838
        %v3840 = vpop.f32.mrb[0].mxu0
        %3841 = vmatprep.mubr.bf16.mxu0 %v3553
        %3842 = vmatmul.mubr.bf16.gmra.mrb[0].mxu0 %v3552
        %v3843 = vpop.f32.mrb[0].mxu0
        %v3844 = vadd.f32 0.0, %v3843
        %v3845 = vpop.f32.mrb[0].mxu0
        %v3846 = vpop.f32.mrb[0].mxu0
        %v3847 = vadd.f32 0.0, %v3846
        %v3848 = vpop.f32.mrb[0].mxu0
        %3849 = vmatprep.mubr.bf16.mxu0 %v3556
        %3850 = vmatmul.mubr.bf16.gmra.mrb[0].mxu0 %v3555
        %v3851 = vpop.f32.mrb[0].mxu0
        %v3852 = vadd.f32 0.0, %v3851
        %v3853 = vpop.f32.mrb[0].mxu0
        %v3854 = vpop.f32.mrb[0].mxu0
        %v3855 = vadd.f32 0.0, %v3854
        %v3856 = vpop.f32.mrb[0].mxu0
        %3857 = vmatprep.mubr.bf16.mxu0 %v3559
        %3858 = vmatmul.mubr.bf16.gmra.mrb[0].mxu0 %v3558
        %v3859 = vpop.f32.mrb[0].mxu0
        %v3860 = vadd.f32 0.0, %v3859
        %v3861 = vpop.f32.mrb[0].mxu0
        %v3862 = vpop.f32.mrb[0].mxu0
        %v3863 = vadd.f32 0.0, %v3862
        %v3864 = vpop.f32.mrb[0].mxu0
        %3865 = vmatprep.mubr.bf16.mxu0 %v3562
        %3866 = vmatmul.mubr.bf16.gmra.mrb[0].mxu0 %v3561
        %v3867 = vpop.f32.mrb[0].mxu0
        %v3868 = vadd.f32 0.0, %v3867
        %v3869 = vpop.f32.mrb[0].mxu0
        %v3870 = vpop.f32.mrb[0].mxu0
        %v3871 = vadd.f32 0.0, %v3870
        %v3872 = vpop.f32.mrb[0].mxu0
        %3873 = vmatprep.mubr.bf16.mxu0 %v3565
        %3874 = vmatmul.mubr.bf16.gmra.mrb[0].mxu0 %v3564
        %v3875 = vpop.f32.mrb[0].mxu0
        %v3876 = vadd.f32 0.0, %v3875
        %v3877 = vpop.f32.mrb[0].mxu0
        %v3878 = vpop.f32.mrb[0].mxu0
        %v3879 = vadd.f32 0.0, %v3878
        %v3880 = vpop.f32.mrb[0].mxu0
        %3881 = vmatprep.mubr.bf16.mxu0 %v3568
        %3882 = vmatmul.mubr.bf16.gmra.mrb[0].mxu0 %v3567
        %v3883 = vpop.f32.mrb[0].mxu0
        %v3884 = vadd.f32 0.0, %v3883
        %v3885 = vpop.f32.mrb[0].mxu0
        %v3886 = vpop.f32.mrb[0].mxu0
        %v3887 = vadd.f32 0.0, %v3886
        %v3888 = vpop.f32.mrb[0].mxu0
        %3889 = vmatprep.mubr.bf16.mxu0 %v3571
        %3890 = vmatmul.mubr.bf16.gmra.mrb[0].mxu0 %v3570
        %v3891 = vpop.f32.mrb[0].mxu0
        %v3892 = vadd.f32 0.0, %v3891
        %v3893 = vpop.f32.mrb[0].mxu0
        %v3894 = vpop.f32.mrb[0].mxu0
        %v3895 = vadd.f32 0.0, %v3894
        %v3896 = vpop.f32.mrb[0].mxu0
        %3897 = vmatprep.mubr.bf16.mxu0 %v3574
        %3898 = vmatmul.mubr.bf16.gmra.mrb[0].mxu0 %v3573
        %v3899 = vpop.f32.mrb[0].mxu0
        %v3900 = vadd.f32 0.0, %v3899
        %v3901 = vpop.f32.mrb[0].mxu0
        %v3902 = vpop.f32.mrb[0].mxu0
        %v3903 = vadd.f32 0.0, %v3902
        %v3904 = vpop.f32.mrb[0].mxu0
        %3905 = vmatprep.mubr.bf16.mxu0 %v3577
        %3906 = vmatmul.mubr.bf16.gmra.mrb[0].mxu0 %v3576
        %v3907 = vpop.f32.mrb[0].mxu0
        %v3908 = vadd.f32 0.0, %v3907
        %v3909 = vpop.f32.mrb[0].mxu0
        %v3910 = vpop.f32.mrb[0].mxu0
        %v3911 = vadd.f32 0.0, %v3910
        %v3912 = vpop.f32.mrb[0].mxu0
        %3913 = vmatprep.mubr.bf16.mxu0 %v3580
        %3914 = vmatmul.mubr.bf16.gmra.mrb[0].mxu0 %v3579
        %v3915 = vpop.f32.mrb[0].mxu0
        %v3916 = vadd.f32 0.0, %v3915
        %v3917 = vpop.f32.mrb[0].mxu0
        %v3918 = vpop.f32.mrb[0].mxu0
        %v3919 = vadd.f32 0.0, %v3918
        %v3920 = vpop.f32.mrb[0].mxu0
        %3921 = vmatprep.mubr.bf16.mxu0 %v3583
        %3922 = vmatmul.mubr.bf16.gmra.mrb[0].mxu0 %v3582
        %v3923 = vpop.f32.mrb[0].mxu0
        %v3924 = vadd.f32 0.0, %v3923
        %v3925 = vpop.f32.mrb[0].mxu0
        %v3926 = vpop.f32.mrb[0].mxu0
        %v3927 = vadd.f32 0.0, %v3926
        %v3928 = vpop.f32.mrb[0].mxu0
        %3929 = vmatprep.mubr.bf16.mxu0 %v3586
        %3930 = vmatmul.mubr.bf16.gmra.mrb[0].mxu0 %v3585
        %v3931 = vpop.f32.mrb[0].mxu0
        %v3932 = vadd.f32 0.0, %v3931
        %v3933 = vpop.f32.mrb[0].mxu0
        %v3934 = vpop.f32.mrb[0].mxu0
        %v3935 = vadd.f32 0.0, %v3934
        %v3936 = vpop.f32.mrb[0].mxu0
        %3937 = vmatprep.mubr.bf16.mxu0 %v3589
        %3938 = vmatmul.mubr.bf16.gmra.mrb[0].mxu0 %v3588
        %v3939 = vpop.f32.mrb[0].mxu0
        %v3940 = vadd.f32 0.0, %v3939
        %v3941 = vpop.f32.mrb[0].mxu0
        %v3942 = vpop.f32.mrb[0].mxu0
        %v3943 = vadd.f32 0.0, %v3942
        %v3944 = vpop.f32.mrb[0].mxu0
        %3945 = vmatprep.mubr.bf16.mxu0 %v3592
        %3946 = vmatmul.mubr.bf16.gmra.mrb[0].mxu0 %v3591
        %v3947 = vpop.f32.mrb[0].mxu0
        %v3948 = vadd.f32 0.0, %v3947
        %v3949 = vpop.f32.mrb[0].mxu0
        %v3950 = vpop.f32.mrb[0].mxu0
        %v3951 = vadd.f32 0.0, %v3950
        %v3952 = vpop.f32.mrb[0].mxu0
        %3953 = vmatprep.mubr.bf16.mxu0 %v3595
        %3954 = vmatmul.mubr.bf16.gmra.mrb[0].mxu0 %v3594
        %v3955 = vpop.f32.mrb[0].mxu0
        %v3956 = vadd.f32 0.0, %v3955
        %v3957 = vpop.f32.mrb[0].mxu0
        %v3958 = vpop.f32.mrb[0].mxu0
        %v3959 = vadd.f32 0.0, %v3958
        %v3960 = vpop.f32.mrb[0].mxu0
        %3961 = vmatprep.mubr.bf16.mxu0 %v3598
        %3962 = vmatmul.mubr.bf16.gmra.mrb[0].mxu0 %v3597
        %v3963 = vpop.f32.mrb[0].mxu0
        %v3964 = vadd.f32 0.0, %v3963
        %v3965 = vpop.f32.mrb[0].mxu0
        %v3966 = vpop.f32.mrb[0].mxu0
        %v3967 = vadd.f32 0.0, %v3966
        %v3968 = vpop.f32.mrb[0].mxu0
        %3969 = vmatprep.mubr.bf16.mxu0 %v3601
        %3970 = vmatmul.mubr.bf16.gmra.mrb[0].mxu0 %v3600
        %v3971 = vpop.f32.mrb[0].mxu0
        %v3972 = vadd.f32 0.0, %v3971
        %v3973 = vpop.f32.mrb[0].mxu0
        %v3974 = vpop.f32.mrb[0].mxu0
        %v3975 = vadd.f32 0.0, %v3974
        %v3976 = vpop.f32.mrb[0].mxu0
        %3977 = vdwg.mxu0
        %3978 = vmatprep.subr.bf16.mxu0 0
        %3979 = vmatpush1.bf16.msra.mxu0 %v3727
        %3980 = vmatprep.subr.bf16.mxu0 0
        %3981 = vmatpush1.bf16.msra.mxu0 %v3728
        %3982 = vmatprep.subr.bf16.mxu0 0
        %3983 = vmatpush1.bf16.msra.mxu0 0
        %3984 = vmatprep.subr.bf16.mxu0 0
        %3985 = vmatpush1.bf16.msra.mxu0 0
        %3986 = vmatprep.subr.bf16.mxu0 0
        %3987 = vmatpush1.bf16.msra.mxu0 0
        %3988 = vmatprep.subr.bf16.mxu0 0
        %3989 = vmatpush1.bf16.msra.mxu0 0
        %3990 = vmatprep.subr.bf16.mxu0 0
        %3991 = vmatpush1.bf16.msra.mxu0 0
        %3992 = vmatprep.subr.bf16.mxu0 0
        %3993 = vmatpush1.bf16.msra.mxu0 0
        %3994 = vmatprep.subr.bf16.mxu0 0
        %3995 = vmatpush1.bf16.msra.mxu0 0
        %3996 = vmatprep.subr.bf16.mxu0 0
        %3997 = vmatpush1.bf16.msra.mxu0 0
        %3998 = vmatprep.subr.bf16.mxu0 0
        %3999 = vmatpush1.bf16.msra.mxu0 0
        %4000 = vmatprep.subr.bf16.mxu0 0
        %4001 = vmatpush1.bf16.msra.mxu0 0
        %4002 = vmatprep.subr.bf16.mxu0 0
        %4003 = vmatpush1.bf16.msra.mxu0 0
        %4004 = vmatprep.subr.bf16.mxu0 0
        %4005 = vmatpush1.bf16.msra.mxu0 0
        %4006 = vmatprep.subr.bf16.mxu0 0
        %4007 = vmatpush1.bf16.msra.mxu0 0
        %4008 = vmatprep.subr.bf16.mxu0 0
        %4009 = vmatpush1.bf16.msra.mxu0 0
        %4010 = vmatprep.mubr.bf16.mxu0 0
        %4011 = vmatmul.mubr.bf16.gmra.mrb[0].mxu0 %v3748
        %v4012 = vpop.f32.mrb[0].mxu0
        %v4013 = vadd.f32 %v3836, %v4012
        %v4014 = vpop.f32.mrb[0].mxu0
        %v4015 = vpop.f32.mrb[0].mxu0
        %v4016 = vadd.f32 %v3839, %v4015
        %v4017 = vpop.f32.mrb[0].mxu0
        %4018 = vmatprep.mubr.bf16.mxu0 0
        %4019 = vmatmul.mubr.bf16.gmra.mrb[0].mxu0 %v3751
        %v4020 = vpop.f32.mrb[0].mxu0
        %v4021 = vadd.f32 %v3844, %v4020
        %v4022 = vpop.f32.mrb[0].mxu0
        %v4023 = vpop.f32.mrb[0].mxu0
        %v4024 = vadd.f32 %v3847, %v4023
        %v4025 = vpop.f32.mrb[0].mxu0
        %4026 = vmatprep.mubr.bf16.mxu0 0
        %4027 = vmatmul.mubr.bf16.gmra.mrb[0].mxu0 %v3754
        %v4028 = vpop.f32.mrb[0].mxu0
        %v4029 = vadd.f32 %v3852, %v4028
        %v4030 = vpop.f32.mrb[0].mxu0
        %v4031 = vpop.f32.mrb[0].mxu0
        %v4032 = vadd.f32 %v3855, %v4031
        %v4033 = vpop.f32.mrb[0].mxu0
        %4034 = vmatprep.mubr.bf16.mxu0 0
        %4035 = vmatmul.mubr.bf16.gmra.mrb[0].mxu0 %v3757
        %v4036 = vpop.f32.mrb[0].mxu0
        %v4037 = vadd.f32 %v3860, %v4036
        %v4038 = vpop.f32.mrb[0].mxu0
        %v4039 = vpop.f32.mrb[0].mxu0
        %v4040 = vadd.f32 %v3863, %v4039
        %v4041 = vpop.f32.mrb[0].mxu0
        %4042 = vmatprep.mubr.bf16.mxu0 0
        %4043 = vmatmul.mubr.bf16.gmra.mrb[0].mxu0 %v3760
        %v4044 = vpop.f32.mrb[0].mxu0
        %v4045 = vadd.f32 %v3868, %v4044
        %v4046 = vpop.f32.mrb[0].mxu0
        %v4047 = vpop.f32.mrb[0].mxu0
        %v4048 = vadd.f32 %v3871, %v4047
        %v4049 = vpop.f32.mrb[0].mxu0
        %4050 = vmatprep.mubr.bf16.mxu0 0
        %4051 = vmatmul.mubr.bf16.gmra.mrb[0].mxu0 %v3763
        %v4052 = vpop.f32.mrb[0].mxu0
        %v4053 = vadd.f32 %v3876, %v4052
        %v4054 = vpop.f32.mrb[0].mxu0
        %v4055 = vpop.f32.mrb[0].mxu0
        %v4056 = vadd.f32 %v3879, %v4055
        %v4057 = vpop.f32.mrb[0].mxu0
        %4058 = vmatprep.mubr.bf16.mxu0 0
        %4059 = vmatmul.mubr.bf16.gmra.mrb[0].mxu0 %v3766
        %v4060 = vpop.f32.mrb[0].mxu0
        %v4061 = vadd.f32 %v3884, %v4060
        %v4062 = vpop.f32.mrb[0].mxu0
        %v4063 = vpop.f32.mrb[0].mxu0
        %v4064 = vadd.f32 %v3887, %v4063
        %v4065 = vpop.f32.mrb[0].mxu0
        %4066 = vmatprep.mubr.bf16.mxu0 0
        %4067 = vmatmul.mubr.bf16.gmra.mrb[0].mxu0 %v3769
        %v4068 = vpop.f32.mrb[0].mxu0
        %v4069 = vadd.f32 %v3892, %v4068
        %v4070 = vpop.f32.mrb[0].mxu0
        %v4071 = vpop.f32.mrb[0].mxu0
        %v4072 = vadd.f32 %v3895, %v4071
        %v4073 = vpop.f32.mrb[0].mxu0
        %4074 = vmatprep.mubr.bf16.mxu0 0
        %4075 = vmatmul.mubr.bf16.gmra.mrb[0].mxu0 %v3772
        %v4076 = vpop.f32.mrb[0].mxu0
        %v4077 = vadd.f32 %v3900, %v4076
        %v4078 = vpop.f32.mrb[0].mxu0
        %v4079 = vpop.f32.mrb[0].mxu0
        %v4080 = vadd.f32 %v3903, %v4079
        %v4081 = vpop.f32.mrb[0].mxu0
        %4082 = vmatprep.mubr.bf16.mxu0 0
        %4083 = vmatmul.mubr.bf16.gmra.mrb[0].mxu0 %v3775
        %v4084 = vpop.f32.mrb[0].mxu0
        %v4085 = vadd.f32 %v3908, %v4084
        %v4086 = vpop.f32.mrb[0].mxu0
        %v4087 = vpop.f32.mrb[0].mxu0
        %v4088 = vadd.f32 %v3911, %v4087
        %v4089 = vpop.f32.mrb[0].mxu0
        %4090 = vmatprep.mubr.bf16.mxu0 0
        %4091 = vmatmul.mubr.bf16.gmra.mrb[0].mxu0 %v3778
        %v4092 = vpop.f32.mrb[0].mxu0
        %v4093 = vadd.f32 %v3916, %v4092
        %v4094 = vpop.f32.mrb[0].mxu0
        %v4095 = vpop.f32.mrb[0].mxu0
        %v4096 = vadd.f32 %v3919, %v4095
        %v4097 = vpop.f32.mrb[0].mxu0
        %4098 = vmatprep.mubr.bf16.mxu0 0
        %4099 = vmatmul.mubr.bf16.gmra.mrb[0].mxu0 %v3781
        %v4100 = vpop.f32.mrb[0].mxu0
        %v4101 = vadd.f32 %v3924, %v4100
        %v4102 = vpop.f32.mrb[0].mxu0
        %v4103 = vpop.f32.mrb[0].mxu0
        %v4104 = vadd.f32 %v3927, %v4103
        %v4105 = vpop.f32.mrb[0].mxu0
        %4106 = vmatprep.mubr.bf16.mxu0 0
        %4107 = vmatmul.mubr.bf16.gmra.mrb[0].mxu0 %v3784
        %v4108 = vpop.f32.mrb[0].mxu0
        %v4109 = vadd.f32 %v3932, %v4108
        %v4110 = vpop.f32.mrb[0].mxu0
        %v4111 = vpop.f32.mrb[0].mxu0
        %v4112 = vadd.f32 %v3935, %v4111
        %v4113 = vpop.f32.mrb[0].mxu0
        %4114 = vmatprep.mubr.bf16.mxu0 0
        %4115 = vmatmul.mubr.bf16.gmra.mrb[0].mxu0 %v3787
        %v4116 = vpop.f32.mrb[0].mxu0
        %v4117 = vadd.f32 %v3940, %v4116
        %v4118 = vpop.f32.mrb[0].mxu0
        %v4119 = vpop.f32.mrb[0].mxu0
        %v4120 = vadd.f32 %v3943, %v4119
        %v4121 = vpop.f32.mrb[0].mxu0
        %4122 = vmatprep.mubr.bf16.mxu0 0
        %4123 = vmatmul.mubr.bf16.gmra.mrb[0].mxu0 %v3790
        %v4124 = vpop.f32.mrb[0].mxu0
        %v4125 = vadd.f32 %v3948, %v4124
        %v4126 = vpop.f32.mrb[0].mxu0
        %v4127 = vpop.f32.mrb[0].mxu0
        %v4128 = vadd.f32 %v3951, %v4127
        %v4129 = vpop.f32.mrb[0].mxu0
        %4130 = vmatprep.mubr.bf16.mxu0 0
        %4131 = vmatmul.mubr.bf16.gmra.mrb[0].mxu0 %v3793
        %v4132 = vpop.f32.mrb[0].mxu0
        %v4133 = vadd.f32 %v3956, %v4132
        %v4134 = vpop.f32.mrb[0].mxu0
        %v4135 = vpop.f32.mrb[0].mxu0
        %v4136 = vadd.f32 %v3959, %v4135
        %v4137 = vpop.f32.mrb[0].mxu0
        %4138 = vmatprep.mubr.bf16.mxu0 0
        %4139 = vmatmul.mubr.bf16.gmra.mrb[0].mxu0 %v3796
        %v4140 = vpop.f32.mrb[0].mxu0
        %v4141 = vadd.f32 %v3964, %v4140
        %v4142 = vpop.f32.mrb[0].mxu0
        %v4143 = vpop.f32.mrb[0].mxu0
        %v4144 = vadd.f32 %v3967, %v4143
        %v4145 = vpop.f32.mrb[0].mxu0
        %4146 = vmatprep.mubr.bf16.mxu0 0
        %4147 = vmatmul.mubr.bf16.gmra.mrb[0].mxu0 %v3799
        %v4148 = vpop.f32.mrb[0].mxu0
        %v4149 = vadd.f32 %v3972, %v4148
        %v4150 = vpop.f32.mrb[0].mxu0
        %v4151 = vpop.f32.mrb[0].mxu0
        %v4152 = vadd.f32 %v3975, %v4151
        %v4153 = vpop.f32.mrb[0].mxu0
        %4154 = vdwg.mxu0
        %vm4155 = vcmp.gt.f32.partialorder %v4013, 0.0
        %vm4156 = vcmp.gt.f32.partialorder %v4016, 0.0
        %vm4157 = vcmp.gt.f32.partialorder %v4021, 0.0
        %vm4158 = vcmp.gt.f32.partialorder %v4024, 0.0
        %vm4159 = vcmp.gt.f32.partialorder %v4029, 0.0
        %vm4160 = vcmp.gt.f32.partialorder %v4032, 0.0
        %vm4161 = vcmp.gt.f32.partialorder %v4037, 0.0
        %vm4162 = vcmp.gt.f32.partialorder %v4040, 0.0
        %vm4163 = vcmp.gt.f32.partialorder %v4045, 0.0
        %vm4164 = vcmp.gt.f32.partialorder %v4048, 0.0
        %vm4165 = vcmp.gt.f32.partialorder %v4053, 0.0
        %vm4166 = vcmp.gt.f32.partialorder %v4056, 0.0
        %vm4167 = vcmp.gt.f32.partialorder %v4061, 0.0
        %vm4168 = vcmp.gt.f32.partialorder %v4064, 0.0
        %vm4169 = vcmp.gt.f32.partialorder %v4069, 0.0
        %vm4170 = vcmp.gt.f32.partialorder %v4072, 0.0
        %vm4171 = vcmp.gt.f32.partialorder %v4077, 0.0
        %vm4172 = vcmp.gt.f32.partialorder %v4080, 0.0
        %vm4173 = vcmp.gt.f32.partialorder %v4085, 0.0
        %vm4174 = vcmp.gt.f32.partialorder %v4088, 0.0
        %vm4175 = vcmp.gt.f32.partialorder %v4093, 0.0
        %vm4176 = vcmp.gt.f32.partialorder %v4096, 0.0
        %vm4177 = vcmp.gt.f32.partialorder %v4101, 0.0
        %vm4178 = vcmp.gt.f32.partialorder %v4104, 0.0
        %vm4179 = vcmp.gt.f32.partialorder %v4109, 0.0
        %vm4180 = vcmp.gt.f32.partialorder %v4112, 0.0
        %vm4181 = vcmp.gt.f32.partialorder %v4117, 0.0
        %vm4182 = vcmp.gt.f32.partialorder %v4120, 0.0
        %vm4183 = vcmp.gt.f32.partialorder %v4125, 0.0
        %vm4184 = vcmp.gt.f32.partialorder %v4128, 0.0
        %vm4185 = vcmp.gt.f32.partialorder %v4133, 0.0
        %vm4186 = vcmp.gt.f32.partialorder %v4136, 0.0
        %vm4187 = vcmp.gt.f32.partialorder %v4141, 0.0
        %vm4188 = vcmp.gt.f32.partialorder %v4144, 0.0
        %vm4189 = vcmp.gt.f32.partialorder %v4149, 0.0
        %vm4190 = vcmp.gt.f32.partialorder %v4152, 0.0
        %v4191 = vstv %s348
        %v4192 = vmul.f32 %v4191, %v4013
        %v4193 = vmul.f32 %v4191, %v4016
        %v4194 = vmul.f32 %v4191, %v4021
        %v4195 = vmul.f32 %v4191, %v4024
        %v4196 = vmul.f32 %v4191, %v4029
        %v4197 = vmul.f32 %v4191, %v4032
        %v4198 = vmul.f32 %v4191, %v4037
        %v4199 = vmul.f32 %v4191, %v4040
        %v4200 = vmul.f32 %v4191, %v4045
        %v4201 = vmul.f32 %v4191, %v4048
        %v4202 = vmul.f32 %v4191, %v4053
        %v4203 = vmul.f32 %v4191, %v4056
        %v4204 = vmul.f32 %v4191, %v4061
        %v4205 = vmul.f32 %v4191, %v4064
        %v4206 = vmul.f32 %v4191, %v4069
        %v4207 = vmul.f32 %v4191, %v4072
        %v4208 = vmul.f32 %v4191, %v4077
        %v4209 = vmul.f32 %v4191, %v4080
        %v4210 = vmul.f32 %v4191, %v4085
        %v4211 = vmul.f32 %v4191, %v4088
        %v4212 = vmul.f32 %v4191, %v4093
        %v4213 = vmul.f32 %v4191, %v4096
        %v4214 = vmul.f32 %v4191, %v4101
        %v4215 = vmul.f32 %v4191, %v4104
        %v4216 = vmul.f32 %v4191, %v4109
        %v4217 = vmul.f32 %v4191, %v4112
        %v4218 = vmul.f32 %v4191, %v4117
        %v4219 = vmul.f32 %v4191, %v4120
        %v4220 = vmul.f32 %v4191, %v4125
        %v4221 = vmul.f32 %v4191, %v4128
        %v4222 = vmul.f32 %v4191, %v4133
        %v4223 = vmul.f32 %v4191, %v4136
        %v4224 = vmul.f32 %v4191, %v4141
        %v4225 = vmul.f32 %v4191, %v4144
        %v4226 = vmul.f32 %v4191, %v4149
        %v4227 = vmul.f32 %v4191, %v4152
        %v4228 = vsel %vm4155, %v4013, %v4192
        %v4229 = vsel %vm4156, %v4016, %v4193
        %v4230 = vsel %vm4157, %v4021, %v4194
        %v4231 = vsel %vm4158, %v4024, %v4195
        %v4232 = vsel %vm4159, %v4029, %v4196
        %v4233 = vsel %vm4160, %v4032, %v4197
        %v4234 = vsel %vm4161, %v4037, %v4198
        %v4235 = vsel %vm4162, %v4040, %v4199
        %v4236 = vsel %vm4163, %v4045, %v4200
        %v4237 = vsel %vm4164, %v4048, %v4201
        %v4238 = vsel %vm4165, %v4053, %v4202
        %v4239 = vsel %vm4166, %v4056, %v4203
        %v4240 = vsel %vm4167, %v4061, %v4204
        %v4241 = vsel %vm4168, %v4064, %v4205
        %v4242 = vsel %vm4169, %v4069, %v4206
        %v4243 = vsel %vm4170, %v4072, %v4207
        %v4244 = vsel %vm4171, %v4077, %v4208
        %v4245 = vsel %vm4172, %v4080, %v4209
        %v4246 = vsel %vm4173, %v4085, %v4210
        %v4247 = vsel %vm4174, %v4088, %v4211
        %v4248 = vsel %vm4175, %v4093, %v4212
        %v4249 = vsel %vm4176, %v4096, %v4213
        %v4250 = vsel %vm4177, %v4101, %v4214
        %v4251 = vsel %vm4178, %v4104, %v4215
        %v4252 = vsel %vm4179, %v4109, %v4216
        %v4253 = vsel %vm4180, %v4112, %v4217
        %v4254 = vsel %vm4181, %v4117, %v4218
        %v4255 = vsel %vm4182, %v4120, %v4219
        %v4256 = vsel %vm4183, %v4125, %v4220
        %v4257 = vsel %vm4184, %v4128, %v4221
        %v4258 = vsel %vm4185, %v4133, %v4222
        %v4259 = vsel %vm4186, %v4136, %v4223
        %v4260 = vsel %vm4187, %v4141, %v4224
        %v4261 = vsel %vm4188, %v4144, %v4225
        %v4262 = vsel %vm4189, %v4149, %v4226
        %v4263 = vsel %vm4190, %v4152, %v4227
        %4265 = vset.pattern.permute.xlu0 0
        %4266 = vperm.xlu0 %4265, %v350
        %v4267 = vpop.permute.xlu0 %4266
        %4270 = vset.pattern.permute.xlu0 0
        %4271 = vperm.xlu0 %4270, %v351
        %v4272 = vpop.permute.xlu0 %4271
        %4275 = vset.pattern.permute.xlu0 0
        %4276 = vperm.xlu0 %4275, %v352
        %v4277 = vpop.permute.xlu0 %4276
        %4280 = vset.pattern.permute.xlu0 0
        %4281 = vperm.xlu0 %4280, %v353
        %v4282 = vpop.permute.xlu0 %4281
        %4285 = vset.pattern.permute.xlu0 0
        %4286 = vperm.xlu0 %4285, %v354
        %v4287 = vpop.permute.xlu0 %4286
        %4290 = vset.pattern.permute.xlu0 0
        %4291 = vperm.xlu0 %4290, %v355
        %v4292 = vpop.permute.xlu0 %4291
        %4295 = vset.pattern.permute.xlu0 0
        %4296 = vperm.xlu0 %4295, %v356
        %v4297 = vpop.permute.xlu0 %4296
        %4300 = vset.pattern.permute.xlu0 0
        %4301 = vperm.xlu0 %4300, %v357
        %v4302 = vpop.permute.xlu0 %4301
        %4305 = vset.pattern.permute.xlu0 0
        %4306 = vperm.xlu0 %4305, %v358
        %v4307 = vpop.permute.xlu0 %4306
        %4310 = vset.pattern.permute.xlu0 0
        %4311 = vperm.xlu0 %4310, %v359
        %v4312 = vpop.permute.xlu0 %4311
        %4315 = vset.pattern.permute.xlu0 0
        %4316 = vperm.xlu0 %4315, %v360
        %v4317 = vpop.permute.xlu0 %4316
        %4320 = vset.pattern.permute.xlu0 0
        %4321 = vperm.xlu0 %4320, %v361
        %v4322 = vpop.permute.xlu0 %4321
        %4325 = vset.pattern.permute.xlu0 0
        %4326 = vperm.xlu0 %4325, %v362
        %v4327 = vpop.permute.xlu0 %4326
        %4330 = vset.pattern.permute.xlu0 0
        %4331 = vperm.xlu0 %4330, %v363
        %v4332 = vpop.permute.xlu0 %4331
        %4335 = vset.pattern.permute.xlu0 0
        %4336 = vperm.xlu0 %4335, %v364
        %v4337 = vpop.permute.xlu0 %4336
        %4340 = vset.pattern.permute.xlu0 0
        %4341 = vperm.xlu0 %4340, %v365
        %v4342 = vpop.permute.xlu0 %4341
        %4345 = vset.pattern.permute.xlu0 0
        %4346 = vperm.xlu0 %4345, %v366
        %v4347 = vpop.permute.xlu0 %4346
        %4350 = vset.pattern.permute.xlu0 0
        %4351 = vperm.xlu0 %4350, %v367
        %v4352 = vpop.permute.xlu0 %4351
        %4355 = vset.pattern.permute.xlu0 0
        %4356 = vperm.xlu0 %4355, %v368
        %v4357 = vpop.permute.xlu0 %4356
        %4360 = vset.pattern.permute.xlu0 0
        %4361 = vperm.xlu0 %4360, %v369
        %v4362 = vpop.permute.xlu0 %4361
        %4365 = vset.pattern.permute.xlu0 0
        %4366 = vperm.xlu0 %4365, %v370
        %v4367 = vpop.permute.xlu0 %4366
        %4370 = vset.pattern.permute.xlu0 0
        %4371 = vperm.xlu0 %4370, %v371
        %v4372 = vpop.permute.xlu0 %4371
        %4375 = vset.pattern.permute.xlu0 0
        %4376 = vperm.xlu0 %4375, %v372
        %v4377 = vpop.permute.xlu0 %4376
        %4380 = vset.pattern.permute.xlu0 0
        %4381 = vperm.xlu0 %4380, %v373
        %v4382 = vpop.permute.xlu0 %4381
        %4385 = vset.pattern.permute.xlu0 0
        %4386 = vperm.xlu0 %4385, %v374
        %v4387 = vpop.permute.xlu0 %4386
        %4390 = vset.pattern.permute.xlu0 0
        %4391 = vperm.xlu0 %4390, %v375
        %v4392 = vpop.permute.xlu0 %4391
        %4395 = vset.pattern.permute.xlu0 0
        %4396 = vperm.xlu0 %4395, %v376
        %v4397 = vpop.permute.xlu0 %4396
        %4400 = vset.pattern.permute.xlu0 0
        %4401 = vperm.xlu0 %4400, %v377
        %v4402 = vpop.permute.xlu0 %4401
        %4405 = vset.pattern.permute.xlu0 0
        %4406 = vperm.xlu0 %4405, %v378
        %v4407 = vpop.permute.xlu0 %4406
        %4410 = vset.pattern.permute.xlu0 0
        %4411 = vperm.xlu0 %4410, %v379
        %v4412 = vpop.permute.xlu0 %4411
        %4415 = vset.pattern.permute.xlu0 0
        %4416 = vperm.xlu0 %4415, %v380
        %v4417 = vpop.permute.xlu0 %4416
        %4420 = vset.pattern.permute.xlu0 0
        %4421 = vperm.xlu0 %4420, %v381
        %v4422 = vpop.permute.xlu0 %4421
        %4425 = vset.pattern.permute.xlu0 0
        %4426 = vperm.xlu0 %4425, %v382
        %v4427 = vpop.permute.xlu0 %4426
        %4430 = vset.pattern.permute.xlu0 0
        %4431 = vperm.xlu0 %4430, %v383
        %v4432 = vpop.permute.xlu0 %4431
        %4435 = vset.pattern.permute.xlu0 0
        %4436 = vperm.xlu0 %4435, %v384
        %v4437 = vpop.permute.xlu0 %4436
        %4440 = vset.pattern.permute.xlu0 0
        %4441 = vperm.xlu0 %4440, %v385
        %v4442 = vpop.permute.xlu0 %4441
        %v4444 = vmul.f32 %v4228, %v4267
        %v4445 = vmul.f32 %v4229, %v4272
        %v4446 = vmul.f32 %v4230, %v4277
        %v4447 = vmul.f32 %v4231, %v4282
        %v4448 = vmul.f32 %v4232, %v4287
        %v4449 = vmul.f32 %v4233, %v4292
        %v4450 = vmul.f32 %v4234, %v4297
        %v4451 = vmul.f32 %v4235, %v4302
        %v4452 = vmul.f32 %v4236, %v4307
        %v4453 = vmul.f32 %v4237, %v4312
        %v4454 = vmul.f32 %v4238, %v4317
        %v4455 = vmul.f32 %v4239, %v4322
        %v4456 = vmul.f32 %v4240, %v4327
        %v4457 = vmul.f32 %v4241, %v4332
        %v4458 = vmul.f32 %v4242, %v4337
        %v4459 = vmul.f32 %v4243, %v4342
        %v4460 = vmul.f32 %v4244, %v4347
        %v4461 = vmul.f32 %v4245, %v4352
        %v4462 = vmul.f32 %v4246, %v4357
        %v4463 = vmul.f32 %v4247, %v4362
        %v4464 = vmul.f32 %v4248, %v4367
        %v4465 = vmul.f32 %v4249, %v4372
        %v4466 = vmul.f32 %v4250, %v4377
        %v4467 = vmul.f32 %v4251, %v4382
        %v4468 = vmul.f32 %v4252, %v4387
        %v4469 = vmul.f32 %v4253, %v4392
        %v4470 = vmul.f32 %v4254, %v4397
        %v4471 = vmul.f32 %v4255, %v4402
        %v4472 = vmul.f32 %v4256, %v4407
        %v4473 = vmul.f32 %v4257, %v4412
        %v4474 = vmul.f32 %v4258, %v4417
        %v4475 = vmul.f32 %v4259, %v4422
        %v4476 = vmul.f32 %v4260, %v4427
        %v4477 = vmul.f32 %v4261, %v4432
        %v4478 = vmul.f32 %v4262, %v4437
        %v4479 = vmul.f32 %v4263, %v4442
        %4480 = vst.msk [vmem:[#allocation3] sm:$0xf] %vm386, 0
        %4481 = vst.msk [vmem:[#allocation3 + $0x4] sm:$0xf] %vm386, 0
        %4482 = vst.msk [vmem:[#allocation3 + $0x8] sm:$0x3] %vm450, 0
        %4483 = vst.msk [vmem:[#allocation3 + $0x98] sm:$0xc] %vm447, 0
        %4484 = vst.msk [vmem:[#allocation3 + $0x9c] sm:$0xf] %vm386, 0
        %4485 = vst.msk [vmem:[#allocation3 + $0xa0] sm:$0xf] %vm386, 0
        %v4486 = vpack.c.bf16 %v4445, %v4444
        %v4487 = vpack.c.bf16 %v4447, %v4446
        %v4488 = vpack.c.bf16 %v4449, %v4448
        %v4489 = vpack.c.bf16 %v4451, %v4450
        %v4490 = vpack.c.bf16 %v4453, %v4452
        %v4491 = vpack.c.bf16 %v4455, %v4454
        %v4492 = vpack.c.bf16 %v4457, %v4456
        %v4493 = vpack.c.bf16 %v4459, %v4458
        %v4494 = vpack.c.bf16 %v4461, %v4460
        %v4495 = vpack.c.bf16 %v4463, %v4462
        %v4496 = vpack.c.bf16 %v4465, %v4464
        %v4497 = vpack.c.bf16 %v4467, %v4466
        %v4498 = vpack.c.bf16 %v4469, %v4468
        %v4499 = vpack.c.bf16 %v4471, %v4470
        %v4500 = vpack.c.bf16 %v4473, %v4472
        %v4501 = vpack.c.bf16 %v4475, %v4474
        %v4502 = vpack.c.bf16 %v4477, %v4476
        %v4503 = vpack.c.bf16 %v4479, %v4478
        %v4522 = vunpack.c.l.b16 %v4486
        %v4523 = vunpack.c.h.b16 %v4486
        %v4524 = vunpack.c.l.b16 %v4487
        %v4525 = vunpack.c.h.b16 %v4487
        %v4526 = vunpack.c.l.b16 %v4488
        %v4527 = vunpack.c.h.b16 %v4488
        %v4528 = vunpack.c.l.b16 %v4489
        %v4529 = vunpack.c.h.b16 %v4489
        %v4530 = vunpack.c.l.b16 %v4490
        %v4531 = vunpack.c.h.b16 %v4490
        %v4532 = vunpack.c.l.b16 %v4491
        %v4533 = vunpack.c.h.b16 %v4491
        %v4534 = vunpack.c.l.b16 %v4492
        %v4535 = vunpack.c.h.b16 %v4492
        %v4536 = vunpack.c.l.b16 %v4493
        %v4537 = vunpack.c.h.b16 %v4493
        %v4538 = vunpack.c.l.b16 %v4494
        %v4539 = vunpack.c.h.b16 %v4494
        %v4540 = vunpack.c.l.b16 %v4495
        %v4541 = vunpack.c.h.b16 %v4495
        %v4542 = vunpack.c.l.b16 %v4496
        %v4543 = vunpack.c.h.b16 %v4496
        %v4544 = vunpack.c.l.b16 %v4497
        %v4545 = vunpack.c.h.b16 %v4497
        %v4546 = vunpack.c.l.b16 %v4498
        %v4547 = vunpack.c.h.b16 %v4498
        %v4548 = vunpack.c.l.b16 %v4499
        %v4549 = vunpack.c.h.b16 %v4499
        %v4550 = vunpack.c.l.b16 %v4500
        %v4551 = vunpack.c.h.b16 %v4500
        %v4552 = vunpack.c.l.b16 %v4501
        %v4553 = vunpack.c.h.b16 %v4501
        %v4554 = vunpack.c.l.b16 %v4502
        %v4555 = vunpack.c.h.b16 %v4502
        %v4556 = vunpack.c.l.b16 %v4503
        %v4557 = vunpack.c.h.b16 %v4503
        %v4558 = vpack.c.b16 %v4522, %v4522
        %v4559 = vpack.c.b16 %v4523, %v4523
        %v4560 = vpack.c.b16 %v4524, %v4524
        %v4561 = vpack.c.b16 %v4525, %v4525
        %v4562 = vpack.c.b16 %v4526, %v4526
        %v4563 = vpack.c.b16 %v4527, %v4527
        %v4564 = vpack.c.b16 %v4528, %v4528
        %v4565 = vpack.c.b16 %v4529, %v4529
        %v4566 = vpack.c.b16 %v4530, %v4530
        %v4567 = vpack.c.b16 %v4531, %v4531
        %v4568 = vpack.c.b16 %v4532, %v4532
        %v4569 = vpack.c.b16 %v4533, %v4533
        %v4570 = vpack.c.b16 %v4534, %v4534
        %v4571 = vpack.c.b16 %v4535, %v4535
        %v4572 = vpack.c.b16 %v4536, %v4536
        %v4573 = vpack.c.b16 %v4537, %v4537
        %v4574 = vpack.c.b16 %v4538, %v4538
        %v4575 = vpack.c.b16 %v4539, %v4539
        %v4576 = vpack.c.b16 %v4540, %v4540
        %v4577 = vpack.c.b16 %v4541, %v4541
        %v4578 = vpack.c.b16 %v4542, %v4542
        %v4579 = vpack.c.b16 %v4543, %v4543
        %v4580 = vpack.c.b16 %v4544, %v4544
        %v4581 = vpack.c.b16 %v4545, %v4545
        %v4582 = vpack.c.b16 %v4546, %v4546
        %v4583 = vpack.c.b16 %v4547, %v4547
        %v4584 = vpack.c.b16 %v4548, %v4548
        %v4585 = vpack.c.b16 %v4549, %v4549
        %v4586 = vpack.c.b16 %v4550, %v4550
        %v4587 = vpack.c.b16 %v4551, %v4551
        %v4588 = vpack.c.b16 %v4552, %v4552
        %v4589 = vpack.c.b16 %v4553, %v4553
        %v4590 = vpack.c.b16 %v4554, %v4554
        %v4591 = vpack.c.b16 %v4555, %v4555
        %v4592 = vpack.c.b16 %v4556, %v4556
        %v4593 = vpack.c.b16 %v4557, %v4557
        %v4594 = vrot.slane %v4558, 6
        %v4595 = vrot.slane %v4594, 4
        %v4596 = vrot.slane %v4559, 6
        %v4597 = vsel %vm438, %v4595, %v4596
        %v4598 = vrot.slane %v4596, 4
        %v4599 = vrot.slane %v4560, 6
        %v4600 = vsel %vm438, %v4598, %v4599
        %v4601 = vrot.slane %v4599, 4
        %v4602 = vrot.slane %v4561, 6
        %v4603 = vsel %vm438, %v4601, %v4602
        %v4604 = vrot.slane %v4602, 4
        %v4605 = vrot.slane %v4562, 6
        %v4606 = vsel %vm438, %v4604, %v4605
        %v4607 = vrot.slane %v4605, 4
        %v4608 = vrot.slane %v4563, 6
        %v4609 = vsel %vm438, %v4607, %v4608
        %v4610 = vrot.slane %v4608, 4
        %v4611 = vrot.slane %v4564, 6
        %v4612 = vsel %vm438, %v4610, %v4611
        %v4613 = vrot.slane %v4611, 4
        %v4614 = vrot.slane %v4565, 6
        %v4615 = vsel %vm438, %v4613, %v4614
        %v4616 = vrot.slane %v4614, 4
        %v4617 = vrot.slane %v4566, 6
        %v4618 = vsel %vm438, %v4616, %v4617
        %v4619 = vrot.slane %v4617, 4
        %v4620 = vrot.slane %v4567, 6
        %v4621 = vsel %vm438, %v4619, %v4620
        %v4622 = vrot.slane %v4620, 4
        %v4623 = vrot.slane %v4568, 6
        %v4624 = vsel %vm438, %v4622, %v4623
        %v4625 = vrot.slane %v4623, 4
        %v4626 = vrot.slane %v4569, 6
        %v4627 = vsel %vm438, %v4625, %v4626
        %v4628 = vrot.slane %v4626, 4
        %v4629 = vrot.slane %v4570, 6
        %v4630 = vsel %vm438, %v4628, %v4629
        %v4631 = vrot.slane %v4629, 4
        %v4632 = vrot.slane %v4571, 6
        %v4633 = vsel %vm438, %v4631, %v4632
        %v4634 = vrot.slane %v4632, 4
        %v4635 = vrot.slane %v4572, 6
        %v4636 = vsel %vm438, %v4634, %v4635
        %v4637 = vrot.slane %v4635, 4
        %v4638 = vrot.slane %v4573, 6
        %v4639 = vsel %vm438, %v4637, %v4638
        %v4640 = vrot.slane %v4638, 4
        %v4641 = vrot.slane %v4574, 6
        %v4642 = vsel %vm438, %v4640, %v4641
        %v4643 = vrot.slane %v4641, 4
        %v4644 = vrot.slane %v4575, 6
        %v4645 = vsel %vm438, %v4643, %v4644
        %v4646 = vrot.slane %v4644, 4
        %v4647 = vrot.slane %v4576, 6
        %v4648 = vsel %vm438, %v4646, %v4647
        %v4649 = vrot.slane %v4647, 4
        %v4650 = vrot.slane %v4577, 6
        %v4651 = vsel %vm438, %v4649, %v4650
        %v4652 = vrot.slane %v4650, 4
        %v4653 = vrot.slane %v4578, 6
        %v4654 = vsel %vm438, %v4652, %v4653
        %v4655 = vrot.slane %v4653, 4
        %v4656 = vrot.slane %v4579, 6
        %v4657 = vsel %vm438, %v4655, %v4656
        %v4658 = vrot.slane %v4656, 4
        %v4659 = vrot.slane %v4580, 6
        %v4660 = vsel %vm438, %v4658, %v4659
        %v4661 = vrot.slane %v4659, 4
        %v4662 = vrot.slane %v4581, 6
        %v4663 = vsel %vm438, %v4661, %v4662
        %v4664 = vrot.slane %v4662, 4
        %v4665 = vrot.slane %v4582, 6
        %v4666 = vsel %vm438, %v4664, %v4665
        %v4667 = vrot.slane %v4665, 4
        %v4668 = vrot.slane %v4583, 6
        %v4669 = vsel %vm438, %v4667, %v4668
        %v4670 = vrot.slane %v4668, 4
        %v4671 = vrot.slane %v4584, 6
        %v4672 = vsel %vm438, %v4670, %v4671
        %v4673 = vrot.slane %v4671, 4
        %v4674 = vrot.slane %v4585, 6
        %v4675 = vsel %vm438, %v4673, %v4674
        %v4676 = vrot.slane %v4674, 4
        %v4677 = vrot.slane %v4586, 6
        %v4678 = vsel %vm438, %v4676, %v4677
        %v4679 = vrot.slane %v4677, 4
        %v4680 = vrot.slane %v4587, 6
        %v4681 = vsel %vm438, %v4679, %v4680
        %v4682 = vrot.slane %v4680, 4
        %v4683 = vrot.slane %v4588, 6
        %v4684 = vsel %vm438, %v4682, %v4683
        %v4685 = vrot.slane %v4683, 4
        %v4686 = vrot.slane %v4589, 6
        %v4687 = vsel %vm438, %v4685, %v4686
        %v4688 = vrot.slane %v4686, 4
        %v4689 = vrot.slane %v4590, 6
        %v4690 = vsel %vm438, %v4688, %v4689
        %v4691 = vrot.slane %v4689, 4
        %v4692 = vrot.slane %v4591, 6
        %v4693 = vsel %vm438, %v4691, %v4692
        %v4694 = vrot.slane %v4692, 4
        %v4695 = vrot.slane %v4592, 6
        %v4696 = vsel %vm438, %v4694, %v4695
        %v4697 = vrot.slane %v4695, 4
        %v4698 = vrot.slane %v4593, 6
        %v4699 = vsel %vm438, %v4697, %v4698
        %v4700 = vrot.slane %v4698, 4
        %4738 = vst.msk [vmem:[#allocation3 + $0x8] sm:$0xc] %vm447, %v4594
        %4739 = vst.msk [vmem:[#allocation3 + $0xc] sm:$0xf] %vm386, %v4597
        %4740 = vst.msk [vmem:[#allocation3 + $0x10] sm:$0xf] %vm386, %v4600
        %4741 = vst.msk [vmem:[#allocation3 + $0x14] sm:$0xf] %vm386, %v4603
        %4742 = vst.msk [vmem:[#allocation3 + $0x18] sm:$0xf] %vm386, %v4606
        %4743 = vst.msk [vmem:[#allocation3 + $0x1c] sm:$0xf] %vm386, %v4609
        %4744 = vst.msk [vmem:[#allocation3 + $0x20] sm:$0xf] %vm386, %v4612
        %4745 = vst.msk [vmem:[#allocation3 + $0x24] sm:$0xf] %vm386, %v4615
        %4746 = vst.msk [vmem:[#allocation3 + $0x28] sm:$0xf] %vm386, %v4618
        %4747 = vst.msk [vmem:[#allocation3 + $0x2c] sm:$0xf] %vm386, %v4621
        %4748 = vst.msk [vmem:[#allocation3 + $0x30] sm:$0xf] %vm386, %v4624
        %4749 = vst.msk [vmem:[#allocation3 + $0x34] sm:$0xf] %vm386, %v4627
        %4750 = vst.msk [vmem:[#allocation3 + $0x38] sm:$0xf] %vm386, %v4630
        %4751 = vst.msk [vmem:[#allocation3 + $0x3c] sm:$0xf] %vm386, %v4633
        %4752 = vst.msk [vmem:[#allocation3 + $0x40] sm:$0xf] %vm386, %v4636
        %4753 = vst.msk [vmem:[#allocation3 + $0x44] sm:$0xf] %vm386, %v4639
        %4754 = vst.msk [vmem:[#allocation3 + $0x48] sm:$0xf] %vm386, %v4642
        %4755 = vst.msk [vmem:[#allocation3 + $0x4c] sm:$0xf] %vm386, %v4645
        %4756 = vst.msk [vmem:[#allocation3 + $0x50] sm:$0xf] %vm386, %v4648
        %4757 = vst.msk [vmem:[#allocation3 + $0x54] sm:$0xf] %vm386, %v4651
        %4758 = vst.msk [vmem:[#allocation3 + $0x58] sm:$0xf] %vm386, %v4654
        %4759 = vst.msk [vmem:[#allocation3 + $0x5c] sm:$0xf] %vm386, %v4657
        %4760 = vst.msk [vmem:[#allocation3 + $0x60] sm:$0xf] %vm386, %v4660
        %4761 = vst.msk [vmem:[#allocation3 + $0x64] sm:$0xf] %vm386, %v4663
        %4762 = vst.msk [vmem:[#allocation3 + $0x68] sm:$0xf] %vm386, %v4666
        %4763 = vst.msk [vmem:[#allocation3 + $0x6c] sm:$0xf] %vm386, %v4669
        %4764 = vst.msk [vmem:[#allocation3 + $0x70] sm:$0xf] %vm386, %v4672
        %4765 = vst.msk [vmem:[#allocation3 + $0x74] sm:$0xf] %vm386, %v4675
        %4766 = vst.msk [vmem:[#allocation3 + $0x78] sm:$0xf] %vm386, %v4678
        %4767 = vst.msk [vmem:[#allocation3 + $0x7c] sm:$0xf] %vm386, %v4681
        %4768 = vst.msk [vmem:[#allocation3 + $0x80] sm:$0xf] %vm386, %v4684
        %4769 = vst.msk [vmem:[#allocation3 + $0x84] sm:$0xf] %vm386, %v4687
        %4770 = vst.msk [vmem:[#allocation3 + $0x88] sm:$0xf] %vm386, %v4690
        %4771 = vst.msk [vmem:[#allocation3 + $0x8c] sm:$0xf] %vm386, %v4693
        %4772 = vst.msk [vmem:[#allocation3 + $0x90] sm:$0xf] %vm386, %v4696
        %4773 = vst.msk [vmem:[#allocation3 + $0x94] sm:$0xf] %vm386, %v4699
        %4774 = vst.msk [vmem:[#allocation3 + $0x98] sm:$0x3] %vm450, %v4700
        %v4775 = vld [vmem:[#allocation3] sm:$0xf]
        %v4776 = vld [vmem:[#allocation3 + $0x4] sm:$0xf]
        %v4777 = vld [vmem:[#allocation3 + $0x8] sm:$0xf]
        %v4778 = vld [vmem:[#allocation3 + $0xc] sm:$0xf]
        %v4779 = vld [vmem:[#allocation3 + $0x10] sm:$0xf]
        %v4780 = vld [vmem:[#allocation3 + $0x14] sm:$0xf]
        %v4781 = vld [vmem:[#allocation3 + $0x18] sm:$0xf]
        %v4782 = vld [vmem:[#allocation3 + $0x1c] sm:$0xf]
        %v4783 = vld [vmem:[#allocation3 + $0x20] sm:$0xf]
        %v4784 = vld [vmem:[#allocation3 + $0x24] sm:$0xf]
        %v4785 = vld [vmem:[#allocation3 + $0x28] sm:$0xf]
        %v4786 = vld [vmem:[#allocation3 + $0x2c] sm:$0xf]
        %v4787 = vld [vmem:[#allocation3 + $0x30] sm:$0xf]
        %v4788 = vld [vmem:[#allocation3 + $0x34] sm:$0xf]
        %v4789 = vld [vmem:[#allocation3 + $0x38] sm:$0xf]
        %v4790 = vld [vmem:[#allocation3 + $0x3c] sm:$0xf]
        %v4791 = vld [vmem:[#allocation3 + $0x40] sm:$0xf]
        %v4792 = vld [vmem:[#allocation3 + $0x44] sm:$0xf]
        %v4793 = vld [vmem:[#allocation3 + $0x48] sm:$0xf]
        %v4794 = vld [vmem:[#allocation3 + $0x4c] sm:$0xf]
        %v4795 = vld [vmem:[#allocation3 + $0x50] sm:$0xf]
        %v4796 = vld [vmem:[#allocation3 + $0x54] sm:$0xf]
        %v4797 = vld [vmem:[#allocation3 + $0x58] sm:$0xf]
        %v4798 = vld [vmem:[#allocation3 + $0x5c] sm:$0xf]
        %v4799 = vld [vmem:[#allocation3 + $0x60] sm:$0xf]
        %v4800 = vld [vmem:[#allocation3 + $0x64] sm:$0xf]
        %v4801 = vld [vmem:[#allocation3 + $0x68] sm:$0xf]
        %v4802 = vld [vmem:[#allocation3 + $0x6c] sm:$0xf]
        %v4803 = vld [vmem:[#allocation3 + $0x70] sm:$0xf]
        %v4804 = vld [vmem:[#allocation3 + $0x74] sm:$0xf]
        %v4805 = vld [vmem:[#allocation3 + $0x78] sm:$0xf]
        %v4806 = vld [vmem:[#allocation3 + $0x7c] sm:$0xf]
        %v4807 = vld [vmem:[#allocation3 + $0x80] sm:$0xf]
        %v4808 = vld [vmem:[#allocation3 + $0x84] sm:$0xf]
        %v4809 = vld [vmem:[#allocation3 + $0x88] sm:$0xf]
        %v4810 = vld [vmem:[#allocation3 + $0x8c] sm:$0xf]
        %v4811 = vld [vmem:[#allocation3 + $0x90] sm:$0x1]
        %v4849 = vunpack.c.l.b16 %v4775
        %v4850 = vunpack.c.l.b16 %v4776
        %v4851 = vunpack.c.l.b16 %v4777
        %v4852 = vunpack.c.l.b16 %v4778
        %v4853 = vunpack.c.l.b16 %v4779
        %v4854 = vunpack.c.l.b16 %v4780
        %v4855 = vunpack.c.l.b16 %v4781
        %v4856 = vunpack.c.l.b16 %v4782
        %v4857 = vunpack.c.l.b16 %v4783
        %v4858 = vunpack.c.l.b16 %v4784
        %v4859 = vunpack.c.l.b16 %v4785
        %v4860 = vunpack.c.l.b16 %v4786
        %v4861 = vunpack.c.l.b16 %v4787
        %v4862 = vunpack.c.l.b16 %v4788
        %v4863 = vunpack.c.l.b16 %v4789
        %v4864 = vunpack.c.l.b16 %v4790
        %v4865 = vunpack.c.l.b16 %v4791
        %v4866 = vunpack.c.l.b16 %v4792
        %v4867 = vunpack.c.l.b16 %v4793
        %v4868 = vunpack.c.l.b16 %v4794
        %v4869 = vunpack.c.l.b16 %v4795
        %v4870 = vunpack.c.l.b16 %v4796
        %v4871 = vunpack.c.l.b16 %v4797
        %v4872 = vunpack.c.l.b16 %v4798
        %v4873 = vunpack.c.l.b16 %v4799
        %v4874 = vunpack.c.l.b16 %v4800
        %v4875 = vunpack.c.l.b16 %v4801
        %v4876 = vunpack.c.l.b16 %v4802
        %v4877 = vunpack.c.l.b16 %v4803
        %v4878 = vunpack.c.l.b16 %v4804
        %v4879 = vunpack.c.l.b16 %v4805
        %v4880 = vunpack.c.l.b16 %v4806
        %v4881 = vunpack.c.l.b16 %v4807
        %v4882 = vunpack.c.l.b16 %v4808
        %v4883 = vunpack.c.l.b16 %v4809
        %v4884 = vunpack.c.l.b16 %v4810
        %v4885 = vunpack.c.l.b16 %v4811
        %v4886 = vpack.c.b16 %v4850, %v4849
        %v4887 = vpack.c.b16 %v4852, %v4851
        %v4888 = vpack.c.b16 %v4854, %v4853
        %v4889 = vpack.c.b16 %v4856, %v4855
        %v4890 = vpack.c.b16 %v4858, %v4857
        %v4891 = vpack.c.b16 %v4860, %v4859
        %v4892 = vpack.c.b16 %v4862, %v4861
        %v4893 = vpack.c.b16 %v4864, %v4863
        %v4894 = vpack.c.b16 %v4866, %v4865
        %v4895 = vpack.c.b16 %v4868, %v4867
        %v4896 = vpack.c.b16 %v4870, %v4869
        %v4897 = vpack.c.b16 %v4872, %v4871
        %v4898 = vpack.c.b16 %v4874, %v4873
        %v4899 = vpack.c.b16 %v4876, %v4875
        %v4900 = vpack.c.b16 %v4878, %v4877
        %v4901 = vpack.c.b16 %v4880, %v4879
        %v4902 = vpack.c.b16 %v4882, %v4881
        %v4903 = vpack.c.b16 %v4884, %v4883
        %v4904 = vpack.c.b16 %v4885, %v4885
        %v4906 = vshrl.u32 %v4886, 16
        %v4908 = vshll.u32 %v4886, 16
        %v4910 = vrot.slane %v4908, 1
        %v4911 = vor.u32 %v4906, %v4910
        %v4913 = vshll.u32 %v4887, 16
        %v4915 = vrot.slane %v4913, 1
        %v4916 = vsel %vm849, %v4911, %v4915
        %v4917 = vshrl.u32 %v4887, 16
        %v4919 = vor.u32 %v4917, %v4915
        %v4921 = vshll.u32 %v4888, 16
        %v4923 = vrot.slane %v4921, 1
        %v4924 = vsel %vm849, %v4919, %v4923
        %v4925 = vshrl.u32 %v4888, 16
        %v4927 = vor.u32 %v4925, %v4923
        %v4929 = vshll.u32 %v4889, 16
        %v4931 = vrot.slane %v4929, 1
        %v4932 = vsel %vm849, %v4927, %v4931
        %v4933 = vshrl.u32 %v4889, 16
        %v4935 = vor.u32 %v4933, %v4931
        %v4937 = vshll.u32 %v4890, 16
        %v4939 = vrot.slane %v4937, 1
        %v4940 = vsel %vm849, %v4935, %v4939
        %v4941 = vshrl.u32 %v4890, 16
        %v4943 = vor.u32 %v4941, %v4939
        %v4945 = vshll.u32 %v4891, 16
        %v4947 = vrot.slane %v4945, 1
        %v4948 = vsel %vm849, %v4943, %v4947
        %v4949 = vshrl.u32 %v4891, 16
        %v4951 = vor.u32 %v4949, %v4947
        %v4953 = vshll.u32 %v4892, 16
        %v4955 = vrot.slane %v4953, 1
        %v4956 = vsel %vm849, %v4951, %v4955
        %v4957 = vshrl.u32 %v4892, 16
        %v4959 = vor.u32 %v4957, %v4955
        %v4961 = vshll.u32 %v4893, 16
        %v4963 = vrot.slane %v4961, 1
        %v4964 = vsel %vm849, %v4959, %v4963
        %v4965 = vshrl.u32 %v4893, 16
        %v4967 = vor.u32 %v4965, %v4963
        %v4969 = vshll.u32 %v4894, 16
        %v4971 = vrot.slane %v4969, 1
        %v4972 = vsel %vm849, %v4967, %v4971
        %v4973 = vshrl.u32 %v4894, 16
        %v4975 = vor.u32 %v4973, %v4971
        %v4977 = vshll.u32 %v4895, 16
        %v4979 = vrot.slane %v4977, 1
        %v4980 = vsel %vm849, %v4975, %v4979
        %v4981 = vshrl.u32 %v4895, 16
        %v4983 = vor.u32 %v4981, %v4979
        %v4985 = vshll.u32 %v4896, 16
        %v4987 = vrot.slane %v4985, 1
        %v4988 = vsel %vm849, %v4983, %v4987
        %v4989 = vshrl.u32 %v4896, 16
        %v4991 = vor.u32 %v4989, %v4987
        %v4993 = vshll.u32 %v4897, 16
        %v4995 = vrot.slane %v4993, 1
        %v4996 = vsel %vm849, %v4991, %v4995
        %v4997 = vshrl.u32 %v4897, 16
        %v4999 = vor.u32 %v4997, %v4995
        %v5001 = vshll.u32 %v4898, 16
        %v5003 = vrot.slane %v5001, 1
        %v5004 = vsel %vm849, %v4999, %v5003
        %v5005 = vshrl.u32 %v4898, 16
        %v5007 = vor.u32 %v5005, %v5003
        %v5009 = vshll.u32 %v4899, 16
        %v5011 = vrot.slane %v5009, 1
        %v5012 = vsel %vm849, %v5007, %v5011
        %v5013 = vshrl.u32 %v4899, 16
        %v5015 = vor.u32 %v5013, %v5011
        %v5017 = vshll.u32 %v4900, 16
        %v5019 = vrot.slane %v5017, 1
        %v5020 = vsel %vm849, %v5015, %v5019
        %v5021 = vshrl.u32 %v4900, 16
        %v5023 = vor.u32 %v5021, %v5019
        %v5025 = vshll.u32 %v4901, 16
        %v5027 = vrot.slane %v5025, 1
        %v5028 = vsel %vm849, %v5023, %v5027
        %v5029 = vshrl.u32 %v4901, 16
        %v5031 = vor.u32 %v5029, %v5027
        %v5033 = vshll.u32 %v4902, 16
        %v5035 = vrot.slane %v5033, 1
        %v5036 = vsel %vm849, %v5031, %v5035
        %v5037 = vshrl.u32 %v4902, 16
        %v5039 = vor.u32 %v5037, %v5035
        %v5041 = vshll.u32 %v4903, 16
        %v5043 = vrot.slane %v5041, 1
        %v5044 = vsel %vm849, %v5039, %v5043
        %v5045 = vshrl.u32 %v4903, 16
        %v5047 = vor.u32 %v5045, %v5043
        %v5049 = vshll.u32 %v4904, 16
        %v5051 = vrot.slane %v5049, 1
        %v5052 = vsel %vm849, %v5047, %v5051
        %5071 = vst.msk [vmem:[#allocation4] sm:$0xff] %vm1016, %v4916
        %5072 = vst.msk [vmem:[#allocation4 + $0x18] sm:$0xff] %vm1016, %v4924
        %5073 = vst.msk [vmem:[#allocation4 + $0x30] sm:$0xff] %vm1016, %v4932
        %5074 = vst.msk [vmem:[#allocation4 + $0x48] sm:$0xff] %vm1016, %v4940
        %5075 = vst.msk [vmem:[#allocation4 + $0x60] sm:$0xff] %vm1016, %v4948
        %5076 = vst.msk [vmem:[#allocation4 + $0x78] sm:$0xff] %vm1016, %v4956
        %5077 = vst.msk [vmem:[#allocation4 + $0x90] sm:$0xff] %vm1016, %v4964
        %5078 = vst.msk [vmem:[#allocation4 + $0xa8] sm:$0xff] %vm1016, %v4972
        %5079 = vst.msk [vmem:[#allocation4 + $0xc0] sm:$0xff] %vm1016, %v4980
        %5080 = vst.msk [vmem:[#allocation4 + $0xd8] sm:$0xff] %vm1016, %v4988
        %5081 = vst.msk [vmem:[#allocation4 + $0xf0] sm:$0xff] %vm1016, %v4996
        %5082 = vst.msk [vmem:[#allocation4 + $0x108] sm:$0xff] %vm1016, %v5004
        %5083 = vst.msk [vmem:[#allocation4 + $0x120] sm:$0xff] %vm1016, %v5012
        %5084 = vst.msk [vmem:[#allocation4 + $0x138] sm:$0xff] %vm1016, %v5020
        %5085 = vst.msk [vmem:[#allocation4 + $0x150] sm:$0xff] %vm1016, %v5028
        %5086 = vst.msk [vmem:[#allocation4 + $0x168] sm:$0xff] %vm1016, %v5036
        %5087 = vst.msk [vmem:[#allocation4 + $0x180] sm:$0xff] %vm1016, %v5044
        %5088 = vst.msk [vmem:[#allocation4 + $0x198] sm:$0xff] %vm1016, %v5052
        %v5089 = vld [vmem:[#allocation3] sm:$0xe]
        %v5090 = vld [vmem:[#allocation3 + $0x4] sm:$0xf]
        %v5091 = vld [vmem:[#allocation3 + $0x8] sm:$0xf]
        %v5092 = vld [vmem:[#allocation3 + $0xc] sm:$0xf]
        %v5093 = vld [vmem:[#allocation3 + $0x10] sm:$0xf]
        %v5094 = vld [vmem:[#allocation3 + $0x14] sm:$0xf]
        %v5095 = vld [vmem:[#allocation3 + $0x18] sm:$0xf]
        %v5096 = vld [vmem:[#allocation3 + $0x1c] sm:$0xf]
        %v5097 = vld [vmem:[#allocation3 + $0x20] sm:$0xf]
        %v5098 = vld [vmem:[#allocation3 + $0x24] sm:$0xf]
        %v5099 = vld [vmem:[#allocation3 + $0x28] sm:$0xf]
        %v5100 = vld [vmem:[#allocation3 + $0x2c] sm:$0xf]
        %v5101 = vld [vmem:[#allocation3 + $0x30] sm:$0xf]
        %v5102 = vld [vmem:[#allocation3 + $0x34] sm:$0xf]
        %v5103 = vld [vmem:[#allocation3 + $0x38] sm:$0xf]
        %v5104 = vld [vmem:[#allocation3 + $0x3c] sm:$0xf]
        %v5105 = vld [vmem:[#allocation3 + $0x40] sm:$0xf]
        %v5106 = vld [vmem:[#allocation3 + $0x44] sm:$0xf]
        %v5107 = vld [vmem:[#allocation3 + $0x48] sm:$0xf]
        %v5108 = vld [vmem:[#allocation3 + $0x4c] sm:$0xf]
        %v5109 = vld [vmem:[#allocation3 + $0x50] sm:$0xf]
        %v5110 = vld [vmem:[#allocation3 + $0x54] sm:$0xf]
        %v5111 = vld [vmem:[#allocation3 + $0x58] sm:$0xf]
        %v5112 = vld [vmem:[#allocation3 + $0x5c] sm:$0xf]
        %v5113 = vld [vmem:[#allocation3 + $0x60] sm:$0xf]
        %v5114 = vld [vmem:[#allocation3 + $0x64] sm:$0xf]
        %v5115 = vld [vmem:[#allocation3 + $0x68] sm:$0xf]
        %v5116 = vld [vmem:[#allocation3 + $0x6c] sm:$0xf]
        %v5117 = vld [vmem:[#allocation3 + $0x70] sm:$0xf]
        %v5118 = vld [vmem:[#allocation3 + $0x74] sm:$0xf]
        %v5119 = vld [vmem:[#allocation3 + $0x78] sm:$0xf]
        %v5120 = vld [vmem:[#allocation3 + $0x7c] sm:$0xf]
        %v5121 = vld [vmem:[#allocation3 + $0x80] sm:$0xf]
        %v5122 = vld [vmem:[#allocation3 + $0x84] sm:$0xf]
        %v5123 = vld [vmem:[#allocation3 + $0x88] sm:$0xf]
        %v5124 = vld [vmem:[#allocation3 + $0x8c] sm:$0xf]
        %v5125 = vld [vmem:[#allocation3 + $0x90] sm:$0x1]
        %v5163 = vunpack.c.l.b16 %v5089
        %v5164 = vunpack.c.l.b16 %v5090
        %v5165 = vunpack.c.l.b16 %v5091
        %v5166 = vunpack.c.l.b16 %v5092
        %v5167 = vunpack.c.l.b16 %v5093
        %v5168 = vunpack.c.l.b16 %v5094
        %v5169 = vunpack.c.l.b16 %v5095
        %v5170 = vunpack.c.l.b16 %v5096
        %v5171 = vunpack.c.l.b16 %v5097
        %v5172 = vunpack.c.l.b16 %v5098
        %v5173 = vunpack.c.l.b16 %v5099
        %v5174 = vunpack.c.l.b16 %v5100
        %v5175 = vunpack.c.l.b16 %v5101
        %v5176 = vunpack.c.l.b16 %v5102
        %v5177 = vunpack.c.l.b16 %v5103
        %v5178 = vunpack.c.l.b16 %v5104
        %v5179 = vunpack.c.l.b16 %v5105
        %v5180 = vunpack.c.l.b16 %v5106
        %v5181 = vunpack.c.l.b16 %v5107
        %v5182 = vunpack.c.l.b16 %v5108
        %v5183 = vunpack.c.l.b16 %v5109
        %v5184 = vunpack.c.l.b16 %v5110
        %v5185 = vunpack.c.l.b16 %v5111
        %v5186 = vunpack.c.l.b16 %v5112
        %v5187 = vunpack.c.l.b16 %v5113
        %v5188 = vunpack.c.l.b16 %v5114
        %v5189 = vunpack.c.l.b16 %v5115
        %v5190 = vunpack.c.l.b16 %v5116
        %v5191 = vunpack.c.l.b16 %v5117
        %v5192 = vunpack.c.l.b16 %v5118
        %v5193 = vunpack.c.l.b16 %v5119
        %v5194 = vunpack.c.l.b16 %v5120
        %v5195 = vunpack.c.l.b16 %v5121
        %v5196 = vunpack.c.l.b16 %v5122
        %v5197 = vunpack.c.l.b16 %v5123
        %v5198 = vunpack.c.l.b16 %v5124
        %v5199 = vunpack.c.l.b16 %v5125
        %v5200 = vpack.c.b16 %v5164, %v5163
        %v5201 = vpack.c.b16 %v5166, %v5165
        %v5202 = vpack.c.b16 %v5168, %v5167
        %v5203 = vpack.c.b16 %v5170, %v5169
        %v5204 = vpack.c.b16 %v5172, %v5171
        %v5205 = vpack.c.b16 %v5174, %v5173
        %v5206 = vpack.c.b16 %v5176, %v5175
        %v5207 = vpack.c.b16 %v5178, %v5177
        %v5208 = vpack.c.b16 %v5180, %v5179
        %v5209 = vpack.c.b16 %v5182, %v5181
        %v5210 = vpack.c.b16 %v5184, %v5183
        %v5211 = vpack.c.b16 %v5186, %v5185
        %v5212 = vpack.c.b16 %v5188, %v5187
        %v5213 = vpack.c.b16 %v5190, %v5189
        %v5214 = vpack.c.b16 %v5192, %v5191
        %v5215 = vpack.c.b16 %v5194, %v5193
        %v5216 = vpack.c.b16 %v5196, %v5195
        %v5217 = vpack.c.b16 %v5198, %v5197
        %v5218 = vpack.c.b16 %v5199, %v5199
        %v5219 = vrot.slane %v5200, 1
        %v5220 = vrot.slane %v5201, 1
        %v5221 = vsel %vm1165, %v5219, %v5220
        %v5222 = vrot.slane %v5202, 1
        %v5223 = vsel %vm1165, %v5220, %v5222
        %v5224 = vrot.slane %v5203, 1
        %v5225 = vsel %vm1165, %v5222, %v5224
        %v5226 = vrot.slane %v5204, 1
        %v5227 = vsel %vm1165, %v5224, %v5226
        %v5228 = vrot.slane %v5205, 1
        %v5229 = vsel %vm1165, %v5226, %v5228
        %v5230 = vrot.slane %v5206, 1
        %v5231 = vsel %vm1165, %v5228, %v5230
        %v5232 = vrot.slane %v5207, 1
        %v5233 = vsel %vm1165, %v5230, %v5232
        %v5234 = vrot.slane %v5208, 1
        %v5235 = vsel %vm1165, %v5232, %v5234
        %v5236 = vrot.slane %v5209, 1
        %v5237 = vsel %vm1165, %v5234, %v5236
        %v5238 = vrot.slane %v5210, 1
        %v5239 = vsel %vm1165, %v5236, %v5238
        %v5240 = vrot.slane %v5211, 1
        %v5241 = vsel %vm1165, %v5238, %v5240
        %v5242 = vrot.slane %v5212, 1
        %v5243 = vsel %vm1165, %v5240, %v5242
        %v5244 = vrot.slane %v5213, 1
        %v5245 = vsel %vm1165, %v5242, %v5244
        %v5246 = vrot.slane %v5214, 1
        %v5247 = vsel %vm1165, %v5244, %v5246
        %v5248 = vrot.slane %v5215, 1
        %v5249 = vsel %vm1165, %v5246, %v5248
        %v5250 = vrot.slane %v5216, 1
        %v5251 = vsel %vm1165, %v5248, %v5250
        %v5252 = vrot.slane %v5217, 1
        %v5253 = vsel %vm1165, %v5250, %v5252
        %v5254 = vrot.slane %v5218, 1
        %v5255 = vsel %vm1165, %v5252, %v5254
        %5256 = vrot.lane.b32.xlu0 %v5221, 32
        %v5257 = vpop.permute.xlu0 %5256
        %5258 = vrot.lane.b32.xlu0 %v5223, 32
        %v5259 = vpop.permute.xlu0 %5258
        %5260 = vrot.lane.b32.xlu0 %v5225, 32
        %v5261 = vpop.permute.xlu0 %5260
        %5262 = vrot.lane.b32.xlu0 %v5227, 32
        %v5263 = vpop.permute.xlu0 %5262
        %5264 = vrot.lane.b32.xlu0 %v5229, 32
        %v5265 = vpop.permute.xlu0 %5264
        %5266 = vrot.lane.b32.xlu0 %v5231, 32
        %v5267 = vpop.permute.xlu0 %5266
        %5268 = vrot.lane.b32.xlu0 %v5233, 32
        %v5269 = vpop.permute.xlu0 %5268
        %5270 = vrot.lane.b32.xlu0 %v5235, 32
        %v5271 = vpop.permute.xlu0 %5270
        %5272 = vrot.lane.b32.xlu0 %v5237, 32
        %v5273 = vpop.permute.xlu0 %5272
        %5274 = vrot.lane.b32.xlu0 %v5239, 32
        %v5275 = vpop.permute.xlu0 %5274
        %5276 = vrot.lane.b32.xlu0 %v5241, 32
        %v5277 = vpop.permute.xlu0 %5276
        %5278 = vrot.lane.b32.xlu0 %v5243, 32
        %v5279 = vpop.permute.xlu0 %5278
        %5280 = vrot.lane.b32.xlu0 %v5245, 32
        %v5281 = vpop.permute.xlu0 %5280
        %5282 = vrot.lane.b32.xlu0 %v5247, 32
        %v5283 = vpop.permute.xlu0 %5282
        %5284 = vrot.lane.b32.xlu0 %v5249, 32
        %v5285 = vpop.permute.xlu0 %5284
        %5286 = vrot.lane.b32.xlu0 %v5251, 32
        %v5287 = vpop.permute.xlu0 %5286
        %5288 = vrot.lane.b32.xlu0 %v5253, 32
        %v5289 = vpop.permute.xlu0 %5288
        %5290 = vrot.lane.b32.xlu0 %v5255, 32
        %v5291 = vpop.permute.xlu0 %5290
        %5310 = vst.msk [vmem:[#allocation4] sm:$0xff] %vm1257, %v5257
        %5311 = vst.msk [vmem:[#allocation4 + $0x18] sm:$0xff] %vm1257, %v5259
        %5312 = vst.msk [vmem:[#allocation4 + $0x30] sm:$0xff] %vm1257, %v5261
        %5313 = vst.msk [vmem:[#allocation4 + $0x48] sm:$0xff] %vm1257, %v5263
        %5314 = vst.msk [vmem:[#allocation4 + $0x60] sm:$0xff] %vm1257, %v5265
        %5315 = vst.msk [vmem:[#allocation4 + $0x78] sm:$0xff] %vm1257, %v5267
        %5316 = vst.msk [vmem:[#allocation4 + $0x90] sm:$0xff] %vm1257, %v5269
        %5317 = vst.msk [vmem:[#allocation4 + $0xa8] sm:$0xff] %vm1257, %v5271
        %5318 = vst.msk [vmem:[#allocation4 + $0xc0] sm:$0xff] %vm1257, %v5273
        %5319 = vst.msk [vmem:[#allocation4 + $0xd8] sm:$0xff] %vm1257, %v5275
        %5320 = vst.msk [vmem:[#allocation4 + $0xf0] sm:$0xff] %vm1257, %v5277
        %5321 = vst.msk [vmem:[#allocation4 + $0x108] sm:$0xff] %vm1257, %v5279
        %5322 = vst.msk [vmem:[#allocation4 + $0x120] sm:$0xff] %vm1257, %v5281
        %5323 = vst.msk [vmem:[#allocation4 + $0x138] sm:$0xff] %vm1257, %v5283
        %5324 = vst.msk [vmem:[#allocation4 + $0x150] sm:$0xff] %vm1257, %v5285
        %5325 = vst.msk [vmem:[#allocation4 + $0x168] sm:$0xff] %vm1257, %v5287
        %5326 = vst.msk [vmem:[#allocation4 + $0x180] sm:$0xff] %vm1257, %v5289
        %5327 = vst.msk [vmem:[#allocation4 + $0x198] sm:$0xff] %vm1257, %v5291
        %v5328 = vld [vmem:[#allocation3] sm:$0xe]
        %v5329 = vld [vmem:[#allocation3 + $0x4] sm:$0xf]
        %v5330 = vld [vmem:[#allocation3 + $0x8] sm:$0xf]
        %v5331 = vld [vmem:[#allocation3 + $0xc] sm:$0xf]
        %v5332 = vld [vmem:[#allocation3 + $0x10] sm:$0xf]
        %v5333 = vld [vmem:[#allocation3 + $0x14] sm:$0xf]
        %v5334 = vld [vmem:[#allocation3 + $0x18] sm:$0xf]
        %v5335 = vld [vmem:[#allocation3 + $0x1c] sm:$0xf]
        %v5336 = vld [vmem:[#allocation3 + $0x20] sm:$0xf]
        %v5337 = vld [vmem:[#allocation3 + $0x24] sm:$0xf]
        %v5338 = vld [vmem:[#allocation3 + $0x28] sm:$0xf]
        %v5339 = vld [vmem:[#allocation3 + $0x2c] sm:$0xf]
        %v5340 = vld [vmem:[#allocation3 + $0x30] sm:$0xf]
        %v5341 = vld [vmem:[#allocation3 + $0x34] sm:$0xf]
        %v5342 = vld [vmem:[#allocation3 + $0x38] sm:$0xf]
        %v5343 = vld [vmem:[#allocation3 + $0x3c] sm:$0xf]
        %v5344 = vld [vmem:[#allocation3 + $0x40] sm:$0xf]
        %v5345 = vld [vmem:[#allocation3 + $0x44] sm:$0xf]
        %v5346 = vld [vmem:[#allocation3 + $0x48] sm:$0xf]
        %v5347 = vld [vmem:[#allocation3 + $0x4c] sm:$0xf]
        %v5348 = vld [vmem:[#allocation3 + $0x50] sm:$0xf]
        %v5349 = vld [vmem:[#allocation3 + $0x54] sm:$0xf]
        %v5350 = vld [vmem:[#allocation3 + $0x58] sm:$0xf]
        %v5351 = vld [vmem:[#allocation3 + $0x5c] sm:$0xf]
        %v5352 = vld [vmem:[#allocation3 + $0x60] sm:$0xf]
        %v5353 = vld [vmem:[#allocation3 + $0x64] sm:$0xf]
        %v5354 = vld [vmem:[#allocation3 + $0x68] sm:$0xf]
        %v5355 = vld [vmem:[#allocation3 + $0x6c] sm:$0xf]
        %v5356 = vld [vmem:[#allocation3 + $0x70] sm:$0xf]
        %v5357 = vld [vmem:[#allocation3 + $0x74] sm:$0xf]
        %v5358 = vld [vmem:[#allocation3 + $0x78] sm:$0xf]
        %v5359 = vld [vmem:[#allocation3 + $0x7c] sm:$0xf]
        %v5360 = vld [vmem:[#allocation3 + $0x80] sm:$0xf]
        %v5361 = vld [vmem:[#allocation3 + $0x84] sm:$0xf]
        %v5362 = vld [vmem:[#allocation3 + $0x88] sm:$0xf]
        %v5363 = vld [vmem:[#allocation3 + $0x8c] sm:$0xf]
        %v5364 = vld [vmem:[#allocation3 + $0x90] sm:$0x3]
        %v5402 = vunpack.c.l.b16 %v5328
        %v5403 = vunpack.c.l.b16 %v5329
        %v5404 = vunpack.c.l.b16 %v5330
        %v5405 = vunpack.c.l.b16 %v5331
        %v5406 = vunpack.c.l.b16 %v5332
        %v5407 = vunpack.c.l.b16 %v5333
        %v5408 = vunpack.c.l.b16 %v5334
        %v5409 = vunpack.c.l.b16 %v5335
        %v5410 = vunpack.c.l.b16 %v5336
        %v5411 = vunpack.c.l.b16 %v5337
        %v5412 = vunpack.c.l.b16 %v5338
        %v5413 = vunpack.c.l.b16 %v5339
        %v5414 = vunpack.c.l.b16 %v5340
        %v5415 = vunpack.c.l.b16 %v5341
        %v5416 = vunpack.c.l.b16 %v5342
        %v5417 = vunpack.c.l.b16 %v5343
        %v5418 = vunpack.c.l.b16 %v5344
        %v5419 = vunpack.c.l.b16 %v5345
        %v5420 = vunpack.c.l.b16 %v5346
        %v5421 = vunpack.c.l.b16 %v5347
        %v5422 = vunpack.c.l.b16 %v5348
        %v5423 = vunpack.c.l.b16 %v5349
        %v5424 = vunpack.c.l.b16 %v5350
        %v5425 = vunpack.c.l.b16 %v5351
        %v5426 = vunpack.c.l.b16 %v5352
        %v5427 = vunpack.c.l.b16 %v5353
        %v5428 = vunpack.c.l.b16 %v5354
        %v5429 = vunpack.c.l.b16 %v5355
        %v5430 = vunpack.c.l.b16 %v5356
        %v5431 = vunpack.c.l.b16 %v5357
        %v5432 = vunpack.c.l.b16 %v5358
        %v5433 = vunpack.c.l.b16 %v5359
        %v5434 = vunpack.c.l.b16 %v5360
        %v5435 = vunpack.c.l.b16 %v5361
        %v5436 = vunpack.c.l.b16 %v5362
        %v5437 = vunpack.c.l.b16 %v5363
        %v5438 = vunpack.c.l.b16 %v5364
        %v5439 = vpack.c.b16 %v5403, %v5402
        %v5440 = vpack.c.b16 %v5405, %v5404
        %v5441 = vpack.c.b16 %v5407, %v5406
        %v5442 = vpack.c.b16 %v5409, %v5408
        %v5443 = vpack.c.b16 %v5411, %v5410
        %v5444 = vpack.c.b16 %v5413, %v5412
        %v5445 = vpack.c.b16 %v5415, %v5414
        %v5446 = vpack.c.b16 %v5417, %v5416
        %v5447 = vpack.c.b16 %v5419, %v5418
        %v5448 = vpack.c.b16 %v5421, %v5420
        %v5449 = vpack.c.b16 %v5423, %v5422
        %v5450 = vpack.c.b16 %v5425, %v5424
        %v5451 = vpack.c.b16 %v5427, %v5426
        %v5452 = vpack.c.b16 %v5429, %v5428
        %v5453 = vpack.c.b16 %v5431, %v5430
        %v5454 = vpack.c.b16 %v5433, %v5432
        %v5455 = vpack.c.b16 %v5435, %v5434
        %v5456 = vpack.c.b16 %v5437, %v5436
        %v5457 = vpack.c.b16 %v5438, %v5438
        %v5459 = vshrl.u32 %v5439, 16
        %v5461 = vrot.slane %v5459, 1
        %v5462 = vshll.u32 %v5439, 16
        %v5464 = vrot.slane %v5462, 2
        %v5465 = vor.u32 %v5461, %v5464
        %v5467 = vshrl.u32 %v5440, 16
        %v5469 = vrot.slane %v5467, 1
        %v5470 = vshll.u32 %v5440, 16
        %v5472 = vrot.slane %v5470, 2
        %v5473 = vor.u32 %v5469, %v5472
        %v5474 = vsel %vm1406, %v5465, %v5473
        %v5476 = vshrl.u32 %v5441, 16
        %v5478 = vrot.slane %v5476, 1
        %v5479 = vshll.u32 %v5441, 16
        %v5481 = vrot.slane %v5479, 2
        %v5482 = vor.u32 %v5478, %v5481
        %v5483 = vsel %vm1406, %v5473, %v5482
        %v5485 = vshrl.u32 %v5442, 16
        %v5487 = vrot.slane %v5485, 1
        %v5488 = vshll.u32 %v5442, 16
        %v5490 = vrot.slane %v5488, 2
        %v5491 = vor.u32 %v5487, %v5490
        %v5492 = vsel %vm1406, %v5482, %v5491
        %v5494 = vshrl.u32 %v5443, 16
        %v5496 = vrot.slane %v5494, 1
        %v5497 = vshll.u32 %v5443, 16
        %v5499 = vrot.slane %v5497, 2
        %v5500 = vor.u32 %v5496, %v5499
        %v5501 = vsel %vm1406, %v5491, %v5500
        %v5503 = vshrl.u32 %v5444, 16
        %v5505 = vrot.slane %v5503, 1
        %v5506 = vshll.u32 %v5444, 16
        %v5508 = vrot.slane %v5506, 2
        %v5509 = vor.u32 %v5505, %v5508
        %v5510 = vsel %vm1406, %v5500, %v5509
        %v5512 = vshrl.u32 %v5445, 16
        %v5514 = vrot.slane %v5512, 1
        %v5515 = vshll.u32 %v5445, 16
        %v5517 = vrot.slane %v5515, 2
        %v5518 = vor.u32 %v5514, %v5517
        %v5519 = vsel %vm1406, %v5509, %v5518
        %v5521 = vshrl.u32 %v5446, 16
        %v5523 = vrot.slane %v5521, 1
        %v5524 = vshll.u32 %v5446, 16
        %v5526 = vrot.slane %v5524, 2
        %v5527 = vor.u32 %v5523, %v5526
        %v5528 = vsel %vm1406, %v5518, %v5527
        %v5530 = vshrl.u32 %v5447, 16
        %v5532 = vrot.slane %v5530, 1
        %v5533 = vshll.u32 %v5447, 16
        %v5535 = vrot.slane %v5533, 2
        %v5536 = vor.u32 %v5532, %v5535
        %v5537 = vsel %vm1406, %v5527, %v5536
        %v5539 = vshrl.u32 %v5448, 16
        %v5541 = vrot.slane %v5539, 1
        %v5542 = vshll.u32 %v5448, 16
        %v5544 = vrot.slane %v5542, 2
        %v5545 = vor.u32 %v5541, %v5544
        %v5546 = vsel %vm1406, %v5536, %v5545
        %v5548 = vshrl.u32 %v5449, 16
        %v5550 = vrot.slane %v5548, 1
        %v5551 = vshll.u32 %v5449, 16
        %v5553 = vrot.slane %v5551, 2
        %v5554 = vor.u32 %v5550, %v5553
        %v5555 = vsel %vm1406, %v5545, %v5554
        %v5557 = vshrl.u32 %v5450, 16
        %v5559 = vrot.slane %v5557, 1
        %v5560 = vshll.u32 %v5450, 16
        %v5562 = vrot.slane %v5560, 2
        %v5563 = vor.u32 %v5559, %v5562
        %v5564 = vsel %vm1406, %v5554, %v5563
        %v5566 = vshrl.u32 %v5451, 16
        %v5568 = vrot.slane %v5566, 1
        %v5569 = vshll.u32 %v5451, 16
        %v5571 = vrot.slane %v5569, 2
        %v5572 = vor.u32 %v5568, %v5571
        %v5573 = vsel %vm1406, %v5563, %v5572
        %v5575 = vshrl.u32 %v5452, 16
        %v5577 = vrot.slane %v5575, 1
        %v5578 = vshll.u32 %v5452, 16
        %v5580 = vrot.slane %v5578, 2
        %v5581 = vor.u32 %v5577, %v5580
        %v5582 = vsel %vm1406, %v5572, %v5581
        %v5584 = vshrl.u32 %v5453, 16
        %v5586 = vrot.slane %v5584, 1
        %v5587 = vshll.u32 %v5453, 16
        %v5589 = vrot.slane %v5587, 2
        %v5590 = vor.u32 %v5586, %v5589
        %v5591 = vsel %vm1406, %v5581, %v5590
        %v5593 = vshrl.u32 %v5454, 16
        %v5595 = vrot.slane %v5593, 1
        %v5596 = vshll.u32 %v5454, 16
        %v5598 = vrot.slane %v5596, 2
        %v5599 = vor.u32 %v5595, %v5598
        %v5600 = vsel %vm1406, %v5590, %v5599
        %v5602 = vshrl.u32 %v5455, 16
        %v5604 = vrot.slane %v5602, 1
        %v5605 = vshll.u32 %v5455, 16
        %v5607 = vrot.slane %v5605, 2
        %v5608 = vor.u32 %v5604, %v5607
        %v5609 = vsel %vm1406, %v5599, %v5608
        %v5611 = vshrl.u32 %v5456, 16
        %v5613 = vrot.slane %v5611, 1
        %v5614 = vshll.u32 %v5456, 16
        %v5616 = vrot.slane %v5614, 2
        %v5617 = vor.u32 %v5613, %v5616
        %v5618 = vsel %vm1406, %v5608, %v5617
        %v5620 = vshrl.u32 %v5457, 16
        %v5622 = vrot.slane %v5620, 1
        %v5623 = vshll.u32 %v5457, 16
        %v5625 = vrot.slane %v5623, 2
        %v5626 = vor.u32 %v5622, %v5625
        %v5627 = vsel %vm1406, %v5617, %v5626
        %5628 = vrot.lane.b32.xlu0 %v5474, 64
        %v5629 = vpop.permute.xlu0 %5628
        %5630 = vrot.lane.b32.xlu0 %v5483, 64
        %v5631 = vpop.permute.xlu0 %5630
        %5632 = vrot.lane.b32.xlu0 %v5492, 64
        %v5633 = vpop.permute.xlu0 %5632
        %5634 = vrot.lane.b32.xlu0 %v5501, 64
        %v5635 = vpop.permute.xlu0 %5634
        %5636 = vrot.lane.b32.xlu0 %v5510, 64
        %v5637 = vpop.permute.xlu0 %5636
        %5638 = vrot.lane.b32.xlu0 %v5519, 64
        %v5639 = vpop.permute.xlu0 %5638
        %5640 = vrot.lane.b32.xlu0 %v5528, 64
        %v5641 = vpop.permute.xlu0 %5640
        %5642 = vrot.lane.b32.xlu0 %v5537, 64
        %v5643 = vpop.permute.xlu0 %5642
        %5644 = vrot.lane.b32.xlu0 %v5546, 64
        %v5645 = vpop.permute.xlu0 %5644
        %5646 = vrot.lane.b32.xlu0 %v5555, 64
        %v5647 = vpop.permute.xlu0 %5646
        %5648 = vrot.lane.b32.xlu0 %v5564, 64
        %v5649 = vpop.permute.xlu0 %5648
        %5650 = vrot.lane.b32.xlu0 %v5573, 64
        %v5651 = vpop.permute.xlu0 %5650
        %5652 = vrot.lane.b32.xlu0 %v5582, 64
        %v5653 = vpop.permute.xlu0 %5652
        %5654 = vrot.lane.b32.xlu0 %v5591, 64
        %v5655 = vpop.permute.xlu0 %5654
        %5656 = vrot.lane.b32.xlu0 %v5600, 64
        %v5657 = vpop.permute.xlu0 %5656
        %5658 = vrot.lane.b32.xlu0 %v5609, 64
        %v5659 = vpop.permute.xlu0 %5658
        %5660 = vrot.lane.b32.xlu0 %v5618, 64
        %v5661 = vpop.permute.xlu0 %5660
        %5662 = vrot.lane.b32.xlu0 %v5627, 64
        %v5663 = vpop.permute.xlu0 %5662
        %5682 = vst.msk [vmem:[#allocation4] sm:$0xff] %vm1631, %v5629
        %5683 = vst.msk [vmem:[#allocation4 + $0x18] sm:$0xff] %vm1631, %v5631
        %5684 = vst.msk [vmem:[#allocation4 + $0x30] sm:$0xff] %vm1631, %v5633
        %5685 = vst.msk [vmem:[#allocation4 + $0x48] sm:$0xff] %vm1631, %v5635
        %5686 = vst.msk [vmem:[#allocation4 + $0x60] sm:$0xff] %vm1631, %v5637
        %5687 = vst.msk [vmem:[#allocation4 + $0x78] sm:$0xff] %vm1631, %v5639
        %5688 = vst.msk [vmem:[#allocation4 + $0x90] sm:$0xff] %vm1631, %v5641
        %5689 = vst.msk [vmem:[#allocation4 + $0xa8] sm:$0xff] %vm1631, %v5643
        %5690 = vst.msk [vmem:[#allocation4 + $0xc0] sm:$0xff] %vm1631, %v5645
        %5691 = vst.msk [vmem:[#allocation4 + $0xd8] sm:$0xff] %vm1631, %v5647
        %5692 = vst.msk [vmem:[#allocation4 + $0xf0] sm:$0xff] %vm1631, %v5649
        %5693 = vst.msk [vmem:[#allocation4 + $0x108] sm:$0xff] %vm1631, %v5651
        %5694 = vst.msk [vmem:[#allocation4 + $0x120] sm:$0xff] %vm1631, %v5653
        %5695 = vst.msk [vmem:[#allocation4 + $0x138] sm:$0xff] %vm1631, %v5655
        %5696 = vst.msk [vmem:[#allocation4 + $0x150] sm:$0xff] %vm1631, %v5657
        %5697 = vst.msk [vmem:[#allocation4 + $0x168] sm:$0xff] %vm1631, %v5659
        %5698 = vst.msk [vmem:[#allocation4 + $0x180] sm:$0xff] %vm1631, %v5661
        %5699 = vst.msk [vmem:[#allocation4 + $0x198] sm:$0xff] %vm1631, %v5663
        %v5700 = vld [vmem:[#allocation3 + $0x8] sm:$0xe]
        %v5701 = vld [vmem:[#allocation3 + $0xc] sm:$0xf]
        %v5702 = vld [vmem:[#allocation3 + $0x10] sm:$0xf]
        %v5703 = vld [vmem:[#allocation3 + $0x14] sm:$0xf]
        %v5704 = vld [vmem:[#allocation3 + $0x18] sm:$0xf]
        %v5705 = vld [vmem:[#allocation3 + $0x1c] sm:$0xf]
        %v5706 = vld [vmem:[#allocation3 + $0x20] sm:$0xf]
        %v5707 = vld [vmem:[#allocation3 + $0x24] sm:$0xf]
        %v5708 = vld [vmem:[#allocation3 + $0x28] sm:$0xf]
        %v5709 = vld [vmem:[#allocation3 + $0x2c] sm:$0xf]
        %v5710 = vld [vmem:[#allocation3 + $0x30] sm:$0xf]
        %v5711 = vld [vmem:[#allocation3 + $0x34] sm:$0xf]
        %v5712 = vld [vmem:[#allocation3 + $0x38] sm:$0xf]
        %v5713 = vld [vmem:[#allocation3 + $0x3c] sm:$0xf]
        %v5714 = vld [vmem:[#allocation3 + $0x40] sm:$0xf]
        %v5715 = vld [vmem:[#allocation3 + $0x44] sm:$0xf]
        %v5716 = vld [vmem:[#allocation3 + $0x48] sm:$0xf]
        %v5717 = vld [vmem:[#allocation3 + $0x4c] sm:$0xf]
        %v5718 = vld [vmem:[#allocation3 + $0x50] sm:$0xf]
        %v5719 = vld [vmem:[#allocation3 + $0x54] sm:$0xf]
        %v5720 = vld [vmem:[#allocation3 + $0x58] sm:$0xf]
        %v5721 = vld [vmem:[#allocation3 + $0x5c] sm:$0xf]
        %v5722 = vld [vmem:[#allocation3 + $0x60] sm:$0xf]
        %v5723 = vld [vmem:[#allocation3 + $0x64] sm:$0xf]
        %v5724 = vld [vmem:[#allocation3 + $0x68] sm:$0xf]
        %v5725 = vld [vmem:[#allocation3 + $0x6c] sm:$0xf]
        %v5726 = vld [vmem:[#allocation3 + $0x70] sm:$0xf]
        %v5727 = vld [vmem:[#allocation3 + $0x74] sm:$0xf]
        %v5728 = vld [vmem:[#allocation3 + $0x78] sm:$0xf]
        %v5729 = vld [vmem:[#allocation3 + $0x7c] sm:$0xf]
        %v5730 = vld [vmem:[#allocation3 + $0x80] sm:$0xf]
        %v5731 = vld [vmem:[#allocation3 + $0x84] sm:$0xf]
        %v5732 = vld [vmem:[#allocation3 + $0x88] sm:$0xf]
        %v5733 = vld [vmem:[#allocation3 + $0x8c] sm:$0xf]
        %v5734 = vld [vmem:[#allocation3 + $0x90] sm:$0xf]
        %v5735 = vld [vmem:[#allocation3 + $0x94] sm:$0xf]
        %v5736 = vld [vmem:[#allocation3 + $0x98] sm:$0x3]
        %v5774 = vunpack.c.l.b16 %v5700
        %v5775 = vunpack.c.l.b16 %v5701
        %v5776 = vunpack.c.l.b16 %v5702
        %v5777 = vunpack.c.l.b16 %v5703
        %v5778 = vunpack.c.l.b16 %v5704
        %v5779 = vunpack.c.l.b16 %v5705
        %v5780 = vunpack.c.l.b16 %v5706
        %v5781 = vunpack.c.l.b16 %v5707
        %v5782 = vunpack.c.l.b16 %v5708
        %v5783 = vunpack.c.l.b16 %v5709
        %v5784 = vunpack.c.l.b16 %v5710
        %v5785 = vunpack.c.l.b16 %v5711
        %v5786 = vunpack.c.l.b16 %v5712
        %v5787 = vunpack.c.l.b16 %v5713
        %v5788 = vunpack.c.l.b16 %v5714
        %v5789 = vunpack.c.l.b16 %v5715
        %v5790 = vunpack.c.l.b16 %v5716
        %v5791 = vunpack.c.l.b16 %v5717
        %v5792 = vunpack.c.l.b16 %v5718
        %v5793 = vunpack.c.l.b16 %v5719
        %v5794 = vunpack.c.l.b16 %v5720
        %v5795 = vunpack.c.l.b16 %v5721
        %v5796 = vunpack.c.l.b16 %v5722
        %v5797 = vunpack.c.l.b16 %v5723
        %v5798 = vunpack.c.l.b16 %v5724
        %v5799 = vunpack.c.l.b16 %v5725
        %v5800 = vunpack.c.l.b16 %v5726
        %v5801 = vunpack.c.l.b16 %v5727
        %v5802 = vunpack.c.l.b16 %v5728
        %v5803 = vunpack.c.l.b16 %v5729
        %v5804 = vunpack.c.l.b16 %v5730
        %v5805 = vunpack.c.l.b16 %v5731
        %v5806 = vunpack.c.l.b16 %v5732
        %v5807 = vunpack.c.l.b16 %v5733
        %v5808 = vunpack.c.l.b16 %v5734
        %v5809 = vunpack.c.l.b16 %v5735
        %v5810 = vunpack.c.l.b16 %v5736
        %v5811 = vpack.c.b16 %v5775, %v5774
        %v5812 = vpack.c.b16 %v5777, %v5776
        %v5813 = vpack.c.b16 %v5779, %v5778
        %v5814 = vpack.c.b16 %v5781, %v5780
        %v5815 = vpack.c.b16 %v5783, %v5782
        %v5816 = vpack.c.b16 %v5785, %v5784
        %v5817 = vpack.c.b16 %v5787, %v5786
        %v5818 = vpack.c.b16 %v5789, %v5788
        %v5819 = vpack.c.b16 %v5791, %v5790
        %v5820 = vpack.c.b16 %v5793, %v5792
        %v5821 = vpack.c.b16 %v5795, %v5794
        %v5822 = vpack.c.b16 %v5797, %v5796
        %v5823 = vpack.c.b16 %v5799, %v5798
        %v5824 = vpack.c.b16 %v5801, %v5800
        %v5825 = vpack.c.b16 %v5803, %v5802
        %v5826 = vpack.c.b16 %v5805, %v5804
        %v5827 = vpack.c.b16 %v5807, %v5806
        %v5828 = vpack.c.b16 %v5809, %v5808
        %v5829 = vpack.c.b16 %v5810, %v5810
        %v5831 = vshrl.u32 %v5811, 16
        %v5833 = vrot.slane %v5831, 1
        %v5834 = vshll.u32 %v5811, 16
        %v5836 = vrot.slane %v5834, 2
        %v5837 = vor.u32 %v5833, %v5836
        %v5839 = vshrl.u32 %v5812, 16
        %v5841 = vrot.slane %v5839, 1
        %v5842 = vshll.u32 %v5812, 16
        %v5844 = vrot.slane %v5842, 2
        %v5845 = vor.u32 %v5841, %v5844
        %v5846 = vsel %vm1406, %v5837, %v5845
        %v5848 = vshrl.u32 %v5813, 16
        %v5850 = vrot.slane %v5848, 1
        %v5851 = vshll.u32 %v5813, 16
        %v5853 = vrot.slane %v5851, 2
        %v5854 = vor.u32 %v5850, %v5853
        %v5855 = vsel %vm1406, %v5845, %v5854
        %v5857 = vshrl.u32 %v5814, 16
        %v5859 = vrot.slane %v5857, 1
        %v5860 = vshll.u32 %v5814, 16
        %v5862 = vrot.slane %v5860, 2
        %v5863 = vor.u32 %v5859, %v5862
        %v5864 = vsel %vm1406, %v5854, %v5863
        %v5866 = vshrl.u32 %v5815, 16
        %v5868 = vrot.slane %v5866, 1
        %v5869 = vshll.u32 %v5815, 16
        %v5871 = vrot.slane %v5869, 2
        %v5872 = vor.u32 %v5868, %v5871
        %v5873 = vsel %vm1406, %v5863, %v5872
        %v5875 = vshrl.u32 %v5816, 16
        %v5877 = vrot.slane %v5875, 1
        %v5878 = vshll.u32 %v5816, 16
        %v5880 = vrot.slane %v5878, 2
        %v5881 = vor.u32 %v5877, %v5880
        %v5882 = vsel %vm1406, %v5872, %v5881
        %v5884 = vshrl.u32 %v5817, 16
        %v5886 = vrot.slane %v5884, 1
        %v5887 = vshll.u32 %v5817, 16
        %v5889 = vrot.slane %v5887, 2
        %v5890 = vor.u32 %v5886, %v5889
        %v5891 = vsel %vm1406, %v5881, %v5890
        %v5893 = vshrl.u32 %v5818, 16
        %v5895 = vrot.slane %v5893, 1
        %v5896 = vshll.u32 %v5818, 16
        %v5898 = vrot.slane %v5896, 2
        %v5899 = vor.u32 %v5895, %v5898
        %v5900 = vsel %vm1406, %v5890, %v5899
        %v5902 = vshrl.u32 %v5819, 16
        %v5904 = vrot.slane %v5902, 1
        %v5905 = vshll.u32 %v5819, 16
        %v5907 = vrot.slane %v5905, 2
        %v5908 = vor.u32 %v5904, %v5907
        %v5909 = vsel %vm1406, %v5899, %v5908
        %v5911 = vshrl.u32 %v5820, 16
        %v5913 = vrot.slane %v5911, 1
        %v5914 = vshll.u32 %v5820, 16
        %v5916 = vrot.slane %v5914, 2
        %v5917 = vor.u32 %v5913, %v5916
        %v5918 = vsel %vm1406, %v5908, %v5917
        %v5920 = vshrl.u32 %v5821, 16
        %v5922 = vrot.slane %v5920, 1
        %v5923 = vshll.u32 %v5821, 16
        %v5925 = vrot.slane %v5923, 2
        %v5926 = vor.u32 %v5922, %v5925
        %v5927 = vsel %vm1406, %v5917, %v5926
        %v5929 = vshrl.u32 %v5822, 16
        %v5931 = vrot.slane %v5929, 1
        %v5932 = vshll.u32 %v5822, 16
        %v5934 = vrot.slane %v5932, 2
        %v5935 = vor.u32 %v5931, %v5934
        %v5936 = vsel %vm1406, %v5926, %v5935
        %v5938 = vshrl.u32 %v5823, 16
        %v5940 = vrot.slane %v5938, 1
        %v5941 = vshll.u32 %v5823, 16
        %v5943 = vrot.slane %v5941, 2
        %v5944 = vor.u32 %v5940, %v5943
        %v5945 = vsel %vm1406, %v5935, %v5944
        %v5947 = vshrl.u32 %v5824, 16
        %v5949 = vrot.slane %v5947, 1
        %v5950 = vshll.u32 %v5824, 16
        %v5952 = vrot.slane %v5950, 2
        %v5953 = vor.u32 %v5949, %v5952
        %v5954 = vsel %vm1406, %v5944, %v5953
        %v5956 = vshrl.u32 %v5825, 16
        %v5958 = vrot.slane %v5956, 1
        %v5959 = vshll.u32 %v5825, 16
        %v5961 = vrot.slane %v5959, 2
        %v5962 = vor.u32 %v5958, %v5961
        %v5963 = vsel %vm1406, %v5953, %v5962
        %v5965 = vshrl.u32 %v5826, 16
        %v5967 = vrot.slane %v5965, 1
        %v5968 = vshll.u32 %v5826, 16
        %v5970 = vrot.slane %v5968, 2
        %v5971 = vor.u32 %v5967, %v5970
        %v5972 = vsel %vm1406, %v5962, %v5971
        %v5974 = vshrl.u32 %v5827, 16
        %v5976 = vrot.slane %v5974, 1
        %v5977 = vshll.u32 %v5827, 16
        %v5979 = vrot.slane %v5977, 2
        %v5980 = vor.u32 %v5976, %v5979
        %v5981 = vsel %vm1406, %v5971, %v5980
        %v5983 = vshrl.u32 %v5828, 16
        %v5985 = vrot.slane %v5983, 1
        %v5986 = vshll.u32 %v5828, 16
        %v5988 = vrot.slane %v5986, 2
        %v5989 = vor.u32 %v5985, %v5988
        %v5990 = vsel %vm1406, %v5980, %v5989
        %v5992 = vshrl.u32 %v5829, 16
        %v5994 = vrot.slane %v5992, 1
        %v5995 = vshll.u32 %v5829, 16
        %v5997 = vrot.slane %v5995, 2
        %v5998 = vor.u32 %v5994, %v5997
        %v5999 = vsel %vm1406, %v5989, %v5998
        %6000 = vrot.lane.b32.xlu0 %v5846, 96
        %v6001 = vpop.permute.xlu0 %6000
        %6002 = vrot.lane.b32.xlu0 %v5855, 96
        %v6003 = vpop.permute.xlu0 %6002
        %6004 = vrot.lane.b32.xlu0 %v5864, 96
        %v6005 = vpop.permute.xlu0 %6004
        %6006 = vrot.lane.b32.xlu0 %v5873, 96
        %v6007 = vpop.permute.xlu0 %6006
        %6008 = vrot.lane.b32.xlu0 %v5882, 96
        %v6009 = vpop.permute.xlu0 %6008
        %6010 = vrot.lane.b32.xlu0 %v5891, 96
        %v6011 = vpop.permute.xlu0 %6010
        %6012 = vrot.lane.b32.xlu0 %v5900, 96
        %v6013 = vpop.permute.xlu0 %6012
        %6014 = vrot.lane.b32.xlu0 %v5909, 96
        %v6015 = vpop.permute.xlu0 %6014
        %6016 = vrot.lane.b32.xlu0 %v5918, 96
        %v6017 = vpop.permute.xlu0 %6016
        %6018 = vrot.lane.b32.xlu0 %v5927, 96
        %v6019 = vpop.permute.xlu0 %6018
        %6020 = vrot.lane.b32.xlu0 %v5936, 96
        %v6021 = vpop.permute.xlu0 %6020
        %6022 = vrot.lane.b32.xlu0 %v5945, 96
        %v6023 = vpop.permute.xlu0 %6022
        %6024 = vrot.lane.b32.xlu0 %v5954, 96
        %v6025 = vpop.permute.xlu0 %6024
        %6026 = vrot.lane.b32.xlu0 %v5963, 96
        %v6027 = vpop.permute.xlu0 %6026
        %6028 = vrot.lane.b32.xlu0 %v5972, 96
        %v6029 = vpop.permute.xlu0 %6028
        %6030 = vrot.lane.b32.xlu0 %v5981, 96
        %v6031 = vpop.permute.xlu0 %6030
        %6032 = vrot.lane.b32.xlu0 %v5990, 96
        %v6033 = vpop.permute.xlu0 %6032
        %6034 = vrot.lane.b32.xlu0 %v5999, 96
        %v6035 = vpop.permute.xlu0 %6034
        %6054 = vst.msk [vmem:[#allocation4] sm:$0xff] %vm2004, %v6001
        %6055 = vst.msk [vmem:[#allocation4 + $0x18] sm:$0xff] %vm2004, %v6003
        %6056 = vst.msk [vmem:[#allocation4 + $0x30] sm:$0xff] %vm2004, %v6005
        %6057 = vst.msk [vmem:[#allocation4 + $0x48] sm:$0xff] %vm2004, %v6007
        %6058 = vst.msk [vmem:[#allocation4 + $0x60] sm:$0xff] %vm2004, %v6009
        %6059 = vst.msk [vmem:[#allocation4 + $0x78] sm:$0xff] %vm2004, %v6011
        %6060 = vst.msk [vmem:[#allocation4 + $0x90] sm:$0xff] %vm2004, %v6013
        %6061 = vst.msk [vmem:[#allocation4 + $0xa8] sm:$0xff] %vm2004, %v6015
        %6062 = vst.msk [vmem:[#allocation4 + $0xc0] sm:$0xff] %vm2004, %v6017
        %6063 = vst.msk [vmem:[#allocation4 + $0xd8] sm:$0xff] %vm2004, %v6019
        %6064 = vst.msk [vmem:[#allocation4 + $0xf0] sm:$0xff] %vm2004, %v6021
        %6065 = vst.msk [vmem:[#allocation4 + $0x108] sm:$0xff] %vm2004, %v6023
        %6066 = vst.msk [vmem:[#allocation4 + $0x120] sm:$0xff] %vm2004, %v6025
        %6067 = vst.msk [vmem:[#allocation4 + $0x138] sm:$0xff] %vm2004, %v6027
        %6068 = vst.msk [vmem:[#allocation4 + $0x150] sm:$0xff] %vm2004, %v6029
        %6069 = vst.msk [vmem:[#allocation4 + $0x168] sm:$0xff] %vm2004, %v6031
        %6070 = vst.msk [vmem:[#allocation4 + $0x180] sm:$0xff] %vm2004, %v6033
        %6071 = vst.msk [vmem:[#allocation4 + $0x198] sm:$0xff] %vm2004, %v6035
        %v6072 = vld [vmem:[#allocation3 + $0x8] sm:$0xc]
        %v6073 = vld [vmem:[#allocation3 + $0xc] sm:$0xf]
        %v6074 = vld [vmem:[#allocation3 + $0x10] sm:$0xf]
        %v6075 = vld [vmem:[#allocation3 + $0x14] sm:$0xf]
        %v6076 = vld [vmem:[#allocation3 + $0x18] sm:$0xf]
        %v6077 = vld [vmem:[#allocation3 + $0x1c] sm:$0xf]
        %v6078 = vld [vmem:[#allocation3 + $0x20] sm:$0xf]
        %v6079 = vld [vmem:[#allocation3 + $0x24] sm:$0xf]
        %v6080 = vld [vmem:[#allocation3 + $0x28] sm:$0xf]
        %v6081 = vld [vmem:[#allocation3 + $0x2c] sm:$0xf]
        %v6082 = vld [vmem:[#allocation3 + $0x30] sm:$0xf]
        %v6083 = vld [vmem:[#allocation3 + $0x34] sm:$0xf]
        %v6084 = vld [vmem:[#allocation3 + $0x38] sm:$0xf]
        %v6085 = vld [vmem:[#allocation3 + $0x3c] sm:$0xf]
        %v6086 = vld [vmem:[#allocation3 + $0x40] sm:$0xf]
        %v6087 = vld [vmem:[#allocation3 + $0x44] sm:$0xf]
        %v6088 = vld [vmem:[#allocation3 + $0x48] sm:$0xf]
        %v6089 = vld [vmem:[#allocation3 + $0x4c] sm:$0xf]
        %v6090 = vld [vmem:[#allocation3 + $0x50] sm:$0xf]
        %v6091 = vld [vmem:[#allocation3 + $0x54] sm:$0xf]
        %v6092 = vld [vmem:[#allocation3 + $0x58] sm:$0xf]
        %v6093 = vld [vmem:[#allocation3 + $0x5c] sm:$0xf]
        %v6094 = vld [vmem:[#allocation3 + $0x60] sm:$0xf]
        %v6095 = vld [vmem:[#allocation3 + $0x64] sm:$0xf]
        %v6096 = vld [vmem:[#allocation3 + $0x68] sm:$0xf]
        %v6097 = vld [vmem:[#allocation3 + $0x6c] sm:$0xf]
        %v6098 = vld [vmem:[#allocation3 + $0x70] sm:$0xf]
        %v6099 = vld [vmem:[#allocation3 + $0x74] sm:$0xf]
        %v6100 = vld [vmem:[#allocation3 + $0x78] sm:$0xf]
        %v6101 = vld [vmem:[#allocation3 + $0x7c] sm:$0xf]
        %v6102 = vld [vmem:[#allocation3 + $0x80] sm:$0xf]
        %v6103 = vld [vmem:[#allocation3 + $0x84] sm:$0xf]
        %v6104 = vld [vmem:[#allocation3 + $0x88] sm:$0xf]
        %v6105 = vld [vmem:[#allocation3 + $0x8c] sm:$0xf]
        %v6106 = vld [vmem:[#allocation3 + $0x90] sm:$0xf]
        %v6107 = vld [vmem:[#allocation3 + $0x94] sm:$0xf]
        %v6108 = vld [vmem:[#allocation3 + $0x98] sm:$0x3]
        %v6146 = vunpack.c.l.b16 %v6072
        %v6147 = vunpack.c.l.b16 %v6073
        %v6148 = vunpack.c.l.b16 %v6074
        %v6149 = vunpack.c.l.b16 %v6075
        %v6150 = vunpack.c.l.b16 %v6076
        %v6151 = vunpack.c.l.b16 %v6077
        %v6152 = vunpack.c.l.b16 %v6078
        %v6153 = vunpack.c.l.b16 %v6079
        %v6154 = vunpack.c.l.b16 %v6080
        %v6155 = vunpack.c.l.b16 %v6081
        %v6156 = vunpack.c.l.b16 %v6082
        %v6157 = vunpack.c.l.b16 %v6083
        %v6158 = vunpack.c.l.b16 %v6084
        %v6159 = vunpack.c.l.b16 %v6085
        %v6160 = vunpack.c.l.b16 %v6086
        %v6161 = vunpack.c.l.b16 %v6087
        %v6162 = vunpack.c.l.b16 %v6088
        %v6163 = vunpack.c.l.b16 %v6089
        %v6164 = vunpack.c.l.b16 %v6090
        %v6165 = vunpack.c.l.b16 %v6091
        %v6166 = vunpack.c.l.b16 %v6092
        %v6167 = vunpack.c.l.b16 %v6093
        %v6168 = vunpack.c.l.b16 %v6094
        %v6169 = vunpack.c.l.b16 %v6095
        %v6170 = vunpack.c.l.b16 %v6096
        %v6171 = vunpack.c.l.b16 %v6097
        %v6172 = vunpack.c.l.b16 %v6098
        %v6173 = vunpack.c.l.b16 %v6099
        %v6174 = vunpack.c.l.b16 %v6100
        %v6175 = vunpack.c.l.b16 %v6101
        %v6176 = vunpack.c.l.b16 %v6102
        %v6177 = vunpack.c.l.b16 %v6103
        %v6178 = vunpack.c.l.b16 %v6104
        %v6179 = vunpack.c.l.b16 %v6105
        %v6180 = vunpack.c.l.b16 %v6106
        %v6181 = vunpack.c.l.b16 %v6107
        %v6182 = vunpack.c.l.b16 %v6108
        %v6183 = vpack.c.b16 %v6147, %v6146
        %v6184 = vpack.c.b16 %v6149, %v6148
        %v6185 = vpack.c.b16 %v6151, %v6150
        %v6186 = vpack.c.b16 %v6153, %v6152
        %v6187 = vpack.c.b16 %v6155, %v6154
        %v6188 = vpack.c.b16 %v6157, %v6156
        %v6189 = vpack.c.b16 %v6159, %v6158
        %v6190 = vpack.c.b16 %v6161, %v6160
        %v6191 = vpack.c.b16 %v6163, %v6162
        %v6192 = vpack.c.b16 %v6165, %v6164
        %v6193 = vpack.c.b16 %v6167, %v6166
        %v6194 = vpack.c.b16 %v6169, %v6168
        %v6195 = vpack.c.b16 %v6171, %v6170
        %v6196 = vpack.c.b16 %v6173, %v6172
        %v6197 = vpack.c.b16 %v6175, %v6174
        %v6198 = vpack.c.b16 %v6177, %v6176
        %v6199 = vpack.c.b16 %v6179, %v6178
        %v6200 = vpack.c.b16 %v6181, %v6180
        %v6201 = vpack.c.b16 %v6182, %v6182
        %v6202 = vrot.slane %v6183, 2
        %v6203 = vrot.slane %v6184, 2
        %v6204 = vsel %vm2153, %v6202, %v6203
        %v6205 = vrot.slane %v6185, 2
        %v6206 = vsel %vm2153, %v6203, %v6205
        %v6207 = vrot.slane %v6186, 2
        %v6208 = vsel %vm2153, %v6205, %v6207
        %v6209 = vrot.slane %v6187, 2
        %v6210 = vsel %vm2153, %v6207, %v6209
        %v6211 = vrot.slane %v6188, 2
        %v6212 = vsel %vm2153, %v6209, %v6211
        %v6213 = vrot.slane %v6189, 2
        %v6214 = vsel %vm2153, %v6211, %v6213
        %v6215 = vrot.slane %v6190, 2
        %v6216 = vsel %vm2153, %v6213, %v6215
        %v6217 = vrot.slane %v6191, 2
        %v6218 = vsel %vm2153, %v6215, %v6217
        %v6219 = vrot.slane %v6192, 2
        %v6220 = vsel %vm2153, %v6217, %v6219
        %v6221 = vrot.slane %v6193, 2
        %v6222 = vsel %vm2153, %v6219, %v6221
        %v6223 = vrot.slane %v6194, 2
        %v6224 = vsel %vm2153, %v6221, %v6223
        %v6225 = vrot.slane %v6195, 2
        %v6226 = vsel %vm2153, %v6223, %v6225
        %v6227 = vrot.slane %v6196, 2
        %v6228 = vsel %vm2153, %v6225, %v6227
        %v6229 = vrot.slane %v6197, 2
        %v6230 = vsel %vm2153, %v6227, %v6229
        %v6231 = vrot.slane %v6198, 2
        %v6232 = vsel %vm2153, %v6229, %v6231
        %v6233 = vrot.slane %v6199, 2
        %v6234 = vsel %vm2153, %v6231, %v6233
        %v6235 = vrot.slane %v6200, 2
        %v6236 = vsel %vm2153, %v6233, %v6235
        %v6237 = vrot.slane %v6201, 2
        %v6238 = vsel %vm2153, %v6235, %v6237
        %6257 = vst.msk [vmem:[#allocation4 + $0x8] sm:$0xff] %vm1016, %v6204
        %6258 = vst.msk [vmem:[#allocation4 + $0x20] sm:$0xff] %vm1016, %v6206
        %6259 = vst.msk [vmem:[#allocation4 + $0x38] sm:$0xff] %vm1016, %v6208
        %6260 = vst.msk [vmem:[#allocation4 + $0x50] sm:$0xff] %vm1016, %v6210
        %6261 = vst.msk [vmem:[#allocation4 + $0x68] sm:$0xff] %vm1016, %v6212
        %6262 = vst.msk [vmem:[#allocation4 + $0x80] sm:$0xff] %vm1016, %v6214
        %6263 = vst.msk [vmem:[#allocation4 + $0x98] sm:$0xff] %vm1016, %v6216
        %6264 = vst.msk [vmem:[#allocation4 + $0xb0] sm:$0xff] %vm1016, %v6218
        %6265 = vst.msk [vmem:[#allocation4 + $0xc8] sm:$0xff] %vm1016, %v6220
        %6266 = vst.msk [vmem:[#allocation4 + $0xe0] sm:$0xff] %vm1016, %v6222
        %6267 = vst.msk [vmem:[#allocation4 + $0xf8] sm:$0xff] %vm1016, %v6224
        %6268 = vst.msk [vmem:[#allocation4 + $0x110] sm:$0xff] %vm1016, %v6226
        %6269 = vst.msk [vmem:[#allocation4 + $0x128] sm:$0xff] %vm1016, %v6228
        %6270 = vst.msk [vmem:[#allocation4 + $0x140] sm:$0xff] %vm1016, %v6230
        %6271 = vst.msk [vmem:[#allocation4 + $0x158] sm:$0xff] %vm1016, %v6232
        %6272 = vst.msk [vmem:[#allocation4 + $0x170] sm:$0xff] %vm1016, %v6234
        %6273 = vst.msk [vmem:[#allocation4 + $0x188] sm:$0xff] %vm1016, %v6236
        %6274 = vst.msk [vmem:[#allocation4 + $0x1a0] sm:$0xff] %vm1016, %v6238
        %v6275 = vld [vmem:[#allocation3 + $0x8] sm:$0xc]
        %v6276 = vld [vmem:[#allocation3 + $0xc] sm:$0xf]
        %v6277 = vld [vmem:[#allocation3 + $0x10] sm:$0xf]
        %v6278 = vld [vmem:[#allocation3 + $0x14] sm:$0xf]
        %v6279 = vld [vmem:[#allocation3 + $0x18] sm:$0xf]
        %v6280 = vld [vmem:[#allocation3 + $0x1c] sm:$0xf]
        %v6281 = vld [vmem:[#allocation3 + $0x20] sm:$0xf]
        %v6282 = vld [vmem:[#allocation3 + $0x24] sm:$0xf]
        %v6283 = vld [vmem:[#allocation3 + $0x28] sm:$0xf]
        %v6284 = vld [vmem:[#allocation3 + $0x2c] sm:$0xf]
        %v6285 = vld [vmem:[#allocation3 + $0x30] sm:$0xf]
        %v6286 = vld [vmem:[#allocation3 + $0x34] sm:$0xf]
        %v6287 = vld [vmem:[#allocation3 + $0x38] sm:$0xf]
        %v6288 = vld [vmem:[#allocation3 + $0x3c] sm:$0xf]
        %v6289 = vld [vmem:[#allocation3 + $0x40] sm:$0xf]
        %v6290 = vld [vmem:[#allocation3 + $0x44] sm:$0xf]
        %v6291 = vld [vmem:[#allocation3 + $0x48] sm:$0xf]
        %v6292 = vld [vmem:[#allocation3 + $0x4c] sm:$0xf]
        %v6293 = vld [vmem:[#allocation3 + $0x50] sm:$0xf]
        %v6294 = vld [vmem:[#allocation3 + $0x54] sm:$0xf]
        %v6295 = vld [vmem:[#allocation3 + $0x58] sm:$0xf]
        %v6296 = vld [vmem:[#allocation3 + $0x5c] sm:$0xf]
        %v6297 = vld [vmem:[#allocation3 + $0x60] sm:$0xf]
        %v6298 = vld [vmem:[#allocation3 + $0x64] sm:$0xf]
        %v6299 = vld [vmem:[#allocation3 + $0x68] sm:$0xf]
        %v6300 = vld [vmem:[#allocation3 + $0x6c] sm:$0xf]
        %v6301 = vld [vmem:[#allocation3 + $0x70] sm:$0xf]
        %v6302 = vld [vmem:[#allocation3 + $0x74] sm:$0xf]
        %v6303 = vld [vmem:[#allocation3 + $0x78] sm:$0xf]
        %v6304 = vld [vmem:[#allocation3 + $0x7c] sm:$0xf]
        %v6305 = vld [vmem:[#allocation3 + $0x80] sm:$0xf]
        %v6306 = vld [vmem:[#allocation3 + $0x84] sm:$0xf]
        %v6307 = vld [vmem:[#allocation3 + $0x88] sm:$0xf]
        %v6308 = vld [vmem:[#allocation3 + $0x8c] sm:$0xf]
        %v6309 = vld [vmem:[#allocation3 + $0x90] sm:$0xf]
        %v6310 = vld [vmem:[#allocation3 + $0x94] sm:$0xf]
        %v6311 = vld [vmem:[#allocation3 + $0x98] sm:$0x7]
        %v6349 = vunpack.c.l.b16 %v6275
        %v6350 = vunpack.c.l.b16 %v6276
        %v6351 = vunpack.c.l.b16 %v6277
        %v6352 = vunpack.c.l.b16 %v6278
        %v6353 = vunpack.c.l.b16 %v6279
        %v6354 = vunpack.c.l.b16 %v6280
        %v6355 = vunpack.c.l.b16 %v6281
        %v6356 = vunpack.c.l.b16 %v6282
        %v6357 = vunpack.c.l.b16 %v6283
        %v6358 = vunpack.c.l.b16 %v6284
        %v6359 = vunpack.c.l.b16 %v6285
        %v6360 = vunpack.c.l.b16 %v6286
        %v6361 = vunpack.c.l.b16 %v6287
        %v6362 = vunpack.c.l.b16 %v6288
        %v6363 = vunpack.c.l.b16 %v6289
        %v6364 = vunpack.c.l.b16 %v6290
        %v6365 = vunpack.c.l.b16 %v6291
        %v6366 = vunpack.c.l.b16 %v6292
        %v6367 = vunpack.c.l.b16 %v6293
        %v6368 = vunpack.c.l.b16 %v6294
        %v6369 = vunpack.c.l.b16 %v6295
        %v6370 = vunpack.c.l.b16 %v6296
        %v6371 = vunpack.c.l.b16 %v6297
        %v6372 = vunpack.c.l.b16 %v6298
        %v6373 = vunpack.c.l.b16 %v6299
        %v6374 = vunpack.c.l.b16 %v6300
        %v6375 = vunpack.c.l.b16 %v6301
        %v6376 = vunpack.c.l.b16 %v6302
        %v6377 = vunpack.c.l.b16 %v6303
        %v6378 = vunpack.c.l.b16 %v6304
        %v6379 = vunpack.c.l.b16 %v6305
        %v6380 = vunpack.c.l.b16 %v6306
        %v6381 = vunpack.c.l.b16 %v6307
        %v6382 = vunpack.c.l.b16 %v6308
        %v6383 = vunpack.c.l.b16 %v6309
        %v6384 = vunpack.c.l.b16 %v6310
        %v6385 = vunpack.c.l.b16 %v6311
        %v6386 = vpack.c.b16 %v6350, %v6349
        %v6387 = vpack.c.b16 %v6352, %v6351
        %v6388 = vpack.c.b16 %v6354, %v6353
        %v6389 = vpack.c.b16 %v6356, %v6355
        %v6390 = vpack.c.b16 %v6358, %v6357
        %v6391 = vpack.c.b16 %v6360, %v6359
        %v6392 = vpack.c.b16 %v6362, %v6361
        %v6393 = vpack.c.b16 %v6364, %v6363
        %v6394 = vpack.c.b16 %v6366, %v6365
        %v6395 = vpack.c.b16 %v6368, %v6367
        %v6396 = vpack.c.b16 %v6370, %v6369
        %v6397 = vpack.c.b16 %v6372, %v6371
        %v6398 = vpack.c.b16 %v6374, %v6373
        %v6399 = vpack.c.b16 %v6376, %v6375
        %v6400 = vpack.c.b16 %v6378, %v6377
        %v6401 = vpack.c.b16 %v6380, %v6379
        %v6402 = vpack.c.b16 %v6382, %v6381
        %v6403 = vpack.c.b16 %v6384, %v6383
        %v6404 = vpack.c.b16 %v6385, %v6385
        %v6406 = vshrl.u32 %v6386, 16
        %v6408 = vrot.slane %v6406, 2
        %v6409 = vshll.u32 %v6386, 16
        %v6411 = vrot.slane %v6409, 3
        %v6412 = vor.u32 %v6408, %v6411
        %v6414 = vshrl.u32 %v6387, 16
        %v6416 = vrot.slane %v6414, 2
        %v6417 = vshll.u32 %v6387, 16
        %v6419 = vrot.slane %v6417, 3
        %v6420 = vor.u32 %v6416, %v6419
        %v6421 = vsel %vm2357, %v6412, %v6420
        %v6423 = vshrl.u32 %v6388, 16
        %v6425 = vrot.slane %v6423, 2
        %v6426 = vshll.u32 %v6388, 16
        %v6428 = vrot.slane %v6426, 3
        %v6429 = vor.u32 %v6425, %v6428
        %v6430 = vsel %vm2357, %v6420, %v6429
        %v6432 = vshrl.u32 %v6389, 16
        %v6434 = vrot.slane %v6432, 2
        %v6435 = vshll.u32 %v6389, 16
        %v6437 = vrot.slane %v6435, 3
        %v6438 = vor.u32 %v6434, %v6437
        %v6439 = vsel %vm2357, %v6429, %v6438
        %v6441 = vshrl.u32 %v6390, 16
        %v6443 = vrot.slane %v6441, 2
        %v6444 = vshll.u32 %v6390, 16
        %v6446 = vrot.slane %v6444, 3
        %v6447 = vor.u32 %v6443, %v6446
        %v6448 = vsel %vm2357, %v6438, %v6447
        %v6450 = vshrl.u32 %v6391, 16
        %v6452 = vrot.slane %v6450, 2
        %v6453 = vshll.u32 %v6391, 16
        %v6455 = vrot.slane %v6453, 3
        %v6456 = vor.u32 %v6452, %v6455
        %v6457 = vsel %vm2357, %v6447, %v6456
        %v6459 = vshrl.u32 %v6392, 16
        %v6461 = vrot.slane %v6459, 2
        %v6462 = vshll.u32 %v6392, 16
        %v6464 = vrot.slane %v6462, 3
        %v6465 = vor.u32 %v6461, %v6464
        %v6466 = vsel %vm2357, %v6456, %v6465
        %v6468 = vshrl.u32 %v6393, 16
        %v6470 = vrot.slane %v6468, 2
        %v6471 = vshll.u32 %v6393, 16
        %v6473 = vrot.slane %v6471, 3
        %v6474 = vor.u32 %v6470, %v6473
        %v6475 = vsel %vm2357, %v6465, %v6474
        %v6477 = vshrl.u32 %v6394, 16
        %v6479 = vrot.slane %v6477, 2
        %v6480 = vshll.u32 %v6394, 16
        %v6482 = vrot.slane %v6480, 3
        %v6483 = vor.u32 %v6479, %v6482
        %v6484 = vsel %vm2357, %v6474, %v6483
        %v6486 = vshrl.u32 %v6395, 16
        %v6488 = vrot.slane %v6486, 2
        %v6489 = vshll.u32 %v6395, 16
        %v6491 = vrot.slane %v6489, 3
        %v6492 = vor.u32 %v6488, %v6491
        %v6493 = vsel %vm2357, %v6483, %v6492
        %v6495 = vshrl.u32 %v6396, 16
        %v6497 = vrot.slane %v6495, 2
        %v6498 = vshll.u32 %v6396, 16
        %v6500 = vrot.slane %v6498, 3
        %v6501 = vor.u32 %v6497, %v6500
        %v6502 = vsel %vm2357, %v6492, %v6501
        %v6504 = vshrl.u32 %v6397, 16
        %v6506 = vrot.slane %v6504, 2
        %v6507 = vshll.u32 %v6397, 16
        %v6509 = vrot.slane %v6507, 3
        %v6510 = vor.u32 %v6506, %v6509
        %v6511 = vsel %vm2357, %v6501, %v6510
        %v6513 = vshrl.u32 %v6398, 16
        %v6515 = vrot.slane %v6513, 2
        %v6516 = vshll.u32 %v6398, 16
        %v6518 = vrot.slane %v6516, 3
        %v6519 = vor.u32 %v6515, %v6518
        %v6520 = vsel %vm2357, %v6510, %v6519
        %v6522 = vshrl.u32 %v6399, 16
        %v6524 = vrot.slane %v6522, 2
        %v6525 = vshll.u32 %v6399, 16
        %v6527 = vrot.slane %v6525, 3
        %v6528 = vor.u32 %v6524, %v6527
        %v6529 = vsel %vm2357, %v6519, %v6528
        %v6531 = vshrl.u32 %v6400, 16
        %v6533 = vrot.slane %v6531, 2
        %v6534 = vshll.u32 %v6400, 16
        %v6536 = vrot.slane %v6534, 3
        %v6537 = vor.u32 %v6533, %v6536
        %v6538 = vsel %vm2357, %v6528, %v6537
        %v6540 = vshrl.u32 %v6401, 16
        %v6542 = vrot.slane %v6540, 2
        %v6543 = vshll.u32 %v6401, 16
        %v6545 = vrot.slane %v6543, 3
        %v6546 = vor.u32 %v6542, %v6545
        %v6547 = vsel %vm2357, %v6537, %v6546
        %v6549 = vshrl.u32 %v6402, 16
        %v6551 = vrot.slane %v6549, 2
        %v6552 = vshll.u32 %v6402, 16
        %v6554 = vrot.slane %v6552, 3
        %v6555 = vor.u32 %v6551, %v6554
        %v6556 = vsel %vm2357, %v6546, %v6555
        %v6558 = vshrl.u32 %v6403, 16
        %v6560 = vrot.slane %v6558, 2
        %v6561 = vshll.u32 %v6403, 16
        %v6563 = vrot.slane %v6561, 3
        %v6564 = vor.u32 %v6560, %v6563
        %v6565 = vsel %vm2357, %v6555, %v6564
        %v6567 = vshrl.u32 %v6404, 16
        %v6569 = vrot.slane %v6567, 2
        %v6570 = vshll.u32 %v6404, 16
        %v6572 = vrot.slane %v6570, 3
        %v6573 = vor.u32 %v6569, %v6572
        %v6574 = vsel %vm2357, %v6564, %v6573
        %6575 = vrot.lane.b32.xlu0 %v6421, 32
        %v6576 = vpop.permute.xlu0 %6575
        %6577 = vrot.lane.b32.xlu0 %v6430, 32
        %v6578 = vpop.permute.xlu0 %6577
        %6579 = vrot.lane.b32.xlu0 %v6439, 32
        %v6580 = vpop.permute.xlu0 %6579
        %6581 = vrot.lane.b32.xlu0 %v6448, 32
        %v6582 = vpop.permute.xlu0 %6581
        %6583 = vrot.lane.b32.xlu0 %v6457, 32
        %v6584 = vpop.permute.xlu0 %6583
        %6585 = vrot.lane.b32.xlu0 %v6466, 32
        %v6586 = vpop.permute.xlu0 %6585
        %6587 = vrot.lane.b32.xlu0 %v6475, 32
        %v6588 = vpop.permute.xlu0 %6587
        %6589 = vrot.lane.b32.xlu0 %v6484, 32
        %v6590 = vpop.permute.xlu0 %6589
        %6591 = vrot.lane.b32.xlu0 %v6493, 32
        %v6592 = vpop.permute.xlu0 %6591
        %6593 = vrot.lane.b32.xlu0 %v6502, 32
        %v6594 = vpop.permute.xlu0 %6593
        %6595 = vrot.lane.b32.xlu0 %v6511, 32
        %v6596 = vpop.permute.xlu0 %6595
        %6597 = vrot.lane.b32.xlu0 %v6520, 32
        %v6598 = vpop.permute.xlu0 %6597
        %6599 = vrot.lane.b32.xlu0 %v6529, 32
        %v6600 = vpop.permute.xlu0 %6599
        %6601 = vrot.lane.b32.xlu0 %v6538, 32
        %v6602 = vpop.permute.xlu0 %6601
        %6603 = vrot.lane.b32.xlu0 %v6547, 32
        %v6604 = vpop.permute.xlu0 %6603
        %6605 = vrot.lane.b32.xlu0 %v6556, 32
        %v6606 = vpop.permute.xlu0 %6605
        %6607 = vrot.lane.b32.xlu0 %v6565, 32
        %v6608 = vpop.permute.xlu0 %6607
        %6609 = vrot.lane.b32.xlu0 %v6574, 32
        %v6610 = vpop.permute.xlu0 %6609
        %6629 = vst.msk [vmem:[#allocation4 + $0x8] sm:$0xff] %vm1257, %v6576
        %6630 = vst.msk [vmem:[#allocation4 + $0x20] sm:$0xff] %vm1257, %v6578
        %6631 = vst.msk [vmem:[#allocation4 + $0x38] sm:$0xff] %vm1257, %v6580
        %6632 = vst.msk [vmem:[#allocation4 + $0x50] sm:$0xff] %vm1257, %v6582
        %6633 = vst.msk [vmem:[#allocation4 + $0x68] sm:$0xff] %vm1257, %v6584
        %6634 = vst.msk [vmem:[#allocation4 + $0x80] sm:$0xff] %vm1257, %v6586
        %6635 = vst.msk [vmem:[#allocation4 + $0x98] sm:$0xff] %vm1257, %v6588
        %6636 = vst.msk [vmem:[#allocation4 + $0xb0] sm:$0xff] %vm1257, %v6590
        %6637 = vst.msk [vmem:[#allocation4 + $0xc8] sm:$0xff] %vm1257, %v6592
        %6638 = vst.msk [vmem:[#allocation4 + $0xe0] sm:$0xff] %vm1257, %v6594
        %6639 = vst.msk [vmem:[#allocation4 + $0xf8] sm:$0xff] %vm1257, %v6596
        %6640 = vst.msk [vmem:[#allocation4 + $0x110] sm:$0xff] %vm1257, %v6598
        %6641 = vst.msk [vmem:[#allocation4 + $0x128] sm:$0xff] %vm1257, %v6600
        %6642 = vst.msk [vmem:[#allocation4 + $0x140] sm:$0xff] %vm1257, %v6602
        %6643 = vst.msk [vmem:[#allocation4 + $0x158] sm:$0xff] %vm1257, %v6604
        %6644 = vst.msk [vmem:[#allocation4 + $0x170] sm:$0xff] %vm1257, %v6606
        %6645 = vst.msk [vmem:[#allocation4 + $0x188] sm:$0xff] %vm1257, %v6608
        %6646 = vst.msk [vmem:[#allocation4 + $0x1a0] sm:$0xff] %vm1257, %v6610
        %v6647 = vld [vmem:[#allocation3 + $0x10] sm:$0xc]
        %v6648 = vld [vmem:[#allocation3 + $0x14] sm:$0xf]
        %v6649 = vld [vmem:[#allocation3 + $0x18] sm:$0xf]
        %v6650 = vld [vmem:[#allocation3 + $0x1c] sm:$0xf]
        %v6651 = vld [vmem:[#allocation3 + $0x20] sm:$0xf]
        %v6652 = vld [vmem:[#allocation3 + $0x24] sm:$0xf]
        %v6653 = vld [vmem:[#allocation3 + $0x28] sm:$0xf]
        %v6654 = vld [vmem:[#allocation3 + $0x2c] sm:$0xf]
        %v6655 = vld [vmem:[#allocation3 + $0x30] sm:$0xf]
        %v6656 = vld [vmem:[#allocation3 + $0x34] sm:$0xf]
        %v6657 = vld [vmem:[#allocation3 + $0x38] sm:$0xf]
        %v6658 = vld [vmem:[#allocation3 + $0x3c] sm:$0xf]
        %v6659 = vld [vmem:[#allocation3 + $0x40] sm:$0xf]
        %v6660 = vld [vmem:[#allocation3 + $0x44] sm:$0xf]
        %v6661 = vld [vmem:[#allocation3 + $0x48] sm:$0xf]
        %v6662 = vld [vmem:[#allocation3 + $0x4c] sm:$0xf]
        %v6663 = vld [vmem:[#allocation3 + $0x50] sm:$0xf]
        %v6664 = vld [vmem:[#allocation3 + $0x54] sm:$0xf]
        %v6665 = vld [vmem:[#allocation3 + $0x58] sm:$0xf]
        %v6666 = vld [vmem:[#allocation3 + $0x5c] sm:$0xf]
        %v6667 = vld [vmem:[#allocation3 + $0x60] sm:$0xf]
        %v6668 = vld [vmem:[#allocation3 + $0x64] sm:$0xf]
        %v6669 = vld [vmem:[#allocation3 + $0x68] sm:$0xf]
        %v6670 = vld [vmem:[#allocation3 + $0x6c] sm:$0xf]
        %v6671 = vld [vmem:[#allocation3 + $0x70] sm:$0xf]
        %v6672 = vld [vmem:[#allocation3 + $0x74] sm:$0xf]
        %v6673 = vld [vmem:[#allocation3 + $0x78] sm:$0xf]
        %v6674 = vld [vmem:[#allocation3 + $0x7c] sm:$0xf]
        %v6675 = vld [vmem:[#allocation3 + $0x80] sm:$0xf]
        %v6676 = vld [vmem:[#allocation3 + $0x84] sm:$0xf]
        %v6677 = vld [vmem:[#allocation3 + $0x88] sm:$0xf]
        %v6678 = vld [vmem:[#allocation3 + $0x8c] sm:$0xf]
        %v6679 = vld [vmem:[#allocation3 + $0x90] sm:$0xf]
        %v6680 = vld [vmem:[#allocation3 + $0x94] sm:$0xf]
        %v6681 = vld [vmem:[#allocation3 + $0x98] sm:$0xf]
        %v6682 = vld [vmem:[#allocation3 + $0x9c] sm:$0xf]
        %v6683 = vld [vmem:[#allocation3 + $0xa0] sm:$0x7]
        %v6721 = vunpack.c.l.b16 %v6647
        %v6722 = vunpack.c.l.b16 %v6648
        %v6723 = vunpack.c.l.b16 %v6649
        %v6724 = vunpack.c.l.b16 %v6650
        %v6725 = vunpack.c.l.b16 %v6651
        %v6726 = vunpack.c.l.b16 %v6652
        %v6727 = vunpack.c.l.b16 %v6653
        %v6728 = vunpack.c.l.b16 %v6654
        %v6729 = vunpack.c.l.b16 %v6655
        %v6730 = vunpack.c.l.b16 %v6656
        %v6731 = vunpack.c.l.b16 %v6657
        %v6732 = vunpack.c.l.b16 %v6658
        %v6733 = vunpack.c.l.b16 %v6659
        %v6734 = vunpack.c.l.b16 %v6660
        %v6735 = vunpack.c.l.b16 %v6661
        %v6736 = vunpack.c.l.b16 %v6662
        %v6737 = vunpack.c.l.b16 %v6663
        %v6738 = vunpack.c.l.b16 %v6664
        %v6739 = vunpack.c.l.b16 %v6665
        %v6740 = vunpack.c.l.b16 %v6666
        %v6741 = vunpack.c.l.b16 %v6667
        %v6742 = vunpack.c.l.b16 %v6668
        %v6743 = vunpack.c.l.b16 %v6669
        %v6744 = vunpack.c.l.b16 %v6670
        %v6745 = vunpack.c.l.b16 %v6671
        %v6746 = vunpack.c.l.b16 %v6672
        %v6747 = vunpack.c.l.b16 %v6673
        %v6748 = vunpack.c.l.b16 %v6674
        %v6749 = vunpack.c.l.b16 %v6675
        %v6750 = vunpack.c.l.b16 %v6676
        %v6751 = vunpack.c.l.b16 %v6677
        %v6752 = vunpack.c.l.b16 %v6678
        %v6753 = vunpack.c.l.b16 %v6679
        %v6754 = vunpack.c.l.b16 %v6680
        %v6755 = vunpack.c.l.b16 %v6681
        %v6756 = vunpack.c.l.b16 %v6682
        %v6757 = vunpack.c.l.b16 %v6683
        %v6758 = vpack.c.b16 %v6722, %v6721
        %v6759 = vpack.c.b16 %v6724, %v6723
        %v6760 = vpack.c.b16 %v6726, %v6725
        %v6761 = vpack.c.b16 %v6728, %v6727
        %v6762 = vpack.c.b16 %v6730, %v6729
        %v6763 = vpack.c.b16 %v6732, %v6731
        %v6764 = vpack.c.b16 %v6734, %v6733
        %v6765 = vpack.c.b16 %v6736, %v6735
        %v6766 = vpack.c.b16 %v6738, %v6737
        %v6767 = vpack.c.b16 %v6740, %v6739
        %v6768 = vpack.c.b16 %v6742, %v6741
        %v6769 = vpack.c.b16 %v6744, %v6743
        %v6770 = vpack.c.b16 %v6746, %v6745
        %v6771 = vpack.c.b16 %v6748, %v6747
        %v6772 = vpack.c.b16 %v6750, %v6749
        %v6773 = vpack.c.b16 %v6752, %v6751
        %v6774 = vpack.c.b16 %v6754, %v6753
        %v6775 = vpack.c.b16 %v6756, %v6755
        %v6776 = vpack.c.b16 %v6757, %v6757
        %v6778 = vshrl.u32 %v6758, 16
        %v6780 = vrot.slane %v6778, 2
        %v6781 = vshll.u32 %v6758, 16
        %v6783 = vrot.slane %v6781, 3
        %v6784 = vor.u32 %v6780, %v6783
        %v6786 = vshrl.u32 %v6759, 16
        %v6788 = vrot.slane %v6786, 2
        %v6789 = vshll.u32 %v6759, 16
        %v6791 = vrot.slane %v6789, 3
        %v6792 = vor.u32 %v6788, %v6791
        %v6793 = vsel %vm2357, %v6784, %v6792
        %v6795 = vshrl.u32 %v6760, 16
        %v6797 = vrot.slane %v6795, 2
        %v6798 = vshll.u32 %v6760, 16
        %v6800 = vrot.slane %v6798, 3
        %v6801 = vor.u32 %v6797, %v6800
        %v6802 = vsel %vm2357, %v6792, %v6801
        %v6804 = vshrl.u32 %v6761, 16
        %v6806 = vrot.slane %v6804, 2
        %v6807 = vshll.u32 %v6761, 16
        %v6809 = vrot.slane %v6807, 3
        %v6810 = vor.u32 %v6806, %v6809
        %v6811 = vsel %vm2357, %v6801, %v6810
        %v6813 = vshrl.u32 %v6762, 16
        %v6815 = vrot.slane %v6813, 2
        %v6816 = vshll.u32 %v6762, 16
        %v6818 = vrot.slane %v6816, 3
        %v6819 = vor.u32 %v6815, %v6818
        %v6820 = vsel %vm2357, %v6810, %v6819
        %v6822 = vshrl.u32 %v6763, 16
        %v6824 = vrot.slane %v6822, 2
        %v6825 = vshll.u32 %v6763, 16
        %v6827 = vrot.slane %v6825, 3
        %v6828 = vor.u32 %v6824, %v6827
        %v6829 = vsel %vm2357, %v6819, %v6828
        %v6831 = vshrl.u32 %v6764, 16
        %v6833 = vrot.slane %v6831, 2
        %v6834 = vshll.u32 %v6764, 16
        %v6836 = vrot.slane %v6834, 3
        %v6837 = vor.u32 %v6833, %v6836
        %v6838 = vsel %vm2357, %v6828, %v6837
        %v6840 = vshrl.u32 %v6765, 16
        %v6842 = vrot.slane %v6840, 2
        %v6843 = vshll.u32 %v6765, 16
        %v6845 = vrot.slane %v6843, 3
        %v6846 = vor.u32 %v6842, %v6845
        %v6847 = vsel %vm2357, %v6837, %v6846
        %v6849 = vshrl.u32 %v6766, 16
        %v6851 = vrot.slane %v6849, 2
        %v6852 = vshll.u32 %v6766, 16
        %v6854 = vrot.slane %v6852, 3
        %v6855 = vor.u32 %v6851, %v6854
        %v6856 = vsel %vm2357, %v6846, %v6855
        %v6858 = vshrl.u32 %v6767, 16
        %v6860 = vrot.slane %v6858, 2
        %v6861 = vshll.u32 %v6767, 16
        %v6863 = vrot.slane %v6861, 3
        %v6864 = vor.u32 %v6860, %v6863
        %v6865 = vsel %vm2357, %v6855, %v6864
        %v6867 = vshrl.u32 %v6768, 16
        %v6869 = vrot.slane %v6867, 2
        %v6870 = vshll.u32 %v6768, 16
        %v6872 = vrot.slane %v6870, 3
        %v6873 = vor.u32 %v6869, %v6872
        %v6874 = vsel %vm2357, %v6864, %v6873
        %v6876 = vshrl.u32 %v6769, 16
        %v6878 = vrot.slane %v6876, 2
        %v6879 = vshll.u32 %v6769, 16
        %v6881 = vrot.slane %v6879, 3
        %v6882 = vor.u32 %v6878, %v6881
        %v6883 = vsel %vm2357, %v6873, %v6882
        %v6885 = vshrl.u32 %v6770, 16
        %v6887 = vrot.slane %v6885, 2
        %v6888 = vshll.u32 %v6770, 16
        %v6890 = vrot.slane %v6888, 3
        %v6891 = vor.u32 %v6887, %v6890
        %v6892 = vsel %vm2357, %v6882, %v6891
        %v6894 = vshrl.u32 %v6771, 16
        %v6896 = vrot.slane %v6894, 2
        %v6897 = vshll.u32 %v6771, 16
        %v6899 = vrot.slane %v6897, 3
        %v6900 = vor.u32 %v6896, %v6899
        %v6901 = vsel %vm2357, %v6891, %v6900
        %v6903 = vshrl.u32 %v6772, 16
        %v6905 = vrot.slane %v6903, 2
        %v6906 = vshll.u32 %v6772, 16
        %v6908 = vrot.slane %v6906, 3
        %v6909 = vor.u32 %v6905, %v6908
        %v6910 = vsel %vm2357, %v6900, %v6909
        %v6912 = vshrl.u32 %v6773, 16
        %v6914 = vrot.slane %v6912, 2
        %v6915 = vshll.u32 %v6773, 16
        %v6917 = vrot.slane %v6915, 3
        %v6918 = vor.u32 %v6914, %v6917
        %v6919 = vsel %vm2357, %v6909, %v6918
        %v6921 = vshrl.u32 %v6774, 16
        %v6923 = vrot.slane %v6921, 2
        %v6924 = vshll.u32 %v6774, 16
        %v6926 = vrot.slane %v6924, 3
        %v6927 = vor.u32 %v6923, %v6926
        %v6928 = vsel %vm2357, %v6918, %v6927
        %v6930 = vshrl.u32 %v6775, 16
        %v6932 = vrot.slane %v6930, 2
        %v6933 = vshll.u32 %v6775, 16
        %v6935 = vrot.slane %v6933, 3
        %v6936 = vor.u32 %v6932, %v6935
        %v6937 = vsel %vm2357, %v6927, %v6936
        %v6939 = vshrl.u32 %v6776, 16
        %v6941 = vrot.slane %v6939, 2
        %v6942 = vshll.u32 %v6776, 16
        %v6944 = vrot.slane %v6942, 3
        %v6945 = vor.u32 %v6941, %v6944
        %v6946 = vsel %vm2357, %v6936, %v6945
        %6947 = vrot.lane.b32.xlu0 %v6793, 64
        %v6948 = vpop.permute.xlu0 %6947
        %6949 = vrot.lane.b32.xlu0 %v6802, 64
        %v6950 = vpop.permute.xlu0 %6949
        %6951 = vrot.lane.b32.xlu0 %v6811, 64
        %v6952 = vpop.permute.xlu0 %6951
        %6953 = vrot.lane.b32.xlu0 %v6820, 64
        %v6954 = vpop.permute.xlu0 %6953
        %6955 = vrot.lane.b32.xlu0 %v6829, 64
        %v6956 = vpop.permute.xlu0 %6955
        %6957 = vrot.lane.b32.xlu0 %v6838, 64
        %v6958 = vpop.permute.xlu0 %6957
        %6959 = vrot.lane.b32.xlu0 %v6847, 64
        %v6960 = vpop.permute.xlu0 %6959
        %6961 = vrot.lane.b32.xlu0 %v6856, 64
        %v6962 = vpop.permute.xlu0 %6961
        %6963 = vrot.lane.b32.xlu0 %v6865, 64
        %v6964 = vpop.permute.xlu0 %6963
        %6965 = vrot.lane.b32.xlu0 %v6874, 64
        %v6966 = vpop.permute.xlu0 %6965
        %6967 = vrot.lane.b32.xlu0 %v6883, 64
        %v6968 = vpop.permute.xlu0 %6967
        %6969 = vrot.lane.b32.xlu0 %v6892, 64
        %v6970 = vpop.permute.xlu0 %6969
        %6971 = vrot.lane.b32.xlu0 %v6901, 64
        %v6972 = vpop.permute.xlu0 %6971
        %6973 = vrot.lane.b32.xlu0 %v6910, 64
        %v6974 = vpop.permute.xlu0 %6973
        %6975 = vrot.lane.b32.xlu0 %v6919, 64
        %v6976 = vpop.permute.xlu0 %6975
        %6977 = vrot.lane.b32.xlu0 %v6928, 64
        %v6978 = vpop.permute.xlu0 %6977
        %6979 = vrot.lane.b32.xlu0 %v6937, 64
        %v6980 = vpop.permute.xlu0 %6979
        %6981 = vrot.lane.b32.xlu0 %v6946, 64
        %v6982 = vpop.permute.xlu0 %6981
        %7001 = vst.msk [vmem:[#allocation4 + $0x8] sm:$0xff] %vm1631, %v6948
        %7002 = vst.msk [vmem:[#allocation4 + $0x20] sm:$0xff] %vm1631, %v6950
        %7003 = vst.msk [vmem:[#allocation4 + $0x38] sm:$0xff] %vm1631, %v6952
        %7004 = vst.msk [vmem:[#allocation4 + $0x50] sm:$0xff] %vm1631, %v6954
        %7005 = vst.msk [vmem:[#allocation4 + $0x68] sm:$0xff] %vm1631, %v6956
        %7006 = vst.msk [vmem:[#allocation4 + $0x80] sm:$0xff] %vm1631, %v6958
        %7007 = vst.msk [vmem:[#allocation4 + $0x98] sm:$0xff] %vm1631, %v6960
        %7008 = vst.msk [vmem:[#allocation4 + $0xb0] sm:$0xff] %vm1631, %v6962
        %7009 = vst.msk [vmem:[#allocation4 + $0xc8] sm:$0xff] %vm1631, %v6964
        %7010 = vst.msk [vmem:[#allocation4 + $0xe0] sm:$0xff] %vm1631, %v6966
        %7011 = vst.msk [vmem:[#allocation4 + $0xf8] sm:$0xff] %vm1631, %v6968
        %7012 = vst.msk [vmem:[#allocation4 + $0x110] sm:$0xff] %vm1631, %v6970
        %7013 = vst.msk [vmem:[#allocation4 + $0x128] sm:$0xff] %vm1631, %v6972
        %7014 = vst.msk [vmem:[#allocation4 + $0x140] sm:$0xff] %vm1631, %v6974
        %7015 = vst.msk [vmem:[#allocation4 + $0x158] sm:$0xff] %vm1631, %v6976
        %7016 = vst.msk [vmem:[#allocation4 + $0x170] sm:$0xff] %vm1631, %v6978
        %7017 = vst.msk [vmem:[#allocation4 + $0x188] sm:$0xff] %vm1631, %v6980
        %7018 = vst.msk [vmem:[#allocation4 + $0x1a0] sm:$0xff] %vm1631, %v6982
        %v7019 = vld [vmem:[#allocation3 + $0x10] sm:$0x8]
        %v7020 = vld [vmem:[#allocation3 + $0x14] sm:$0xf]
        %v7021 = vld [vmem:[#allocation3 + $0x18] sm:$0xf]
        %v7022 = vld [vmem:[#allocation3 + $0x1c] sm:$0xf]
        %v7023 = vld [vmem:[#allocation3 + $0x20] sm:$0xf]
        %v7024 = vld [vmem:[#allocation3 + $0x24] sm:$0xf]
        %v7025 = vld [vmem:[#allocation3 + $0x28] sm:$0xf]
        %v7026 = vld [vmem:[#allocation3 + $0x2c] sm:$0xf]
        %v7027 = vld [vmem:[#allocation3 + $0x30] sm:$0xf]
        %v7028 = vld [vmem:[#allocation3 + $0x34] sm:$0xf]
        %v7029 = vld [vmem:[#allocation3 + $0x38] sm:$0xf]
        %v7030 = vld [vmem:[#allocation3 + $0x3c] sm:$0xf]
        %v7031 = vld [vmem:[#allocation3 + $0x40] sm:$0xf]
        %v7032 = vld [vmem:[#allocation3 + $0x44] sm:$0xf]
        %v7033 = vld [vmem:[#allocation3 + $0x48] sm:$0xf]
        %v7034 = vld [vmem:[#allocation3 + $0x4c] sm:$0xf]
        %v7035 = vld [vmem:[#allocation3 + $0x50] sm:$0xf]
        %v7036 = vld [vmem:[#allocation3 + $0x54] sm:$0xf]
        %v7037 = vld [vmem:[#allocation3 + $0x58] sm:$0xf]
        %v7038 = vld [vmem:[#allocation3 + $0x5c] sm:$0xf]
        %v7039 = vld [vmem:[#allocation3 + $0x60] sm:$0xf]
        %v7040 = vld [vmem:[#allocation3 + $0x64] sm:$0xf]
        %v7041 = vld [vmem:[#allocation3 + $0x68] sm:$0xf]
        %v7042 = vld [vmem:[#allocation3 + $0x6c] sm:$0xf]
        %v7043 = vld [vmem:[#allocation3 + $0x70] sm:$0xf]
        %v7044 = vld [vmem:[#allocation3 + $0x74] sm:$0xf]
        %v7045 = vld [vmem:[#allocation3 + $0x78] sm:$0xf]
        %v7046 = vld [vmem:[#allocation3 + $0x7c] sm:$0xf]
        %v7047 = vld [vmem:[#allocation3 + $0x80] sm:$0xf]
        %v7048 = vld [vmem:[#allocation3 + $0x84] sm:$0xf]
        %v7049 = vld [vmem:[#allocation3 + $0x88] sm:$0xf]
        %v7050 = vld [vmem:[#allocation3 + $0x8c] sm:$0xf]
        %v7051 = vld [vmem:[#allocation3 + $0x90] sm:$0xf]
        %v7052 = vld [vmem:[#allocation3 + $0x94] sm:$0xf]
        %v7053 = vld [vmem:[#allocation3 + $0x98] sm:$0xf]
        %v7054 = vld [vmem:[#allocation3 + $0x9c] sm:$0xf]
        %v7055 = vld [vmem:[#allocation3 + $0xa0] sm:$0x7]
        %v7093 = vunpack.c.l.b16 %v7019
        %v7094 = vunpack.c.l.b16 %v7020
        %v7095 = vunpack.c.l.b16 %v7021
        %v7096 = vunpack.c.l.b16 %v7022
        %v7097 = vunpack.c.l.b16 %v7023
        %v7098 = vunpack.c.l.b16 %v7024
        %v7099 = vunpack.c.l.b16 %v7025
        %v7100 = vunpack.c.l.b16 %v7026
        %v7101 = vunpack.c.l.b16 %v7027
        %v7102 = vunpack.c.l.b16 %v7028
        %v7103 = vunpack.c.l.b16 %v7029
        %v7104 = vunpack.c.l.b16 %v7030
        %v7105 = vunpack.c.l.b16 %v7031
        %v7106 = vunpack.c.l.b16 %v7032
        %v7107 = vunpack.c.l.b16 %v7033
        %v7108 = vunpack.c.l.b16 %v7034
        %v7109 = vunpack.c.l.b16 %v7035
        %v7110 = vunpack.c.l.b16 %v7036
        %v7111 = vunpack.c.l.b16 %v7037
        %v7112 = vunpack.c.l.b16 %v7038
        %v7113 = vunpack.c.l.b16 %v7039
        %v7114 = vunpack.c.l.b16 %v7040
        %v7115 = vunpack.c.l.b16 %v7041
        %v7116 = vunpack.c.l.b16 %v7042
        %v7117 = vunpack.c.l.b16 %v7043
        %v7118 = vunpack.c.l.b16 %v7044
        %v7119 = vunpack.c.l.b16 %v7045
        %v7120 = vunpack.c.l.b16 %v7046
        %v7121 = vunpack.c.l.b16 %v7047
        %v7122 = vunpack.c.l.b16 %v7048
        %v7123 = vunpack.c.l.b16 %v7049
        %v7124 = vunpack.c.l.b16 %v7050
        %v7125 = vunpack.c.l.b16 %v7051
        %v7126 = vunpack.c.l.b16 %v7052
        %v7127 = vunpack.c.l.b16 %v7053
        %v7128 = vunpack.c.l.b16 %v7054
        %v7129 = vunpack.c.l.b16 %v7055
        %v7130 = vpack.c.b16 %v7094, %v7093
        %v7131 = vpack.c.b16 %v7096, %v7095
        %v7132 = vpack.c.b16 %v7098, %v7097
        %v7133 = vpack.c.b16 %v7100, %v7099
        %v7134 = vpack.c.b16 %v7102, %v7101
        %v7135 = vpack.c.b16 %v7104, %v7103
        %v7136 = vpack.c.b16 %v7106, %v7105
        %v7137 = vpack.c.b16 %v7108, %v7107
        %v7138 = vpack.c.b16 %v7110, %v7109
        %v7139 = vpack.c.b16 %v7112, %v7111
        %v7140 = vpack.c.b16 %v7114, %v7113
        %v7141 = vpack.c.b16 %v7116, %v7115
        %v7142 = vpack.c.b16 %v7118, %v7117
        %v7143 = vpack.c.b16 %v7120, %v7119
        %v7144 = vpack.c.b16 %v7122, %v7121
        %v7145 = vpack.c.b16 %v7124, %v7123
        %v7146 = vpack.c.b16 %v7126, %v7125
        %v7147 = vpack.c.b16 %v7128, %v7127
        %v7148 = vpack.c.b16 %v7129, %v7129
        %v7149 = vrot.slane %v7130, 3
        %v7150 = vrot.slane %v7131, 3
        %v7151 = vsel %vm3102, %v7149, %v7150
        %v7152 = vrot.slane %v7132, 3
        %v7153 = vsel %vm3102, %v7150, %v7152
        %v7154 = vrot.slane %v7133, 3
        %v7155 = vsel %vm3102, %v7152, %v7154
        %v7156 = vrot.slane %v7134, 3
        %v7157 = vsel %vm3102, %v7154, %v7156
        %v7158 = vrot.slane %v7135, 3
        %v7159 = vsel %vm3102, %v7156, %v7158
        %v7160 = vrot.slane %v7136, 3
        %v7161 = vsel %vm3102, %v7158, %v7160
        %v7162 = vrot.slane %v7137, 3
        %v7163 = vsel %vm3102, %v7160, %v7162
        %v7164 = vrot.slane %v7138, 3
        %v7165 = vsel %vm3102, %v7162, %v7164
        %v7166 = vrot.slane %v7139, 3
        %v7167 = vsel %vm3102, %v7164, %v7166
        %v7168 = vrot.slane %v7140, 3
        %v7169 = vsel %vm3102, %v7166, %v7168
        %v7170 = vrot.slane %v7141, 3
        %v7171 = vsel %vm3102, %v7168, %v7170
        %v7172 = vrot.slane %v7142, 3
        %v7173 = vsel %vm3102, %v7170, %v7172
        %v7174 = vrot.slane %v7143, 3
        %v7175 = vsel %vm3102, %v7172, %v7174
        %v7176 = vrot.slane %v7144, 3
        %v7177 = vsel %vm3102, %v7174, %v7176
        %v7178 = vrot.slane %v7145, 3
        %v7179 = vsel %vm3102, %v7176, %v7178
        %v7180 = vrot.slane %v7146, 3
        %v7181 = vsel %vm3102, %v7178, %v7180
        %v7182 = vrot.slane %v7147, 3
        %v7183 = vsel %vm3102, %v7180, %v7182
        %v7184 = vrot.slane %v7148, 3
        %v7185 = vsel %vm3102, %v7182, %v7184
        %7186 = vrot.lane.b32.xlu0 %v7151, 96
        %v7187 = vpop.permute.xlu0 %7186
        %7188 = vrot.lane.b32.xlu0 %v7153, 96
        %v7189 = vpop.permute.xlu0 %7188
        %7190 = vrot.lane.b32.xlu0 %v7155, 96
        %v7191 = vpop.permute.xlu0 %7190
        %7192 = vrot.lane.b32.xlu0 %v7157, 96
        %v7193 = vpop.permute.xlu0 %7192
        %7194 = vrot.lane.b32.xlu0 %v7159, 96
        %v7195 = vpop.permute.xlu0 %7194
        %7196 = vrot.lane.b32.xlu0 %v7161, 96
        %v7197 = vpop.permute.xlu0 %7196
        %7198 = vrot.lane.b32.xlu0 %v7163, 96
        %v7199 = vpop.permute.xlu0 %7198
        %7200 = vrot.lane.b32.xlu0 %v7165, 96
        %v7201 = vpop.permute.xlu0 %7200
        %7202 = vrot.lane.b32.xlu0 %v7167, 96
        %v7203 = vpop.permute.xlu0 %7202
        %7204 = vrot.lane.b32.xlu0 %v7169, 96
        %v7205 = vpop.permute.xlu0 %7204
        %7206 = vrot.lane.b32.xlu0 %v7171, 96
        %v7207 = vpop.permute.xlu0 %7206
        %7208 = vrot.lane.b32.xlu0 %v7173, 96
        %v7209 = vpop.permute.xlu0 %7208
        %7210 = vrot.lane.b32.xlu0 %v7175, 96
        %v7211 = vpop.permute.xlu0 %7210
        %7212 = vrot.lane.b32.xlu0 %v7177, 96
        %v7213 = vpop.permute.xlu0 %7212
        %7214 = vrot.lane.b32.xlu0 %v7179, 96
        %v7215 = vpop.permute.xlu0 %7214
        %7216 = vrot.lane.b32.xlu0 %v7181, 96
        %v7217 = vpop.permute.xlu0 %7216
        %7218 = vrot.lane.b32.xlu0 %v7183, 96
        %v7219 = vpop.permute.xlu0 %7218
        %7220 = vrot.lane.b32.xlu0 %v7185, 96
        %v7221 = vpop.permute.xlu0 %7220
        %7240 = vst.msk [vmem:[#allocation4 + $0x8] sm:$0xff] %vm2004, %v7187
        %7241 = vst.msk [vmem:[#allocation4 + $0x20] sm:$0xff] %vm2004, %v7189
        %7242 = vst.msk [vmem:[#allocation4 + $0x38] sm:$0xff] %vm2004, %v7191
        %7243 = vst.msk [vmem:[#allocation4 + $0x50] sm:$0xff] %vm2004, %v7193
        %7244 = vst.msk [vmem:[#allocation4 + $0x68] sm:$0xff] %vm2004, %v7195
        %7245 = vst.msk [vmem:[#allocation4 + $0x80] sm:$0xff] %vm2004, %v7197
        %7246 = vst.msk [vmem:[#allocation4 + $0x98] sm:$0xff] %vm2004, %v7199
        %7247 = vst.msk [vmem:[#allocation4 + $0xb0] sm:$0xff] %vm2004, %v7201
        %7248 = vst.msk [vmem:[#allocation4 + $0xc8] sm:$0xff] %vm2004, %v7203
        %7249 = vst.msk [vmem:[#allocation4 + $0xe0] sm:$0xff] %vm2004, %v7205
        %7250 = vst.msk [vmem:[#allocation4 + $0xf8] sm:$0xff] %vm2004, %v7207
        %7251 = vst.msk [vmem:[#allocation4 + $0x110] sm:$0xff] %vm2004, %v7209
        %7252 = vst.msk [vmem:[#allocation4 + $0x128] sm:$0xff] %vm2004, %v7211
        %7253 = vst.msk [vmem:[#allocation4 + $0x140] sm:$0xff] %vm2004, %v7213
        %7254 = vst.msk [vmem:[#allocation4 + $0x158] sm:$0xff] %vm2004, %v7215
        %7255 = vst.msk [vmem:[#allocation4 + $0x170] sm:$0xff] %vm2004, %v7217
        %7256 = vst.msk [vmem:[#allocation4 + $0x188] sm:$0xff] %vm2004, %v7219
        %7257 = vst.msk [vmem:[#allocation4 + $0x1a0] sm:$0xff] %vm2004, %v7221
        %v7258 = vld [vmem:[#allocation3 + $0x10] sm:$0x8]
        %v7259 = vld [vmem:[#allocation3 + $0x14] sm:$0xf]
        %v7260 = vld [vmem:[#allocation3 + $0x18] sm:$0xf]
        %v7261 = vld [vmem:[#allocation3 + $0x1c] sm:$0xf]
        %v7262 = vld [vmem:[#allocation3 + $0x20] sm:$0xf]
        %v7263 = vld [vmem:[#allocation3 + $0x24] sm:$0xf]
        %v7264 = vld [vmem:[#allocation3 + $0x28] sm:$0xf]
        %v7265 = vld [vmem:[#allocation3 + $0x2c] sm:$0xf]
        %v7266 = vld [vmem:[#allocation3 + $0x30] sm:$0xf]
        %v7267 = vld [vmem:[#allocation3 + $0x34] sm:$0xf]
        %v7268 = vld [vmem:[#allocation3 + $0x38] sm:$0xf]
        %v7269 = vld [vmem:[#allocation3 + $0x3c] sm:$0xf]
        %v7270 = vld [vmem:[#allocation3 + $0x40] sm:$0xf]
        %v7271 = vld [vmem:[#allocation3 + $0x44] sm:$0xf]
        %v7272 = vld [vmem:[#allocation3 + $0x48] sm:$0xf]
        %v7273 = vld [vmem:[#allocation3 + $0x4c] sm:$0xf]
        %v7274 = vld [vmem:[#allocation3 + $0x50] sm:$0xf]
        %v7275 = vld [vmem:[#allocation3 + $0x54] sm:$0xf]
        %v7276 = vld [vmem:[#allocation3 + $0x58] sm:$0xf]
        %v7277 = vld [vmem:[#allocation3 + $0x5c] sm:$0xf]
        %v7278 = vld [vmem:[#allocation3 + $0x60] sm:$0xf]
        %v7279 = vld [vmem:[#allocation3 + $0x64] sm:$0xf]
        %v7280 = vld [vmem:[#allocation3 + $0x68] sm:$0xf]
        %v7281 = vld [vmem:[#allocation3 + $0x6c] sm:$0xf]
        %v7282 = vld [vmem:[#allocation3 + $0x70] sm:$0xf]
        %v7283 = vld [vmem:[#allocation3 + $0x74] sm:$0xf]
        %v7284 = vld [vmem:[#allocation3 + $0x78] sm:$0xf]
        %v7285 = vld [vmem:[#allocation3 + $0x7c] sm:$0xf]
        %v7286 = vld [vmem:[#allocation3 + $0x80] sm:$0xf]
        %v7287 = vld [vmem:[#allocation3 + $0x84] sm:$0xf]
        %v7288 = vld [vmem:[#allocation3 + $0x88] sm:$0xf]
        %v7289 = vld [vmem:[#allocation3 + $0x8c] sm:$0xf]
        %v7290 = vld [vmem:[#allocation3 + $0x90] sm:$0xf]
        %v7291 = vld [vmem:[#allocation3 + $0x94] sm:$0xf]
        %v7292 = vld [vmem:[#allocation3 + $0x98] sm:$0xf]
        %v7293 = vld [vmem:[#allocation3 + $0x9c] sm:$0xf]
        %v7294 = vld [vmem:[#allocation3 + $0xa0] sm:$0xf]
        %v7332 = vunpack.c.l.b16 %v7258
        %v7333 = vunpack.c.l.b16 %v7259
        %v7334 = vunpack.c.l.b16 %v7260
        %v7335 = vunpack.c.l.b16 %v7261
        %v7336 = vunpack.c.l.b16 %v7262
        %v7337 = vunpack.c.l.b16 %v7263
        %v7338 = vunpack.c.l.b16 %v7264
        %v7339 = vunpack.c.l.b16 %v7265
        %v7340 = vunpack.c.l.b16 %v7266
        %v7341 = vunpack.c.l.b16 %v7267
        %v7342 = vunpack.c.l.b16 %v7268
        %v7343 = vunpack.c.l.b16 %v7269
        %v7344 = vunpack.c.l.b16 %v7270
        %v7345 = vunpack.c.l.b16 %v7271
        %v7346 = vunpack.c.l.b16 %v7272
        %v7347 = vunpack.c.l.b16 %v7273
        %v7348 = vunpack.c.l.b16 %v7274
        %v7349 = vunpack.c.l.b16 %v7275
        %v7350 = vunpack.c.l.b16 %v7276
        %v7351 = vunpack.c.l.b16 %v7277
        %v7352 = vunpack.c.l.b16 %v7278
        %v7353 = vunpack.c.l.b16 %v7279
        %v7354 = vunpack.c.l.b16 %v7280
        %v7355 = vunpack.c.l.b16 %v7281
        %v7356 = vunpack.c.l.b16 %v7282
        %v7357 = vunpack.c.l.b16 %v7283
        %v7358 = vunpack.c.l.b16 %v7284
        %v7359 = vunpack.c.l.b16 %v7285
        %v7360 = vunpack.c.l.b16 %v7286
        %v7361 = vunpack.c.l.b16 %v7287
        %v7362 = vunpack.c.l.b16 %v7288
        %v7363 = vunpack.c.l.b16 %v7289
        %v7364 = vunpack.c.l.b16 %v7290
        %v7365 = vunpack.c.l.b16 %v7291
        %v7366 = vunpack.c.l.b16 %v7292
        %v7367 = vunpack.c.l.b16 %v7293
        %v7368 = vunpack.c.l.b16 %v7294
        %v7369 = vpack.c.b16 %v7333, %v7332
        %v7370 = vpack.c.b16 %v7335, %v7334
        %v7371 = vpack.c.b16 %v7337, %v7336
        %v7372 = vpack.c.b16 %v7339, %v7338
        %v7373 = vpack.c.b16 %v7341, %v7340
        %v7374 = vpack.c.b16 %v7343, %v7342
        %v7375 = vpack.c.b16 %v7345, %v7344
        %v7376 = vpack.c.b16 %v7347, %v7346
        %v7377 = vpack.c.b16 %v7349, %v7348
        %v7378 = vpack.c.b16 %v7351, %v7350
        %v7379 = vpack.c.b16 %v7353, %v7352
        %v7380 = vpack.c.b16 %v7355, %v7354
        %v7381 = vpack.c.b16 %v7357, %v7356
        %v7382 = vpack.c.b16 %v7359, %v7358
        %v7383 = vpack.c.b16 %v7361, %v7360
        %v7384 = vpack.c.b16 %v7363, %v7362
        %v7385 = vpack.c.b16 %v7365, %v7364
        %v7386 = vpack.c.b16 %v7367, %v7366
        %v7387 = vpack.c.b16 %v7368, %v7368
        %v7389 = vshrl.u32 %v7369, 16
        %v7391 = vrot.slane %v7389, 3
        %v7392 = vshll.u32 %v7369, 16
        %v7394 = vrot.slane %v7392, 4
        %v7395 = vor.u32 %v7391, %v7394
        %v7397 = vshrl.u32 %v7370, 16
        %v7399 = vrot.slane %v7397, 3
        %v7400 = vshll.u32 %v7370, 16
        %v7402 = vrot.slane %v7400, 4
        %v7403 = vor.u32 %v7399, %v7402
        %v7404 = vsel %vm3342, %v7395, %v7403
        %v7406 = vshrl.u32 %v7371, 16
        %v7408 = vrot.slane %v7406, 3
        %v7409 = vshll.u32 %v7371, 16
        %v7411 = vrot.slane %v7409, 4
        %v7412 = vor.u32 %v7408, %v7411
        %v7413 = vsel %vm3342, %v7403, %v7412
        %v7415 = vshrl.u32 %v7372, 16
        %v7417 = vrot.slane %v7415, 3
        %v7418 = vshll.u32 %v7372, 16
        %v7420 = vrot.slane %v7418, 4
        %v7421 = vor.u32 %v7417, %v7420
        %v7422 = vsel %vm3342, %v7412, %v7421
        %v7424 = vshrl.u32 %v7373, 16
        %v7426 = vrot.slane %v7424, 3
        %v7427 = vshll.u32 %v7373, 16
        %v7429 = vrot.slane %v7427, 4
        %v7430 = vor.u32 %v7426, %v7429
        %v7431 = vsel %vm3342, %v7421, %v7430
        %v7433 = vshrl.u32 %v7374, 16
        %v7435 = vrot.slane %v7433, 3
        %v7436 = vshll.u32 %v7374, 16
        %v7438 = vrot.slane %v7436, 4
        %v7439 = vor.u32 %v7435, %v7438
        %v7440 = vsel %vm3342, %v7430, %v7439
        %v7442 = vshrl.u32 %v7375, 16
        %v7444 = vrot.slane %v7442, 3
        %v7445 = vshll.u32 %v7375, 16
        %v7447 = vrot.slane %v7445, 4
        %v7448 = vor.u32 %v7444, %v7447
        %v7449 = vsel %vm3342, %v7439, %v7448
        %v7451 = vshrl.u32 %v7376, 16
        %v7453 = vrot.slane %v7451, 3
        %v7454 = vshll.u32 %v7376, 16
        %v7456 = vrot.slane %v7454, 4
        %v7457 = vor.u32 %v7453, %v7456
        %v7458 = vsel %vm3342, %v7448, %v7457
        %v7460 = vshrl.u32 %v7377, 16
        %v7462 = vrot.slane %v7460, 3
        %v7463 = vshll.u32 %v7377, 16
        %v7465 = vrot.slane %v7463, 4
        %v7466 = vor.u32 %v7462, %v7465
        %v7467 = vsel %vm3342, %v7457, %v7466
        %v7469 = vshrl.u32 %v7378, 16
        %v7471 = vrot.slane %v7469, 3
        %v7472 = vshll.u32 %v7378, 16
        %v7474 = vrot.slane %v7472, 4
        %v7475 = vor.u32 %v7471, %v7474
        %v7476 = vsel %vm3342, %v7466, %v7475
        %v7478 = vshrl.u32 %v7379, 16
        %v7480 = vrot.slane %v7478, 3
        %v7481 = vshll.u32 %v7379, 16
        %v7483 = vrot.slane %v7481, 4
        %v7484 = vor.u32 %v7480, %v7483
        %v7485 = vsel %vm3342, %v7475, %v7484
        %v7487 = vshrl.u32 %v7380, 16
        %v7489 = vrot.slane %v7487, 3
        %v7490 = vshll.u32 %v7380, 16
        %v7492 = vrot.slane %v7490, 4
        %v7493 = vor.u32 %v7489, %v7492
        %v7494 = vsel %vm3342, %v7484, %v7493
        %v7496 = vshrl.u32 %v7381, 16
        %v7498 = vrot.slane %v7496, 3
        %v7499 = vshll.u32 %v7381, 16
        %v7501 = vrot.slane %v7499, 4
        %v7502 = vor.u32 %v7498, %v7501
        %v7503 = vsel %vm3342, %v7493, %v7502
        %v7505 = vshrl.u32 %v7382, 16
        %v7507 = vrot.slane %v7505, 3
        %v7508 = vshll.u32 %v7382, 16
        %v7510 = vrot.slane %v7508, 4
        %v7511 = vor.u32 %v7507, %v7510
        %v7512 = vsel %vm3342, %v7502, %v7511
        %v7514 = vshrl.u32 %v7383, 16
        %v7516 = vrot.slane %v7514, 3
        %v7517 = vshll.u32 %v7383, 16
        %v7519 = vrot.slane %v7517, 4
        %v7520 = vor.u32 %v7516, %v7519
        %v7521 = vsel %vm3342, %v7511, %v7520
        %v7523 = vshrl.u32 %v7384, 16
        %v7525 = vrot.slane %v7523, 3
        %v7526 = vshll.u32 %v7384, 16
        %v7528 = vrot.slane %v7526, 4
        %v7529 = vor.u32 %v7525, %v7528
        %v7530 = vsel %vm3342, %v7520, %v7529
        %v7532 = vshrl.u32 %v7385, 16
        %v7534 = vrot.slane %v7532, 3
        %v7535 = vshll.u32 %v7385, 16
        %v7537 = vrot.slane %v7535, 4
        %v7538 = vor.u32 %v7534, %v7537
        %v7539 = vsel %vm3342, %v7529, %v7538
        %v7541 = vshrl.u32 %v7386, 16
        %v7543 = vrot.slane %v7541, 3
        %v7544 = vshll.u32 %v7386, 16
        %v7546 = vrot.slane %v7544, 4
        %v7547 = vor.u32 %v7543, %v7546
        %v7548 = vsel %vm3342, %v7538, %v7547
        %v7550 = vshrl.u32 %v7387, 16
        %v7552 = vrot.slane %v7550, 3
        %v7553 = vshll.u32 %v7387, 16
        %v7555 = vrot.slane %v7553, 4
        %v7556 = vor.u32 %v7552, %v7555
        %v7557 = vsel %vm3342, %v7547, %v7556
        %7576 = vst.msk [vmem:[#allocation4 + $0x10] sm:$0xff] %vm1016, %v7404
        %7577 = vst.msk [vmem:[#allocation4 + $0x28] sm:$0xff] %vm1016, %v7413
        %7578 = vst.msk [vmem:[#allocation4 + $0x40] sm:$0xff] %vm1016, %v7422
        %7579 = vst.msk [vmem:[#allocation4 + $0x58] sm:$0xff] %vm1016, %v7431
        %7580 = vst.msk [vmem:[#allocation4 + $0x70] sm:$0xff] %vm1016, %v7440
        %7581 = vst.msk [vmem:[#allocation4 + $0x88] sm:$0xff] %vm1016, %v7449
        %7582 = vst.msk [vmem:[#allocation4 + $0xa0] sm:$0xff] %vm1016, %v7458
        %7583 = vst.msk [vmem:[#allocation4 + $0xb8] sm:$0xff] %vm1016, %v7467
        %7584 = vst.msk [vmem:[#allocation4 + $0xd0] sm:$0xff] %vm1016, %v7476
        %7585 = vst.msk [vmem:[#allocation4 + $0xe8] sm:$0xff] %vm1016, %v7485
        %7586 = vst.msk [vmem:[#allocation4 + $0x100] sm:$0xff] %vm1016, %v7494
        %7587 = vst.msk [vmem:[#allocation4 + $0x118] sm:$0xff] %vm1016, %v7503
        %7588 = vst.msk [vmem:[#allocation4 + $0x130] sm:$0xff] %vm1016, %v7512
        %7589 = vst.msk [vmem:[#allocation4 + $0x148] sm:$0xff] %vm1016, %v7521
        %7590 = vst.msk [vmem:[#allocation4 + $0x160] sm:$0xff] %vm1016, %v7530
        %7591 = vst.msk [vmem:[#allocation4 + $0x178] sm:$0xff] %vm1016, %v7539
        %7592 = vst.msk [vmem:[#allocation4 + $0x190] sm:$0xff] %vm1016, %v7548
        %7593 = vst.msk [vmem:[#allocation4 + $0x1a8] sm:$0xff] %vm1016, %v7557
        %v7594 = vld [vmem:[#allocation4] sm:$0xff]
        %v7595 = vld [vmem:[#allocation4 + $0x8] sm:$0xff]
        %v7596 = vld [vmem:[#allocation4 + $0x10] sm:$0xff]
        %v7597 = vld [vmem:[#allocation4 + $0x18] sm:$0xff]
        %v7598 = vld [vmem:[#allocation4 + $0x20] sm:$0xff]
        %v7599 = vld [vmem:[#allocation4 + $0x28] sm:$0xff]
        %v7600 = vld [vmem:[#allocation4 + $0x30] sm:$0xff]
        %v7601 = vld [vmem:[#allocation4 + $0x38] sm:$0xff]
        %v7602 = vld [vmem:[#allocation4 + $0x40] sm:$0xff]
        %v7603 = vld [vmem:[#allocation4 + $0x48] sm:$0xff]
        %v7604 = vld [vmem:[#allocation4 + $0x50] sm:$0xff]
        %v7605 = vld [vmem:[#allocation4 + $0x58] sm:$0xff]
        %v7606 = vld [vmem:[#allocation4 + $0x60] sm:$0xff]
        %v7607 = vld [vmem:[#allocation4 + $0x68] sm:$0xff]
        %v7608 = vld [vmem:[#allocation4 + $0x70] sm:$0xff]
        %v7609 = vld [vmem:[#allocation4 + $0x78] sm:$0xff]
        %v7610 = vld [vmem:[#allocation4 + $0x80] sm:$0xff]
        %v7611 = vld [vmem:[#allocation4 + $0x88] sm:$0xff]
        %v7612 = vld [vmem:[#allocation4 + $0x90] sm:$0xff]
        %v7613 = vld [vmem:[#allocation4 + $0x98] sm:$0xff]
        %v7614 = vld [vmem:[#allocation4 + $0xa0] sm:$0xff]
        %v7615 = vld [vmem:[#allocation4 + $0xa8] sm:$0xff]
        %v7616 = vld [vmem:[#allocation4 + $0xb0] sm:$0xff]
        %v7617 = vld [vmem:[#allocation4 + $0xb8] sm:$0xff]
        %v7618 = vld [vmem:[#allocation4 + $0xc0] sm:$0xff]
        %v7619 = vld [vmem:[#allocation4 + $0xc8] sm:$0xff]
        %v7620 = vld [vmem:[#allocation4 + $0xd0] sm:$0xff]
        %v7621 = vld [vmem:[#allocation4 + $0xd8] sm:$0xff]
        %v7622 = vld [vmem:[#allocation4 + $0xe0] sm:$0xff]
        %v7623 = vld [vmem:[#allocation4 + $0xe8] sm:$0xff]
        %v7624 = vld [vmem:[#allocation4 + $0xf0] sm:$0xff]
        %v7625 = vld [vmem:[#allocation4 + $0xf8] sm:$0xff]
        %v7626 = vld [vmem:[#allocation4 + $0x100] sm:$0xff]
        %v7627 = vld [vmem:[#allocation4 + $0x108] sm:$0xff]
        %v7628 = vld [vmem:[#allocation4 + $0x110] sm:$0xff]
        %v7629 = vld [vmem:[#allocation4 + $0x118] sm:$0xff]
        %v7630 = vld [vmem:[#allocation4 + $0x120] sm:$0xff]
        %v7631 = vld [vmem:[#allocation4 + $0x128] sm:$0xff]
        %v7632 = vld [vmem:[#allocation4 + $0x130] sm:$0xff]
        %v7633 = vld [vmem:[#allocation4 + $0x138] sm:$0xff]
        %v7634 = vld [vmem:[#allocation4 + $0x140] sm:$0xff]
        %v7635 = vld [vmem:[#allocation4 + $0x148] sm:$0xff]
        %v7636 = vld [vmem:[#allocation4 + $0x150] sm:$0xff]
        %v7637 = vld [vmem:[#allocation4 + $0x158] sm:$0xff]
        %v7638 = vld [vmem:[#allocation4 + $0x160] sm:$0xff]
        %v7639 = vld [vmem:[#allocation4 + $0x168] sm:$0xff]
        %v7640 = vld [vmem:[#allocation4 + $0x170] sm:$0xff]
        %v7641 = vld [vmem:[#allocation4 + $0x178] sm:$0xff]
        %v7642 = vld [vmem:[#allocation4 + $0x180] sm:$0xff]
        %v7643 = vld [vmem:[#allocation4 + $0x188] sm:$0xff]
        %v7644 = vld [vmem:[#allocation4 + $0x190] sm:$0xff]
        %v7645 = vld [vmem:[#allocation4 + $0x198] sm:$0xff]
        %v7646 = vld [vmem:[#allocation4 + $0x1a0] sm:$0xff]
        %v7647 = vld [vmem:[#allocation4 + $0x1a8] sm:$0xff]
        %v7648 = vld [vmem:[%s4] sm:$0xf]
        %v7649 = vld [vmem:[%s4 + $0x4] sm:$0xf]
        %v7650 = vld [vmem:[%s4 + $0x8] sm:$0xf]
        %v7651 = vld [vmem:[%s4 + $0xc] sm:$0xf]
        %v7652 = vld [vmem:[%s4 + $0x10] sm:$0xf]
        %v7653 = vld [vmem:[%s4 + $0x14] sm:$0xf]
        %v7654 = vld [vmem:[%s4 + $0x18] sm:$0xf]
        %v7655 = vld [vmem:[%s4 + $0x1c] sm:$0xf]
        %v7656 = vld [vmem:[%s4 + $0x20] sm:$0xf]
        %v7657 = vld [vmem:[%s4 + $0x24] sm:$0xf]
        %v7658 = vld [vmem:[%s4 + $0x28] sm:$0xf]
        %v7659 = vld [vmem:[%s4 + $0x2c] sm:$0xf]
        %v7660 = vld [vmem:[%s4 + $0x30] sm:$0xf]
        %v7661 = vld [vmem:[%s4 + $0x34] sm:$0xf]
        %v7662 = vld [vmem:[%s4 + $0x38] sm:$0xf]
        %v7663 = vld [vmem:[%s4 + $0x3c] sm:$0xf]
        %v7664 = vld [vmem:[%s4 + $0x40] sm:$0xf]
        %v7665 = vld [vmem:[%s4 + $0x44] sm:$0xf]
        %v7666 = vld [vmem:[%s4 + $0x48] sm:$0xf]
        %v7667 = vld [vmem:[%s4 + $0x4c] sm:$0xf]
        %v7668 = vld [vmem:[%s4 + $0x50] sm:$0xf]
        %v7669 = vld [vmem:[%s4 + $0x54] sm:$0xf]
        %v7670 = vld [vmem:[%s4 + $0x58] sm:$0xf]
        %v7671 = vld [vmem:[%s4 + $0x5c] sm:$0xf]
        %v7672 = vld [vmem:[%s4 + $0x60] sm:$0xf]
        %v7673 = vld [vmem:[%s4 + $0x64] sm:$0xf]
        %v7674 = vld [vmem:[%s4 + $0x68] sm:$0xf]
        %v7675 = vld [vmem:[%s4 + $0x6c] sm:$0xf]
        %v7676 = vld [vmem:[%s4 + $0x70] sm:$0xf]
        %v7677 = vld [vmem:[%s4 + $0x74] sm:$0xf]
        %v7678 = vld [vmem:[%s4 + $0x78] sm:$0xf]
        %v7679 = vld [vmem:[%s4 + $0x7c] sm:$0xf]
        %v7680 = vld [vmem:[%s4 + $0x80] sm:$0xf]
        %v7681 = vld [vmem:[%s4 + $0x84] sm:$0xf]
        %v7682 = vld [vmem:[%s4 + $0x88] sm:$0xf]
        %v7683 = vld [vmem:[%s4 + $0x8c] sm:$0xf]
        %v7720 = vunpack.c.l.b16 %v7648
        %v7721 = vunpack.c.l.b16 %v7649
        %v7722 = vunpack.c.l.b16 %v7650
        %v7723 = vunpack.c.l.b16 %v7651
        %v7724 = vunpack.c.l.b16 %v7652
        %v7725 = vunpack.c.l.b16 %v7653
        %v7726 = vunpack.c.l.b16 %v7654
        %v7727 = vunpack.c.l.b16 %v7655
        %v7728 = vunpack.c.l.b16 %v7656
        %v7729 = vunpack.c.l.b16 %v7657
        %v7730 = vunpack.c.l.b16 %v7658
        %v7731 = vunpack.c.l.b16 %v7659
        %v7732 = vunpack.c.l.b16 %v7660
        %v7733 = vunpack.c.l.b16 %v7661
        %v7734 = vunpack.c.l.b16 %v7662
        %v7735 = vunpack.c.l.b16 %v7663
        %v7736 = vunpack.c.l.b16 %v7664
        %v7737 = vunpack.c.l.b16 %v7665
        %v7738 = vunpack.c.l.b16 %v7666
        %v7739 = vunpack.c.l.b16 %v7667
        %v7740 = vunpack.c.l.b16 %v7668
        %v7741 = vunpack.c.l.b16 %v7669
        %v7742 = vunpack.c.l.b16 %v7670
        %v7743 = vunpack.c.l.b16 %v7671
        %v7744 = vunpack.c.l.b16 %v7672
        %v7745 = vunpack.c.l.b16 %v7673
        %v7746 = vunpack.c.l.b16 %v7674
        %v7747 = vunpack.c.l.b16 %v7675
        %v7748 = vunpack.c.l.b16 %v7676
        %v7749 = vunpack.c.l.b16 %v7677
        %v7750 = vunpack.c.l.b16 %v7678
        %v7751 = vunpack.c.l.b16 %v7679
        %v7752 = vunpack.c.l.b16 %v7680
        %v7753 = vunpack.c.l.b16 %v7681
        %v7754 = vunpack.c.l.b16 %v7682
        %v7755 = vunpack.c.l.b16 %v7683
        %v7756 = vpack.c.b16 %v7721, %v7720
        %v7757 = vpack.c.b16 %v7723, %v7722
        %v7758 = vpack.c.b16 %v7725, %v7724
        %v7759 = vpack.c.b16 %v7727, %v7726
        %v7760 = vpack.c.b16 %v7729, %v7728
        %v7761 = vpack.c.b16 %v7731, %v7730
        %v7762 = vpack.c.b16 %v7733, %v7732
        %v7763 = vpack.c.b16 %v7735, %v7734
        %v7764 = vpack.c.b16 %v7737, %v7736
        %v7765 = vpack.c.b16 %v7739, %v7738
        %v7766 = vpack.c.b16 %v7741, %v7740
        %v7767 = vpack.c.b16 %v7743, %v7742
        %v7768 = vpack.c.b16 %v7745, %v7744
        %v7769 = vpack.c.b16 %v7747, %v7746
        %v7770 = vpack.c.b16 %v7749, %v7748
        %v7771 = vpack.c.b16 %v7751, %v7750
        %v7772 = vpack.c.b16 %v7753, %v7752
        %v7773 = vpack.c.b16 %v7755, %v7754
        %v7793 = vsel %vm1016, %v7596, 0
        %v7796 = vsel %vm1016, %v7599, 0
        %v7799 = vsel %vm1016, %v7602, 0
        %v7802 = vsel %vm1016, %v7605, 0
        %v7805 = vsel %vm1016, %v7608, 0
        %v7808 = vsel %vm1016, %v7611, 0
        %v7811 = vsel %vm1016, %v7614, 0
        %v7814 = vsel %vm1016, %v7617, 0
        %v7817 = vsel %vm1016, %v7620, 0
        %v7820 = vsel %vm1016, %v7623, 0
        %v7823 = vsel %vm1016, %v7626, 0
        %v7826 = vsel %vm1016, %v7629, 0
        %v7829 = vsel %vm1016, %v7632, 0
        %v7832 = vsel %vm1016, %v7635, 0
        %v7835 = vsel %vm1016, %v7638, 0
        %v7838 = vsel %vm1016, %v7641, 0
        %v7841 = vsel %vm1016, %v7644, 0
        %v7844 = vsel %vm1016, %v7647, 0
        %7846 = vmatprep.subr.bf16.mxu0 0
        %7847 = vmatpush1.bf16.msra.mxu0 %v7756
        %7848 = vmatprep.subr.bf16.mxu0 0
        %7849 = vmatpush1.bf16.msra.mxu0 %v7757
        %7850 = vmatprep.subr.bf16.mxu0 0
        %7851 = vmatpush1.bf16.msra.mxu0 %v7758
        %7852 = vmatprep.subr.bf16.mxu0 0
        %7853 = vmatpush1.bf16.msra.mxu0 %v7759
        %7854 = vmatprep.subr.bf16.mxu0 0
        %7855 = vmatpush1.bf16.msra.mxu0 %v7760
        %7856 = vmatprep.subr.bf16.mxu0 0
        %7857 = vmatpush1.bf16.msra.mxu0 %v7761
        %7858 = vmatprep.subr.bf16.mxu0 0
        %7859 = vmatpush1.bf16.msra.mxu0 %v7762
        %7860 = vmatprep.subr.bf16.mxu0 0
        %7861 = vmatpush1.bf16.msra.mxu0 %v7763
        %7862 = vmatprep.subr.bf16.mxu0 0
        %7863 = vmatpush1.bf16.msra.mxu0 %v7764
        %7864 = vmatprep.subr.bf16.mxu0 0
        %7865 = vmatpush1.bf16.msra.mxu0 %v7765
        %7866 = vmatprep.subr.bf16.mxu0 0
        %7867 = vmatpush1.bf16.msra.mxu0 %v7766
        %7868 = vmatprep.subr.bf16.mxu0 0
        %7869 = vmatpush1.bf16.msra.mxu0 %v7767
        %7870 = vmatprep.subr.bf16.mxu0 0
        %7871 = vmatpush1.bf16.msra.mxu0 %v7768
        %7872 = vmatprep.subr.bf16.mxu0 0
        %7873 = vmatpush1.bf16.msra.mxu0 %v7769
        %7874 = vmatprep.subr.bf16.mxu0 0
        %7875 = vmatpush1.bf16.msra.mxu0 %v7770
        %7876 = vmatprep.subr.bf16.mxu0 0
        %7877 = vmatpush1.bf16.msra.mxu0 %v7771
        %7878 = vmatprep.mubr.bf16.mxu0 %v7595
        %7879 = vmatmul.mubr.bf16.gmra.mrb[0].mxu0 %v7594
        %v7880 = vpop.f32.mrb[0].mxu0
        %v7881 = vadd.f32 0.0, %v7880
        %v7882 = vpop.f32.mrb[0].mxu0
        %v7883 = vpop.f32.mrb[0].mxu0
        %v7884 = vadd.f32 0.0, %v7883
        %v7885 = vpop.f32.mrb[0].mxu0
        %7886 = vmatprep.mubr.bf16.mxu0 %v7598
        %7887 = vmatmul.mubr.bf16.gmra.mrb[0].mxu0 %v7597
        %v7888 = vpop.f32.mrb[0].mxu0
        %v7889 = vadd.f32 0.0, %v7888
        %v7890 = vpop.f32.mrb[0].mxu0
        %v7891 = vpop.f32.mrb[0].mxu0
        %v7892 = vadd.f32 0.0, %v7891
        %v7893 = vpop.f32.mrb[0].mxu0
        %7894 = vmatprep.mubr.bf16.mxu0 %v7601
        %7895 = vmatmul.mubr.bf16.gmra.mrb[0].mxu0 %v7600
        %v7896 = vpop.f32.mrb[0].mxu0
        %v7897 = vadd.f32 0.0, %v7896
        %v7898 = vpop.f32.mrb[0].mxu0
        %v7899 = vpop.f32.mrb[0].mxu0
        %v7900 = vadd.f32 0.0, %v7899
        %v7901 = vpop.f32.mrb[0].mxu0
        %7902 = vmatprep.mubr.bf16.mxu0 %v7604
        %7903 = vmatmul.mubr.bf16.gmra.mrb[0].mxu0 %v7603
        %v7904 = vpop.f32.mrb[0].mxu0
        %v7905 = vadd.f32 0.0, %v7904
        %v7906 = vpop.f32.mrb[0].mxu0
        %v7907 = vpop.f32.mrb[0].mxu0
        %v7908 = vadd.f32 0.0, %v7907
        %v7909 = vpop.f32.mrb[0].mxu0
        %7910 = vmatprep.mubr.bf16.mxu0 %v7607
        %7911 = vmatmul.mubr.bf16.gmra.mrb[0].mxu0 %v7606
        %v7912 = vpop.f32.mrb[0].mxu0
        %v7913 = vadd.f32 0.0, %v7912
        %v7914 = vpop.f32.mrb[0].mxu0
        %v7915 = vpop.f32.mrb[0].mxu0
        %v7916 = vadd.f32 0.0, %v7915
        %v7917 = vpop.f32.mrb[0].mxu0
        %7918 = vmatprep.mubr.bf16.mxu0 %v7610
        %7919 = vmatmul.mubr.bf16.gmra.mrb[0].mxu0 %v7609
        %v7920 = vpop.f32.mrb[0].mxu0
        %v7921 = vadd.f32 0.0, %v7920
        %v7922 = vpop.f32.mrb[0].mxu0
        %v7923 = vpop.f32.mrb[0].mxu0
        %v7924 = vadd.f32 0.0, %v7923
        %v7925 = vpop.f32.mrb[0].mxu0
        %7926 = vmatprep.mubr.bf16.mxu0 %v7613
        %7927 = vmatmul.mubr.bf16.gmra.mrb[0].mxu0 %v7612
        %v7928 = vpop.f32.mrb[0].mxu0
        %v7929 = vadd.f32 0.0, %v7928
        %v7930 = vpop.f32.mrb[0].mxu0
        %v7931 = vpop.f32.mrb[0].mxu0
        %v7932 = vadd.f32 0.0, %v7931
        %v7933 = vpop.f32.mrb[0].mxu0
        %7934 = vmatprep.mubr.bf16.mxu0 %v7616
        %7935 = vmatmul.mubr.bf16.gmra.mrb[0].mxu0 %v7615
        %v7936 = vpop.f32.mrb[0].mxu0
        %v7937 = vadd.f32 0.0, %v7936
        %v7938 = vpop.f32.mrb[0].mxu0
        %v7939 = vpop.f32.mrb[0].mxu0
        %v7940 = vadd.f32 0.0, %v7939
        %v7941 = vpop.f32.mrb[0].mxu0
        %7942 = vmatprep.mubr.bf16.mxu0 %v7619
        %7943 = vmatmul.mubr.bf16.gmra.mrb[0].mxu0 %v7618
        %v7944 = vpop.f32.mrb[0].mxu0
        %v7945 = vadd.f32 0.0, %v7944
        %v7946 = vpop.f32.mrb[0].mxu0
        %v7947 = vpop.f32.mrb[0].mxu0
        %v7948 = vadd.f32 0.0, %v7947
        %v7949 = vpop.f32.mrb[0].mxu0
        %7950 = vmatprep.mubr.bf16.mxu0 %v7622
        %7951 = vmatmul.mubr.bf16.gmra.mrb[0].mxu0 %v7621
        %v7952 = vpop.f32.mrb[0].mxu0
        %v7953 = vadd.f32 0.0, %v7952
        %v7954 = vpop.f32.mrb[0].mxu0
        %v7955 = vpop.f32.mrb[0].mxu0
        %v7956 = vadd.f32 0.0, %v7955
        %v7957 = vpop.f32.mrb[0].mxu0
        %7958 = vmatprep.mubr.bf16.mxu0 %v7625
        %7959 = vmatmul.mubr.bf16.gmra.mrb[0].mxu0 %v7624
        %v7960 = vpop.f32.mrb[0].mxu0
        %v7961 = vadd.f32 0.0, %v7960
        %v7962 = vpop.f32.mrb[0].mxu0
        %v7963 = vpop.f32.mrb[0].mxu0
        %v7964 = vadd.f32 0.0, %v7963
        %v7965 = vpop.f32.mrb[0].mxu0
        %7966 = vmatprep.mubr.bf16.mxu0 %v7628
        %7967 = vmatmul.mubr.bf16.gmra.mrb[0].mxu0 %v7627
        %v7968 = vpop.f32.mrb[0].mxu0
        %v7969 = vadd.f32 0.0, %v7968
        %v7970 = vpop.f32.mrb[0].mxu0
        %v7971 = vpop.f32.mrb[0].mxu0
        %v7972 = vadd.f32 0.0, %v7971
        %v7973 = vpop.f32.mrb[0].mxu0
        %7974 = vmatprep.mubr.bf16.mxu0 %v7631
        %7975 = vmatmul.mubr.bf16.gmra.mrb[0].mxu0 %v7630
        %v7976 = vpop.f32.mrb[0].mxu0
        %v7977 = vadd.f32 0.0, %v7976
        %v7978 = vpop.f32.mrb[0].mxu0
        %v7979 = vpop.f32.mrb[0].mxu0
        %v7980 = vadd.f32 0.0, %v7979
        %v7981 = vpop.f32.mrb[0].mxu0
        %7982 = vmatprep.mubr.bf16.mxu0 %v7634
        %7983 = vmatmul.mubr.bf16.gmra.mrb[0].mxu0 %v7633
        %v7984 = vpop.f32.mrb[0].mxu0
        %v7985 = vadd.f32 0.0, %v7984
        %v7986 = vpop.f32.mrb[0].mxu0
        %v7987 = vpop.f32.mrb[0].mxu0
        %v7988 = vadd.f32 0.0, %v7987
        %v7989 = vpop.f32.mrb[0].mxu0
        %7990 = vmatprep.mubr.bf16.mxu0 %v7637
        %7991 = vmatmul.mubr.bf16.gmra.mrb[0].mxu0 %v7636
        %v7992 = vpop.f32.mrb[0].mxu0
        %v7993 = vadd.f32 0.0, %v7992
        %v7994 = vpop.f32.mrb[0].mxu0
        %v7995 = vpop.f32.mrb[0].mxu0
        %v7996 = vadd.f32 0.0, %v7995
        %v7997 = vpop.f32.mrb[0].mxu0
        %7998 = vmatprep.mubr.bf16.mxu0 %v7640
        %7999 = vmatmul.mubr.bf16.gmra.mrb[0].mxu0 %v7639
        %v8000 = vpop.f32.mrb[0].mxu0
        %v8001 = vadd.f32 0.0, %v8000
        %v8002 = vpop.f32.mrb[0].mxu0
        %v8003 = vpop.f32.mrb[0].mxu0
        %v8004 = vadd.f32 0.0, %v8003
        %v8005 = vpop.f32.mrb[0].mxu0
        %8006 = vmatprep.mubr.bf16.mxu0 %v7643
        %8007 = vmatmul.mubr.bf16.gmra.mrb[0].mxu0 %v7642
        %v8008 = vpop.f32.mrb[0].mxu0
        %v8009 = vadd.f32 0.0, %v8008
        %v8010 = vpop.f32.mrb[0].mxu0
        %v8011 = vpop.f32.mrb[0].mxu0
        %v8012 = vadd.f32 0.0, %v8011
        %v8013 = vpop.f32.mrb[0].mxu0
        %8014 = vmatprep.mubr.bf16.mxu0 %v7646
        %8015 = vmatmul.mubr.bf16.gmra.mrb[0].mxu0 %v7645
        %v8016 = vpop.f32.mrb[0].mxu0
        %v8017 = vadd.f32 0.0, %v8016
        %v8018 = vpop.f32.mrb[0].mxu0
        %v8019 = vpop.f32.mrb[0].mxu0
        %v8020 = vadd.f32 0.0, %v8019
        %v8021 = vpop.f32.mrb[0].mxu0
        %8022 = vdwg.mxu0
        %8023 = vmatprep.subr.bf16.mxu0 0
        %8024 = vmatpush1.bf16.msra.mxu0 %v7772
        %8025 = vmatprep.subr.bf16.mxu0 0
        %8026 = vmatpush1.bf16.msra.mxu0 %v7773
        %8027 = vmatprep.subr.bf16.mxu0 0
        %8028 = vmatpush1.bf16.msra.mxu0 0
        %8029 = vmatprep.subr.bf16.mxu0 0
        %8030 = vmatpush1.bf16.msra.mxu0 0
        %8031 = vmatprep.subr.bf16.mxu0 0
        %8032 = vmatpush1.bf16.msra.mxu0 0
        %8033 = vmatprep.subr.bf16.mxu0 0
        %8034 = vmatpush1.bf16.msra.mxu0 0
        %8035 = vmatprep.subr.bf16.mxu0 0
        %8036 = vmatpush1.bf16.msra.mxu0 0
        %8037 = vmatprep.subr.bf16.mxu0 0
        %8038 = vmatpush1.bf16.msra.mxu0 0
        %8039 = vmatprep.subr.bf16.mxu0 0
        %8040 = vmatpush1.bf16.msra.mxu0 0
        %8041 = vmatprep.subr.bf16.mxu0 0
        %8042 = vmatpush1.bf16.msra.mxu0 0
        %8043 = vmatprep.subr.bf16.mxu0 0
        %8044 = vmatpush1.bf16.msra.mxu0 0
        %8045 = vmatprep.subr.bf16.mxu0 0
        %8046 = vmatpush1.bf16.msra.mxu0 0
        %8047 = vmatprep.subr.bf16.mxu0 0
        %8048 = vmatpush1.bf16.msra.mxu0 0
        %8049 = vmatprep.subr.bf16.mxu0 0
        %8050 = vmatpush1.bf16.msra.mxu0 0
        %8051 = vmatprep.subr.bf16.mxu0 0
        %8052 = vmatpush1.bf16.msra.mxu0 0
        %8053 = vmatprep.subr.bf16.mxu0 0
        %8054 = vmatpush1.bf16.msra.mxu0 0
        %8055 = vmatprep.mubr.bf16.mxu0 0
        %8056 = vmatmul.mubr.bf16.gmra.mrb[0].mxu0 %v7793
        %v8057 = vpop.f32.mrb[0].mxu0
        %v8058 = vadd.f32 %v7881, %v8057
        %v8059 = vpop.f32.mrb[0].mxu0
        %v8060 = vpop.f32.mrb[0].mxu0
        %v8061 = vadd.f32 %v7884, %v8060
        %v8062 = vpop.f32.mrb[0].mxu0
        %8063 = vmatprep.mubr.bf16.mxu0 0
        %8064 = vmatmul.mubr.bf16.gmra.mrb[0].mxu0 %v7796
        %v8065 = vpop.f32.mrb[0].mxu0
        %v8066 = vadd.f32 %v7889, %v8065
        %v8067 = vpop.f32.mrb[0].mxu0
        %v8068 = vpop.f32.mrb[0].mxu0
        %v8069 = vadd.f32 %v7892, %v8068
        %v8070 = vpop.f32.mrb[0].mxu0
        %8071 = vmatprep.mubr.bf16.mxu0 0
        %8072 = vmatmul.mubr.bf16.gmra.mrb[0].mxu0 %v7799
        %v8073 = vpop.f32.mrb[0].mxu0
        %v8074 = vadd.f32 %v7897, %v8073
        %v8075 = vpop.f32.mrb[0].mxu0
        %v8076 = vpop.f32.mrb[0].mxu0
        %v8077 = vadd.f32 %v7900, %v8076
        %v8078 = vpop.f32.mrb[0].mxu0
        %8079 = vmatprep.mubr.bf16.mxu0 0
        %8080 = vmatmul.mubr.bf16.gmra.mrb[0].mxu0 %v7802
        %v8081 = vpop.f32.mrb[0].mxu0
        %v8082 = vadd.f32 %v7905, %v8081
        %v8083 = vpop.f32.mrb[0].mxu0
        %v8084 = vpop.f32.mrb[0].mxu0
        %v8085 = vadd.f32 %v7908, %v8084
        %v8086 = vpop.f32.mrb[0].mxu0
        %8087 = vmatprep.mubr.bf16.mxu0 0
        %8088 = vmatmul.mubr.bf16.gmra.mrb[0].mxu0 %v7805
        %v8089 = vpop.f32.mrb[0].mxu0
        %v8090 = vadd.f32 %v7913, %v8089
        %v8091 = vpop.f32.mrb[0].mxu0
        %v8092 = vpop.f32.mrb[0].mxu0
        %v8093 = vadd.f32 %v7916, %v8092
        %v8094 = vpop.f32.mrb[0].mxu0
        %8095 = vmatprep.mubr.bf16.mxu0 0
        %8096 = vmatmul.mubr.bf16.gmra.mrb[0].mxu0 %v7808
        %v8097 = vpop.f32.mrb[0].mxu0
        %v8098 = vadd.f32 %v7921, %v8097
        %v8099 = vpop.f32.mrb[0].mxu0
        %v8100 = vpop.f32.mrb[0].mxu0
        %v8101 = vadd.f32 %v7924, %v8100
        %v8102 = vpop.f32.mrb[0].mxu0
        %8103 = vmatprep.mubr.bf16.mxu0 0
        %8104 = vmatmul.mubr.bf16.gmra.mrb[0].mxu0 %v7811
        %v8105 = vpop.f32.mrb[0].mxu0
        %v8106 = vadd.f32 %v7929, %v8105
        %v8107 = vpop.f32.mrb[0].mxu0
        %v8108 = vpop.f32.mrb[0].mxu0
        %v8109 = vadd.f32 %v7932, %v8108
        %v8110 = vpop.f32.mrb[0].mxu0
        %8111 = vmatprep.mubr.bf16.mxu0 0
        %8112 = vmatmul.mubr.bf16.gmra.mrb[0].mxu0 %v7814
        %v8113 = vpop.f32.mrb[0].mxu0
        %v8114 = vadd.f32 %v7937, %v8113
        %v8115 = vpop.f32.mrb[0].mxu0
        %v8116 = vpop.f32.mrb[0].mxu0
        %v8117 = vadd.f32 %v7940, %v8116
        %v8118 = vpop.f32.mrb[0].mxu0
        %8119 = vmatprep.mubr.bf16.mxu0 0
        %8120 = vmatmul.mubr.bf16.gmra.mrb[0].mxu0 %v7817
        %v8121 = vpop.f32.mrb[0].mxu0
        %v8122 = vadd.f32 %v7945, %v8121
        %v8123 = vpop.f32.mrb[0].mxu0
        %v8124 = vpop.f32.mrb[0].mxu0
        %v8125 = vadd.f32 %v7948, %v8124
        %v8126 = vpop.f32.mrb[0].mxu0
        %8127 = vmatprep.mubr.bf16.mxu0 0
        %8128 = vmatmul.mubr.bf16.gmra.mrb[0].mxu0 %v7820
        %v8129 = vpop.f32.mrb[0].mxu0
        %v8130 = vadd.f32 %v7953, %v8129
        %v8131 = vpop.f32.mrb[0].mxu0
        %v8132 = vpop.f32.mrb[0].mxu0
        %v8133 = vadd.f32 %v7956, %v8132
        %v8134 = vpop.f32.mrb[0].mxu0
        %8135 = vmatprep.mubr.bf16.mxu0 0
        %8136 = vmatmul.mubr.bf16.gmra.mrb[0].mxu0 %v7823
        %v8137 = vpop.f32.mrb[0].mxu0
        %v8138 = vadd.f32 %v7961, %v8137
        %v8139 = vpop.f32.mrb[0].mxu0
        %v8140 = vpop.f32.mrb[0].mxu0
        %v8141 = vadd.f32 %v7964, %v8140
        %v8142 = vpop.f32.mrb[0].mxu0
        %8143 = vmatprep.mubr.bf16.mxu0 0
        %8144 = vmatmul.mubr.bf16.gmra.mrb[0].mxu0 %v7826
        %v8145 = vpop.f32.mrb[0].mxu0
        %v8146 = vadd.f32 %v7969, %v8145
        %v8147 = vpop.f32.mrb[0].mxu0
        %v8148 = vpop.f32.mrb[0].mxu0
        %v8149 = vadd.f32 %v7972, %v8148
        %v8150 = vpop.f32.mrb[0].mxu0
        %8151 = vmatprep.mubr.bf16.mxu0 0
        %8152 = vmatmul.mubr.bf16.gmra.mrb[0].mxu0 %v7829
        %v8153 = vpop.f32.mrb[0].mxu0
        %v8154 = vadd.f32 %v7977, %v8153
        %v8155 = vpop.f32.mrb[0].mxu0
        %v8156 = vpop.f32.mrb[0].mxu0
        %v8157 = vadd.f32 %v7980, %v8156
        %v8158 = vpop.f32.mrb[0].mxu0
        %8159 = vmatprep.mubr.bf16.mxu0 0
        %8160 = vmatmul.mubr.bf16.gmra.mrb[0].mxu0 %v7832
        %v8161 = vpop.f32.mrb[0].mxu0
        %v8162 = vadd.f32 %v7985, %v8161
        %v8163 = vpop.f32.mrb[0].mxu0
        %v8164 = vpop.f32.mrb[0].mxu0
        %v8165 = vadd.f32 %v7988, %v8164
        %v8166 = vpop.f32.mrb[0].mxu0
        %8167 = vmatprep.mubr.bf16.mxu0 0
        %8168 = vmatmul.mubr.bf16.gmra.mrb[0].mxu0 %v7835
        %v8169 = vpop.f32.mrb[0].mxu0
        %v8170 = vadd.f32 %v7993, %v8169
        %v8171 = vpop.f32.mrb[0].mxu0
        %v8172 = vpop.f32.mrb[0].mxu0
        %v8173 = vadd.f32 %v7996, %v8172
        %v8174 = vpop.f32.mrb[0].mxu0
        %8175 = vmatprep.mubr.bf16.mxu0 0
        %8176 = vmatmul.mubr.bf16.gmra.mrb[0].mxu0 %v7838
        %v8177 = vpop.f32.mrb[0].mxu0
        %v8178 = vadd.f32 %v8001, %v8177
        %v8179 = vpop.f32.mrb[0].mxu0
        %v8180 = vpop.f32.mrb[0].mxu0
        %v8181 = vadd.f32 %v8004, %v8180
        %v8182 = vpop.f32.mrb[0].mxu0
        %8183 = vmatprep.mubr.bf16.mxu0 0
        %8184 = vmatmul.mubr.bf16.gmra.mrb[0].mxu0 %v7841
        %v8185 = vpop.f32.mrb[0].mxu0
        %v8186 = vadd.f32 %v8009, %v8185
        %v8187 = vpop.f32.mrb[0].mxu0
        %v8188 = vpop.f32.mrb[0].mxu0
        %v8189 = vadd.f32 %v8012, %v8188
        %v8190 = vpop.f32.mrb[0].mxu0
        %8191 = vmatprep.mubr.bf16.mxu0 0
        %8192 = vmatmul.mubr.bf16.gmra.mrb[0].mxu0 %v7844
        %v8193 = vpop.f32.mrb[0].mxu0
        %v8194 = vadd.f32 %v8017, %v8193
        %v8195 = vpop.f32.mrb[0].mxu0
        %v8196 = vpop.f32.mrb[0].mxu0
        %v8197 = vadd.f32 %v8020, %v8196
        %v8198 = vpop.f32.mrb[0].mxu0
        %8199 = vdwg.mxu0
        %v8200 = vmul.f32 %v8058, %v4267
        %v8201 = vmul.f32 %v8061, %v4272
        %v8202 = vmul.f32 %v8066, %v4277
        %v8203 = vmul.f32 %v8069, %v4282
        %v8204 = vmul.f32 %v8074, %v4287
        %v8205 = vmul.f32 %v8077, %v4292
        %v8206 = vmul.f32 %v8082, %v4297
        %v8207 = vmul.f32 %v8085, %v4302
        %v8208 = vmul.f32 %v8090, %v4307
        %v8209 = vmul.f32 %v8093, %v4312
        %v8210 = vmul.f32 %v8098, %v4317
        %v8211 = vmul.f32 %v8101, %v4322
        %v8212 = vmul.f32 %v8106, %v4327
        %v8213 = vmul.f32 %v8109, %v4332
        %v8214 = vmul.f32 %v8114, %v4337
        %v8215 = vmul.f32 %v8117, %v4342
        %v8216 = vmul.f32 %v8122, %v4347
        %v8217 = vmul.f32 %v8125, %v4352
        %v8218 = vmul.f32 %v8130, %v4357
        %v8219 = vmul.f32 %v8133, %v4362
        %v8220 = vmul.f32 %v8138, %v4367
        %v8221 = vmul.f32 %v8141, %v4372
        %v8222 = vmul.f32 %v8146, %v4377
        %v8223 = vmul.f32 %v8149, %v4382
        %v8224 = vmul.f32 %v8154, %v4387
        %v8225 = vmul.f32 %v8157, %v4392
        %v8226 = vmul.f32 %v8162, %v4397
        %v8227 = vmul.f32 %v8165, %v4402
        %v8228 = vmul.f32 %v8170, %v4407
        %v8229 = vmul.f32 %v8173, %v4412
        %v8230 = vmul.f32 %v8178, %v4417
        %v8231 = vmul.f32 %v8181, %v4422
        %v8232 = vmul.f32 %v8186, %v4427
        %v8233 = vmul.f32 %v8189, %v4432
        %v8234 = vmul.f32 %v8194, %v4437
        %v8235 = vmul.f32 %v8197, %v4442
        %v8236 = vsel %vm1016, %v8200, 0.0
        %v8237 = vsel %vm1016, %v8201, 0.0
        %v8238 = vadd.f32 %v8236, %v8237
        %v8239 = vsel %vm1016, %v8202, 0.0
        %v8240 = vadd.f32 %v8238, %v8239
        %v8241 = vsel %vm1016, %v8203, 0.0
        %v8242 = vadd.f32 %v8240, %v8241
        %v8243 = vsel %vm1016, %v8204, 0.0
        %v8244 = vadd.f32 %v8242, %v8243
        %v8245 = vsel %vm1016, %v8205, 0.0
        %v8246 = vadd.f32 %v8244, %v8245
        %v8247 = vsel %vm1016, %v8206, 0.0
        %v8248 = vadd.f32 %v8246, %v8247
        %v8249 = vsel %vm1016, %v8207, 0.0
        %v8250 = vadd.f32 %v8248, %v8249
        %v8251 = vsel %vm1016, %v8208, 0.0
        %v8252 = vadd.f32 %v8250, %v8251
        %v8253 = vsel %vm1016, %v8209, 0.0
        %v8254 = vadd.f32 %v8252, %v8253
        %v8255 = vsel %vm1016, %v8210, 0.0
        %v8256 = vadd.f32 %v8254, %v8255
        %v8257 = vsel %vm1016, %v8211, 0.0
        %v8258 = vadd.f32 %v8256, %v8257
        %v8259 = vsel %vm1016, %v8212, 0.0
        %v8260 = vadd.f32 %v8258, %v8259
        %v8261 = vsel %vm1016, %v8213, 0.0
        %v8262 = vadd.f32 %v8260, %v8261
        %v8263 = vsel %vm1016, %v8214, 0.0
        %v8264 = vadd.f32 %v8262, %v8263
        %v8265 = vsel %vm1016, %v8215, 0.0
        %v8266 = vadd.f32 %v8264, %v8265
        %v8267 = vsel %vm1016, %v8216, 0.0
        %v8268 = vadd.f32 %v8266, %v8267
        %v8269 = vsel %vm1016, %v8217, 0.0
        %v8270 = vadd.f32 %v8268, %v8269
        %v8271 = vsel %vm1016, %v8218, 0.0
        %v8272 = vadd.f32 %v8270, %v8271
        %v8273 = vsel %vm1016, %v8219, 0.0
        %v8274 = vadd.f32 %v8272, %v8273
        %v8275 = vsel %vm1016, %v8220, 0.0
        %v8276 = vadd.f32 %v8274, %v8275
        %v8277 = vsel %vm1016, %v8221, 0.0
        %v8278 = vadd.f32 %v8276, %v8277
        %v8279 = vsel %vm1016, %v8222, 0.0
        %v8280 = vadd.f32 %v8278, %v8279
        %v8281 = vsel %vm1016, %v8223, 0.0
        %v8282 = vadd.f32 %v8280, %v8281
        %v8283 = vsel %vm1016, %v8224, 0.0
        %v8284 = vadd.f32 %v8282, %v8283
        %v8285 = vsel %vm1016, %v8225, 0.0
        %v8286 = vadd.f32 %v8284, %v8285
        %v8287 = vsel %vm1016, %v8226, 0.0
        %v8288 = vadd.f32 %v8286, %v8287
        %v8289 = vsel %vm1016, %v8227, 0.0
        %v8290 = vadd.f32 %v8288, %v8289
        %v8291 = vsel %vm1016, %v8228, 0.0
        %v8292 = vadd.f32 %v8290, %v8291
        %v8293 = vsel %vm1016, %v8229, 0.0
        %v8294 = vadd.f32 %v8292, %v8293
        %v8295 = vsel %vm1016, %v8230, 0.0
        %v8296 = vadd.f32 %v8294, %v8295
        %v8297 = vsel %vm1016, %v8231, 0.0
        %v8298 = vadd.f32 %v8296, %v8297
        %v8299 = vsel %vm1016, %v8232, 0.0
        %v8300 = vadd.f32 %v8298, %v8299
        %v8301 = vsel %vm1016, %v8233, 0.0
        %v8302 = vadd.f32 %v8300, %v8301
        %v8303 = vsel %vm1016, %v8234, 0.0
        %v8304 = vadd.f32 %v8302, %v8303
        %v8305 = vsel %vm1016, %v8235, 0.0
        %v8306 = vadd.f32 %v8304, %v8305
        %v8307 = vrot.slane %v8306, 4
        %v8308 = vadd.f32 %v8306, %v8307
        %v8309 = vrot.slane %v8308, 2
        %v8310 = vadd.f32 %v8308, %v8309
        %v8311 = vrot.slane %v8310, 1
        %v8312 = vadd.f32 %v8310, %v8311
        %v8313 = vmul.f32 %v8312, 0.00390625
        %v8314 = vld [vmem:[%s5] sm:$0x3]
        %v8315 = vmul.f32 %v8313, %v8314
        %v8316 = vsel %vm450, %v8315, 0.0
        %8317 = vadd.xlane.f32.xlu0 %v8316
        %v8318 = vpop.xlane.xlu0 %8317
        %v8319 = vld [vmem:[%s6] sm:$0x3]
        %v8320 = vadd.f32 %v8318, %v8319
        %vm8321 = vcmp.gt.f32.partialorder %v8320, 0.0
        %v8322 = vstv %s349
        %v8323 = vmul.f32 %v8322, %v8320
        %v8324 = vsel %vm8321, %v8320, %v8323
        %v8325 = vld [vmem:[%s7] sm:$0x3]
        %8327 = vset.pattern.permute.xlu0 0
        %8328 = vperm.xlu0 %8327, %v8324
        %v8329 = vpop.permute.xlu0 %8328
        %v8331 = vmul.f32 %v8329, %v8325
        %v8332 = vsel %vm450, %v8331, 0.0
        %v8333 = vrot.slane %v8332, 4
        %v8334 = vadd.f32 %v8332, %v8333
        %v8335 = vrot.slane %v8334, 2
        %v8336 = vadd.f32 %v8334, %v8335
        %v8337 = vrot.slane %v8336, 1
        %v8338 = vadd.f32 %v8336, %v8337
        %v8339 = vld [vmem:[%s8] sm:$0x1]
        %v8340 = vadd.f32 %v8338, %v8339
        %v8341 = vxor.u32 %v8340, 2147483648
        %v8342 = vmul.f32 %v8341, 1.442695
        %v8343 = vpow.pop %v8342
        %v8344 = vadd.f32 %v8343, 1.0
        %v8345 = vrcp.pop %v8344
        %v8346 = vmul.f32 1.0, %v8345
        %v8347 = vlaneseq
        %v8348 = vshrl.u32 %v8347, 7
        %v8349 = vsub.s32 0, %v8348
        %v8350 = vrot.slane %v8346, %v8349
        %v8351 = vmul.f32 %v8200, %v8350
        %v8352 = vmul.f32 %v8201, %v8350
        %v8353 = vmul.f32 %v8202, %v8350
        %v8354 = vmul.f32 %v8203, %v8350
        %v8355 = vmul.f32 %v8204, %v8350
        %v8356 = vmul.f32 %v8205, %v8350
        %v8357 = vmul.f32 %v8206, %v8350
        %v8358 = vmul.f32 %v8207, %v8350
        %v8359 = vmul.f32 %v8208, %v8350
        %v8360 = vmul.f32 %v8209, %v8350
        %v8361 = vmul.f32 %v8210, %v8350
        %v8362 = vmul.f32 %v8211, %v8350
        %v8363 = vmul.f32 %v8212, %v8350
        %v8364 = vmul.f32 %v8213, %v8350
        %v8365 = vmul.f32 %v8214, %v8350
        %v8366 = vmul.f32 %v8215, %v8350
        %v8367 = vmul.f32 %v8216, %v8350
        %v8368 = vmul.f32 %v8217, %v8350
        %v8369 = vmul.f32 %v8218, %v8350
        %v8370 = vmul.f32 %v8219, %v8350
        %v8371 = vmul.f32 %v8220, %v8350
        %v8372 = vmul.f32 %v8221, %v8350
        %v8373 = vmul.f32 %v8222, %v8350
        %v8374 = vmul.f32 %v8223, %v8350
        %v8375 = vmul.f32 %v8224, %v8350
        %v8376 = vmul.f32 %v8225, %v8350
        %v8377 = vmul.f32 %v8226, %v8350
        %v8378 = vmul.f32 %v8227, %v8350
        %v8379 = vmul.f32 %v8228, %v8350
        %v8380 = vmul.f32 %v8229, %v8350
        %v8381 = vmul.f32 %v8230, %v8350
        %v8382 = vmul.f32 %v8231, %v8350
        %v8383 = vmul.f32 %v8232, %v8350
        %v8384 = vmul.f32 %v8233, %v8350
        %v8385 = vmul.f32 %v8234, %v8350
        %v8386 = vmul.f32 %v8235, %v8350
        %v8387 = vld [vmem:[%s341] sm:$0xff]
        %v8388 = vld [vmem:[%s341 + $0x8] sm:$0xff]
        %v8389 = vadd.f32 %v8351, %v8387
        %v8390 = vadd.f32 %v8352, %v8388
        %8391 = vst.msk [vmem:[%s346] sm:$0xff] %vm1016, %v8389
        %8392 = vst.msk [vmem:[%s346 + $0x8] sm:$0xff] %vm1016, %v8390
        %v8393 = vld [vmem:[%s341 + $0x10] sm:$0xff]
        %v8394 = vld [vmem:[%s341 + $0x18] sm:$0xff]
        %vm8397 = vcmask 1041408
        %v8398 = vrot.slane %v8393, 6
        %v8399 = vrot.slane %v8394, 6
        %v8400 = vsel %vm8397, %v8398, %v8399
        %v8404 = vadd.f32 %v8353, %v8398
        %v8405 = vadd.f32 %v8354, %v8400
        %v8406 = vadd.f32 %v8355, %v8399
        %vm8407 = vcmask 261122
        %8408 = vst.msk [vmem:[%s346 + $0xe] sm:$0xfc] %vm8407, %v8404
        %8409 = vst.msk [vmem:[%s346 + $0x16] sm:$0xff] %vm1016, %v8405
        %8410 = vst.msk [vmem:[%s346 + $0x1e] sm:$0x3] %vm450, %v8406
        %v8411 = vld [vmem:[%s341 + $0x20] sm:$0xff]
        %v8412 = vld [vmem:[%s341 + $0x28] sm:$0xff]
        %vm8415 = vcmask 1043456
        %v8416 = vrot.slane %v8411, 4
        %v8417 = vrot.slane %v8412, 4
        %v8418 = vsel %vm8415, %v8416, %v8417
        %v8422 = vadd.f32 %v8355, %v8416
        %v8423 = vadd.f32 %v8356, %v8418
        %v8424 = vadd.f32 %v8357, %v8417
        %vm8425 = vcmask 261124
        %8426 = vst.msk [vmem:[%s346 + $0x1c] sm:$0xf0] %vm8425, %v8422
        %8427 = vst.msk [vmem:[%s346 + $0x24] sm:$0xff] %vm1016, %v8423
        %8428 = vst.msk [vmem:[%s346 + $0x2c] sm:$0xf] %vm386, %v8424
        %v8429 = vld [vmem:[%s341 + $0x30] sm:$0xff]
        %v8430 = vld [vmem:[%s341 + $0x38] sm:$0xff]
        %vm8433 = vcmask 1045504
        %v8434 = vrot.slane %v8429, 2
        %v8435 = vrot.slane %v8430, 2
        %v8436 = vsel %vm8433, %v8434, %v8435
        %v8440 = vadd.f32 %v8357, %v8434
        %v8441 = vadd.f32 %v8358, %v8436
        %v8442 = vadd.f32 %v8359, %v8435
        %vm8443 = vcmask 261126
        %8444 = vst.msk [vmem:[%s346 + $0x2a] sm:$0xc0] %vm8443, %v8440
        %8445 = vst.msk [vmem:[%s346 + $0x32] sm:$0xff] %vm1016, %v8441
        %vm8446 = vcmask 259072
        %8447 = vst.msk [vmem:[%s346 + $0x3a] sm:$0x3f] %vm8446, %v8442
        %v8448 = vld [vmem:[%s341 + $0x40] sm:$0xff]
        %v8449 = vld [vmem:[%s341 + $0x48] sm:$0xff]
        %v8450 = vadd.f32 %v8360, %v8448
        %v8451 = vadd.f32 %v8361, %v8449
        %8452 = vst.msk [vmem:[%s346 + $0x40] sm:$0xff] %vm1016, %v8450
        %8453 = vst.msk [vmem:[%s346 + $0x48] sm:$0xff] %vm1016, %v8451
        %v8454 = vld [vmem:[%s341 + $0x50] sm:$0xff]
        %v8455 = vld [vmem:[%s341 + $0x58] sm:$0xff]
        %v8458 = vrot.slane %v8454, 6
        %v8459 = vrot.slane %v8455, 6
        %v8460 = vsel %vm8397, %v8458, %v8459
        %v8464 = vadd.f32 %v8362, %v8458
        %v8465 = vadd.f32 %v8363, %v8460
        %v8466 = vadd.f32 %v8364, %v8459
        %8467 = vst.msk [vmem:[%s346 + $0x4e] sm:$0xfc] %vm8407, %v8464
        %8468 = vst.msk [vmem:[%s346 + $0x56] sm:$0xff] %vm1016, %v8465
        %8469 = vst.msk [vmem:[%s346 + $0x5e] sm:$0x3] %vm450, %v8466
        %v8470 = vld [vmem:[%s341 + $0x60] sm:$0xff]
        %v8471 = vld [vmem:[%s341 + $0x68] sm:$0xff]
        %v8474 = vrot.slane %v8470, 4
        %v8475 = vrot.slane %v8471, 4
        %v8476 = vsel %vm8415, %v8474, %v8475
        %v8480 = vadd.f32 %v8364, %v8474
        %v8481 = vadd.f32 %v8365, %v8476
        %v8482 = vadd.f32 %v8366, %v8475
        %8483 = vst.msk [vmem:[%s346 + $0x5c] sm:$0xf0] %vm8425, %v8480
        %8484 = vst.msk [vmem:[%s346 + $0x64] sm:$0xff] %vm1016, %v8481
        %8485 = vst.msk [vmem:[%s346 + $0x6c] sm:$0xf] %vm386, %v8482
        %v8486 = vld [vmem:[%s341 + $0x70] sm:$0xff]
        %v8487 = vld [vmem:[%s341 + $0x78] sm:$0xff]
        %v8490 = vrot.slane %v8486, 2
        %v8491 = vrot.slane %v8487, 2
        %v8492 = vsel %vm8433, %v8490, %v8491
        %v8496 = vadd.f32 %v8366, %v8490
        %v8497 = vadd.f32 %v8367, %v8492
        %v8498 = vadd.f32 %v8368, %v8491
        %8499 = vst.msk [vmem:[%s346 + $0x6a] sm:$0xc0] %vm8443, %v8496
        %8500 = vst.msk [vmem:[%s346 + $0x72] sm:$0xff] %vm1016, %v8497
        %8501 = vst.msk [vmem:[%s346 + $0x7a] sm:$0x3f] %vm8446, %v8498
        %v8502 = vld [vmem:[%s341 + $0x80] sm:$0xff]
        %v8503 = vld [vmem:[%s341 + $0x88] sm:$0xff]
        %v8504 = vadd.f32 %v8369, %v8502
        %v8505 = vadd.f32 %v8370, %v8503
        %8506 = vst.msk [vmem:[%s346 + $0x80] sm:$0xff] %vm1016, %v8504
        %8507 = vst.msk [vmem:[%s346 + $0x88] sm:$0xff] %vm1016, %v8505
        %v8508 = vld [vmem:[%s341 + $0x90] sm:$0xff]
        %v8509 = vld [vmem:[%s341 + $0x98] sm:$0xff]
        %v8512 = vrot.slane %v8508, 6
        %v8513 = vrot.slane %v8509, 6
        %v8514 = vsel %vm8397, %v8512, %v8513
        %v8518 = vadd.f32 %v8371, %v8512
        %v8519 = vadd.f32 %v8372, %v8514
        %v8520 = vadd.f32 %v8373, %v8513
        %8521 = vst.msk [vmem:[%s346 + $0x8e] sm:$0xfc] %vm8407, %v8518
        %8522 = vst.msk [vmem:[%s346 + $0x96] sm:$0xff] %vm1016, %v8519
        %8523 = vst.msk [vmem:[%s346 + $0x9e] sm:$0x3] %vm450, %v8520
        %v8524 = vld [vmem:[%s341 + $0xa0] sm:$0xff]
        %v8525 = vld [vmem:[%s341 + $0xa8] sm:$0xff]
        %v8528 = vrot.slane %v8524, 4
        %v8529 = vrot.slane %v8525, 4
        %v8530 = vsel %vm8415, %v8528, %v8529
        %v8534 = vadd.f32 %v8373, %v8528
        %v8535 = vadd.f32 %v8374, %v8530
        %v8536 = vadd.f32 %v8375, %v8529
        %8537 = vst.msk [vmem:[%s346 + $0x9c] sm:$0xf0] %vm8425, %v8534
        %8538 = vst.msk [vmem:[%s346 + $0xa4] sm:$0xff] %vm1016, %v8535
        %8539 = vst.msk [vmem:[%s346 + $0xac] sm:$0xf] %vm386, %v8536
        %v8540 = vld [vmem:[%s341 + $0xb0] sm:$0xff]
        %v8541 = vld [vmem:[%s341 + $0xb8] sm:$0xff]
        %v8544 = vrot.slane %v8540, 2
        %v8545 = vrot.slane %v8541, 2
        %v8546 = vsel %vm8433, %v8544, %v8545
        %v8550 = vadd.f32 %v8375, %v8544
        %v8551 = vadd.f32 %v8376, %v8546
        %v8552 = vadd.f32 %v8377, %v8545
        %8553 = vst.msk [vmem:[%s346 + $0xaa] sm:$0xc0] %vm8443, %v8550
        %8554 = vst.msk [vmem:[%s346 + $0xb2] sm:$0xff] %vm1016, %v8551
        %8555 = vst.msk [vmem:[%s346 + $0xba] sm:$0x3f] %vm8446, %v8552
        %v8556 = vld [vmem:[%s341 + $0xc0] sm:$0xff]
        %v8557 = vld [vmem:[%s341 + $0xc8] sm:$0xff]
        %v8558 = vadd.f32 %v8378, %v8556
        %v8559 = vadd.f32 %v8379, %v8557
        %8560 = vst.msk [vmem:[%s346 + $0xc0] sm:$0xff] %vm1016, %v8558
        %8561 = vst.msk [vmem:[%s346 + $0xc8] sm:$0xff] %vm1016, %v8559
        %v8562 = vld [vmem:[%s341 + $0xd0] sm:$0xff]
        %v8563 = vld [vmem:[%s341 + $0xd8] sm:$0xff]
        %v8566 = vrot.slane %v8562, 6
        %v8567 = vrot.slane %v8563, 6
        %v8568 = vsel %vm8397, %v8566, %v8567
        %v8572 = vadd.f32 %v8380, %v8566
        %v8573 = vadd.f32 %v8381, %v8568
        %v8574 = vadd.f32 %v8382, %v8567
        %8575 = vst.msk [vmem:[%s346 + $0xce] sm:$0xfc] %vm8407, %v8572
        %8576 = vst.msk [vmem:[%s346 + $0xd6] sm:$0xff] %vm1016, %v8573
        %8577 = vst.msk [vmem:[%s346 + $0xde] sm:$0x3] %vm450, %v8574
        %v8578 = vld [vmem:[%s341 + $0xe0] sm:$0xff]
        %v8579 = vld [vmem:[%s341 + $0xe8] sm:$0xff]
        %v8582 = vrot.slane %v8578, 4
        %v8583 = vrot.slane %v8579, 4
        %v8584 = vsel %vm8415, %v8582, %v8583
        %v8588 = vadd.f32 %v8382, %v8582
        %v8589 = vadd.f32 %v8383, %v8584
        %v8590 = vadd.f32 %v8384, %v8583
        %8591 = vst.msk [vmem:[%s346 + $0xdc] sm:$0xf0] %vm8425, %v8588
        %8592 = vst.msk [vmem:[%s346 + $0xe4] sm:$0xff] %vm1016, %v8589
        %8593 = vst.msk [vmem:[%s346 + $0xec] sm:$0xf] %vm386, %v8590
        %v8594 = vld [vmem:[%s341 + $0xf0] sm:$0xff]
        %v8595 = vld [vmem:[%s341 + $0xf8] sm:$0xff]
        %v8598 = vrot.slane %v8594, 2
        %v8599 = vrot.slane %v8595, 2
        %v8600 = vsel %vm8433, %v8598, %v8599
        %v8604 = vadd.f32 %v8384, %v8598
        %v8605 = vadd.f32 %v8385, %v8600
        %v8606 = vadd.f32 %v8386, %v8599
        %8607 = vst.msk [vmem:[%s346 + $0xea] sm:$0xc0] %vm8443, %v8604
        %8608 = vst.msk [vmem:[%s346 + $0xf2] sm:$0xff] %vm1016, %v8605
        %8609 = vst.msk [vmem:[%s346 + $0xfa] sm:$0x3f] %vm8446, %v8606
        %p8610 = scmp.lt.s32.totalorder %s21, 1
        %s8611 = scalar_select %p8610, %s21, 1
        %s8612 = smul.addr %s8611, 32
        %s8613 = smul.addr %s8612, 8
        %s8614 = scalar_lea.vmem %s9, %s8613
        // Predicated region
        $region61: #{tpu_custom_call.1} parent=55 // pred_check
          %p8615 = pneg %p233
        $region62: #{tpu_custom_call.1} parent=55 // pred_check_branch
          %8617 = sbr.rel (%p8615) target = $region64
        $region63: #{tpu_custom_call.1} parent=55 // pred_region
          _
        $region64: #{tpu_custom_call.1} parent=55 // pred_fallthru
          _
      $region56: #{tpu_custom_call.1} parent=5 // pred_fallthru
        _
      %p8618 = scmp.le.s32.totalorder 2, %s16
      // Predicated region
      $region65: #{tpu_custom_call.1} parent=5 // pred_check
        %p8619 = pneg %p8618
      $region66: #{tpu_custom_call.1} parent=5 // pred_check_branch
        %8621 = sbr.rel (%p8619) target = $region68
      $region67: #{tpu_custom_call.1} parent=5 // pred_region
        %s8622 = ssub.s32 %s16, 2
        // Predicated region
        $region69: #{tpu_custom_call.1} parent=67 // pred_check
          %p8623 = pneg %p239
        $region70: #{tpu_custom_call.1} parent=67 // pred_check_branch
          %8625 = sbr.rel (%p8623) target = $region72
        $region71: #{tpu_custom_call.1} parent=67 // pred_region
          %p8626 = scmp.lt.s32.totalorder %s22, 1
          %s8627 = scalar_select %p8626, %s22, 1
          %s8628 = smul.addr %s8627, 32
          %s8629 = smul.addr %s8628, 8
          %s8630 = scalar_lea.vmem %s9, %s8629
        $region72: #{tpu_custom_call.1} parent=67 // pred_fallthru
          _
      $region68: #{tpu_custom_call.1} parent=5 // pred_fallthru
        _
    $region6: #{tpu_custom_call.1} parent=1 // loop_footer
      %s20 = sadd.s32 1, %s16
    $region7: #{tpu_custom_call.1} parent=1 // loop_footer_branch
      %15 = sbr.rel target = $region3
    $region8: #{tpu_custom_call.1} parent=1 // loop_exit
      _
    %8631 = vsyncpa [#allocation6], 1
    %s8632 = scalar_lea.sflag [#allocation6], 1
    %8633 = vsyncpa %s8632, 1

</llo_original>
